<compile_context>
chip_gen: v6e
topology: v6e:2x2x1
jax: 0.10.0
libtpu: 0.0.40
codegen_flags: <defaults>
</compile_context>

<pallas_src>
import jax
import jax.numpy as jnp
from jax.experimental import pallas as pl
from jax.experimental.pallas import tpu as pltpu

_BN_EPS = 1e-5
_VMEM_LIMIT = 32 * 1024 * 1024   # explicit, safe on v5e/v6e/v7x (usage << limit)


def _vmem_spec():
    return pl.BlockSpec(memory_space=pltpu.MemorySpace.VMEM)


# ---------------------------------------------------------------------------
# Kernels
# ---------------------------------------------------------------------------
def conv_bn_relu_kernel(p_ref, w_ref, gb_ref, o_ref):
    """One conv layer as a lane-dense GEMM with fused BatchNorm(train)+ReLU.

    p : (K, M)  bf16 im2col patches, K = 9*Cin, M = N*Ho*Wo (lane dim).
    w : (32, K) bf16 conv weights.
    gb: (32, 2) f32 -- column 0 = gamma, column 1 = beta.
    o : (32, M) bf16 activations (lane-dense, unmasked stores).
    """
    y = jnp.dot(w_ref[...], p_ref[...], preferred_element_type=jnp.float32)
    inv_m = 1.0 / y.shape[-1]
    mean = jnp.sum(y, axis=-1, keepdims=True) * inv_m
    yc = y - mean                                       # centered -> stable variance
    var = jnp.sum(yc * yc, axis=-1, keepdims=True) * inv_m
    scale = gb_ref[:, 0:1] * jax.lax.rsqrt(var + _BN_EPS)
    o_ref[...] = jnp.maximum(yc * scale + gb_ref[:, 1:2], 0.0).astype(o_ref.dtype)


def lstm_heads_kernel(x_ref, h_ref, c_ref, wih_ref, whh_ref, b_ref,
                      whd_ref, bhd_ref, ho_ref, co_ref, heads_ref, gates_ref):
    """Fused LSTMCell + concatenated critic/actor heads.

    4-step grid over the 1024 gate columns (256 per gate, PyTorch order
    i,f,g,o): step j computes that gate's pre-activation block into
    gates_ref[j] while the next gate's weight block DMA is in flight; the
    last step applies the cell update and the (256, 1+A) heads matmul.
    """
    j = pl.program_id(0)
    xb = x_ref[...]                                   # (N, 1152) bf16
    hb = h_ref[...].astype(jnp.bfloat16)              # (N, 256)
    gates_ref[j] = (jnp.dot(xb, wih_ref[...], preferred_element_type=jnp.float32)
                    + jnp.dot(hb, whh_ref[...], preferred_element_type=jnp.float32)
                    + b_ref[...])

    @pl.when(j == pl.num_programs(0) - 1)
    def _():
        i = jax.nn.sigmoid(gates_ref[0])
        f = jax.nn.sigmoid(gates_ref[1])
        g = jnp.tanh(gates_ref[2])
        o = jax.nn.sigmoid(gates_ref[3])
        c_new = f * c_ref[...] + i * g
        h_new = o * jnp.tanh(c_new)
        co_ref[...] = c_new
        ho_ref[...] = h_new
        heads_ref[...] = (jnp.dot(h_new, whd_ref[...],
                                  preferred_element_type=jnp.float32) + bhd_ref[...])


# ---------------------------------------------------------------------------
# Pallas wrappers
# ---------------------------------------------------------------------------
def conv_bn_relu(patches, w_mat, gb):
    K, M = patches.shape
    Co = w_mat.shape[0]
    vs = _vmem_spec()
    return pl.pallas_call(
        conv_bn_relu_kernel,
        out_shape=jax.ShapeDtypeStruct((Co, M), jnp.bfloat16),
        in_specs=[vs, vs, vs],
        out_specs=vs,
        compiler_params=pltpu.CompilerParams(vmem_limit_bytes=_VMEM_LIMIT),
    )(patches, w_mat, gb)


def lstm_heads(feat, hx, cx, w_ih_t, w_hh_t, bias, w_heads, b_heads):
    N, Hd = hx.shape
    Din = feat.shape[1]
    O = w_heads.shape[1]
    n_gates = 4
    return pl.pallas_call(
        lstm_heads_kernel,
        out_shape=(jax.ShapeDtypeStruct((N, Hd), jnp.float32),
                   jax.ShapeDtypeStruct((N, Hd), jnp.float32),
                   jax.ShapeDtypeStruct((N, O), jnp.float32)),
        grid=(n_gates,),
        in_specs=[
            pl.BlockSpec((N, Din), lambda j: (0, 0)),      # feat   (resident)
            pl.BlockSpec((N, Hd), lambda j: (0, 0)),       # hx     (resident)
            pl.BlockSpec((N, Hd), lambda j: (0, 0)),       # cx     (resident)
            pl.BlockSpec((Din, Hd), lambda j: (0, j)),     # w_ih^T gate block
            pl.BlockSpec((Hd, Hd), lambda j: (0, j)),      # w_hh^T gate block
            pl.BlockSpec((1, Hd), lambda j: (0, j)),       # bias   gate block
            pl.BlockSpec((Hd, O), lambda j: (0, 0)),       # heads weight
            pl.BlockSpec((1, O), lambda j: (0, 0)),        # heads bias
        ],
        out_specs=(pl.BlockSpec((N, Hd), lambda j: (0, 0)),
                   pl.BlockSpec((N, Hd), lambda j: (0, 0)),
                   pl.BlockSpec((N, O), lambda j: (0, 0))),
        scratch_shapes=[pltpu.VMEM((n_gates, N, Hd), jnp.float32)],
        compiler_params=pltpu.CompilerParams(
            dimension_semantics=("arbitrary",),
            vmem_limit_bytes=_VMEM_LIMIT),
    )(feat, hx, cx, w_ih_t, w_hh_t, bias, w_heads, b_heads)


# ---------------------------------------------------------------------------
# JAX glue (bf16 im2col, parameter re-layout)
# ---------------------------------------------------------------------------
def im2col_cmajor(a):
    """Channel-major im2col for 3x3 conv, stride 2, padding 1 (bf16 in/out).

    a: (C, N, H, W) -> patches (9*C, N*Ho*Wo), row order (kh, kw, c).
    """
    C, N, H, W = a.shape
    Ho = (H - 1) // 2 + 1
    Wo = (W - 1) // 2 + 1
    ap = jnp.pad(a, ((0, 0), (0, 0), (1, 1), (1, 1)))
    cols = [ap[:, :, kh:kh + 2 * Ho - 1:2, kw:kw + 2 * Wo - 1:2]
            for kh in range(3) for kw in range(3)]
    p = jnp.stack(cols, axis=0).reshape(9 * C, N * Ho * Wo)
    return p, (N, Ho, Wo)


def conv_w_to_mat(w_oihw):
    """torch conv weight (Co, Ci, 3, 3) -> (Co, 9*Ci), column order (kh, kw, ci)."""
    co, ci = w_oihw.shape[0], w_oihw.shape[1]
    return jnp.transpose(w_oihw, (0, 2, 3, 1)).reshape(co, 9 * ci)


def prepare_params(p):
    """One-time transform of torch-layout params into kernel-ready layouts."""
    kp = {}
    for i in range(1, 5):
        kp[f"conv{i}_w"] = conv_w_to_mat(p[f"conv{i}_w"]).astype(jnp.bfloat16)  # (32, 9*Ci)
        kp[f"bn{i}_gb"] = jnp.stack(                                            # (32, 2)
            [p[f"bn{i}_g"], p[f"bn{i}_b"]], axis=1).astype(jnp.float32)
    kp["lstm_wih_t"] = p["lstm_wih"].T.astype(jnp.bfloat16)        # (1152, 1024)
    kp["lstm_whh_t"] = p["lstm_whh"].T.astype(jnp.bfloat16)        # (256, 1024)
    kp["lstm_b"] = (p["lstm_bih"] + p["lstm_bhh"]).reshape(1, -1).astype(jnp.float32)
    # fused heads: column 0 = critic value, columns 1.. = actor logits
    kp["heads_w"] = jnp.concatenate(
        [p["critic_w"], p["actor_w"]], axis=0).T.astype(jnp.float32)            # (256, 1+A)
    kp["heads_b"] = jnp.concatenate(
        [p["critic_b"], p["actor_b"]]).reshape(1, -1).astype(jnp.float32)       # (1, 1+A)
    return kp


def init_params(key, num_inputs, action_space, hidden=256, lstm_in=1152):
    keys = jax.random.split(key, 12)

    def nrm(k, shape, scale=0.1):
        return scale * jax.random.normal(k, shape, dtype=jnp.float32)

    p = {}
    in_c = num_inputs
    for i in range(4):
        # NOTE: conv bias omitted on purpose -- a per-channel constant added
        # before BatchNorm's batch-mean subtraction cancels exactly.
        p[f"conv{i + 1}_w"] = nrm(keys[i], (32, in_c, 3, 3))
        p[f"bn{i + 1}_g"] = jnp.ones((32,), jnp.float32)   # BatchNorm default init
        p[f"bn{i + 1}_b"] = jnp.zeros((32,), jnp.float32)
        in_c = 32
    p["lstm_wih"] = nrm(keys[4], (4 * hidden, lstm_in), 0.05)
    p["lstm_whh"] = nrm(keys[5], (4 * hidden, hidden), 0.05)
    p["lstm_bih"] = nrm(keys[6], (4 * hidden,), 0.01)
    p["lstm_bhh"] = nrm(keys[7], (4 * hidden,), 0.01)
    p["critic_w"] = nrm(keys[8], (1, hidden))
    p["critic_b"] = nrm(keys[9], (1,), 0.01)
    p["actor_w"] = nrm(keys[10], (action_space, hidden))
    p["actor_b"] = nrm(keys[11], (action_space,), 0.01)
    return p


@jax.jit
def policy_forward(kp, x_nchw, hx, cx):
    # Channel-major bf16 activations (C, N, H, W): every conv GEMM output is
    # lane-dense, all inter-kernel HBM traffic is bf16, and the final NCHW
    # flatten is a tiny (32, 2, 6, 6) transpose.
    a = jnp.transpose(x_nchw, (1, 0, 2, 3)).astype(jnp.bfloat16)
    for i in range(1, 5):
        patches, (N, Ho, Wo) = im2col_cmajor(a)
        y = conv_bn_relu(patches, kp[f"conv{i}_w"], kp[f"bn{i}_gb"])
        a = y.reshape(32, N, Ho, Wo)

    C, N = a.shape[0], a.shape[1]
    # torch: x.view(N, -1) on an NCHW tensor == channel-major flatten
    feat = jnp.transpose(a.reshape(C, N, -1), (1, 0, 2)).reshape(N, -1)   # (N, 1152) bf16

    hx_new, cx_new, head_out = lstm_heads(
        feat, hx, cx, kp["lstm_wih_t"], kp["lstm_whh_t"], kp["lstm_b"],
        kp["heads_w"], kp["heads_b"])
    state_value = head_out[:, :1]
    action_score = head_out[:, 1:]
    return state_value, action_score, (hx_new, cx_new)


if __name__ == "__main__":
    num_inputs, action_space = 3, 6
    batch, H, W = 2, 96, 96     # 96 -> 48 -> 24 -> 12 -> 6 ; 32*6*6 = 1152 (LSTM input)
    hidden = 256

    key = jax.random.PRNGKey(0)
    k_p, k_x, k_h, k_c = jax.random.split(key, 4)
    raw_params = init_params(k_p, num_inputs, action_space, hidden=hidden)
    kparams = prepare_params(raw_params)   # one-time weight re-layout (bf16, transposed, fused heads)

    x = jax.random.normal(k_x, (batch, num_inputs, H, W), dtype=jnp.float32)
    hx = 0.1 * jax.random.normal(k_h, (batch, hidden), dtype=jnp.float32)
    cx = 0.1 * jax.random.normal(k_c, (batch, hidden), dtype=jnp.float32)

    state_value, action_score, (hx_new, cx_new) = policy_forward(kparams, x, hx, cx)
    jax.block_until_ready((state_value, action_score, hx_new, cx_new))

    assert state_value.shape == (batch, 1)
    assert action_score.shape == (batch, action_space)
    assert hx_new.shape == (batch, hidden) and cx_new.shape == (batch, hidden)
    assert bool(jnp.all(jnp.isfinite(state_value)))
    assert bool(jnp.all(jnp.isfinite(action_score)))
    assert bool(jnp.all(jnp.isfinite(hx_new))) and bool(jnp.all(jnp.isfinite(cx_new)))
    print("KERNEL_OK")
</pallas_src>

<mosaic_0001>
module attributes {stable_mosaic.version = 11 : i64} {
  func.func @conv_bn_relu_kernel(%arg0: memref<27x4608xbf16, #tpu.memory_space<vmem>>, %arg1: memref<32x27xbf16, #tpu.memory_space<vmem>>, %arg2: memref<32x2xf32, #tpu.memory_space<vmem>>, %arg3: memref<32x4608xbf16, #tpu.memory_space<vmem>>) attributes {dimension_semantics = [], scalar_prefetch = 0 : i64, scratch_operands = 0 : i64, tpu.core_type = #tpu.core_type<tc>} {
    %c0 = arith.constant 0 : index
    %c0_0 = arith.constant 0 : index
    %0 = vector.load %arg1[%c0, %c0_0] : memref<32x27xbf16, #tpu.memory_space<vmem>>, vector<32x27xbf16>
    %c0_1 = arith.constant 0 : index
    %c0_2 = arith.constant 0 : index
    %1 = vector.load %arg0[%c0_1, %c0_2] : memref<27x4608xbf16, #tpu.memory_space<vmem>>, vector<27x4608xbf16>
    %cst = arith.constant dense<0.000000e+00> : vector<32x4608xf32>
    %2 = tpu.matmul %0, %1, %cst {dimension_numbers = #tpu.dot_dimension_numbers<[1], [0], [0], [1], [0, 0, 1, 1], [], []>} : vector<32x27xbf16>, vector<27x4608xbf16>, vector<32x4608xf32> -> vector<32x4608xf32>
    %cst_3 = arith.constant dense<0.000000e+00> : vector<32xf32>
    %3 = vector.multi_reduction <add>, %2, %cst_3 [1] : vector<32x4608xf32> to vector<32xf32>
    %4 = vector.shape_cast %3 : vector<32xf32> to vector<32x1xf32>
    %cst_4 = arith.constant 2.17013891E-4 : f32
    %5 = vector.broadcast %cst_4 : f32 to vector<32x1xf32>
    %6 = arith.mulf %4, %5 : vector<32x1xf32>
    %7 = vector.broadcast %6 : vector<32x1xf32> to vector<32x4608xf32>
    %8 = arith.subf %2, %7 : vector<32x4608xf32>
    %9 = arith.mulf %8, %8 : vector<32x4608xf32>
    %cst_5 = arith.constant dense<0.000000e+00> : vector<32xf32>
    %10 = vector.multi_reduction <add>, %9, %cst_5 [1] : vector<32x4608xf32> to vector<32xf32>
    %11 = vector.shape_cast %10 : vector<32xf32> to vector<32x1xf32>
    %cst_6 = arith.constant 2.17013891E-4 : f32
    %12 = vector.broadcast %cst_6 : f32 to vector<32x1xf32>
    %13 = arith.mulf %11, %12 : vector<32x1xf32>
    %c0_7 = arith.constant 0 : index
    %c0_8 = arith.constant 0 : index
    %14 = vector.load %arg2[%c0_7, %c0_8] : memref<32x2xf32, #tpu.memory_space<vmem>>, vector<32x1xf32>
    %cst_9 = arith.constant 9.99999974E-6 : f32
    %15 = vector.broadcast %cst_9 : f32 to vector<32x1xf32>
    %16 = arith.addf %13, %15 : vector<32x1xf32>
    %17 = math.rsqrt %16 : vector<32x1xf32>
    %18 = arith.mulf %14, %17 : vector<32x1xf32>
    %19 = vector.broadcast %18 : vector<32x1xf32> to vector<32x4608xf32>
    %20 = arith.mulf %8, %19 : vector<32x4608xf32>
    %c0_10 = arith.constant 0 : index
    %c1 = arith.constant 1 : index
    %21 = vector.load %arg2[%c0_10, %c1] : memref<32x2xf32, #tpu.memory_space<vmem>>, vector<32x1xf32>
    %22 = vector.broadcast %21 : vector<32x1xf32> to vector<32x4608xf32>
    %23 = arith.addf %20, %22 : vector<32x4608xf32>
    %cst_11 = arith.constant 0.000000e+00 : f32
    %24 = vector.broadcast %cst_11 : f32 to vector<32x4608xf32>
    %25 = arith.maximumf %23, %24 : vector<32x4608xf32>
    %26 = arith.truncf %25 : vector<32x4608xf32> to vector<32x4608xbf16>
    %c0_12 = arith.constant 0 : index
    %c0_13 = arith.constant 0 : index
    %27 = vector.load %arg3[%c0_12, %c0_13] : memref<32x4608xbf16, #tpu.memory_space<vmem>>, vector<32x4608xbf16>
    tpu.vector_store %arg3[%c0_12, %c0_13], %26 {strides = array<i32>} : memref<32x4608xbf16, #tpu.memory_space<vmem>>, vector<32x4608xbf16>,
    return
  }
}

module attributes {stable_mosaic.version = 11 : i64} {
  func.func @conv_bn_relu_kernel(%arg0: memref<288x1152xbf16, #tpu.memory_space<vmem>>, %arg1: memref<32x288xbf16, #tpu.memory_space<vmem>>, %arg2: memref<32x2xf32, #tpu.memory_space<vmem>>, %arg3: memref<32x1152xbf16, #tpu.memory_space<vmem>>) attributes {dimension_semantics = [], scalar_prefetch = 0 : i64, scratch_operands = 0 : i64, tpu.core_type = #tpu.core_type<tc>} {
    %c0 = arith.constant 0 : index
    %c0_0 = arith.constant 0 : index
    %0 = vector.load %arg1[%c0, %c0_0] : memref<32x288xbf16, #tpu.memory_space<vmem>>, vector<32x288xbf16>
    %c0_1 = arith.constant 0 : index
    %c0_2 = arith.constant 0 : index
    %1 = vector.load %arg0[%c0_1, %c0_2] : memref<288x1152xbf16, #tpu.memory_space<vmem>>, vector<288x1152xbf16>
    %cst = arith.constant dense<0.000000e+00> : vector<32x1152xf32>
    %2 = tpu.matmul %0, %1, %cst {dimension_numbers = #tpu.dot_dimension_numbers<[1], [0], [0], [1], [0, 0, 1, 1], [], []>} : vector<32x288xbf16>, vector<288x1152xbf16>, vector<32x1152xf32> -> vector<32x1152xf32>
    %cst_3 = arith.constant dense<0.000000e+00> : vector<32xf32>
    %3 = vector.multi_reduction <add>, %2, %cst_3 [1] : vector<32x1152xf32> to vector<32xf32>
    %4 = vector.shape_cast %3 : vector<32xf32> to vector<32x1xf32>
    %cst_4 = arith.constant 8.68055562E-4 : f32
    %5 = vector.broadcast %cst_4 : f32 to vector<32x1xf32>
    %6 = arith.mulf %4, %5 : vector<32x1xf32>
    %7 = vector.broadcast %6 : vector<32x1xf32> to vector<32x1152xf32>
    %8 = arith.subf %2, %7 : vector<32x1152xf32>
    %9 = arith.mulf %8, %8 : vector<32x1152xf32>
    %cst_5 = arith.constant dense<0.000000e+00> : vector<32xf32>
    %10 = vector.multi_reduction <add>, %9, %cst_5 [1] : vector<32x1152xf32> to vector<32xf32>
    %11 = vector.shape_cast %10 : vector<32xf32> to vector<32x1xf32>
    %cst_6 = arith.constant 8.68055562E-4 : f32
    %12 = vector.broadcast %cst_6 : f32 to vector<32x1xf32>
    %13 = arith.mulf %11, %12 : vector<32x1xf32>
    %c0_7 = arith.constant 0 : index
    %c0_8 = arith.constant 0 : index
    %14 = vector.load %arg2[%c0_7, %c0_8] : memref<32x2xf32, #tpu.memory_space<vmem>>, vector<32x1xf32>
    %cst_9 = arith.constant 9.99999974E-6 : f32
    %15 = vector.broadcast %cst_9 : f32 to vector<32x1xf32>
    %16 = arith.addf %13, %15 : vector<32x1xf32>
    %17 = math.rsqrt %16 : vector<32x1xf32>
    %18 = arith.mulf %14, %17 : vector<32x1xf32>
    %19 = vector.broadcast %18 : vector<32x1xf32> to vector<32x1152xf32>
    %20 = arith.mulf %8, %19 : vector<32x1152xf32>
    %c0_10 = arith.constant 0 : index
    %c1 = arith.constant 1 : index
    %21 = vector.load %arg2[%c0_10, %c1] : memref<32x2xf32, #tpu.memory_space<vmem>>, vector<32x1xf32>
    %22 = vector.broadcast %21 : vector<32x1xf32> to vector<32x1152xf32>
    %23 = arith.addf %20, %22 : vector<32x1152xf32>
    %cst_11 = arith.constant 0.000000e+00 : f32
    %24 = vector.broadcast %cst_11 : f32 to vector<32x1152xf32>
    %25 = arith.maximumf %23, %24 : vector<32x1152xf32>
    %26 = arith.truncf %25 : vector<32x1152xf32> to vector<32x1152xbf16>
    %c0_12 = arith.constant 0 : index
    %c0_13 = arith.constant 0 : index
    %27 = vector.load %arg3[%c0_12, %c0_13] : memref<32x1152xbf16, #tpu.memory_space<vmem>>, vector<32x1152xbf16>
    tpu.vector_store %arg3[%c0_12, %c0_13], %26 {strides = array<i32>} : memref<32x1152xbf16, #tpu.memory_space<vmem>>, vector<32x1152xbf16>,
    return
  }
}

module attributes {stable_mosaic.version = 11 : i64} {
  func.func @conv_bn_relu_kernel(%arg0: memref<288x288xbf16, #tpu.memory_space<vmem>>, %arg1: memref<32x288xbf16, #tpu.memory_space<vmem>>, %arg2: memref<32x2xf32, #tpu.memory_space<vmem>>, %arg3: memref<32x288xbf16, #tpu.memory_space<vmem>>) attributes {dimension_semantics = [], scalar_prefetch = 0 : i64, scratch_operands = 0 : i64, tpu.core_type = #tpu.core_type<tc>} {
    %c0 = arith.constant 0 : index
    %c0_0 = arith.constant 0 : index
    %0 = vector.load %arg1[%c0, %c0_0] : memref<32x288xbf16, #tpu.memory_space<vmem>>, vector<32x288xbf16>
    %c0_1 = arith.constant 0 : index
    %c0_2 = arith.constant 0 : index
    %1 = vector.load %arg0[%c0_1, %c0_2] : memref<288x288xbf16, #tpu.memory_space<vmem>>, vector<288x288xbf16>
    %cst = arith.constant dense<0.000000e+00> : vector<32x288xf32>
    %2 = tpu.matmul %0, %1, %cst {dimension_numbers = #tpu.dot_dimension_numbers<[1], [0], [0], [1], [0, 0, 1, 1], [], []>} : vector<32x288xbf16>, vector<288x288xbf16>, vector<32x288xf32> -> vector<32x288xf32>
    %cst_3 = arith.constant dense<0.000000e+00> : vector<32xf32>
    %3 = vector.multi_reduction <add>, %2, %cst_3 [1] : vector<32x288xf32> to vector<32xf32>
    %4 = vector.shape_cast %3 : vector<32xf32> to vector<32x1xf32>
    %cst_4 = arith.constant 0.00347222225 : f32
    %5 = vector.broadcast %cst_4 : f32 to vector<32x1xf32>
    %6 = arith.mulf %4, %5 : vector<32x1xf32>
    %7 = vector.broadcast %6 : vector<32x1xf32> to vector<32x288xf32>
    %8 = arith.subf %2, %7 : vector<32x288xf32>
    %9 = arith.mulf %8, %8 : vector<32x288xf32>
    %cst_5 = arith.constant dense<0.000000e+00> : vector<32xf32>
    %10 = vector.multi_reduction <add>, %9, %cst_5 [1] : vector<32x288xf32> to vector<32xf32>
    %11 = vector.shape_cast %10 : vector<32xf32> to vector<32x1xf32>
    %cst_6 = arith.constant 0.00347222225 : f32
    %12 = vector.broadcast %cst_6 : f32 to vector<32x1xf32>
    %13 = arith.mulf %11, %12 : vector<32x1xf32>
    %c0_7 = arith.constant 0 : index
    %c0_8 = arith.constant 0 : index
    %14 = vector.load %arg2[%c0_7, %c0_8] : memref<32x2xf32, #tpu.memory_space<vmem>>, vector<32x1xf32>
    %cst_9 = arith.constant 9.99999974E-6 : f32
    %15 = vector.broadcast %cst_9 : f32 to vector<32x1xf32>
    %16 = arith.addf %13, %15 : vector<32x1xf32>
    %17 = math.rsqrt %16 : vector<32x1xf32>
    %18 = arith.mulf %14, %17 : vector<32x1xf32>
    %19 = vector.broadcast %18 : vector<32x1xf32> to vector<32x288xf32>
    %20 = arith.mulf %8, %19 : vector<32x288xf32>
    %c0_10 = arith.constant 0 : index
    %c1 = arith.constant 1 : index
    %21 = vector.load %arg2[%c0_10, %c1] : memref<32x2xf32, #tpu.memory_space<vmem>>, vector<32x1xf32>
    %22 = vector.broadcast %21 : vector<32x1xf32> to vector<32x288xf32>
    %23 = arith.addf %20, %22 : vector<32x288xf32>
    %cst_11 = arith.constant 0.000000e+00 : f32
    %24 = vector.broadcast %cst_11 : f32 to vector<32x288xf32>
    %25 = arith.maximumf %23, %24 : vector<32x288xf32>
    %26 = arith.truncf %25 : vector<32x288xf32> to vector<32x288xbf16>
    %c0_12 = arith.constant 0 : index
    %c0_13 = arith.constant 0 : index
    %27 = vector.load %arg3[%c0_12, %c0_13] : memref<32x288xbf16, #tpu.memory_space<vmem>>, vector<32x288xbf16>
    tpu.vector_store %arg3[%c0_12, %c0_13], %26 {strides = array<i32>} : memref<32x288xbf16, #tpu.memory_space<vmem>>, vector<32x288xbf16>,
    return
  }
}

module attributes {stable_mosaic.version = 11 : i64} {
  func.func @conv_bn_relu_kernel(%arg0: memref<288x72xbf16, #tpu.memory_space<vmem>>, %arg1: memref<32x288xbf16, #tpu.memory_space<vmem>>, %arg2: memref<32x2xf32, #tpu.memory_space<vmem>>, %arg3: memref<32x72xbf16, #tpu.memory_space<vmem>>) attributes {dimension_semantics = [], scalar_prefetch = 0 : i64, scratch_operands = 0 : i64, tpu.core_type = #tpu.core_type<tc>} {
    %c0 = arith.constant 0 : index
    %c0_0 = arith.constant 0 : index
    %0 = vector.load %arg1[%c0, %c0_0] : memref<32x288xbf16, #tpu.memory_space<vmem>>, vector<32x288xbf16>
    %c0_1 = arith.constant 0 : index
    %c0_2 = arith.constant 0 : index
    %1 = vector.load %arg0[%c0_1, %c0_2] : memref<288x72xbf16, #tpu.memory_space<vmem>>, vector<288x72xbf16>
    %cst = arith.constant dense<0.000000e+00> : vector<32x72xf32>
    %2 = tpu.matmul %0, %1, %cst {dimension_numbers = #tpu.dot_dimension_numbers<[1], [0], [0], [1], [0, 0, 1, 1], [], []>} : vector<32x288xbf16>, vector<288x72xbf16>, vector<32x72xf32> -> vector<32x72xf32>
    %cst_3 = arith.constant dense<0.000000e+00> : vector<32xf32>
    %3 = vector.multi_reduction <add>, %2, %cst_3 [1] : vector<32x72xf32> to vector<32xf32>
    %4 = vector.shape_cast %3 : vector<32xf32> to vector<32x1xf32>
    %cst_4 = arith.constant 0.013888889 : f32
    %5 = vector.broadcast %cst_4 : f32 to vector<32x1xf32>
    %6 = arith.mulf %4, %5 : vector<32x1xf32>
    %7 = vector.broadcast %6 : vector<32x1xf32> to vector<32x72xf32>
    %8 = arith.subf %2, %7 : vector<32x72xf32>
    %9 = arith.mulf %8, %8 : vector<32x72xf32>
    %cst_5 = arith.constant dense<0.000000e+00> : vector<32xf32>
    %10 = vector.multi_reduction <add>, %9, %cst_5 [1] : vector<32x72xf32> to vector<32xf32>
    %11 = vector.shape_cast %10 : vector<32xf32> to vector<32x1xf32>
    %cst_6 = arith.constant 0.013888889 : f32
    %12 = vector.broadcast %cst_6 : f32 to vector<32x1xf32>
    %13 = arith.mulf %11, %12 : vector<32x1xf32>
    %c0_7 = arith.constant 0 : index
    %c0_8 = arith.constant 0 : index
    %14 = vector.load %arg2[%c0_7, %c0_8] : memref<32x2xf32, #tpu.memory_space<vmem>>, vector<32x1xf32>
    %cst_9 = arith.constant 9.99999974E-6 : f32
    %15 = vector.broadcast %cst_9 : f32 to vector<32x1xf32>
    %16 = arith.addf %13, %15 : vector<32x1xf32>
    %17 = math.rsqrt %16 : vector<32x1xf32>
    %18 = arith.mulf %14, %17 : vector<32x1xf32>
    %19 = vector.broadcast %18 : vector<32x1xf32> to vector<32x72xf32>
    %20 = arith.mulf %8, %19 : vector<32x72xf32>
    %c0_10 = arith.constant 0 : index
    %c1 = arith.constant 1 : index
    %21 = vector.load %arg2[%c0_10, %c1] : memref<32x2xf32, #tpu.memory_space<vmem>>, vector<32x1xf32>
    %22 = vector.broadcast %21 : vector<32x1xf32> to vector<32x72xf32>
    %23 = arith.addf %20, %22 : vector<32x72xf32>
    %cst_11 = arith.constant 0.000000e+00 : f32
    %24 = vector.broadcast %cst_11 : f32 to vector<32x72xf32>
    %25 = arith.maximumf %23, %24 : vector<32x72xf32>
    %26 = arith.truncf %25 : vector<32x72xf32> to vector<32x72xbf16>
    %c0_12 = arith.constant 0 : index
    %c0_13 = arith.constant 0 : index
    %27 = vector.load %arg3[%c0_12, %c0_13] : memref<32x72xbf16, #tpu.memory_space<vmem>>, vector<32x72xbf16>
    tpu.vector_store %arg3[%c0_12, %c0_13], %26 {strides = array<i32>} : memref<32x72xbf16, #tpu.memory_space<vmem>>, vector<32x72xbf16>,
    return
  }
}

module attributes {stable_mosaic.version = 11 : i64} {
  func.func @lstm_heads_kernel(%arg0: i32, %arg1: memref<2x1152xbf16, #tpu.memory_space<vmem>>, %arg2: memref<2x256xf32, #tpu.memory_space<vmem>>, %arg3: memref<2x256xf32, #tpu.memory_space<vmem>>, %arg4: memref<1152x256xbf16, #tpu.memory_space<vmem>>, %arg5: memref<256x256xbf16, #tpu.memory_space<vmem>>, %arg6: memref<1x256xf32, #tpu.memory_space<vmem>>, %arg7: memref<256x7xf32, #tpu.memory_space<vmem>>, %arg8: memref<1x7xf32, #tpu.memory_space<vmem>>, %arg9: memref<2x256xf32, #tpu.memory_space<vmem>>, %arg10: memref<2x256xf32, #tpu.memory_space<vmem>>, %arg11: memref<2x7xf32, #tpu.memory_space<vmem>>, %arg12: memref<4x2x256xf32, #tpu.memory_space<vmem>>) attributes {dimension_semantics = [#tpu.dimension_semantics<arbitrary>], iteration_bounds = array<i64: 4>, scalar_prefetch = 0 : i64, scratch_operands = 1 : i64, tpu.core_type = #tpu.core_type<tc>, window_params = [{pipeline_mode = #tpu.pipeline_mode<synchronous>, transform_indices = @transform_0, window_bounds = array<i64: 2, 1152>}, {pipeline_mode = #tpu.pipeline_mode<synchronous>, transform_indices = @transform_1, window_bounds = array<i64: 2, 256>}, {pipeline_mode = #tpu.pipeline_mode<synchronous>, transform_indices = @transform_2, window_bounds = array<i64: 2, 256>}, {transform_indices = @transform_3, window_bounds = array<i64: 1152, 256>}, {transform_indices = @transform_4, window_bounds = array<i64: 256, 256>}, {transform_indices = @transform_5, window_bounds = array<i64: 1, 256>}, {pipeline_mode = #tpu.pipeline_mode<synchronous>, transform_indices = @transform_6, window_bounds = array<i64: 256, 7>}, {pipeline_mode = #tpu.pipeline_mode<synchronous>, transform_indices = @transform_7, window_bounds = array<i64: 1, 7>}, {pipeline_mode = #tpu.pipeline_mode<synchronous>, transform_indices = @transform_8, window_bounds = array<i64: 2, 256>}, {pipeline_mode = #tpu.pipeline_mode<synchronous>, transform_indices = @transform_9, window_bounds = array<i64: 2, 256>}, {pipeline_mode = #tpu.pipeline_mode<synchronous>, transform_indices = @transform_10, window_bounds = array<i64: 2, 7>}]} {
    %c0 = arith.constant 0 : index
    %c0_0 = arith.constant 0 : index
    %0 = vector.load %arg1[%c0, %c0_0] : memref<2x1152xbf16, #tpu.memory_space<vmem>>, vector<2x1152xbf16>
    %c0_1 = arith.constant 0 : index
    %c0_2 = arith.constant 0 : index
    %1 = vector.load %arg2[%c0_1, %c0_2] : memref<2x256xf32, #tpu.memory_space<vmem>>, vector<2x256xf32>
    %2 = arith.truncf %1 : vector<2x256xf32> to vector<2x256xbf16>
    %c0_3 = arith.constant 0 : index
    %c0_4 = arith.constant 0 : index
    %3 = vector.load %arg4[%c0_3, %c0_4] : memref<1152x256xbf16, #tpu.memory_space<vmem>>, vector<1152x256xbf16>
    %cst = arith.constant dense<0.000000e+00> : vector<2x256xf32>
    %4 = tpu.matmul %0, %3, %cst {dimension_numbers = #tpu.dot_dimension_numbers<[1], [0], [0], [1], [0, 0, 1, 1], [], []>} : vector<2x1152xbf16>, vector<1152x256xbf16>, vector<2x256xf32> -> vector<2x256xf32>
    %c0_5 = arith.constant 0 : index
    %c0_6 = arith.constant 0 : index
    %5 = vector.load %arg5[%c0_5, %c0_6] : memref<256x256xbf16, #tpu.memory_space<vmem>>, vector<256x256xbf16>
    %cst_7 = arith.constant dense<0.000000e+00> : vector<2x256xf32>
    %6 = tpu.matmul %2, %5, %cst_7 {dimension_numbers = #tpu.dot_dimension_numbers<[1], [0], [0], [1], [0, 0, 1, 1], [], []>} : vector<2x256xbf16>, vector<256x256xbf16>, vector<2x256xf32> -> vector<2x256xf32>
    %7 = arith.addf %4, %6 : vector<2x256xf32>
    %c0_8 = arith.constant 0 : index
    %c0_9 = arith.constant 0 : index
    %8 = vector.load %arg6[%c0_8, %c0_9] : memref<1x256xf32, #tpu.memory_space<vmem>>, vector<1x256xf32>
    %9 = vector.broadcast %8 : vector<1x256xf32> to vector<2x256xf32>
    %10 = arith.addf %7, %9 : vector<2x256xf32>
    %11 = arith.index_cast %arg0 : i32 to index
    %c0_10 = arith.constant 0 : index
    %c0_11 = arith.constant 0 : index
    %12 = vector.load %arg12[%11, %c0_10, %c0_11] : memref<4x2x256xf32, #tpu.memory_space<vmem>>, vector<1x2x256xf32>
    %13 = vector.shape_cast %12 : vector<1x2x256xf32> to vector<2x256xf32>
    %14 = vector.shape_cast %10 : vector<2x256xf32> to vector<1x2x256xf32>
    tpu.vector_store %arg12[%11, %c0_10, %c0_11], %14 {strides = array<i32>} : memref<4x2x256xf32, #tpu.memory_space<vmem>>, vector<1x2x256xf32>,
    %c3_i32 = arith.constant 3 : i32
    %15 = arith.cmpi eq, %arg0, %c3_i32 : i32
    %16 = arith.extui %15 : i1 to i32
    %c0_i32 = arith.constant 0 : i32
    %17 = arith.cmpi ne, %16, %c0_i32 : i32
    scf.if %17 {
      %c0_12 = arith.constant 0 : index
      %c0_13 = arith.constant 0 : index
      %c0_14 = arith.constant 0 : index
      %18 = vector.load %arg12[%c0_12, %c0_13, %c0_14] : memref<4x2x256xf32, #tpu.memory_space<vmem>>, vector<1x2x256xf32>
      %19 = vector.shape_cast %18 : vector<1x2x256xf32> to vector<2x256xf32>
      %20 = arith.negf %19 : vector<2x256xf32>
      %21 = math.exp %20 : vector<2x256xf32>
      %cst_15 = arith.constant 1.000000e+00 : f32
      %22 = vector.broadcast %cst_15 : f32 to vector<2x256xf32>
      %23 = arith.addf %22, %21 : vector<2x256xf32>
      %24 = arith.divf %22, %23 : vector<2x256xf32>
      %c1 = arith.constant 1 : index
      %c0_16 = arith.constant 0 : index
      %c0_17 = arith.constant 0 : index
      %25 = vector.load %arg12[%c1, %c0_16, %c0_17] : memref<4x2x256xf32, #tpu.memory_space<vmem>>, vector<1x2x256xf32>
      %26 = vector.shape_cast %25 : vector<1x2x256xf32> to vector<2x256xf32>
      %27 = arith.negf %26 : vector<2x256xf32>
      %28 = math.exp %27 : vector<2x256xf32>
      %cst_18 = arith.constant 1.000000e+00 : f32
      %29 = vector.broadcast %cst_18 : f32 to vector<2x256xf32>
      %30 = arith.addf %29, %28 : vector<2x256xf32>
      %31 = arith.divf %29, %30 : vector<2x256xf32>
      %c2 = arith.constant 2 : index
      %c0_19 = arith.constant 0 : index
      %c0_20 = arith.constant 0 : index
      %32 = vector.load %arg12[%c2, %c0_19, %c0_20] : memref<4x2x256xf32, #tpu.memory_space<vmem>>, vector<1x2x256xf32>
      %33 = vector.shape_cast %32 : vector<1x2x256xf32> to vector<2x256xf32>
      %34 = math.tanh %33 : vector<2x256xf32>
      %c3 = arith.constant 3 : index
      %c0_21 = arith.constant 0 : index
      %c0_22 = arith.constant 0 : index
      %35 = vector.load %arg12[%c3, %c0_21, %c0_22] : memref<4x2x256xf32, #tpu.memory_space<vmem>>, vector<1x2x256xf32>
      %36 = vector.shape_cast %35 : vector<1x2x256xf32> to vector<2x256xf32>
      %37 = arith.negf %36 : vector<2x256xf32>
      %38 = math.exp %37 : vector<2x256xf32>
      %cst_23 = arith.constant 1.000000e+00 : f32
      %39 = vector.broadcast %cst_23 : f32 to vector<2x256xf32>
      %40 = arith.addf %39, %38 : vector<2x256xf32>
      %41 = arith.divf %39, %40 : vector<2x256xf32>
      %c0_24 = arith.constant 0 : index
      %c0_25 = arith.constant 0 : index
      %42 = vector.load %arg3[%c0_24, %c0_25] : memref<2x256xf32, #tpu.memory_space<vmem>>, vector<2x256xf32>
      %43 = arith.mulf %31, %42 : vector<2x256xf32>
      %44 = arith.mulf %24, %34 : vector<2x256xf32>
      %45 = arith.addf %43, %44 : vector<2x256xf32>
      %46 = math.tanh %45 : vector<2x256xf32>
      %47 = arith.mulf %41, %46 : vector<2x256xf32>
      %c0_26 = arith.constant 0 : index
      %c0_27 = arith.constant 0 : index
      %48 = vector.load %arg10[%c0_26, %c0_27] : memref<2x256xf32, #tpu.memory_space<vmem>>, vector<2x256xf32>
      tpu.vector_store %arg10[%c0_26, %c0_27], %45 {strides = array<i32>} : memref<2x256xf32, #tpu.memory_space<vmem>>, vector<2x256xf32>,
      %c0_28 = arith.constant 0 : index
      %c0_29 = arith.constant 0 : index
      %49 = vector.load %arg9[%c0_28, %c0_29] : memref<2x256xf32, #tpu.memory_space<vmem>>, vector<2x256xf32>
      tpu.vector_store %arg9[%c0_28, %c0_29], %47 {strides = array<i32>} : memref<2x256xf32, #tpu.memory_space<vmem>>, vector<2x256xf32>,
      %c0_30 = arith.constant 0 : index
      %c0_31 = arith.constant 0 : index
      %50 = vector.load %arg7[%c0_30, %c0_31] : memref<256x7xf32, #tpu.memory_space<vmem>>, vector<256x7xf32>
      %cst_32 = arith.constant dense<0.000000e+00> : vector<2x7xf32>
      %51 = tpu.matmul %47, %50, %cst_32 {dimension_numbers = #tpu.dot_dimension_numbers<[1], [0], [0], [1], [0, 0, 1, 1], [], []>} : vector<2x256xf32>, vector<256x7xf32>, vector<2x7xf32> -> vector<2x7xf32>
      %c0_33 = arith.constant 0 : index
      %c0_34 = arith.constant 0 : index
      %52 = vector.load %arg8[%c0_33, %c0_34] : memref<1x7xf32, #tpu.memory_space<vmem>>, vector<1x7xf32>
      %53 = vector.broadcast %52 : vector<1x7xf32> to vector<2x7xf32>
      %54 = arith.addf %51, %53 : vector<2x7xf32>
      %c0_35 = arith.constant 0 : index
      %c0_36 = arith.constant 0 : index
      %55 = vector.load %arg11[%c0_35, %c0_36] : memref<2x7xf32, #tpu.memory_space<vmem>>, vector<2x7xf32>
      tpu.vector_store %arg11[%c0_35, %c0_36], %54 {strides = array<i32>} : memref<2x7xf32, #tpu.memory_space<vmem>>, vector<2x7xf32>,
    } else {
    }
    return
  }
  func.func @transform_0(%arg0: i32) -> (i32, i32) {
    %c0_i32 = arith.constant 0 : i32
    %c0_i32_0 = arith.constant 0 : i32
    %c0_i32_1 = arith.constant 0 : i32
    return %c0_i32, %c0_i32_0 : i32, i32
  }
  func.func @transform_1(%arg0: i32) -> (i32, i32) {
    %c0_i32 = arith.constant 0 : i32
    %c0_i32_0 = arith.constant 0 : i32
    %c0_i32_1 = arith.constant 0 : i32
    return %c0_i32, %c0_i32_0 : i32, i32
  }
  func.func @transform_2(%arg0: i32) -> (i32, i32) {
    %c0_i32 = arith.constant 0 : i32
    %c0_i32_0 = arith.constant 0 : i32
    %c0_i32_1 = arith.constant 0 : i32
    return %c0_i32, %c0_i32_0 : i32, i32
  }
  func.func @transform_3(%arg0: i32) -> (i32, i32) {
    %c0_i32 = arith.constant 0 : i32
    %c0_i32_0 = arith.constant 0 : i32
    return %c0_i32, %arg0 : i32, i32
  }
  func.func @transform_4(%arg0: i32) -> (i32, i32) {
    %c0_i32 = arith.constant 0 : i32
    %c0_i32_0 = arith.constant 0 : i32
    return %c0_i32, %arg0 : i32, i32
  }
  func.func @transform_5(%arg0: i32) -> (i32, i32) {
    %c0_i32 = arith.constant 0 : i32
    %c0_i32_0 = arith.constant 0 : i32
    return %c0_i32, %arg0 : i32, i32
  }
  func.func @transform_6(%arg0: i32) -> (i32, i32) {
    %c0_i32 = arith.constant 0 : i32
    %c0_i32_0 = arith.constant 0 : i32
    %c0_i32_1 = arith.constant 0 : i32
    return %c0_i32, %c0_i32_0 : i32, i32
  }
  func.func @transform_7(%arg0: i32) -> (i32, i32) {
    %c0_i32 = arith.constant 0 : i32
    %c0_i32_0 = arith.constant 0 : i32
    %c0_i32_1 = arith.constant 0 : i32
    return %c0_i32, %c0_i32_0 : i32, i32
  }
  func.func @transform_8(%arg0: i32) -> (i32, i32) {
    %c0_i32 = arith.constant 0 : i32
    %c0_i32_0 = arith.constant 0 : i32
    %c0_i32_1 = arith.constant 0 : i32
    return %c0_i32, %c0_i32_0 : i32, i32
  }
  func.func @transform_9(%arg0: i32) -> (i32, i32) {
    %c0_i32 = arith.constant 0 : i32
    %c0_i32_0 = arith.constant 0 : i32
    %c0_i32_1 = arith.constant 0 : i32
    return %c0_i32, %c0_i32_0 : i32, i32
  }
  func.func @transform_10(%arg0: i32) -> (i32, i32) {
    %c0_i32 = arith.constant 0 : i32
    %c0_i32_0 = arith.constant 0 : i32
    %c0_i32_1 = arith.constant 0 : i32
    return %c0_i32, %c0_i32_0 : i32, i32
  }
}

</mosaic_0001>

<llo_original>
// kernel: policy_forward.5
$region0: #{policy_forward.5}
  #allocation0 [shape = 'u32[]', space=smem, size = 0x4, offset = 0x4, fixed_abs, tag = 'smem constant byte address 0x4 - core index']
  #allocation1 [shape = 'u32[144,128]{1,0:T(1,128)}', space=vmem, size = 0x12000, scoped, tag = 'internal scratch']
  %s0 = inlined_call_operand.vmem [shape: bf16[27,4608], index: 0, kind: input, shape index: {}]
  %s1 = inlined_call_operand.vmem [shape: bf16[32,27], index: 1, kind: input, shape index: {}]
  %s2 = inlined_call_operand.vmem [shape: f32[32,2], index: 2, kind: input, shape index: {}]
  %s3 = inlined_call_operand.vmem [shape: bf16[32,4608], index: 3, kind: output, shape index: {}]
  %s4 = sld [smem:[#allocation0]]
  $region22: #{policy_forward.5} parent=0
    _
  %s6 = ssub.s32 1, %s4
  %s7 = scalar_select 0, %s6, %s4
  // Predicated region
  $region2: #{policy_forward.5} parent=0 // pred_check
    _
  $region3: #{policy_forward.5} parent=0 // pred_check_branch
    %9 = sbr.rel (0) target = $region5
  $region4: #{policy_forward.5} parent=0 // pred_region
    _
  $region5: #{policy_forward.5} parent=0 // pred_fallthru
    _
  // Predicated region
  $region6: #{policy_forward.5} parent=0 // pred_check
    _
  $region7: #{policy_forward.5} parent=0 // pred_check_branch
    %11 = sbr.rel (0) target = $region9
  $region8: #{policy_forward.5} parent=0 // pred_region
    _
  $region9: #{policy_forward.5} parent=0 // pred_fallthru
    _
  // Predicated region
  $region10: #{policy_forward.5} parent=0 // pred_check
    _
  $region11: #{policy_forward.5} parent=0 // pred_check_branch
    %13 = sbr.rel (0) target = $region13
  $region12: #{policy_forward.5} parent=0 // pred_region
    _
  $region13: #{policy_forward.5} parent=0 // pred_fallthru
    _
  %v15 = vld [vmem:[%s1] sm:$0xf]
  %v16 = vld [vmem:[%s1 + $0x4] sm:$0xf]
  %v17 = vld [vmem:[%s1 + $0x8] sm:$0xf]
  %v18 = vld [vmem:[%s1 + $0xc] sm:$0xf]
  %v19 = vld [vmem:[%s0] sm:$0xff]
  %v20 = vld [vmem:[%s0 + $0x8] sm:$0xff]
  %v21 = vld [vmem:[%s0 + $0x10] sm:$0xff]
  %v22 = vld [vmem:[%s0 + $0x18] sm:$0xff]
  %v23 = vld [vmem:[%s0 + $0x20] sm:$0xff]
  %v24 = vld [vmem:[%s0 + $0x28] sm:$0xff]
  %v25 = vld [vmem:[%s0 + $0x30] sm:$0xff]
  %v26 = vld [vmem:[%s0 + $0x38] sm:$0xff]
  %v27 = vld [vmem:[%s0 + $0x40] sm:$0xff]
  %v28 = vld [vmem:[%s0 + $0x48] sm:$0xff]
  %v29 = vld [vmem:[%s0 + $0x50] sm:$0xff]
  %v30 = vld [vmem:[%s0 + $0x58] sm:$0xff]
  %v31 = vld [vmem:[%s0 + $0x60] sm:$0xff]
  %v32 = vld [vmem:[%s0 + $0x68] sm:$0xff]
  %v33 = vld [vmem:[%s0 + $0x70] sm:$0xff]
  %v34 = vld [vmem:[%s0 + $0x78] sm:$0xff]
  %v35 = vld [vmem:[%s0 + $0x80] sm:$0xff]
  %v36 = vld [vmem:[%s0 + $0x88] sm:$0xff]
  %v37 = vld [vmem:[%s0 + $0x90] sm:$0xff]
  %v38 = vld [vmem:[%s0 + $0x98] sm:$0xff]
  %v39 = vld [vmem:[%s0 + $0xa0] sm:$0xff]
  %v40 = vld [vmem:[%s0 + $0xa8] sm:$0xff]
  %v41 = vld [vmem:[%s0 + $0xb0] sm:$0xff]
  %v42 = vld [vmem:[%s0 + $0xb8] sm:$0xff]
  %v43 = vld [vmem:[%s0 + $0xc0] sm:$0xff]
  %v44 = vld [vmem:[%s0 + $0xc8] sm:$0xff]
  %v45 = vld [vmem:[%s0 + $0xd0] sm:$0xff]
  %v46 = vld [vmem:[%s0 + $0xd8] sm:$0xff]
  %v47 = vld [vmem:[%s0 + $0xe0] sm:$0xff]
  %v48 = vld [vmem:[%s0 + $0xe8] sm:$0xff]
  %v49 = vld [vmem:[%s0 + $0xf0] sm:$0xff]
  %v50 = vld [vmem:[%s0 + $0xf8] sm:$0xff]
  %v51 = vld [vmem:[%s0 + $0x100] sm:$0xff]
  %v52 = vld [vmem:[%s0 + $0x108] sm:$0xff]
  %v53 = vld [vmem:[%s0 + $0x110] sm:$0xff]
  %v54 = vld [vmem:[%s0 + $0x118] sm:$0xff]
  %v55 = vld [vmem:[%s0 + $0x120] sm:$0xff]
  %v56 = vld [vmem:[%s0 + $0x128] sm:$0xff]
  %v57 = vld [vmem:[%s0 + $0x130] sm:$0xff]
  %v58 = vld [vmem:[%s0 + $0x138] sm:$0xff]
  %v59 = vld [vmem:[%s0 + $0x140] sm:$0xff]
  %v60 = vld [vmem:[%s0 + $0x148] sm:$0xff]
  %v61 = vld [vmem:[%s0 + $0x150] sm:$0xff]
  %v62 = vld [vmem:[%s0 + $0x158] sm:$0xff]
  %v63 = vld [vmem:[%s0 + $0x160] sm:$0xff]
  %v64 = vld [vmem:[%s0 + $0x168] sm:$0xff]
  %v65 = vld [vmem:[%s0 + $0x170] sm:$0xff]
  %v66 = vld [vmem:[%s0 + $0x178] sm:$0xff]
  %v67 = vld [vmem:[%s0 + $0x180] sm:$0xff]
  %v68 = vld [vmem:[%s0 + $0x188] sm:$0xff]
  %v69 = vld [vmem:[%s0 + $0x190] sm:$0xff]
  %v70 = vld [vmem:[%s0 + $0x198] sm:$0xff]
  %v71 = vld [vmem:[%s0 + $0x1a0] sm:$0xff]
  %v72 = vld [vmem:[%s0 + $0x1a8] sm:$0xff]
  %v73 = vld [vmem:[%s0 + $0x1b0] sm:$0x33]
  %v74 = vld [vmem:[%s0 + $0x1b8] sm:$0x33]
  %v75 = vld [vmem:[%s0 + $0x1c0] sm:$0x33]
  %v76 = vld [vmem:[%s0 + $0x1c8] sm:$0x33]
  %v77 = vld [vmem:[%s0 + $0x1d0] sm:$0x33]
  %v78 = vld [vmem:[%s0 + $0x1d8] sm:$0x33]
  %v79 = vld [vmem:[%s0 + $0x1e0] sm:$0x33]
  %v80 = vld [vmem:[%s0 + $0x1e8] sm:$0x33]
  %v81 = vld [vmem:[%s0 + $0x1f0] sm:$0x33]
  %v82 = vld [vmem:[%s0 + $0x1f8] sm:$0x33]
  %v83 = vld [vmem:[%s0 + $0x200] sm:$0x33]
  %v84 = vld [vmem:[%s0 + $0x208] sm:$0x33]
  %v85 = vld [vmem:[%s0 + $0x210] sm:$0x33]
  %v86 = vld [vmem:[%s0 + $0x218] sm:$0x33]
  %v87 = vld [vmem:[%s0 + $0x220] sm:$0x33]
  %v88 = vld [vmem:[%s0 + $0x228] sm:$0x33]
  %v89 = vld [vmem:[%s0 + $0x230] sm:$0x33]
  %v90 = vld [vmem:[%s0 + $0x238] sm:$0x33]
  %v95 = vunpack.c.l.b16 %v15
  %v96 = vunpack.c.l.b16 %v16
  %v97 = vunpack.c.l.b16 %v17
  %v98 = vunpack.c.l.b16 %v18
  %v99 = vpack.c.b16 %v96, %v95
  %v100 = vpack.c.b16 %v98, %v97
  %v173 = vunpack.c.l.b16 %v19
  %v174 = vunpack.c.h.b16 %v19
  %v175 = vunpack.c.l.b16 %v20
  %v176 = vunpack.c.h.b16 %v20
  %v177 = vunpack.c.l.b16 %v21
  %v178 = vunpack.c.h.b16 %v21
  %v179 = vunpack.c.l.b16 %v22
  %v180 = vunpack.c.h.b16 %v22
  %v181 = vunpack.c.l.b16 %v23
  %v182 = vunpack.c.h.b16 %v23
  %v183 = vunpack.c.l.b16 %v24
  %v184 = vunpack.c.h.b16 %v24
  %v185 = vunpack.c.l.b16 %v25
  %v186 = vunpack.c.h.b16 %v25
  %v187 = vunpack.c.l.b16 %v26
  %v188 = vunpack.c.h.b16 %v26
  %v189 = vunpack.c.l.b16 %v27
  %v190 = vunpack.c.h.b16 %v27
  %v191 = vunpack.c.l.b16 %v28
  %v192 = vunpack.c.h.b16 %v28
  %v193 = vunpack.c.l.b16 %v29
  %v194 = vunpack.c.h.b16 %v29
  %v195 = vunpack.c.l.b16 %v30
  %v196 = vunpack.c.h.b16 %v30
  %v197 = vunpack.c.l.b16 %v31
  %v198 = vunpack.c.h.b16 %v31
  %v199 = vunpack.c.l.b16 %v32
  %v200 = vunpack.c.h.b16 %v32
  %v201 = vunpack.c.l.b16 %v33
  %v202 = vunpack.c.h.b16 %v33
  %v203 = vunpack.c.l.b16 %v34
  %v204 = vunpack.c.h.b16 %v34
  %v205 = vunpack.c.l.b16 %v35
  %v206 = vunpack.c.h.b16 %v35
  %v207 = vunpack.c.l.b16 %v36
  %v208 = vunpack.c.h.b16 %v36
  %v209 = vunpack.c.l.b16 %v37
  %v210 = vunpack.c.h.b16 %v37
  %v211 = vunpack.c.l.b16 %v38
  %v212 = vunpack.c.h.b16 %v38
  %v213 = vunpack.c.l.b16 %v39
  %v214 = vunpack.c.h.b16 %v39
  %v215 = vunpack.c.l.b16 %v40
  %v216 = vunpack.c.h.b16 %v40
  %v217 = vunpack.c.l.b16 %v41
  %v218 = vunpack.c.h.b16 %v41
  %v219 = vunpack.c.l.b16 %v42
  %v220 = vunpack.c.h.b16 %v42
  %v221 = vunpack.c.l.b16 %v43
  %v222 = vunpack.c.h.b16 %v43
  %v223 = vunpack.c.l.b16 %v44
  %v224 = vunpack.c.h.b16 %v44
  %v225 = vunpack.c.l.b16 %v45
  %v226 = vunpack.c.h.b16 %v45
  %v227 = vunpack.c.l.b16 %v46
  %v228 = vunpack.c.h.b16 %v46
  %v229 = vunpack.c.l.b16 %v47
  %v230 = vunpack.c.h.b16 %v47
  %v231 = vunpack.c.l.b16 %v48
  %v232 = vunpack.c.h.b16 %v48
  %v233 = vunpack.c.l.b16 %v49
  %v234 = vunpack.c.h.b16 %v49
  %v235 = vunpack.c.l.b16 %v50
  %v236 = vunpack.c.h.b16 %v50
  %v237 = vunpack.c.l.b16 %v51
  %v238 = vunpack.c.h.b16 %v51
  %v239 = vunpack.c.l.b16 %v52
  %v240 = vunpack.c.h.b16 %v52
  %v241 = vunpack.c.l.b16 %v53
  %v242 = vunpack.c.h.b16 %v53
  %v243 = vunpack.c.l.b16 %v54
  %v244 = vunpack.c.h.b16 %v54
  %v245 = vunpack.c.l.b16 %v55
  %v246 = vunpack.c.h.b16 %v55
  %v247 = vunpack.c.l.b16 %v56
  %v248 = vunpack.c.h.b16 %v56
  %v249 = vunpack.c.l.b16 %v57
  %v250 = vunpack.c.h.b16 %v57
  %v251 = vunpack.c.l.b16 %v58
  %v252 = vunpack.c.h.b16 %v58
  %v253 = vunpack.c.l.b16 %v59
  %v254 = vunpack.c.h.b16 %v59
  %v255 = vunpack.c.l.b16 %v60
  %v256 = vunpack.c.h.b16 %v60
  %v257 = vunpack.c.l.b16 %v61
  %v258 = vunpack.c.h.b16 %v61
  %v259 = vunpack.c.l.b16 %v62
  %v260 = vunpack.c.h.b16 %v62
  %v261 = vunpack.c.l.b16 %v63
  %v262 = vunpack.c.h.b16 %v63
  %v263 = vunpack.c.l.b16 %v64
  %v264 = vunpack.c.h.b16 %v64
  %v265 = vunpack.c.l.b16 %v65
  %v266 = vunpack.c.h.b16 %v65
  %v267 = vunpack.c.l.b16 %v66
  %v268 = vunpack.c.h.b16 %v66
  %v269 = vunpack.c.l.b16 %v67
  %v270 = vunpack.c.h.b16 %v67
  %v271 = vunpack.c.l.b16 %v68
  %v272 = vunpack.c.h.b16 %v68
  %v273 = vunpack.c.l.b16 %v69
  %v274 = vunpack.c.h.b16 %v69
  %v275 = vunpack.c.l.b16 %v70
  %v276 = vunpack.c.h.b16 %v70
  %v277 = vunpack.c.l.b16 %v71
  %v278 = vunpack.c.h.b16 %v71
  %v279 = vunpack.c.l.b16 %v72
  %v280 = vunpack.c.h.b16 %v72
  %v281 = vunpack.c.l.b16 %v73
  %v282 = vunpack.c.h.b16 %v73
  %v283 = vunpack.c.l.b16 %v74
  %v284 = vunpack.c.h.b16 %v74
  %v285 = vunpack.c.l.b16 %v75
  %v286 = vunpack.c.h.b16 %v75
  %v287 = vunpack.c.l.b16 %v76
  %v288 = vunpack.c.h.b16 %v76
  %v289 = vunpack.c.l.b16 %v77
  %v290 = vunpack.c.h.b16 %v77
  %v291 = vunpack.c.l.b16 %v78
  %v292 = vunpack.c.h.b16 %v78
  %v293 = vunpack.c.l.b16 %v79
  %v294 = vunpack.c.h.b16 %v79
  %v295 = vunpack.c.l.b16 %v80
  %v296 = vunpack.c.h.b16 %v80
  %v297 = vunpack.c.l.b16 %v81
  %v298 = vunpack.c.h.b16 %v81
  %v299 = vunpack.c.l.b16 %v82
  %v300 = vunpack.c.h.b16 %v82
  %v301 = vunpack.c.l.b16 %v83
  %v302 = vunpack.c.h.b16 %v83
  %v303 = vunpack.c.l.b16 %v84
  %v304 = vunpack.c.h.b16 %v84
  %v305 = vunpack.c.l.b16 %v85
  %v306 = vunpack.c.h.b16 %v85
  %v307 = vunpack.c.l.b16 %v86
  %v308 = vunpack.c.h.b16 %v86
  %v309 = vunpack.c.l.b16 %v87
  %v310 = vunpack.c.h.b16 %v87
  %v311 = vunpack.c.l.b16 %v88
  %v312 = vunpack.c.h.b16 %v88
  %v313 = vunpack.c.l.b16 %v89
  %v314 = vunpack.c.h.b16 %v89
  %v315 = vunpack.c.l.b16 %v90
  %v316 = vunpack.c.h.b16 %v90
  %v317 = vpack.c.b16 %v209, %v173
  %v318 = vpack.c.b16 %v210, %v174
  %v319 = vpack.c.b16 %v211, %v175
  %v320 = vpack.c.b16 %v212, %v176
  %v321 = vpack.c.b16 %v213, %v177
  %v322 = vpack.c.b16 %v214, %v178
  %v323 = vpack.c.b16 %v215, %v179
  %v324 = vpack.c.b16 %v216, %v180
  %v325 = vpack.c.b16 %v217, %v181
  %v326 = vpack.c.b16 %v218, %v182
  %v327 = vpack.c.b16 %v219, %v183
  %v328 = vpack.c.b16 %v220, %v184
  %v329 = vpack.c.b16 %v221, %v185
  %v330 = vpack.c.b16 %v222, %v186
  %v331 = vpack.c.b16 %v223, %v187
  %v332 = vpack.c.b16 %v224, %v188
  %v333 = vpack.c.b16 %v225, %v189
  %v334 = vpack.c.b16 %v226, %v190
  %v335 = vpack.c.b16 %v227, %v191
  %v336 = vpack.c.b16 %v228, %v192
  %v337 = vpack.c.b16 %v229, %v193
  %v338 = vpack.c.b16 %v230, %v194
  %v339 = vpack.c.b16 %v231, %v195
  %v340 = vpack.c.b16 %v232, %v196
  %v341 = vpack.c.b16 %v233, %v197
  %v342 = vpack.c.b16 %v234, %v198
  %v343 = vpack.c.b16 %v235, %v199
  %v344 = vpack.c.b16 %v236, %v200
  %v345 = vpack.c.b16 %v237, %v201
  %v346 = vpack.c.b16 %v238, %v202
  %v347 = vpack.c.b16 %v239, %v203
  %v348 = vpack.c.b16 %v240, %v204
  %v349 = vpack.c.b16 %v241, %v205
  %v350 = vpack.c.b16 %v242, %v206
  %v351 = vpack.c.b16 %v243, %v207
  %v352 = vpack.c.b16 %v244, %v208
  %v353 = vpack.c.b16 %v281, %v245
  %v354 = vpack.c.b16 %v282, %v246
  %v355 = vpack.c.b16 %v283, %v247
  %v356 = vpack.c.b16 %v284, %v248
  %v357 = vpack.c.b16 %v285, %v249
  %v358 = vpack.c.b16 %v286, %v250
  %v359 = vpack.c.b16 %v287, %v251
  %v360 = vpack.c.b16 %v288, %v252
  %v361 = vpack.c.b16 %v289, %v253
  %v362 = vpack.c.b16 %v290, %v254
  %v363 = vpack.c.b16 %v291, %v255
  %v364 = vpack.c.b16 %v292, %v256
  %v365 = vpack.c.b16 %v293, %v257
  %v366 = vpack.c.b16 %v294, %v258
  %v367 = vpack.c.b16 %v295, %v259
  %v368 = vpack.c.b16 %v296, %v260
  %v369 = vpack.c.b16 %v297, %v261
  %v370 = vpack.c.b16 %v298, %v262
  %v371 = vpack.c.b16 %v299, %v263
  %v372 = vpack.c.b16 %v300, %v264
  %v373 = vpack.c.b16 %v301, %v265
  %v374 = vpack.c.b16 %v302, %v266
  %v375 = vpack.c.b16 %v303, %v267
  %v376 = vpack.c.b16 %v304, %v268
  %v377 = vpack.c.b16 %v305, %v269
  %v378 = vpack.c.b16 %v306, %v270
  %v379 = vpack.c.b16 %v307, %v271
  %v380 = vpack.c.b16 %v308, %v272
  %v381 = vpack.c.b16 %v309, %v273
  %v382 = vpack.c.b16 %v310, %v274
  %v383 = vpack.c.b16 %v311, %v275
  %v384 = vpack.c.b16 %v312, %v276
  %v385 = vpack.c.b16 %v313, %v277
  %v386 = vpack.c.b16 %v314, %v278
  %v387 = vpack.c.b16 %v315, %v279
  %v388 = vpack.c.b16 %v316, %v280
  %vm425 = vcmask 220160
  %v427 = vsel %vm425, %v99, 0
  %v430 = vsel %vm425, %v100, 0
  %vm432 = vcmask 1044480
  %vm433 = vcmask 1045504
  %v434 = vsel %vm432, 4294967295, 65535
  %v435 = vsel %vm433, %v434, 0
  %v437 = vand.u32 %v353, %v435
  %v440 = vand.u32 %v354, %v435
  %v443 = vand.u32 %v355, %v435
  %v446 = vand.u32 %v356, %v435
  %v449 = vand.u32 %v357, %v435
  %v452 = vand.u32 %v358, %v435
  %v455 = vand.u32 %v359, %v435
  %v458 = vand.u32 %v360, %v435
  %v461 = vand.u32 %v361, %v435
  %v464 = vand.u32 %v362, %v435
  %v467 = vand.u32 %v363, %v435
  %v470 = vand.u32 %v364, %v435
  %v473 = vand.u32 %v365, %v435
  %v476 = vand.u32 %v366, %v435
  %v479 = vand.u32 %v367, %v435
  %v482 = vand.u32 %v368, %v435
  %v485 = vand.u32 %v369, %v435
  %v488 = vand.u32 %v370, %v435
  %v491 = vand.u32 %v371, %v435
  %v494 = vand.u32 %v372, %v435
  %v497 = vand.u32 %v373, %v435
  %v500 = vand.u32 %v374, %v435
  %v503 = vand.u32 %v375, %v435
  %v506 = vand.u32 %v376, %v435
  %v509 = vand.u32 %v377, %v435
  %v512 = vand.u32 %v378, %v435
  %v515 = vand.u32 %v379, %v435
  %v518 = vand.u32 %v380, %v435
  %v521 = vand.u32 %v381, %v435
  %v524 = vand.u32 %v382, %v435
  %v527 = vand.u32 %v383, %v435
  %v530 = vand.u32 %v384, %v435
  %v533 = vand.u32 %v385, %v435
  %v536 = vand.u32 %v386, %v435
  %v539 = vand.u32 %v387, %v435
  %v542 = vand.u32 %v388, %v435
  %544 = vmatprep.subr.bf16.mxu0 0
  %545 = vmatpush1.bf16.msra.mxu0 0
  %546 = vmatprep.subr.bf16.mxu0 0
  %547 = vmatpush1.bf16.msra.mxu0 0
  %548 = vmatprep.subr.bf16.mxu0 0
  %549 = vmatpush1.bf16.msra.mxu0 0
  %550 = vmatprep.subr.bf16.mxu0 0
  %551 = vmatpush1.bf16.msra.mxu0 0
  %552 = vmatprep.subr.bf16.mxu0 0
  %553 = vmatpush1.bf16.msra.mxu0 0
  %554 = vmatprep.subr.bf16.mxu0 0
  %555 = vmatpush1.bf16.msra.mxu0 0
  %556 = vmatprep.subr.bf16.mxu0 %v440
  %557 = vmatpush1.bf16.msra.mxu0 %v437
  %558 = vmatprep.subr.bf16.mxu0 %v318
  %559 = vmatpush1.bf16.msra.mxu0 %v317
  %560 = vmatprep.subr.bf16.mxu0 0
  %561 = vmatpush2.bf16.msra.mxu0 0
  %562 = vmatprep.subr.bf16.mxu0 0
  %563 = vmatpush2.bf16.msra.mxu0 0
  %564 = vmatprep.subr.bf16.mxu0 0
  %565 = vmatpush2.bf16.msra.mxu0 0
  %566 = vmatprep.subr.bf16.mxu0 0
  %567 = vmatpush2.bf16.msra.mxu0 0
  %568 = vmatprep.subr.bf16.mxu0 0
  %569 = vmatpush2.bf16.msra.mxu0 0
  %570 = vmatprep.subr.bf16.mxu0 0
  %571 = vmatpush2.bf16.msra.mxu0 0
  %572 = vmatprep.subr.bf16.mxu0 0
  %573 = vmatpush2.bf16.msra.mxu0 0
  %574 = vmatprep.subr.bf16.mxu0 0
  %575 = vmatpush2.bf16.msra.mxu0 0
  %576 = vmatprep.mubr.bf16.mxu0 0
  %577 = vmatmul.mubr.bf16.gmra.mxu0 %v427
  %v578 = vpop.f32.mrf.mxu0
  %v579 = vadd.f32 0.0, %v578
  %v580 = vpop.f32.mrf.mxu0
  %v581 = vadd.f32 0.0, %v580
  %v582 = vpop.f32.mrf.mxu0
  %v583 = vadd.f32 0.0, %v582
  %v584 = vpop.f32.mrf.mxu0
  %v585 = vadd.f32 0.0, %v584
  %586 = vmatprep.mubr.bf16.mxu0 0
  %587 = vmatmul.mubr.bf16.gmra.mxu0 %v430
  %v588 = vpop.f32.mrf.mxu0
  %v589 = vadd.f32 0.0, %v588
  %v590 = vpop.f32.mrf.mxu0
  %v591 = vadd.f32 0.0, %v590
  %v592 = vpop.f32.mrf.mxu0
  %v593 = vadd.f32 0.0, %v592
  %v594 = vpop.f32.mrf.mxu0
  %v595 = vadd.f32 0.0, %v594
  %596 = vdwg.mxu0
  %597 = vmatprep.subr.bf16.mxu0 0
  %598 = vmatpush1.bf16.msra.mxu0 0
  %599 = vmatprep.subr.bf16.mxu0 0
  %600 = vmatpush1.bf16.msra.mxu0 0
  %601 = vmatprep.subr.bf16.mxu0 0
  %602 = vmatpush1.bf16.msra.mxu0 0
  %603 = vmatprep.subr.bf16.mxu0 0
  %604 = vmatpush1.bf16.msra.mxu0 0
  %605 = vmatprep.subr.bf16.mxu0 0
  %606 = vmatpush1.bf16.msra.mxu0 0
  %607 = vmatprep.subr.bf16.mxu0 0
  %608 = vmatpush1.bf16.msra.mxu0 0
  %609 = vmatprep.subr.bf16.mxu0 %v446
  %610 = vmatpush1.bf16.msra.mxu0 %v443
  %611 = vmatprep.subr.bf16.mxu0 %v320
  %612 = vmatpush1.bf16.msra.mxu0 %v319
  %613 = vmatprep.subr.bf16.mxu0 0
  %614 = vmatpush2.bf16.msra.mxu0 0
  %615 = vmatprep.subr.bf16.mxu0 0
  %616 = vmatpush2.bf16.msra.mxu0 0
  %617 = vmatprep.subr.bf16.mxu0 0
  %618 = vmatpush2.bf16.msra.mxu0 0
  %619 = vmatprep.subr.bf16.mxu0 0
  %620 = vmatpush2.bf16.msra.mxu0 0
  %621 = vmatprep.subr.bf16.mxu0 0
  %622 = vmatpush2.bf16.msra.mxu0 0
  %623 = vmatprep.subr.bf16.mxu0 0
  %624 = vmatpush2.bf16.msra.mxu0 0
  %625 = vmatprep.subr.bf16.mxu0 0
  %626 = vmatpush2.bf16.msra.mxu0 0
  %627 = vmatprep.subr.bf16.mxu0 0
  %628 = vmatpush2.bf16.msra.mxu0 0
  %629 = vmatprep.mubr.bf16.mxu0 0
  %630 = vmatmul.mubr.bf16.gmra.mxu0 %v427
  %v631 = vpop.f32.mrf.mxu0
  %v632 = vadd.f32 0.0, %v631
  %v633 = vpop.f32.mrf.mxu0
  %v634 = vadd.f32 0.0, %v633
  %v635 = vpop.f32.mrf.mxu0
  %v636 = vadd.f32 0.0, %v635
  %v637 = vpop.f32.mrf.mxu0
  %v638 = vadd.f32 0.0, %v637
  %639 = vmatprep.mubr.bf16.mxu0 0
  %640 = vmatmul.mubr.bf16.gmra.mxu0 %v430
  %v641 = vpop.f32.mrf.mxu0
  %v642 = vadd.f32 0.0, %v641
  %v643 = vpop.f32.mrf.mxu0
  %v644 = vadd.f32 0.0, %v643
  %v645 = vpop.f32.mrf.mxu0
  %v646 = vadd.f32 0.0, %v645
  %v647 = vpop.f32.mrf.mxu0
  %v648 = vadd.f32 0.0, %v647
  %649 = vdwg.mxu0
  %650 = vmatprep.subr.bf16.mxu0 0
  %651 = vmatpush1.bf16.msra.mxu0 0
  %652 = vmatprep.subr.bf16.mxu0 0
  %653 = vmatpush1.bf16.msra.mxu0 0
  %654 = vmatprep.subr.bf16.mxu0 0
  %655 = vmatpush1.bf16.msra.mxu0 0
  %656 = vmatprep.subr.bf16.mxu0 0
  %657 = vmatpush1.bf16.msra.mxu0 0
  %658 = vmatprep.subr.bf16.mxu0 0
  %659 = vmatpush1.bf16.msra.mxu0 0
  %660 = vmatprep.subr.bf16.mxu0 0
  %661 = vmatpush1.bf16.msra.mxu0 0
  %662 = vmatprep.subr.bf16.mxu0 %v452
  %663 = vmatpush1.bf16.msra.mxu0 %v449
  %664 = vmatprep.subr.bf16.mxu0 %v322
  %665 = vmatpush1.bf16.msra.mxu0 %v321
  %666 = vmatprep.subr.bf16.mxu0 0
  %667 = vmatpush2.bf16.msra.mxu0 0
  %668 = vmatprep.subr.bf16.mxu0 0
  %669 = vmatpush2.bf16.msra.mxu0 0
  %670 = vmatprep.subr.bf16.mxu0 0
  %671 = vmatpush2.bf16.msra.mxu0 0
  %672 = vmatprep.subr.bf16.mxu0 0
  %673 = vmatpush2.bf16.msra.mxu0 0
  %674 = vmatprep.subr.bf16.mxu0 0
  %675 = vmatpush2.bf16.msra.mxu0 0
  %676 = vmatprep.subr.bf16.mxu0 0
  %677 = vmatpush2.bf16.msra.mxu0 0
  %678 = vmatprep.subr.bf16.mxu0 0
  %679 = vmatpush2.bf16.msra.mxu0 0
  %680 = vmatprep.subr.bf16.mxu0 0
  %681 = vmatpush2.bf16.msra.mxu0 0
  %682 = vmatprep.mubr.bf16.mxu0 0
  %683 = vmatmul.mubr.bf16.gmra.mxu0 %v427
  %v684 = vpop.f32.mrf.mxu0
  %v685 = vadd.f32 0.0, %v684
  %v686 = vpop.f32.mrf.mxu0
  %v687 = vadd.f32 0.0, %v686
  %v688 = vpop.f32.mrf.mxu0
  %v689 = vadd.f32 0.0, %v688
  %v690 = vpop.f32.mrf.mxu0
  %v691 = vadd.f32 0.0, %v690
  %692 = vmatprep.mubr.bf16.mxu0 0
  %693 = vmatmul.mubr.bf16.gmra.mxu0 %v430
  %v694 = vpop.f32.mrf.mxu0
  %v695 = vadd.f32 0.0, %v694
  %v696 = vpop.f32.mrf.mxu0
  %v697 = vadd.f32 0.0, %v696
  %v698 = vpop.f32.mrf.mxu0
  %v699 = vadd.f32 0.0, %v698
  %v700 = vpop.f32.mrf.mxu0
  %v701 = vadd.f32 0.0, %v700
  %702 = vdwg.mxu0
  %703 = vmatprep.subr.bf16.mxu0 0
  %704 = vmatpush1.bf16.msra.mxu0 0
  %705 = vmatprep.subr.bf16.mxu0 0
  %706 = vmatpush1.bf16.msra.mxu0 0
  %707 = vmatprep.subr.bf16.mxu0 0
  %708 = vmatpush1.bf16.msra.mxu0 0
  %709 = vmatprep.subr.bf16.mxu0 0
  %710 = vmatpush1.bf16.msra.mxu0 0
  %711 = vmatprep.subr.bf16.mxu0 0
  %712 = vmatpush1.bf16.msra.mxu0 0
  %713 = vmatprep.subr.bf16.mxu0 0
  %714 = vmatpush1.bf16.msra.mxu0 0
  %715 = vmatprep.subr.bf16.mxu0 %v458
  %716 = vmatpush1.bf16.msra.mxu0 %v455
  %717 = vmatprep.subr.bf16.mxu0 %v324
  %718 = vmatpush1.bf16.msra.mxu0 %v323
  %719 = vmatprep.subr.bf16.mxu0 0
  %720 = vmatpush2.bf16.msra.mxu0 0
  %721 = vmatprep.subr.bf16.mxu0 0
  %722 = vmatpush2.bf16.msra.mxu0 0
  %723 = vmatprep.subr.bf16.mxu0 0
  %724 = vmatpush2.bf16.msra.mxu0 0
  %725 = vmatprep.subr.bf16.mxu0 0
  %726 = vmatpush2.bf16.msra.mxu0 0
  %727 = vmatprep.subr.bf16.mxu0 0
  %728 = vmatpush2.bf16.msra.mxu0 0
  %729 = vmatprep.subr.bf16.mxu0 0
  %730 = vmatpush2.bf16.msra.mxu0 0
  %731 = vmatprep.subr.bf16.mxu0 0
  %732 = vmatpush2.bf16.msra.mxu0 0
  %733 = vmatprep.subr.bf16.mxu0 0
  %734 = vmatpush2.bf16.msra.mxu0 0
  %735 = vmatprep.mubr.bf16.mxu0 0
  %736 = vmatmul.mubr.bf16.gmra.mxu0 %v427
  %v737 = vpop.f32.mrf.mxu0
  %v738 = vadd.f32 0.0, %v737
  %v739 = vpop.f32.mrf.mxu0
  %v740 = vadd.f32 0.0, %v739
  %v741 = vpop.f32.mrf.mxu0
  %v742 = vadd.f32 0.0, %v741
  %v743 = vpop.f32.mrf.mxu0
  %v744 = vadd.f32 0.0, %v743
  %745 = vmatprep.mubr.bf16.mxu0 0
  %746 = vmatmul.mubr.bf16.gmra.mxu0 %v430
  %v747 = vpop.f32.mrf.mxu0
  %v748 = vadd.f32 0.0, %v747
  %v749 = vpop.f32.mrf.mxu0
  %v750 = vadd.f32 0.0, %v749
  %v751 = vpop.f32.mrf.mxu0
  %v752 = vadd.f32 0.0, %v751
  %v753 = vpop.f32.mrf.mxu0
  %v754 = vadd.f32 0.0, %v753
  %755 = vdwg.mxu0
  %756 = vmatprep.subr.bf16.mxu0 0
  %757 = vmatpush1.bf16.msra.mxu0 0
  %758 = vmatprep.subr.bf16.mxu0 0
  %759 = vmatpush1.bf16.msra.mxu0 0
  %760 = vmatprep.subr.bf16.mxu0 0
  %761 = vmatpush1.bf16.msra.mxu0 0
  %762 = vmatprep.subr.bf16.mxu0 0
  %763 = vmatpush1.bf16.msra.mxu0 0
  %764 = vmatprep.subr.bf16.mxu0 0
  %765 = vmatpush1.bf16.msra.mxu0 0
  %766 = vmatprep.subr.bf16.mxu0 0
  %767 = vmatpush1.bf16.msra.mxu0 0
  %768 = vmatprep.subr.bf16.mxu0 %v464
  %769 = vmatpush1.bf16.msra.mxu0 %v461
  %770 = vmatprep.subr.bf16.mxu0 %v326
  %771 = vmatpush1.bf16.msra.mxu0 %v325
  %772 = vmatprep.subr.bf16.mxu0 0
  %773 = vmatpush2.bf16.msra.mxu0 0
  %774 = vmatprep.subr.bf16.mxu0 0
  %775 = vmatpush2.bf16.msra.mxu0 0
  %776 = vmatprep.subr.bf16.mxu0 0
  %777 = vmatpush2.bf16.msra.mxu0 0
  %778 = vmatprep.subr.bf16.mxu0 0
  %779 = vmatpush2.bf16.msra.mxu0 0
  %780 = vmatprep.subr.bf16.mxu0 0
  %781 = vmatpush2.bf16.msra.mxu0 0
  %782 = vmatprep.subr.bf16.mxu0 0
  %783 = vmatpush2.bf16.msra.mxu0 0
  %784 = vmatprep.subr.bf16.mxu0 0
  %785 = vmatpush2.bf16.msra.mxu0 0
  %786 = vmatprep.subr.bf16.mxu0 0
  %787 = vmatpush2.bf16.msra.mxu0 0
  %788 = vmatprep.mubr.bf16.mxu0 0
  %789 = vmatmul.mubr.bf16.gmra.mxu0 %v427
  %v790 = vpop.f32.mrf.mxu0
  %v791 = vadd.f32 0.0, %v790
  %v792 = vpop.f32.mrf.mxu0
  %v793 = vadd.f32 0.0, %v792
  %v794 = vpop.f32.mrf.mxu0
  %v795 = vadd.f32 0.0, %v794
  %v796 = vpop.f32.mrf.mxu0
  %v797 = vadd.f32 0.0, %v796
  %798 = vmatprep.mubr.bf16.mxu0 0
  %799 = vmatmul.mubr.bf16.gmra.mxu0 %v430
  %v800 = vpop.f32.mrf.mxu0
  %v801 = vadd.f32 0.0, %v800
  %v802 = vpop.f32.mrf.mxu0
  %v803 = vadd.f32 0.0, %v802
  %v804 = vpop.f32.mrf.mxu0
  %v805 = vadd.f32 0.0, %v804
  %v806 = vpop.f32.mrf.mxu0
  %v807 = vadd.f32 0.0, %v806
  %808 = vdwg.mxu0
  %809 = vmatprep.subr.bf16.mxu0 0
  %810 = vmatpush1.bf16.msra.mxu0 0
  %811 = vmatprep.subr.bf16.mxu0 0
  %812 = vmatpush1.bf16.msra.mxu0 0
  %813 = vmatprep.subr.bf16.mxu0 0
  %814 = vmatpush1.bf16.msra.mxu0 0
  %815 = vmatprep.subr.bf16.mxu0 0
  %816 = vmatpush1.bf16.msra.mxu0 0
  %817 = vmatprep.subr.bf16.mxu0 0
  %818 = vmatpush1.bf16.msra.mxu0 0
  %819 = vmatprep.subr.bf16.mxu0 0
  %820 = vmatpush1.bf16.msra.mxu0 0
  %821 = vmatprep.subr.bf16.mxu0 %v470
  %822 = vmatpush1.bf16.msra.mxu0 %v467
  %823 = vmatprep.subr.bf16.mxu0 %v328
  %824 = vmatpush1.bf16.msra.mxu0 %v327
  %825 = vmatprep.subr.bf16.mxu0 0
  %826 = vmatpush2.bf16.msra.mxu0 0
  %827 = vmatprep.subr.bf16.mxu0 0
  %828 = vmatpush2.bf16.msra.mxu0 0
  %829 = vmatprep.subr.bf16.mxu0 0
  %830 = vmatpush2.bf16.msra.mxu0 0
  %831 = vmatprep.subr.bf16.mxu0 0
  %832 = vmatpush2.bf16.msra.mxu0 0
  %833 = vmatprep.subr.bf16.mxu0 0
  %834 = vmatpush2.bf16.msra.mxu0 0
  %835 = vmatprep.subr.bf16.mxu0 0
  %836 = vmatpush2.bf16.msra.mxu0 0
  %837 = vmatprep.subr.bf16.mxu0 0
  %838 = vmatpush2.bf16.msra.mxu0 0
  %839 = vmatprep.subr.bf16.mxu0 0
  %840 = vmatpush2.bf16.msra.mxu0 0
  %841 = vmatprep.mubr.bf16.mxu0 0
  %842 = vmatmul.mubr.bf16.gmra.mxu0 %v427
  %v843 = vpop.f32.mrf.mxu0
  %v844 = vadd.f32 0.0, %v843
  %v845 = vpop.f32.mrf.mxu0
  %v846 = vadd.f32 0.0, %v845
  %v847 = vpop.f32.mrf.mxu0
  %v848 = vadd.f32 0.0, %v847
  %v849 = vpop.f32.mrf.mxu0
  %v850 = vadd.f32 0.0, %v849
  %851 = vmatprep.mubr.bf16.mxu0 0
  %852 = vmatmul.mubr.bf16.gmra.mxu0 %v430
  %v853 = vpop.f32.mrf.mxu0
  %v854 = vadd.f32 0.0, %v853
  %v855 = vpop.f32.mrf.mxu0
  %v856 = vadd.f32 0.0, %v855
  %v857 = vpop.f32.mrf.mxu0
  %v858 = vadd.f32 0.0, %v857
  %v859 = vpop.f32.mrf.mxu0
  %v860 = vadd.f32 0.0, %v859
  %861 = vdwg.mxu0
  %862 = vmatprep.subr.bf16.mxu0 0
  %863 = vmatpush1.bf16.msra.mxu0 0
  %864 = vmatprep.subr.bf16.mxu0 0
  %865 = vmatpush1.bf16.msra.mxu0 0
  %866 = vmatprep.subr.bf16.mxu0 0
  %867 = vmatpush1.bf16.msra.mxu0 0
  %868 = vmatprep.subr.bf16.mxu0 0
  %869 = vmatpush1.bf16.msra.mxu0 0
  %870 = vmatprep.subr.bf16.mxu0 0
  %871 = vmatpush1.bf16.msra.mxu0 0
  %872 = vmatprep.subr.bf16.mxu0 0
  %873 = vmatpush1.bf16.msra.mxu0 0
  %874 = vmatprep.subr.bf16.mxu0 %v476
  %875 = vmatpush1.bf16.msra.mxu0 %v473
  %876 = vmatprep.subr.bf16.mxu0 %v330
  %877 = vmatpush1.bf16.msra.mxu0 %v329
  %878 = vmatprep.subr.bf16.mxu0 0
  %879 = vmatpush2.bf16.msra.mxu0 0
  %880 = vmatprep.subr.bf16.mxu0 0
  %881 = vmatpush2.bf16.msra.mxu0 0
  %882 = vmatprep.subr.bf16.mxu0 0
  %883 = vmatpush2.bf16.msra.mxu0 0
  %884 = vmatprep.subr.bf16.mxu0 0
  %885 = vmatpush2.bf16.msra.mxu0 0
  %886 = vmatprep.subr.bf16.mxu0 0
  %887 = vmatpush2.bf16.msra.mxu0 0
  %888 = vmatprep.subr.bf16.mxu0 0
  %889 = vmatpush2.bf16.msra.mxu0 0
  %890 = vmatprep.subr.bf16.mxu0 0
  %891 = vmatpush2.bf16.msra.mxu0 0
  %892 = vmatprep.subr.bf16.mxu0 0
  %893 = vmatpush2.bf16.msra.mxu0 0
  %894 = vmatprep.mubr.bf16.mxu0 0
  %895 = vmatmul.mubr.bf16.gmra.mxu0 %v427
  %v896 = vpop.f32.mrf.mxu0
  %v897 = vadd.f32 0.0, %v896
  %v898 = vpop.f32.mrf.mxu0
  %v899 = vadd.f32 0.0, %v898
  %v900 = vpop.f32.mrf.mxu0
  %v901 = vadd.f32 0.0, %v900
  %v902 = vpop.f32.mrf.mxu0
  %v903 = vadd.f32 0.0, %v902
  %904 = vmatprep.mubr.bf16.mxu0 0
  %905 = vmatmul.mubr.bf16.gmra.mxu0 %v430
  %v906 = vpop.f32.mrf.mxu0
  %v907 = vadd.f32 0.0, %v906
  %v908 = vpop.f32.mrf.mxu0
  %v909 = vadd.f32 0.0, %v908
  %v910 = vpop.f32.mrf.mxu0
  %v911 = vadd.f32 0.0, %v910
  %v912 = vpop.f32.mrf.mxu0
  %v913 = vadd.f32 0.0, %v912
  %914 = vdwg.mxu0
  %915 = vmatprep.subr.bf16.mxu0 0
  %916 = vmatpush1.bf16.msra.mxu0 0
  %917 = vmatprep.subr.bf16.mxu0 0
  %918 = vmatpush1.bf16.msra.mxu0 0
  %919 = vmatprep.subr.bf16.mxu0 0
  %920 = vmatpush1.bf16.msra.mxu0 0
  %921 = vmatprep.subr.bf16.mxu0 0
  %922 = vmatpush1.bf16.msra.mxu0 0
  %923 = vmatprep.subr.bf16.mxu0 0
  %924 = vmatpush1.bf16.msra.mxu0 0
  %925 = vmatprep.subr.bf16.mxu0 0
  %926 = vmatpush1.bf16.msra.mxu0 0
  %927 = vmatprep.subr.bf16.mxu0 %v482
  %928 = vmatpush1.bf16.msra.mxu0 %v479
  %929 = vmatprep.subr.bf16.mxu0 %v332
  %930 = vmatpush1.bf16.msra.mxu0 %v331
  %931 = vmatprep.subr.bf16.mxu0 0
  %932 = vmatpush2.bf16.msra.mxu0 0
  %933 = vmatprep.subr.bf16.mxu0 0
  %934 = vmatpush2.bf16.msra.mxu0 0
  %935 = vmatprep.subr.bf16.mxu0 0
  %936 = vmatpush2.bf16.msra.mxu0 0
  %937 = vmatprep.subr.bf16.mxu0 0
  %938 = vmatpush2.bf16.msra.mxu0 0
  %939 = vmatprep.subr.bf16.mxu0 0
  %940 = vmatpush2.bf16.msra.mxu0 0
  %941 = vmatprep.subr.bf16.mxu0 0
  %942 = vmatpush2.bf16.msra.mxu0 0
  %943 = vmatprep.subr.bf16.mxu0 0
  %944 = vmatpush2.bf16.msra.mxu0 0
  %945 = vmatprep.subr.bf16.mxu0 0
  %946 = vmatpush2.bf16.msra.mxu0 0
  %947 = vmatprep.mubr.bf16.mxu0 0
  %948 = vmatmul.mubr.bf16.gmra.mxu0 %v427
  %v949 = vpop.f32.mrf.mxu0
  %v950 = vadd.f32 0.0, %v949
  %v951 = vpop.f32.mrf.mxu0
  %v952 = vadd.f32 0.0, %v951
  %v953 = vpop.f32.mrf.mxu0
  %v954 = vadd.f32 0.0, %v953
  %v955 = vpop.f32.mrf.mxu0
  %v956 = vadd.f32 0.0, %v955
  %957 = vmatprep.mubr.bf16.mxu0 0
  %958 = vmatmul.mubr.bf16.gmra.mxu0 %v430
  %v959 = vpop.f32.mrf.mxu0
  %v960 = vadd.f32 0.0, %v959
  %v961 = vpop.f32.mrf.mxu0
  %v962 = vadd.f32 0.0, %v961
  %v963 = vpop.f32.mrf.mxu0
  %v964 = vadd.f32 0.0, %v963
  %v965 = vpop.f32.mrf.mxu0
  %v966 = vadd.f32 0.0, %v965
  %967 = vdwg.mxu0
  %968 = vmatprep.subr.bf16.mxu0 0
  %969 = vmatpush1.bf16.msra.mxu0 0
  %970 = vmatprep.subr.bf16.mxu0 0
  %971 = vmatpush1.bf16.msra.mxu0 0
  %972 = vmatprep.subr.bf16.mxu0 0
  %973 = vmatpush1.bf16.msra.mxu0 0
  %974 = vmatprep.subr.bf16.mxu0 0
  %975 = vmatpush1.bf16.msra.mxu0 0
  %976 = vmatprep.subr.bf16.mxu0 0
  %977 = vmatpush1.bf16.msra.mxu0 0
  %978 = vmatprep.subr.bf16.mxu0 0
  %979 = vmatpush1.bf16.msra.mxu0 0
  %980 = vmatprep.subr.bf16.mxu0 %v488
  %981 = vmatpush1.bf16.msra.mxu0 %v485
  %982 = vmatprep.subr.bf16.mxu0 %v334
  %983 = vmatpush1.bf16.msra.mxu0 %v333
  %984 = vmatprep.subr.bf16.mxu0 0
  %985 = vmatpush2.bf16.msra.mxu0 0
  %986 = vmatprep.subr.bf16.mxu0 0
  %987 = vmatpush2.bf16.msra.mxu0 0
  %988 = vmatprep.subr.bf16.mxu0 0
  %989 = vmatpush2.bf16.msra.mxu0 0
  %990 = vmatprep.subr.bf16.mxu0 0
  %991 = vmatpush2.bf16.msra.mxu0 0
  %992 = vmatprep.subr.bf16.mxu0 0
  %993 = vmatpush2.bf16.msra.mxu0 0
  %994 = vmatprep.subr.bf16.mxu0 0
  %995 = vmatpush2.bf16.msra.mxu0 0
  %996 = vmatprep.subr.bf16.mxu0 0
  %997 = vmatpush2.bf16.msra.mxu0 0
  %998 = vmatprep.subr.bf16.mxu0 0
  %999 = vmatpush2.bf16.msra.mxu0 0
  %1000 = vmatprep.mubr.bf16.mxu0 0
  %1001 = vmatmul.mubr.bf16.gmra.mxu0 %v427
  %v1002 = vpop.f32.mrf.mxu0
  %v1003 = vadd.f32 0.0, %v1002
  %v1004 = vpop.f32.mrf.mxu0
  %v1005 = vadd.f32 0.0, %v1004
  %v1006 = vpop.f32.mrf.mxu0
  %v1007 = vadd.f32 0.0, %v1006
  %v1008 = vpop.f32.mrf.mxu0
  %v1009 = vadd.f32 0.0, %v1008
  %1010 = vmatprep.mubr.bf16.mxu0 0
  %1011 = vmatmul.mubr.bf16.gmra.mxu0 %v430
  %v1012 = vpop.f32.mrf.mxu0
  %v1013 = vadd.f32 0.0, %v1012
  %v1014 = vpop.f32.mrf.mxu0
  %v1015 = vadd.f32 0.0, %v1014
  %v1016 = vpop.f32.mrf.mxu0
  %v1017 = vadd.f32 0.0, %v1016
  %v1018 = vpop.f32.mrf.mxu0
  %v1019 = vadd.f32 0.0, %v1018
  %1020 = vdwg.mxu0
  %1021 = vmatprep.subr.bf16.mxu0 0
  %1022 = vmatpush1.bf16.msra.mxu0 0
  %1023 = vmatprep.subr.bf16.mxu0 0
  %1024 = vmatpush1.bf16.msra.mxu0 0
  %1025 = vmatprep.subr.bf16.mxu0 0
  %1026 = vmatpush1.bf16.msra.mxu0 0
  %1027 = vmatprep.subr.bf16.mxu0 0
  %1028 = vmatpush1.bf16.msra.mxu0 0
  %1029 = vmatprep.subr.bf16.mxu0 0
  %1030 = vmatpush1.bf16.msra.mxu0 0
  %1031 = vmatprep.subr.bf16.mxu0 0
  %1032 = vmatpush1.bf16.msra.mxu0 0
  %1033 = vmatprep.subr.bf16.mxu0 %v494
  %1034 = vmatpush1.bf16.msra.mxu0 %v491
  %1035 = vmatprep.subr.bf16.mxu0 %v336
  %1036 = vmatpush1.bf16.msra.mxu0 %v335
  %1037 = vmatprep.subr.bf16.mxu0 0
  %1038 = vmatpush2.bf16.msra.mxu0 0
  %1039 = vmatprep.subr.bf16.mxu0 0
  %1040 = vmatpush2.bf16.msra.mxu0 0
  %1041 = vmatprep.subr.bf16.mxu0 0
  %1042 = vmatpush2.bf16.msra.mxu0 0
  %1043 = vmatprep.subr.bf16.mxu0 0
  %1044 = vmatpush2.bf16.msra.mxu0 0
  %1045 = vmatprep.subr.bf16.mxu0 0
  %1046 = vmatpush2.bf16.msra.mxu0 0
  %1047 = vmatprep.subr.bf16.mxu0 0
  %1048 = vmatpush2.bf16.msra.mxu0 0
  %1049 = vmatprep.subr.bf16.mxu0 0
  %1050 = vmatpush2.bf16.msra.mxu0 0
  %1051 = vmatprep.subr.bf16.mxu0 0
  %1052 = vmatpush2.bf16.msra.mxu0 0
  %1053 = vmatprep.mubr.bf16.mxu0 0
  %1054 = vmatmul.mubr.bf16.gmra.mxu0 %v427
  %v1055 = vpop.f32.mrf.mxu0
  %v1056 = vadd.f32 0.0, %v1055
  %v1057 = vpop.f32.mrf.mxu0
  %v1058 = vadd.f32 0.0, %v1057
  %v1059 = vpop.f32.mrf.mxu0
  %v1060 = vadd.f32 0.0, %v1059
  %v1061 = vpop.f32.mrf.mxu0
  %v1062 = vadd.f32 0.0, %v1061
  %1063 = vmatprep.mubr.bf16.mxu0 0
  %1064 = vmatmul.mubr.bf16.gmra.mxu0 %v430
  %v1065 = vpop.f32.mrf.mxu0
  %v1066 = vadd.f32 0.0, %v1065
  %v1067 = vpop.f32.mrf.mxu0
  %v1068 = vadd.f32 0.0, %v1067
  %v1069 = vpop.f32.mrf.mxu0
  %v1070 = vadd.f32 0.0, %v1069
  %v1071 = vpop.f32.mrf.mxu0
  %v1072 = vadd.f32 0.0, %v1071
  %1073 = vdwg.mxu0
  %1074 = vmatprep.subr.bf16.mxu0 0
  %1075 = vmatpush1.bf16.msra.mxu0 0
  %1076 = vmatprep.subr.bf16.mxu0 0
  %1077 = vmatpush1.bf16.msra.mxu0 0
  %1078 = vmatprep.subr.bf16.mxu0 0
  %1079 = vmatpush1.bf16.msra.mxu0 0
  %1080 = vmatprep.subr.bf16.mxu0 0
  %1081 = vmatpush1.bf16.msra.mxu0 0
  %1082 = vmatprep.subr.bf16.mxu0 0
  %1083 = vmatpush1.bf16.msra.mxu0 0
  %1084 = vmatprep.subr.bf16.mxu0 0
  %1085 = vmatpush1.bf16.msra.mxu0 0
  %1086 = vmatprep.subr.bf16.mxu0 %v500
  %1087 = vmatpush1.bf16.msra.mxu0 %v497
  %1088 = vmatprep.subr.bf16.mxu0 %v338
  %1089 = vmatpush1.bf16.msra.mxu0 %v337
  %1090 = vmatprep.subr.bf16.mxu0 0
  %1091 = vmatpush2.bf16.msra.mxu0 0
  %1092 = vmatprep.subr.bf16.mxu0 0
  %1093 = vmatpush2.bf16.msra.mxu0 0
  %1094 = vmatprep.subr.bf16.mxu0 0
  %1095 = vmatpush2.bf16.msra.mxu0 0
  %1096 = vmatprep.subr.bf16.mxu0 0
  %1097 = vmatpush2.bf16.msra.mxu0 0
  %1098 = vmatprep.subr.bf16.mxu0 0
  %1099 = vmatpush2.bf16.msra.mxu0 0
  %1100 = vmatprep.subr.bf16.mxu0 0
  %1101 = vmatpush2.bf16.msra.mxu0 0
  %1102 = vmatprep.subr.bf16.mxu0 0
  %1103 = vmatpush2.bf16.msra.mxu0 0
  %1104 = vmatprep.subr.bf16.mxu0 0
  %1105 = vmatpush2.bf16.msra.mxu0 0
  %1106 = vmatprep.mubr.bf16.mxu0 0
  %1107 = vmatmul.mubr.bf16.gmra.mxu0 %v427
  %v1108 = vpop.f32.mrf.mxu0
  %v1109 = vadd.f32 0.0, %v1108
  %v1110 = vpop.f32.mrf.mxu0
  %v1111 = vadd.f32 0.0, %v1110
  %v1112 = vpop.f32.mrf.mxu0
  %v1113 = vadd.f32 0.0, %v1112
  %v1114 = vpop.f32.mrf.mxu0
  %v1115 = vadd.f32 0.0, %v1114
  %1116 = vmatprep.mubr.bf16.mxu0 0
  %1117 = vmatmul.mubr.bf16.gmra.mxu0 %v430
  %v1118 = vpop.f32.mrf.mxu0
  %v1119 = vadd.f32 0.0, %v1118
  %v1120 = vpop.f32.mrf.mxu0
  %v1121 = vadd.f32 0.0, %v1120
  %v1122 = vpop.f32.mrf.mxu0
  %v1123 = vadd.f32 0.0, %v1122
  %v1124 = vpop.f32.mrf.mxu0
  %v1125 = vadd.f32 0.0, %v1124
  %1126 = vdwg.mxu0
  %1127 = vmatprep.subr.bf16.mxu0 0
  %1128 = vmatpush1.bf16.msra.mxu0 0
  %1129 = vmatprep.subr.bf16.mxu0 0
  %1130 = vmatpush1.bf16.msra.mxu0 0
  %1131 = vmatprep.subr.bf16.mxu0 0
  %1132 = vmatpush1.bf16.msra.mxu0 0
  %1133 = vmatprep.subr.bf16.mxu0 0
  %1134 = vmatpush1.bf16.msra.mxu0 0
  %1135 = vmatprep.subr.bf16.mxu0 0
  %1136 = vmatpush1.bf16.msra.mxu0 0
  %1137 = vmatprep.subr.bf16.mxu0 0
  %1138 = vmatpush1.bf16.msra.mxu0 0
  %1139 = vmatprep.subr.bf16.mxu0 %v506
  %1140 = vmatpush1.bf16.msra.mxu0 %v503
  %1141 = vmatprep.subr.bf16.mxu0 %v340
  %1142 = vmatpush1.bf16.msra.mxu0 %v339
  %1143 = vmatprep.subr.bf16.mxu0 0
  %1144 = vmatpush2.bf16.msra.mxu0 0
  %1145 = vmatprep.subr.bf16.mxu0 0
  %1146 = vmatpush2.bf16.msra.mxu0 0
  %1147 = vmatprep.subr.bf16.mxu0 0
  %1148 = vmatpush2.bf16.msra.mxu0 0
  %1149 = vmatprep.subr.bf16.mxu0 0
  %1150 = vmatpush2.bf16.msra.mxu0 0
  %1151 = vmatprep.subr.bf16.mxu0 0
  %1152 = vmatpush2.bf16.msra.mxu0 0
  %1153 = vmatprep.subr.bf16.mxu0 0
  %1154 = vmatpush2.bf16.msra.mxu0 0
  %1155 = vmatprep.subr.bf16.mxu0 0
  %1156 = vmatpush2.bf16.msra.mxu0 0
  %1157 = vmatprep.subr.bf16.mxu0 0
  %1158 = vmatpush2.bf16.msra.mxu0 0
  %1159 = vmatprep.mubr.bf16.mxu0 0
  %1160 = vmatmul.mubr.bf16.gmra.mxu0 %v427
  %v1161 = vpop.f32.mrf.mxu0
  %v1162 = vadd.f32 0.0, %v1161
  %v1163 = vpop.f32.mrf.mxu0
  %v1164 = vadd.f32 0.0, %v1163
  %v1165 = vpop.f32.mrf.mxu0
  %v1166 = vadd.f32 0.0, %v1165
  %v1167 = vpop.f32.mrf.mxu0
  %v1168 = vadd.f32 0.0, %v1167
  %1169 = vmatprep.mubr.bf16.mxu0 0
  %1170 = vmatmul.mubr.bf16.gmra.mxu0 %v430
  %v1171 = vpop.f32.mrf.mxu0
  %v1172 = vadd.f32 0.0, %v1171
  %v1173 = vpop.f32.mrf.mxu0
  %v1174 = vadd.f32 0.0, %v1173
  %v1175 = vpop.f32.mrf.mxu0
  %v1176 = vadd.f32 0.0, %v1175
  %v1177 = vpop.f32.mrf.mxu0
  %v1178 = vadd.f32 0.0, %v1177
  %1179 = vdwg.mxu0
  %1180 = vmatprep.subr.bf16.mxu0 0
  %1181 = vmatpush1.bf16.msra.mxu0 0
  %1182 = vmatprep.subr.bf16.mxu0 0
  %1183 = vmatpush1.bf16.msra.mxu0 0
  %1184 = vmatprep.subr.bf16.mxu0 0
  %1185 = vmatpush1.bf16.msra.mxu0 0
  %1186 = vmatprep.subr.bf16.mxu0 0
  %1187 = vmatpush1.bf16.msra.mxu0 0
  %1188 = vmatprep.subr.bf16.mxu0 0
  %1189 = vmatpush1.bf16.msra.mxu0 0
  %1190 = vmatprep.subr.bf16.mxu0 0
  %1191 = vmatpush1.bf16.msra.mxu0 0
  %1192 = vmatprep.subr.bf16.mxu0 %v512
  %1193 = vmatpush1.bf16.msra.mxu0 %v509
  %1194 = vmatprep.subr.bf16.mxu0 %v342
  %1195 = vmatpush1.bf16.msra.mxu0 %v341
  %1196 = vmatprep.subr.bf16.mxu0 0
  %1197 = vmatpush2.bf16.msra.mxu0 0
  %1198 = vmatprep.subr.bf16.mxu0 0
  %1199 = vmatpush2.bf16.msra.mxu0 0
  %1200 = vmatprep.subr.bf16.mxu0 0
  %1201 = vmatpush2.bf16.msra.mxu0 0
  %1202 = vmatprep.subr.bf16.mxu0 0
  %1203 = vmatpush2.bf16.msra.mxu0 0
  %1204 = vmatprep.subr.bf16.mxu0 0
  %1205 = vmatpush2.bf16.msra.mxu0 0
  %1206 = vmatprep.subr.bf16.mxu0 0
  %1207 = vmatpush2.bf16.msra.mxu0 0
  %1208 = vmatprep.subr.bf16.mxu0 0
  %1209 = vmatpush2.bf16.msra.mxu0 0
  %1210 = vmatprep.subr.bf16.mxu0 0
  %1211 = vmatpush2.bf16.msra.mxu0 0
  %1212 = vmatprep.mubr.bf16.mxu0 0
  %1213 = vmatmul.mubr.bf16.gmra.mxu0 %v427
  %v1214 = vpop.f32.mrf.mxu0
  %v1215 = vadd.f32 0.0, %v1214
  %v1216 = vpop.f32.mrf.mxu0
  %v1217 = vadd.f32 0.0, %v1216
  %v1218 = vpop.f32.mrf.mxu0
  %v1219 = vadd.f32 0.0, %v1218
  %v1220 = vpop.f32.mrf.mxu0
  %v1221 = vadd.f32 0.0, %v1220
  %1222 = vmatprep.mubr.bf16.mxu0 0
  %1223 = vmatmul.mubr.bf16.gmra.mxu0 %v430
  %v1224 = vpop.f32.mrf.mxu0
  %v1225 = vadd.f32 0.0, %v1224
  %v1226 = vpop.f32.mrf.mxu0
  %v1227 = vadd.f32 0.0, %v1226
  %v1228 = vpop.f32.mrf.mxu0
  %v1229 = vadd.f32 0.0, %v1228
  %v1230 = vpop.f32.mrf.mxu0
  %v1231 = vadd.f32 0.0, %v1230
  %1232 = vdwg.mxu0
  %1233 = vmatprep.subr.bf16.mxu0 0
  %1234 = vmatpush1.bf16.msra.mxu0 0
  %1235 = vmatprep.subr.bf16.mxu0 0
  %1236 = vmatpush1.bf16.msra.mxu0 0
  %1237 = vmatprep.subr.bf16.mxu0 0
  %1238 = vmatpush1.bf16.msra.mxu0 0
  %1239 = vmatprep.subr.bf16.mxu0 0
  %1240 = vmatpush1.bf16.msra.mxu0 0
  %1241 = vmatprep.subr.bf16.mxu0 0
  %1242 = vmatpush1.bf16.msra.mxu0 0
  %1243 = vmatprep.subr.bf16.mxu0 0
  %1244 = vmatpush1.bf16.msra.mxu0 0
  %1245 = vmatprep.subr.bf16.mxu0 %v518
  %1246 = vmatpush1.bf16.msra.mxu0 %v515
  %1247 = vmatprep.subr.bf16.mxu0 %v344
  %1248 = vmatpush1.bf16.msra.mxu0 %v343
  %1249 = vmatprep.subr.bf16.mxu0 0
  %1250 = vmatpush2.bf16.msra.mxu0 0
  %1251 = vmatprep.subr.bf16.mxu0 0
  %1252 = vmatpush2.bf16.msra.mxu0 0
  %1253 = vmatprep.subr.bf16.mxu0 0
  %1254 = vmatpush2.bf16.msra.mxu0 0
  %1255 = vmatprep.subr.bf16.mxu0 0
  %1256 = vmatpush2.bf16.msra.mxu0 0
  %1257 = vmatprep.subr.bf16.mxu0 0
  %1258 = vmatpush2.bf16.msra.mxu0 0
  %1259 = vmatprep.subr.bf16.mxu0 0
  %1260 = vmatpush2.bf16.msra.mxu0 0
  %1261 = vmatprep.subr.bf16.mxu0 0
  %1262 = vmatpush2.bf16.msra.mxu0 0
  %1263 = vmatprep.subr.bf16.mxu0 0
  %1264 = vmatpush2.bf16.msra.mxu0 0
  %1265 = vmatprep.mubr.bf16.mxu0 0
  %1266 = vmatmul.mubr.bf16.gmra.mxu0 %v427
  %v1267 = vpop.f32.mrf.mxu0
  %v1268 = vadd.f32 0.0, %v1267
  %v1269 = vpop.f32.mrf.mxu0
  %v1270 = vadd.f32 0.0, %v1269
  %v1271 = vpop.f32.mrf.mxu0
  %v1272 = vadd.f32 0.0, %v1271
  %v1273 = vpop.f32.mrf.mxu0
  %v1274 = vadd.f32 0.0, %v1273
  %1275 = vmatprep.mubr.bf16.mxu0 0
  %1276 = vmatmul.mubr.bf16.gmra.mxu0 %v430
  %v1277 = vpop.f32.mrf.mxu0
  %v1278 = vadd.f32 0.0, %v1277
  %v1279 = vpop.f32.mrf.mxu0
  %v1280 = vadd.f32 0.0, %v1279
  %v1281 = vpop.f32.mrf.mxu0
  %v1282 = vadd.f32 0.0, %v1281
  %v1283 = vpop.f32.mrf.mxu0
  %v1284 = vadd.f32 0.0, %v1283
  %1285 = vdwg.mxu0
  %1286 = vmatprep.subr.bf16.mxu0 0
  %1287 = vmatpush1.bf16.msra.mxu0 0
  %1288 = vmatprep.subr.bf16.mxu0 0
  %1289 = vmatpush1.bf16.msra.mxu0 0
  %1290 = vmatprep.subr.bf16.mxu0 0
  %1291 = vmatpush1.bf16.msra.mxu0 0
  %1292 = vmatprep.subr.bf16.mxu0 0
  %1293 = vmatpush1.bf16.msra.mxu0 0
  %1294 = vmatprep.subr.bf16.mxu0 0
  %1295 = vmatpush1.bf16.msra.mxu0 0
  %1296 = vmatprep.subr.bf16.mxu0 0
  %1297 = vmatpush1.bf16.msra.mxu0 0
  %1298 = vmatprep.subr.bf16.mxu0 %v524
  %1299 = vmatpush1.bf16.msra.mxu0 %v521
  %1300 = vmatprep.subr.bf16.mxu0 %v346
  %1301 = vmatpush1.bf16.msra.mxu0 %v345
  %1302 = vmatprep.subr.bf16.mxu0 0
  %1303 = vmatpush2.bf16.msra.mxu0 0
  %1304 = vmatprep.subr.bf16.mxu0 0
  %1305 = vmatpush2.bf16.msra.mxu0 0
  %1306 = vmatprep.subr.bf16.mxu0 0
  %1307 = vmatpush2.bf16.msra.mxu0 0
  %1308 = vmatprep.subr.bf16.mxu0 0
  %1309 = vmatpush2.bf16.msra.mxu0 0
  %1310 = vmatprep.subr.bf16.mxu0 0
  %1311 = vmatpush2.bf16.msra.mxu0 0
  %1312 = vmatprep.subr.bf16.mxu0 0
  %1313 = vmatpush2.bf16.msra.mxu0 0
  %1314 = vmatprep.subr.bf16.mxu0 0
  %1315 = vmatpush2.bf16.msra.mxu0 0
  %1316 = vmatprep.subr.bf16.mxu0 0
  %1317 = vmatpush2.bf16.msra.mxu0 0
  %1318 = vmatprep.mubr.bf16.mxu0 0
  %1319 = vmatmul.mubr.bf16.gmra.mxu0 %v427
  %v1320 = vpop.f32.mrf.mxu0
  %v1321 = vadd.f32 0.0, %v1320
  %v1322 = vpop.f32.mrf.mxu0
  %v1323 = vadd.f32 0.0, %v1322
  %v1324 = vpop.f32.mrf.mxu0
  %v1325 = vadd.f32 0.0, %v1324
  %v1326 = vpop.f32.mrf.mxu0
  %v1327 = vadd.f32 0.0, %v1326
  %1328 = vmatprep.mubr.bf16.mxu0 0
  %1329 = vmatmul.mubr.bf16.gmra.mxu0 %v430
  %v1330 = vpop.f32.mrf.mxu0
  %v1331 = vadd.f32 0.0, %v1330
  %v1332 = vpop.f32.mrf.mxu0
  %v1333 = vadd.f32 0.0, %v1332
  %v1334 = vpop.f32.mrf.mxu0
  %v1335 = vadd.f32 0.0, %v1334
  %v1336 = vpop.f32.mrf.mxu0
  %v1337 = vadd.f32 0.0, %v1336
  %1338 = vdwg.mxu0
  %1339 = vmatprep.subr.bf16.mxu0 0
  %1340 = vmatpush1.bf16.msra.mxu0 0
  %1341 = vmatprep.subr.bf16.mxu0 0
  %1342 = vmatpush1.bf16.msra.mxu0 0
  %1343 = vmatprep.subr.bf16.mxu0 0
  %1344 = vmatpush1.bf16.msra.mxu0 0
  %1345 = vmatprep.subr.bf16.mxu0 0
  %1346 = vmatpush1.bf16.msra.mxu0 0
  %1347 = vmatprep.subr.bf16.mxu0 0
  %1348 = vmatpush1.bf16.msra.mxu0 0
  %1349 = vmatprep.subr.bf16.mxu0 0
  %1350 = vmatpush1.bf16.msra.mxu0 0
  %1351 = vmatprep.subr.bf16.mxu0 %v530
  %1352 = vmatpush1.bf16.msra.mxu0 %v527
  %1353 = vmatprep.subr.bf16.mxu0 %v348
  %1354 = vmatpush1.bf16.msra.mxu0 %v347
  %1355 = vmatprep.subr.bf16.mxu0 0
  %1356 = vmatpush2.bf16.msra.mxu0 0
  %1357 = vmatprep.subr.bf16.mxu0 0
  %1358 = vmatpush2.bf16.msra.mxu0 0
  %1359 = vmatprep.subr.bf16.mxu0 0
  %1360 = vmatpush2.bf16.msra.mxu0 0
  %1361 = vmatprep.subr.bf16.mxu0 0
  %1362 = vmatpush2.bf16.msra.mxu0 0
  %1363 = vmatprep.subr.bf16.mxu0 0
  %1364 = vmatpush2.bf16.msra.mxu0 0
  %1365 = vmatprep.subr.bf16.mxu0 0
  %1366 = vmatpush2.bf16.msra.mxu0 0
  %1367 = vmatprep.subr.bf16.mxu0 0
  %1368 = vmatpush2.bf16.msra.mxu0 0
  %1369 = vmatprep.subr.bf16.mxu0 0
  %1370 = vmatpush2.bf16.msra.mxu0 0
  %1371 = vmatprep.mubr.bf16.mxu0 0
  %1372 = vmatmul.mubr.bf16.gmra.mxu0 %v427
  %v1373 = vpop.f32.mrf.mxu0
  %v1374 = vadd.f32 0.0, %v1373
  %v1375 = vpop.f32.mrf.mxu0
  %v1376 = vadd.f32 0.0, %v1375
  %v1377 = vpop.f32.mrf.mxu0
  %v1378 = vadd.f32 0.0, %v1377
  %v1379 = vpop.f32.mrf.mxu0
  %v1380 = vadd.f32 0.0, %v1379
  %1381 = vmatprep.mubr.bf16.mxu0 0
  %1382 = vmatmul.mubr.bf16.gmra.mxu0 %v430
  %v1383 = vpop.f32.mrf.mxu0
  %v1384 = vadd.f32 0.0, %v1383
  %v1385 = vpop.f32.mrf.mxu0
  %v1386 = vadd.f32 0.0, %v1385
  %v1387 = vpop.f32.mrf.mxu0
  %v1388 = vadd.f32 0.0, %v1387
  %v1389 = vpop.f32.mrf.mxu0
  %v1390 = vadd.f32 0.0, %v1389
  %1391 = vdwg.mxu0
  %1392 = vmatprep.subr.bf16.mxu0 0
  %1393 = vmatpush1.bf16.msra.mxu0 0
  %1394 = vmatprep.subr.bf16.mxu0 0
  %1395 = vmatpush1.bf16.msra.mxu0 0
  %1396 = vmatprep.subr.bf16.mxu0 0
  %1397 = vmatpush1.bf16.msra.mxu0 0
  %1398 = vmatprep.subr.bf16.mxu0 0
  %1399 = vmatpush1.bf16.msra.mxu0 0
  %1400 = vmatprep.subr.bf16.mxu0 0
  %1401 = vmatpush1.bf16.msra.mxu0 0
  %1402 = vmatprep.subr.bf16.mxu0 0
  %1403 = vmatpush1.bf16.msra.mxu0 0
  %1404 = vmatprep.subr.bf16.mxu0 %v536
  %1405 = vmatpush1.bf16.msra.mxu0 %v533
  %1406 = vmatprep.subr.bf16.mxu0 %v350
  %1407 = vmatpush1.bf16.msra.mxu0 %v349
  %1408 = vmatprep.subr.bf16.mxu0 0
  %1409 = vmatpush2.bf16.msra.mxu0 0
  %1410 = vmatprep.subr.bf16.mxu0 0
  %1411 = vmatpush2.bf16.msra.mxu0 0
  %1412 = vmatprep.subr.bf16.mxu0 0
  %1413 = vmatpush2.bf16.msra.mxu0 0
  %1414 = vmatprep.subr.bf16.mxu0 0
  %1415 = vmatpush2.bf16.msra.mxu0 0
  %1416 = vmatprep.subr.bf16.mxu0 0
  %1417 = vmatpush2.bf16.msra.mxu0 0
  %1418 = vmatprep.subr.bf16.mxu0 0
  %1419 = vmatpush2.bf16.msra.mxu0 0
  %1420 = vmatprep.subr.bf16.mxu0 0
  %1421 = vmatpush2.bf16.msra.mxu0 0
  %1422 = vmatprep.subr.bf16.mxu0 0
  %1423 = vmatpush2.bf16.msra.mxu0 0
  %1424 = vmatprep.mubr.bf16.mxu0 0
  %1425 = vmatmul.mubr.bf16.gmra.mxu0 %v427
  %v1426 = vpop.f32.mrf.mxu0
  %v1427 = vadd.f32 0.0, %v1426
  %v1428 = vpop.f32.mrf.mxu0
  %v1429 = vadd.f32 0.0, %v1428
  %v1430 = vpop.f32.mrf.mxu0
  %v1431 = vadd.f32 0.0, %v1430
  %v1432 = vpop.f32.mrf.mxu0
  %v1433 = vadd.f32 0.0, %v1432
  %1434 = vmatprep.mubr.bf16.mxu0 0
  %1435 = vmatmul.mubr.bf16.gmra.mxu0 %v430
  %v1436 = vpop.f32.mrf.mxu0
  %v1437 = vadd.f32 0.0, %v1436
  %v1438 = vpop.f32.mrf.mxu0
  %v1439 = vadd.f32 0.0, %v1438
  %v1440 = vpop.f32.mrf.mxu0
  %v1441 = vadd.f32 0.0, %v1440
  %v1442 = vpop.f32.mrf.mxu0
  %v1443 = vadd.f32 0.0, %v1442
  %1444 = vdwg.mxu0
  %1445 = vmatprep.subr.bf16.mxu0 0
  %1446 = vmatpush1.bf16.msra.mxu0 0
  %1447 = vmatprep.subr.bf16.mxu0 0
  %1448 = vmatpush1.bf16.msra.mxu0 0
  %1449 = vmatprep.subr.bf16.mxu0 0
  %1450 = vmatpush1.bf16.msra.mxu0 0
  %1451 = vmatprep.subr.bf16.mxu0 0
  %1452 = vmatpush1.bf16.msra.mxu0 0
  %1453 = vmatprep.subr.bf16.mxu0 0
  %1454 = vmatpush1.bf16.msra.mxu0 0
  %1455 = vmatprep.subr.bf16.mxu0 0
  %1456 = vmatpush1.bf16.msra.mxu0 0
  %1457 = vmatprep.subr.bf16.mxu0 %v542
  %1458 = vmatpush1.bf16.msra.mxu0 %v539
  %1459 = vmatprep.subr.bf16.mxu0 %v352
  %1460 = vmatpush1.bf16.msra.mxu0 %v351
  %1461 = vmatprep.subr.bf16.mxu0 0
  %1462 = vmatpush2.bf16.msra.mxu0 0
  %1463 = vmatprep.subr.bf16.mxu0 0
  %1464 = vmatpush2.bf16.msra.mxu0 0
  %1465 = vmatprep.subr.bf16.mxu0 0
  %1466 = vmatpush2.bf16.msra.mxu0 0
  %1467 = vmatprep.subr.bf16.mxu0 0
  %1468 = vmatpush2.bf16.msra.mxu0 0
  %1469 = vmatprep.subr.bf16.mxu0 0
  %1470 = vmatpush2.bf16.msra.mxu0 0
  %1471 = vmatprep.subr.bf16.mxu0 0
  %1472 = vmatpush2.bf16.msra.mxu0 0
  %1473 = vmatprep.subr.bf16.mxu0 0
  %1474 = vmatpush2.bf16.msra.mxu0 0
  %1475 = vmatprep.subr.bf16.mxu0 0
  %1476 = vmatpush2.bf16.msra.mxu0 0
  %1477 = vmatprep.mubr.bf16.mxu0 0
  %1478 = vmatmul.mubr.bf16.gmra.mxu0 %v427
  %v1479 = vpop.f32.mrf.mxu0
  %v1480 = vadd.f32 0.0, %v1479
  %v1481 = vpop.f32.mrf.mxu0
  %v1482 = vadd.f32 0.0, %v1481
  %v1483 = vpop.f32.mrf.mxu0
  %v1484 = vadd.f32 0.0, %v1483
  %v1485 = vpop.f32.mrf.mxu0
  %v1486 = vadd.f32 0.0, %v1485
  %1487 = vmatprep.mubr.bf16.mxu0 0
  %1488 = vmatmul.mubr.bf16.gmra.mxu0 %v430
  %v1489 = vpop.f32.mrf.mxu0
  %v1490 = vadd.f32 0.0, %v1489
  %v1491 = vpop.f32.mrf.mxu0
  %v1492 = vadd.f32 0.0, %v1491
  %v1493 = vpop.f32.mrf.mxu0
  %v1494 = vadd.f32 0.0, %v1493
  %v1495 = vpop.f32.mrf.mxu0
  %v1496 = vadd.f32 0.0, %v1495
  %1497 = vdwg.mxu0
  %v1498 = vadd.f32 %v579, %v581
  %v1499 = vadd.f32 %v1498, %v632
  %v1500 = vadd.f32 %v1499, %v634
  %v1501 = vadd.f32 %v1500, %v685
  %v1502 = vadd.f32 %v1501, %v687
  %v1503 = vadd.f32 %v1502, %v738
  %v1504 = vadd.f32 %v1503, %v740
  %v1505 = vadd.f32 %v1504, %v791
  %v1506 = vadd.f32 %v1505, %v793
  %v1507 = vadd.f32 %v1506, %v844
  %v1508 = vadd.f32 %v1507, %v846
  %v1509 = vadd.f32 %v1508, %v897
  %v1510 = vadd.f32 %v1509, %v899
  %v1511 = vadd.f32 %v1510, %v950
  %v1512 = vadd.f32 %v1511, %v952
  %v1513 = vadd.f32 %v1512, %v1003
  %v1514 = vadd.f32 %v1513, %v1005
  %v1515 = vadd.f32 %v1514, %v1056
  %v1516 = vadd.f32 %v1515, %v1058
  %v1517 = vadd.f32 %v1516, %v1109
  %v1518 = vadd.f32 %v1517, %v1111
  %v1519 = vadd.f32 %v1518, %v1162
  %v1520 = vadd.f32 %v1519, %v1164
  %v1521 = vadd.f32 %v1520, %v1215
  %v1522 = vadd.f32 %v1521, %v1217
  %v1523 = vadd.f32 %v1522, %v1268
  %v1524 = vadd.f32 %v1523, %v1270
  %v1525 = vadd.f32 %v1524, %v1321
  %v1526 = vadd.f32 %v1525, %v1323
  %v1527 = vadd.f32 %v1526, %v1374
  %v1528 = vadd.f32 %v1527, %v1376
  %v1529 = vadd.f32 %v1528, %v1427
  %v1530 = vadd.f32 %v1529, %v1429
  %v1531 = vadd.f32 %v1530, %v1480
  %v1532 = vadd.f32 %v1531, %v1482
  %1533 = vadd.xlane.f32.xlu0 %v1532
  %v1534 = vpop.xlane.xlu0 %1533
  %v1535 = vadd.f32 %v583, %v585
  %v1536 = vadd.f32 %v1535, %v636
  %v1537 = vadd.f32 %v1536, %v638
  %v1538 = vadd.f32 %v1537, %v689
  %v1539 = vadd.f32 %v1538, %v691
  %v1540 = vadd.f32 %v1539, %v742
  %v1541 = vadd.f32 %v1540, %v744
  %v1542 = vadd.f32 %v1541, %v795
  %v1543 = vadd.f32 %v1542, %v797
  %v1544 = vadd.f32 %v1543, %v848
  %v1545 = vadd.f32 %v1544, %v850
  %v1546 = vadd.f32 %v1545, %v901
  %v1547 = vadd.f32 %v1546, %v903
  %v1548 = vadd.f32 %v1547, %v954
  %v1549 = vadd.f32 %v1548, %v956
  %v1550 = vadd.f32 %v1549, %v1007
  %v1551 = vadd.f32 %v1550, %v1009
  %v1552 = vadd.f32 %v1551, %v1060
  %v1553 = vadd.f32 %v1552, %v1062
  %v1554 = vadd.f32 %v1553, %v1113
  %v1555 = vadd.f32 %v1554, %v1115
  %v1556 = vadd.f32 %v1555, %v1166
  %v1557 = vadd.f32 %v1556, %v1168
  %v1558 = vadd.f32 %v1557, %v1219
  %v1559 = vadd.f32 %v1558, %v1221
  %v1560 = vadd.f32 %v1559, %v1272
  %v1561 = vadd.f32 %v1560, %v1274
  %v1562 = vadd.f32 %v1561, %v1325
  %v1563 = vadd.f32 %v1562, %v1327
  %v1564 = vadd.f32 %v1563, %v1378
  %v1565 = vadd.f32 %v1564, %v1380
  %v1566 = vadd.f32 %v1565, %v1431
  %v1567 = vadd.f32 %v1566, %v1433
  %v1568 = vadd.f32 %v1567, %v1484
  %v1569 = vadd.f32 %v1568, %v1486
  %1570 = vadd.xlane.f32.xlu0 %v1569
  %v1571 = vpop.xlane.xlu0 %1570
  %v1572 = vadd.f32 %v589, %v591
  %v1573 = vadd.f32 %v1572, %v642
  %v1574 = vadd.f32 %v1573, %v644
  %v1575 = vadd.f32 %v1574, %v695
  %v1576 = vadd.f32 %v1575, %v697
  %v1577 = vadd.f32 %v1576, %v748
  %v1578 = vadd.f32 %v1577, %v750
  %v1579 = vadd.f32 %v1578, %v801
  %v1580 = vadd.f32 %v1579, %v803
  %v1581 = vadd.f32 %v1580, %v854
  %v1582 = vadd.f32 %v1581, %v856
  %v1583 = vadd.f32 %v1582, %v907
  %v1584 = vadd.f32 %v1583, %v909
  %v1585 = vadd.f32 %v1584, %v960
  %v1586 = vadd.f32 %v1585, %v962
  %v1587 = vadd.f32 %v1586, %v1013
  %v1588 = vadd.f32 %v1587, %v1015
  %v1589 = vadd.f32 %v1588, %v1066
  %v1590 = vadd.f32 %v1589, %v1068
  %v1591 = vadd.f32 %v1590, %v1119
  %v1592 = vadd.f32 %v1591, %v1121
  %v1593 = vadd.f32 %v1592, %v1172
  %v1594 = vadd.f32 %v1593, %v1174
  %v1595 = vadd.f32 %v1594, %v1225
  %v1596 = vadd.f32 %v1595, %v1227
  %v1597 = vadd.f32 %v1596, %v1278
  %v1598 = vadd.f32 %v1597, %v1280
  %v1599 = vadd.f32 %v1598, %v1331
  %v1600 = vadd.f32 %v1599, %v1333
  %v1601 = vadd.f32 %v1600, %v1384
  %v1602 = vadd.f32 %v1601, %v1386
  %v1603 = vadd.f32 %v1602, %v1437
  %v1604 = vadd.f32 %v1603, %v1439
  %v1605 = vadd.f32 %v1604, %v1490
  %v1606 = vadd.f32 %v1605, %v1492
  %1607 = vadd.xlane.f32.xlu0 %v1606
  %v1608 = vpop.xlane.xlu0 %1607
  %v1609 = vadd.f32 %v593, %v595
  %v1610 = vadd.f32 %v1609, %v646
  %v1611 = vadd.f32 %v1610, %v648
  %v1612 = vadd.f32 %v1611, %v699
  %v1613 = vadd.f32 %v1612, %v701
  %v1614 = vadd.f32 %v1613, %v752
  %v1615 = vadd.f32 %v1614, %v754
  %v1616 = vadd.f32 %v1615, %v805
  %v1617 = vadd.f32 %v1616, %v807
  %v1618 = vadd.f32 %v1617, %v858
  %v1619 = vadd.f32 %v1618, %v860
  %v1620 = vadd.f32 %v1619, %v911
  %v1621 = vadd.f32 %v1620, %v913
  %v1622 = vadd.f32 %v1621, %v964
  %v1623 = vadd.f32 %v1622, %v966
  %v1624 = vadd.f32 %v1623, %v1017
  %v1625 = vadd.f32 %v1624, %v1019
  %v1626 = vadd.f32 %v1625, %v1070
  %v1627 = vadd.f32 %v1626, %v1072
  %v1628 = vadd.f32 %v1627, %v1123
  %v1629 = vadd.f32 %v1628, %v1125
  %v1630 = vadd.f32 %v1629, %v1176
  %v1631 = vadd.f32 %v1630, %v1178
  %v1632 = vadd.f32 %v1631, %v1229
  %v1633 = vadd.f32 %v1632, %v1231
  %v1634 = vadd.f32 %v1633, %v1282
  %v1635 = vadd.f32 %v1634, %v1284
  %v1636 = vadd.f32 %v1635, %v1335
  %v1637 = vadd.f32 %v1636, %v1337
  %v1638 = vadd.f32 %v1637, %v1388
  %v1639 = vadd.f32 %v1638, %v1390
  %v1640 = vadd.f32 %v1639, %v1441
  %v1641 = vadd.f32 %v1640, %v1443
  %v1642 = vadd.f32 %v1641, %v1494
  %v1643 = vadd.f32 %v1642, %v1496
  %1644 = vadd.xlane.f32.xlu0 %v1643
  %v1645 = vpop.xlane.xlu0 %1644
  %v1646 = vmul.f32 %v1534, 0.00021701389
  %v1647 = vmul.f32 %v1571, 0.00021701389
  %v1648 = vmul.f32 %v1608, 0.00021701389
  %v1649 = vmul.f32 %v1645, 0.00021701389
  %v1650 = vsub.f32 %v579, %v1646
  %v1651 = vsub.f32 %v581, %v1646
  %v1652 = vsub.f32 %v632, %v1646
  %v1653 = vsub.f32 %v634, %v1646
  %v1654 = vsub.f32 %v685, %v1646
  %v1655 = vsub.f32 %v687, %v1646
  %v1656 = vsub.f32 %v738, %v1646
  %v1657 = vsub.f32 %v740, %v1646
  %v1658 = vsub.f32 %v791, %v1646
  %v1659 = vsub.f32 %v793, %v1646
  %v1660 = vsub.f32 %v844, %v1646
  %v1661 = vsub.f32 %v846, %v1646
  %v1662 = vsub.f32 %v897, %v1646
  %v1663 = vsub.f32 %v899, %v1646
  %v1664 = vsub.f32 %v950, %v1646
  %v1665 = vsub.f32 %v952, %v1646
  %v1666 = vsub.f32 %v1003, %v1646
  %v1667 = vsub.f32 %v1005, %v1646
  %v1668 = vsub.f32 %v1056, %v1646
  %v1669 = vsub.f32 %v1058, %v1646
  %v1670 = vsub.f32 %v1109, %v1646
  %v1671 = vsub.f32 %v1111, %v1646
  %v1672 = vsub.f32 %v1162, %v1646
  %v1673 = vsub.f32 %v1164, %v1646
  %v1674 = vsub.f32 %v1215, %v1646
  %v1675 = vsub.f32 %v1217, %v1646
  %v1676 = vsub.f32 %v1268, %v1646
  %v1677 = vsub.f32 %v1270, %v1646
  %v1678 = vsub.f32 %v1321, %v1646
  %v1679 = vsub.f32 %v1323, %v1646
  %v1680 = vsub.f32 %v1374, %v1646
  %v1681 = vsub.f32 %v1376, %v1646
  %v1682 = vsub.f32 %v1427, %v1646
  %v1683 = vsub.f32 %v1429, %v1646
  %v1684 = vsub.f32 %v1480, %v1646
  %v1685 = vsub.f32 %v1482, %v1646
  %v1686 = vsub.f32 %v583, %v1647
  %v1687 = vsub.f32 %v585, %v1647
  %v1688 = vsub.f32 %v636, %v1647
  %v1689 = vsub.f32 %v638, %v1647
  %v1690 = vsub.f32 %v689, %v1647
  %v1691 = vsub.f32 %v691, %v1647
  %v1692 = vsub.f32 %v742, %v1647
  %v1693 = vsub.f32 %v744, %v1647
  %v1694 = vsub.f32 %v795, %v1647
  %v1695 = vsub.f32 %v797, %v1647
  %v1696 = vsub.f32 %v848, %v1647
  %v1697 = vsub.f32 %v850, %v1647
  %v1698 = vsub.f32 %v901, %v1647
  %v1699 = vsub.f32 %v903, %v1647
  %v1700 = vsub.f32 %v954, %v1647
  %v1701 = vsub.f32 %v956, %v1647
  %v1702 = vsub.f32 %v1007, %v1647
  %v1703 = vsub.f32 %v1009, %v1647
  %v1704 = vsub.f32 %v1060, %v1647
  %v1705 = vsub.f32 %v1062, %v1647
  %v1706 = vsub.f32 %v1113, %v1647
  %v1707 = vsub.f32 %v1115, %v1647
  %v1708 = vsub.f32 %v1166, %v1647
  %v1709 = vsub.f32 %v1168, %v1647
  %v1710 = vsub.f32 %v1219, %v1647
  %v1711 = vsub.f32 %v1221, %v1647
  %v1712 = vsub.f32 %v1272, %v1647
  %v1713 = vsub.f32 %v1274, %v1647
  %v1714 = vsub.f32 %v1325, %v1647
  %v1715 = vsub.f32 %v1327, %v1647
  %v1716 = vsub.f32 %v1378, %v1647
  %v1717 = vsub.f32 %v1380, %v1647
  %v1718 = vsub.f32 %v1431, %v1647
  %v1719 = vsub.f32 %v1433, %v1647
  %v1720 = vsub.f32 %v1484, %v1647
  %v1721 = vsub.f32 %v1486, %v1647
  %v1722 = vsub.f32 %v589, %v1648
  %v1723 = vsub.f32 %v591, %v1648
  %v1724 = vsub.f32 %v642, %v1648
  %v1725 = vsub.f32 %v644, %v1648
  %v1726 = vsub.f32 %v695, %v1648
  %v1727 = vsub.f32 %v697, %v1648
  %v1728 = vsub.f32 %v748, %v1648
  %v1729 = vsub.f32 %v750, %v1648
  %v1730 = vsub.f32 %v801, %v1648
  %v1731 = vsub.f32 %v803, %v1648
  %v1732 = vsub.f32 %v854, %v1648
  %v1733 = vsub.f32 %v856, %v1648
  %v1734 = vsub.f32 %v907, %v1648
  %v1735 = vsub.f32 %v909, %v1648
  %v1736 = vsub.f32 %v960, %v1648
  %v1737 = vsub.f32 %v962, %v1648
  %v1738 = vsub.f32 %v1013, %v1648
  %v1739 = vsub.f32 %v1015, %v1648
  %v1740 = vsub.f32 %v1066, %v1648
  %v1741 = vsub.f32 %v1068, %v1648
  %v1742 = vsub.f32 %v1119, %v1648
  %v1743 = vsub.f32 %v1121, %v1648
  %v1744 = vsub.f32 %v1172, %v1648
  %v1745 = vsub.f32 %v1174, %v1648
  %v1746 = vsub.f32 %v1225, %v1648
  %v1747 = vsub.f32 %v1227, %v1648
  %v1748 = vsub.f32 %v1278, %v1648
  %v1749 = vsub.f32 %v1280, %v1648
  %v1750 = vsub.f32 %v1331, %v1648
  %v1751 = vsub.f32 %v1333, %v1648
  %v1752 = vsub.f32 %v1384, %v1648
  %v1753 = vsub.f32 %v1386, %v1648
  %v1754 = vsub.f32 %v1437, %v1648
  %v1755 = vsub.f32 %v1439, %v1648
  %v1756 = vsub.f32 %v1490, %v1648
  %v1757 = vsub.f32 %v1492, %v1648
  %v1758 = vsub.f32 %v593, %v1649
  %v1759 = vsub.f32 %v595, %v1649
  %v1760 = vsub.f32 %v646, %v1649
  %v1761 = vsub.f32 %v648, %v1649
  %v1762 = vsub.f32 %v699, %v1649
  %v1763 = vsub.f32 %v701, %v1649
  %v1764 = vsub.f32 %v752, %v1649
  %v1765 = vsub.f32 %v754, %v1649
  %v1766 = vsub.f32 %v805, %v1649
  %v1767 = vsub.f32 %v807, %v1649
  %v1768 = vsub.f32 %v858, %v1649
  %v1769 = vsub.f32 %v860, %v1649
  %v1770 = vsub.f32 %v911, %v1649
  %v1771 = vsub.f32 %v913, %v1649
  %v1772 = vsub.f32 %v964, %v1649
  %v1773 = vsub.f32 %v966, %v1649
  %v1774 = vsub.f32 %v1017, %v1649
  %v1775 = vsub.f32 %v1019, %v1649
  %v1776 = vsub.f32 %v1070, %v1649
  %v1777 = vsub.f32 %v1072, %v1649
  %v1778 = vsub.f32 %v1123, %v1649
  %v1779 = vsub.f32 %v1125, %v1649
  %v1780 = vsub.f32 %v1176, %v1649
  %v1781 = vsub.f32 %v1178, %v1649
  %v1782 = vsub.f32 %v1229, %v1649
  %v1783 = vsub.f32 %v1231, %v1649
  %v1784 = vsub.f32 %v1282, %v1649
  %v1785 = vsub.f32 %v1284, %v1649
  %v1786 = vsub.f32 %v1335, %v1649
  %v1787 = vsub.f32 %v1337, %v1649
  %v1788 = vsub.f32 %v1388, %v1649
  %v1789 = vsub.f32 %v1390, %v1649
  %v1790 = vsub.f32 %v1441, %v1649
  %v1791 = vsub.f32 %v1443, %v1649
  %v1792 = vsub.f32 %v1494, %v1649
  %v1793 = vsub.f32 %v1496, %v1649
  %v1794 = vmul.f32 %v1650, %v1650
  %v1795 = vmul.f32 %v1651, %v1651
  %v1796 = vmul.f32 %v1652, %v1652
  %v1797 = vmul.f32 %v1653, %v1653
  %v1798 = vmul.f32 %v1654, %v1654
  %v1799 = vmul.f32 %v1655, %v1655
  %v1800 = vmul.f32 %v1656, %v1656
  %v1801 = vmul.f32 %v1657, %v1657
  %v1802 = vmul.f32 %v1658, %v1658
  %v1803 = vmul.f32 %v1659, %v1659
  %v1804 = vmul.f32 %v1660, %v1660
  %v1805 = vmul.f32 %v1661, %v1661
  %v1806 = vmul.f32 %v1662, %v1662
  %v1807 = vmul.f32 %v1663, %v1663
  %v1808 = vmul.f32 %v1664, %v1664
  %v1809 = vmul.f32 %v1665, %v1665
  %v1810 = vmul.f32 %v1666, %v1666
  %v1811 = vmul.f32 %v1667, %v1667
  %v1812 = vmul.f32 %v1668, %v1668
  %v1813 = vmul.f32 %v1669, %v1669
  %v1814 = vmul.f32 %v1670, %v1670
  %v1815 = vmul.f32 %v1671, %v1671
  %v1816 = vmul.f32 %v1672, %v1672
  %v1817 = vmul.f32 %v1673, %v1673
  %v1818 = vmul.f32 %v1674, %v1674
  %v1819 = vmul.f32 %v1675, %v1675
  %v1820 = vmul.f32 %v1676, %v1676
  %v1821 = vmul.f32 %v1677, %v1677
  %v1822 = vmul.f32 %v1678, %v1678
  %v1823 = vmul.f32 %v1679, %v1679
  %v1824 = vmul.f32 %v1680, %v1680
  %v1825 = vmul.f32 %v1681, %v1681
  %v1826 = vmul.f32 %v1682, %v1682
  %v1827 = vmul.f32 %v1683, %v1683
  %v1828 = vmul.f32 %v1684, %v1684
  %v1829 = vmul.f32 %v1685, %v1685
  %v1830 = vmul.f32 %v1686, %v1686
  %v1831 = vmul.f32 %v1687, %v1687
  %v1832 = vmul.f32 %v1688, %v1688
  %v1833 = vmul.f32 %v1689, %v1689
  %v1834 = vmul.f32 %v1690, %v1690
  %v1835 = vmul.f32 %v1691, %v1691
  %v1836 = vmul.f32 %v1692, %v1692
  %v1837 = vmul.f32 %v1693, %v1693
  %v1838 = vmul.f32 %v1694, %v1694
  %v1839 = vmul.f32 %v1695, %v1695
  %v1840 = vmul.f32 %v1696, %v1696
  %v1841 = vmul.f32 %v1697, %v1697
  %v1842 = vmul.f32 %v1698, %v1698
  %v1843 = vmul.f32 %v1699, %v1699
  %v1844 = vmul.f32 %v1700, %v1700
  %v1845 = vmul.f32 %v1701, %v1701
  %v1846 = vmul.f32 %v1702, %v1702
  %v1847 = vmul.f32 %v1703, %v1703
  %v1848 = vmul.f32 %v1704, %v1704
  %v1849 = vmul.f32 %v1705, %v1705
  %v1850 = vmul.f32 %v1706, %v1706
  %v1851 = vmul.f32 %v1707, %v1707
  %v1852 = vmul.f32 %v1708, %v1708
  %v1853 = vmul.f32 %v1709, %v1709
  %v1854 = vmul.f32 %v1710, %v1710
  %v1855 = vmul.f32 %v1711, %v1711
  %v1856 = vmul.f32 %v1712, %v1712
  %v1857 = vmul.f32 %v1713, %v1713
  %v1858 = vmul.f32 %v1714, %v1714
  %v1859 = vmul.f32 %v1715, %v1715
  %v1860 = vmul.f32 %v1716, %v1716
  %v1861 = vmul.f32 %v1717, %v1717
  %v1862 = vmul.f32 %v1718, %v1718
  %v1863 = vmul.f32 %v1719, %v1719
  %v1864 = vmul.f32 %v1720, %v1720
  %v1865 = vmul.f32 %v1721, %v1721
  %v1866 = vmul.f32 %v1722, %v1722
  %v1867 = vmul.f32 %v1723, %v1723
  %v1868 = vmul.f32 %v1724, %v1724
  %v1869 = vmul.f32 %v1725, %v1725
  %v1870 = vmul.f32 %v1726, %v1726
  %v1871 = vmul.f32 %v1727, %v1727
  %v1872 = vmul.f32 %v1728, %v1728
  %v1873 = vmul.f32 %v1729, %v1729
  %v1874 = vmul.f32 %v1730, %v1730
  %v1875 = vmul.f32 %v1731, %v1731
  %v1876 = vmul.f32 %v1732, %v1732
  %v1877 = vmul.f32 %v1733, %v1733
  %v1878 = vmul.f32 %v1734, %v1734
  %v1879 = vmul.f32 %v1735, %v1735
  %v1880 = vmul.f32 %v1736, %v1736
  %v1881 = vmul.f32 %v1737, %v1737
  %v1882 = vmul.f32 %v1738, %v1738
  %v1883 = vmul.f32 %v1739, %v1739
  %v1884 = vmul.f32 %v1740, %v1740
  %v1885 = vmul.f32 %v1741, %v1741
  %v1886 = vmul.f32 %v1742, %v1742
  %v1887 = vmul.f32 %v1743, %v1743
  %v1888 = vmul.f32 %v1744, %v1744
  %v1889 = vmul.f32 %v1745, %v1745
  %v1890 = vmul.f32 %v1746, %v1746
  %v1891 = vmul.f32 %v1747, %v1747
  %v1892 = vmul.f32 %v1748, %v1748
  %v1893 = vmul.f32 %v1749, %v1749
  %v1894 = vmul.f32 %v1750, %v1750
  %v1895 = vmul.f32 %v1751, %v1751
  %v1896 = vmul.f32 %v1752, %v1752
  %v1897 = vmul.f32 %v1753, %v1753
  %v1898 = vmul.f32 %v1754, %v1754
  %v1899 = vmul.f32 %v1755, %v1755
  %v1900 = vmul.f32 %v1756, %v1756
  %v1901 = vmul.f32 %v1757, %v1757
  %v1902 = vmul.f32 %v1758, %v1758
  %v1903 = vmul.f32 %v1759, %v1759
  %v1904 = vmul.f32 %v1760, %v1760
  %v1905 = vmul.f32 %v1761, %v1761
  %v1906 = vmul.f32 %v1762, %v1762
  %v1907 = vmul.f32 %v1763, %v1763
  %v1908 = vmul.f32 %v1764, %v1764
  %v1909 = vmul.f32 %v1765, %v1765
  %v1910 = vmul.f32 %v1766, %v1766
  %v1911 = vmul.f32 %v1767, %v1767
  %v1912 = vmul.f32 %v1768, %v1768
  %v1913 = vmul.f32 %v1769, %v1769
  %v1914 = vmul.f32 %v1770, %v1770
  %v1915 = vmul.f32 %v1771, %v1771
  %v1916 = vmul.f32 %v1772, %v1772
  %v1917 = vmul.f32 %v1773, %v1773
  %v1918 = vmul.f32 %v1774, %v1774
  %v1919 = vmul.f32 %v1775, %v1775
  %v1920 = vmul.f32 %v1776, %v1776
  %v1921 = vmul.f32 %v1777, %v1777
  %v1922 = vmul.f32 %v1778, %v1778
  %v1923 = vmul.f32 %v1779, %v1779
  %v1924 = vmul.f32 %v1780, %v1780
  %v1925 = vmul.f32 %v1781, %v1781
  %v1926 = vmul.f32 %v1782, %v1782
  %v1927 = vmul.f32 %v1783, %v1783
  %v1928 = vmul.f32 %v1784, %v1784
  %v1929 = vmul.f32 %v1785, %v1785
  %v1930 = vmul.f32 %v1786, %v1786
  %v1931 = vmul.f32 %v1787, %v1787
  %v1932 = vmul.f32 %v1788, %v1788
  %v1933 = vmul.f32 %v1789, %v1789
  %v1934 = vmul.f32 %v1790, %v1790
  %v1935 = vmul.f32 %v1791, %v1791
  %v1936 = vmul.f32 %v1792, %v1792
  %v1937 = vmul.f32 %v1793, %v1793
  %v1938 = vadd.f32 %v1794, %v1795
  %v1939 = vadd.f32 %v1938, %v1796
  %v1940 = vadd.f32 %v1939, %v1797
  %v1941 = vadd.f32 %v1940, %v1798
  %v1942 = vadd.f32 %v1941, %v1799
  %v1943 = vadd.f32 %v1942, %v1800
  %v1944 = vadd.f32 %v1943, %v1801
  %v1945 = vadd.f32 %v1944, %v1802
  %v1946 = vadd.f32 %v1945, %v1803
  %v1947 = vadd.f32 %v1946, %v1804
  %v1948 = vadd.f32 %v1947, %v1805
  %v1949 = vadd.f32 %v1948, %v1806
  %v1950 = vadd.f32 %v1949, %v1807
  %v1951 = vadd.f32 %v1950, %v1808
  %v1952 = vadd.f32 %v1951, %v1809
  %v1953 = vadd.f32 %v1952, %v1810
  %v1954 = vadd.f32 %v1953, %v1811
  %v1955 = vadd.f32 %v1954, %v1812
  %v1956 = vadd.f32 %v1955, %v1813
  %v1957 = vadd.f32 %v1956, %v1814
  %v1958 = vadd.f32 %v1957, %v1815
  %v1959 = vadd.f32 %v1958, %v1816
  %v1960 = vadd.f32 %v1959, %v1817
  %v1961 = vadd.f32 %v1960, %v1818
  %v1962 = vadd.f32 %v1961, %v1819
  %v1963 = vadd.f32 %v1962, %v1820
  %v1964 = vadd.f32 %v1963, %v1821
  %v1965 = vadd.f32 %v1964, %v1822
  %v1966 = vadd.f32 %v1965, %v1823
  %v1967 = vadd.f32 %v1966, %v1824
  %v1968 = vadd.f32 %v1967, %v1825
  %v1969 = vadd.f32 %v1968, %v1826
  %v1970 = vadd.f32 %v1969, %v1827
  %v1971 = vadd.f32 %v1970, %v1828
  %v1972 = vadd.f32 %v1971, %v1829
  %1973 = vadd.xlane.f32.xlu0 %v1972
  %v1974 = vpop.xlane.xlu0 %1973
  %v1975 = vadd.f32 %v1830, %v1831
  %v1976 = vadd.f32 %v1975, %v1832
  %v1977 = vadd.f32 %v1976, %v1833
  %v1978 = vadd.f32 %v1977, %v1834
  %v1979 = vadd.f32 %v1978, %v1835
  %v1980 = vadd.f32 %v1979, %v1836
  %v1981 = vadd.f32 %v1980, %v1837
  %v1982 = vadd.f32 %v1981, %v1838
  %v1983 = vadd.f32 %v1982, %v1839
  %v1984 = vadd.f32 %v1983, %v1840
  %v1985 = vadd.f32 %v1984, %v1841
  %v1986 = vadd.f32 %v1985, %v1842
  %v1987 = vadd.f32 %v1986, %v1843
  %v1988 = vadd.f32 %v1987, %v1844
  %v1989 = vadd.f32 %v1988, %v1845
  %v1990 = vadd.f32 %v1989, %v1846
  %v1991 = vadd.f32 %v1990, %v1847
  %v1992 = vadd.f32 %v1991, %v1848
  %v1993 = vadd.f32 %v1992, %v1849
  %v1994 = vadd.f32 %v1993, %v1850
  %v1995 = vadd.f32 %v1994, %v1851
  %v1996 = vadd.f32 %v1995, %v1852
  %v1997 = vadd.f32 %v1996, %v1853
  %v1998 = vadd.f32 %v1997, %v1854
  %v1999 = vadd.f32 %v1998, %v1855
  %v2000 = vadd.f32 %v1999, %v1856
  %v2001 = vadd.f32 %v2000, %v1857
  %v2002 = vadd.f32 %v2001, %v1858
  %v2003 = vadd.f32 %v2002, %v1859
  %v2004 = vadd.f32 %v2003, %v1860
  %v2005 = vadd.f32 %v2004, %v1861
  %v2006 = vadd.f32 %v2005, %v1862
  %v2007 = vadd.f32 %v2006, %v1863
  %v2008 = vadd.f32 %v2007, %v1864
  %v2009 = vadd.f32 %v2008, %v1865
  %2010 = vadd.xlane.f32.xlu0 %v2009
  %v2011 = vpop.xlane.xlu0 %2010
  %v2012 = vadd.f32 %v1866, %v1867
  %v2013 = vadd.f32 %v2012, %v1868
  %v2014 = vadd.f32 %v2013, %v1869
  %v2015 = vadd.f32 %v2014, %v1870
  %v2016 = vadd.f32 %v2015, %v1871
  %v2017 = vadd.f32 %v2016, %v1872
  %v2018 = vadd.f32 %v2017, %v1873
  %v2019 = vadd.f32 %v2018, %v1874
  %v2020 = vadd.f32 %v2019, %v1875
  %v2021 = vadd.f32 %v2020, %v1876
  %v2022 = vadd.f32 %v2021, %v1877
  %v2023 = vadd.f32 %v2022, %v1878
  %v2024 = vadd.f32 %v2023, %v1879
  %v2025 = vadd.f32 %v2024, %v1880
  %v2026 = vadd.f32 %v2025, %v1881
  %v2027 = vadd.f32 %v2026, %v1882
  %v2028 = vadd.f32 %v2027, %v1883
  %v2029 = vadd.f32 %v2028, %v1884
  %v2030 = vadd.f32 %v2029, %v1885
  %v2031 = vadd.f32 %v2030, %v1886
  %v2032 = vadd.f32 %v2031, %v1887
  %v2033 = vadd.f32 %v2032, %v1888
  %v2034 = vadd.f32 %v2033, %v1889
  %v2035 = vadd.f32 %v2034, %v1890
  %v2036 = vadd.f32 %v2035, %v1891
  %v2037 = vadd.f32 %v2036, %v1892
  %v2038 = vadd.f32 %v2037, %v1893
  %v2039 = vadd.f32 %v2038, %v1894
  %v2040 = vadd.f32 %v2039, %v1895
  %v2041 = vadd.f32 %v2040, %v1896
  %v2042 = vadd.f32 %v2041, %v1897
  %v2043 = vadd.f32 %v2042, %v1898
  %v2044 = vadd.f32 %v2043, %v1899
  %v2045 = vadd.f32 %v2044, %v1900
  %v2046 = vadd.f32 %v2045, %v1901
  %2047 = vadd.xlane.f32.xlu0 %v2046
  %v2048 = vpop.xlane.xlu0 %2047
  %v2049 = vadd.f32 %v1902, %v1903
  %v2050 = vadd.f32 %v2049, %v1904
  %v2051 = vadd.f32 %v2050, %v1905
  %v2052 = vadd.f32 %v2051, %v1906
  %v2053 = vadd.f32 %v2052, %v1907
  %v2054 = vadd.f32 %v2053, %v1908
  %v2055 = vadd.f32 %v2054, %v1909
  %v2056 = vadd.f32 %v2055, %v1910
  %v2057 = vadd.f32 %v2056, %v1911
  %v2058 = vadd.f32 %v2057, %v1912
  %v2059 = vadd.f32 %v2058, %v1913
  %v2060 = vadd.f32 %v2059, %v1914
  %v2061 = vadd.f32 %v2060, %v1915
  %v2062 = vadd.f32 %v2061, %v1916
  %v2063 = vadd.f32 %v2062, %v1917
  %v2064 = vadd.f32 %v2063, %v1918
  %v2065 = vadd.f32 %v2064, %v1919
  %v2066 = vadd.f32 %v2065, %v1920
  %v2067 = vadd.f32 %v2066, %v1921
  %v2068 = vadd.f32 %v2067, %v1922
  %v2069 = vadd.f32 %v2068, %v1923
  %v2070 = vadd.f32 %v2069, %v1924
  %v2071 = vadd.f32 %v2070, %v1925
  %v2072 = vadd.f32 %v2071, %v1926
  %v2073 = vadd.f32 %v2072, %v1927
  %v2074 = vadd.f32 %v2073, %v1928
  %v2075 = vadd.f32 %v2074, %v1929
  %v2076 = vadd.f32 %v2075, %v1930
  %v2077 = vadd.f32 %v2076, %v1931
  %v2078 = vadd.f32 %v2077, %v1932
  %v2079 = vadd.f32 %v2078, %v1933
  %v2080 = vadd.f32 %v2079, %v1934
  %v2081 = vadd.f32 %v2080, %v1935
  %v2082 = vadd.f32 %v2081, %v1936
  %v2083 = vadd.f32 %v2082, %v1937
  %2084 = vadd.xlane.f32.xlu0 %v2083
  %v2085 = vpop.xlane.xlu0 %2084
  %v2086 = vmul.f32 %v1974, 0.00021701389
  %v2087 = vmul.f32 %v2011, 0.00021701389
  %v2088 = vmul.f32 %v2048, 0.00021701389
  %v2089 = vmul.f32 %v2085, 0.00021701389
  %v2090 = vld [vmem:[%s2] sm:$0xff]
  %v2091 = vld [vmem:[%s2 + $0x8] sm:$0xff]
  %v2092 = vld [vmem:[%s2 + $0x10] sm:$0xff]
  %v2093 = vld [vmem:[%s2 + $0x18] sm:$0xff]
  %v2094 = vadd.f32 %v2086, 1e-05
  %v2095 = vadd.f32 %v2087, 1e-05
  %v2096 = vadd.f32 %v2088, 1e-05
  %v2097 = vadd.f32 %v2089, 1e-05
  %v2098 = vrsqrt.pop %v2094
  %v2099 = vrsqrt.pop %v2095
  %v2100 = vrsqrt.pop %v2096
  %v2101 = vrsqrt.pop %v2097
  %v2102 = vmul.f32 %v2090, %v2098
  %v2103 = vmul.f32 %v2091, %v2099
  %v2104 = vmul.f32 %v2092, %v2100
  %v2105 = vmul.f32 %v2093, %v2101
  %2107 = vset.pattern.permute.xlu0 0
  %2108 = vperm.xlu0 %2107, %v2102
  %v2109 = vpop.permute.xlu0 %2108
  %2112 = vset.pattern.permute.xlu0 0
  %2113 = vperm.xlu0 %2112, %v2103
  %v2114 = vpop.permute.xlu0 %2113
  %2117 = vset.pattern.permute.xlu0 0
  %2118 = vperm.xlu0 %2117, %v2104
  %v2119 = vpop.permute.xlu0 %2118
  %2122 = vset.pattern.permute.xlu0 0
  %2123 = vperm.xlu0 %2122, %v2105
  %v2124 = vpop.permute.xlu0 %2123
  %v2126 = vmul.f32 %v1650, %v2109
  %v2127 = vmul.f32 %v1651, %v2109
  %v2128 = vmul.f32 %v1652, %v2109
  %v2129 = vmul.f32 %v1653, %v2109
  %v2130 = vmul.f32 %v1654, %v2109
  %v2131 = vmul.f32 %v1655, %v2109
  %v2132 = vmul.f32 %v1656, %v2109
  %v2133 = vmul.f32 %v1657, %v2109
  %v2134 = vmul.f32 %v1658, %v2109
  %v2135 = vmul.f32 %v1659, %v2109
  %v2136 = vmul.f32 %v1660, %v2109
  %v2137 = vmul.f32 %v1661, %v2109
  %v2138 = vmul.f32 %v1662, %v2109
  %v2139 = vmul.f32 %v1663, %v2109
  %v2140 = vmul.f32 %v1664, %v2109
  %v2141 = vmul.f32 %v1665, %v2109
  %v2142 = vmul.f32 %v1666, %v2109
  %v2143 = vmul.f32 %v1667, %v2109
  %v2144 = vmul.f32 %v1668, %v2109
  %v2145 = vmul.f32 %v1669, %v2109
  %v2146 = vmul.f32 %v1670, %v2109
  %v2147 = vmul.f32 %v1671, %v2109
  %v2148 = vmul.f32 %v1672, %v2109
  %v2149 = vmul.f32 %v1673, %v2109
  %v2150 = vmul.f32 %v1674, %v2109
  %v2151 = vmul.f32 %v1675, %v2109
  %v2152 = vmul.f32 %v1676, %v2109
  %v2153 = vmul.f32 %v1677, %v2109
  %v2154 = vmul.f32 %v1678, %v2109
  %v2155 = vmul.f32 %v1679, %v2109
  %v2156 = vmul.f32 %v1680, %v2109
  %v2157 = vmul.f32 %v1681, %v2109
  %v2158 = vmul.f32 %v1682, %v2109
  %v2159 = vmul.f32 %v1683, %v2109
  %v2160 = vmul.f32 %v1684, %v2109
  %v2161 = vmul.f32 %v1685, %v2109
  %v2162 = vmul.f32 %v1686, %v2114
  %v2163 = vmul.f32 %v1687, %v2114
  %v2164 = vmul.f32 %v1688, %v2114
  %v2165 = vmul.f32 %v1689, %v2114
  %v2166 = vmul.f32 %v1690, %v2114
  %v2167 = vmul.f32 %v1691, %v2114
  %v2168 = vmul.f32 %v1692, %v2114
  %v2169 = vmul.f32 %v1693, %v2114
  %v2170 = vmul.f32 %v1694, %v2114
  %v2171 = vmul.f32 %v1695, %v2114
  %v2172 = vmul.f32 %v1696, %v2114
  %v2173 = vmul.f32 %v1697, %v2114
  %v2174 = vmul.f32 %v1698, %v2114
  %v2175 = vmul.f32 %v1699, %v2114
  %v2176 = vmul.f32 %v1700, %v2114
  %v2177 = vmul.f32 %v1701, %v2114
  %v2178 = vmul.f32 %v1702, %v2114
  %v2179 = vmul.f32 %v1703, %v2114
  %v2180 = vmul.f32 %v1704, %v2114
  %v2181 = vmul.f32 %v1705, %v2114
  %v2182 = vmul.f32 %v1706, %v2114
  %v2183 = vmul.f32 %v1707, %v2114
  %v2184 = vmul.f32 %v1708, %v2114
  %v2185 = vmul.f32 %v1709, %v2114
  %v2186 = vmul.f32 %v1710, %v2114
  %v2187 = vmul.f32 %v1711, %v2114
  %v2188 = vmul.f32 %v1712, %v2114
  %v2189 = vmul.f32 %v1713, %v2114
  %v2190 = vmul.f32 %v1714, %v2114
  %v2191 = vmul.f32 %v1715, %v2114
  %v2192 = vmul.f32 %v1716, %v2114
  %v2193 = vmul.f32 %v1717, %v2114
  %v2194 = vmul.f32 %v1718, %v2114
  %v2195 = vmul.f32 %v1719, %v2114
  %v2196 = vmul.f32 %v1720, %v2114
  %v2197 = vmul.f32 %v1721, %v2114
  %v2198 = vmul.f32 %v1722, %v2119
  %v2199 = vmul.f32 %v1723, %v2119
  %v2200 = vmul.f32 %v1724, %v2119
  %v2201 = vmul.f32 %v1725, %v2119
  %v2202 = vmul.f32 %v1726, %v2119
  %v2203 = vmul.f32 %v1727, %v2119
  %v2204 = vmul.f32 %v1728, %v2119
  %v2205 = vmul.f32 %v1729, %v2119
  %v2206 = vmul.f32 %v1730, %v2119
  %v2207 = vmul.f32 %v1731, %v2119
  %v2208 = vmul.f32 %v1732, %v2119
  %v2209 = vmul.f32 %v1733, %v2119
  %v2210 = vmul.f32 %v1734, %v2119
  %v2211 = vmul.f32 %v1735, %v2119
  %v2212 = vmul.f32 %v1736, %v2119
  %v2213 = vmul.f32 %v1737, %v2119
  %v2214 = vmul.f32 %v1738, %v2119
  %v2215 = vmul.f32 %v1739, %v2119
  %v2216 = vmul.f32 %v1740, %v2119
  %v2217 = vmul.f32 %v1741, %v2119
  %v2218 = vmul.f32 %v1742, %v2119
  %v2219 = vmul.f32 %v1743, %v2119
  %v2220 = vmul.f32 %v1744, %v2119
  %v2221 = vmul.f32 %v1745, %v2119
  %v2222 = vmul.f32 %v1746, %v2119
  %v2223 = vmul.f32 %v1747, %v2119
  %v2224 = vmul.f32 %v1748, %v2119
  %v2225 = vmul.f32 %v1749, %v2119
  %v2226 = vmul.f32 %v1750, %v2119
  %v2227 = vmul.f32 %v1751, %v2119
  %v2228 = vmul.f32 %v1752, %v2119
  %v2229 = vmul.f32 %v1753, %v2119
  %v2230 = vmul.f32 %v1754, %v2119
  %v2231 = vmul.f32 %v1755, %v2119
  %v2232 = vmul.f32 %v1756, %v2119
  %v2233 = vmul.f32 %v1757, %v2119
  %v2234 = vmul.f32 %v1758, %v2124
  %v2235 = vmul.f32 %v1759, %v2124
  %v2236 = vmul.f32 %v1760, %v2124
  %v2237 = vmul.f32 %v1761, %v2124
  %v2238 = vmul.f32 %v1762, %v2124
  %v2239 = vmul.f32 %v1763, %v2124
  %v2240 = vmul.f32 %v1764, %v2124
  %v2241 = vmul.f32 %v1765, %v2124
  %v2242 = vmul.f32 %v1766, %v2124
  %v2243 = vmul.f32 %v1767, %v2124
  %v2244 = vmul.f32 %v1768, %v2124
  %v2245 = vmul.f32 %v1769, %v2124
  %v2246 = vmul.f32 %v1770, %v2124
  %v2247 = vmul.f32 %v1771, %v2124
  %v2248 = vmul.f32 %v1772, %v2124
  %v2249 = vmul.f32 %v1773, %v2124
  %v2250 = vmul.f32 %v1774, %v2124
  %v2251 = vmul.f32 %v1775, %v2124
  %v2252 = vmul.f32 %v1776, %v2124
  %v2253 = vmul.f32 %v1777, %v2124
  %v2254 = vmul.f32 %v1778, %v2124
  %v2255 = vmul.f32 %v1779, %v2124
  %v2256 = vmul.f32 %v1780, %v2124
  %v2257 = vmul.f32 %v1781, %v2124
  %v2258 = vmul.f32 %v1782, %v2124
  %v2259 = vmul.f32 %v1783, %v2124
  %v2260 = vmul.f32 %v1784, %v2124
  %v2261 = vmul.f32 %v1785, %v2124
  %v2262 = vmul.f32 %v1786, %v2124
  %v2263 = vmul.f32 %v1787, %v2124
  %v2264 = vmul.f32 %v1788, %v2124
  %v2265 = vmul.f32 %v1789, %v2124
  %v2266 = vmul.f32 %v1790, %v2124
  %v2267 = vmul.f32 %v1791, %v2124
  %v2268 = vmul.f32 %v1792, %v2124
  %v2269 = vmul.f32 %v1793, %v2124
  %2271 = vset.pattern.permute.xlu0 1
  %2272 = vperm.xlu0 %2271, %v2090
  %v2273 = vpop.permute.xlu0 %2272
  %2276 = vset.pattern.permute.xlu0 1
  %2277 = vperm.xlu0 %2276, %v2091
  %v2278 = vpop.permute.xlu0 %2277
  %2281 = vset.pattern.permute.xlu0 1
  %2282 = vperm.xlu0 %2281, %v2092
  %v2283 = vpop.permute.xlu0 %2282
  %2286 = vset.pattern.permute.xlu0 1
  %2287 = vperm.xlu0 %2286, %v2093
  %v2288 = vpop.permute.xlu0 %2287
  %v2290 = vadd.f32 %v2126, %v2273
  %v2291 = vadd.f32 %v2127, %v2273
  %v2292 = vadd.f32 %v2128, %v2273
  %v2293 = vadd.f32 %v2129, %v2273
  %v2294 = vadd.f32 %v2130, %v2273
  %v2295 = vadd.f32 %v2131, %v2273
  %v2296 = vadd.f32 %v2132, %v2273
  %v2297 = vadd.f32 %v2133, %v2273
  %v2298 = vadd.f32 %v2134, %v2273
  %v2299 = vadd.f32 %v2135, %v2273
  %v2300 = vadd.f32 %v2136, %v2273
  %v2301 = vadd.f32 %v2137, %v2273
  %v2302 = vadd.f32 %v2138, %v2273
  %v2303 = vadd.f32 %v2139, %v2273
  %v2304 = vadd.f32 %v2140, %v2273
  %v2305 = vadd.f32 %v2141, %v2273
  %v2306 = vadd.f32 %v2142, %v2273
  %v2307 = vadd.f32 %v2143, %v2273
  %v2308 = vadd.f32 %v2144, %v2273
  %v2309 = vadd.f32 %v2145, %v2273
  %v2310 = vadd.f32 %v2146, %v2273
  %v2311 = vadd.f32 %v2147, %v2273
  %v2312 = vadd.f32 %v2148, %v2273
  %v2313 = vadd.f32 %v2149, %v2273
  %v2314 = vadd.f32 %v2150, %v2273
  %v2315 = vadd.f32 %v2151, %v2273
  %v2316 = vadd.f32 %v2152, %v2273
  %v2317 = vadd.f32 %v2153, %v2273
  %v2318 = vadd.f32 %v2154, %v2273
  %v2319 = vadd.f32 %v2155, %v2273
  %v2320 = vadd.f32 %v2156, %v2273
  %v2321 = vadd.f32 %v2157, %v2273
  %v2322 = vadd.f32 %v2158, %v2273
  %v2323 = vadd.f32 %v2159, %v2273
  %v2324 = vadd.f32 %v2160, %v2273
  %v2325 = vadd.f32 %v2161, %v2273
  %v2326 = vadd.f32 %v2162, %v2278
  %v2327 = vadd.f32 %v2163, %v2278
  %v2328 = vadd.f32 %v2164, %v2278
  %v2329 = vadd.f32 %v2165, %v2278
  %v2330 = vadd.f32 %v2166, %v2278
  %v2331 = vadd.f32 %v2167, %v2278
  %v2332 = vadd.f32 %v2168, %v2278
  %v2333 = vadd.f32 %v2169, %v2278
  %v2334 = vadd.f32 %v2170, %v2278
  %v2335 = vadd.f32 %v2171, %v2278
  %v2336 = vadd.f32 %v2172, %v2278
  %v2337 = vadd.f32 %v2173, %v2278
  %v2338 = vadd.f32 %v2174, %v2278
  %v2339 = vadd.f32 %v2175, %v2278
  %v2340 = vadd.f32 %v2176, %v2278
  %v2341 = vadd.f32 %v2177, %v2278
  %v2342 = vadd.f32 %v2178, %v2278
  %v2343 = vadd.f32 %v2179, %v2278
  %v2344 = vadd.f32 %v2180, %v2278
  %v2345 = vadd.f32 %v2181, %v2278
  %v2346 = vadd.f32 %v2182, %v2278
  %v2347 = vadd.f32 %v2183, %v2278
  %v2348 = vadd.f32 %v2184, %v2278
  %v2349 = vadd.f32 %v2185, %v2278
  %v2350 = vadd.f32 %v2186, %v2278
  %v2351 = vadd.f32 %v2187, %v2278
  %v2352 = vadd.f32 %v2188, %v2278
  %v2353 = vadd.f32 %v2189, %v2278
  %v2354 = vadd.f32 %v2190, %v2278
  %v2355 = vadd.f32 %v2191, %v2278
  %v2356 = vadd.f32 %v2192, %v2278
  %v2357 = vadd.f32 %v2193, %v2278
  %v2358 = vadd.f32 %v2194, %v2278
  %v2359 = vadd.f32 %v2195, %v2278
  %v2360 = vadd.f32 %v2196, %v2278
  %v2361 = vadd.f32 %v2197, %v2278
  %v2362 = vadd.f32 %v2198, %v2283
  %v2363 = vadd.f32 %v2199, %v2283
  %v2364 = vadd.f32 %v2200, %v2283
  %v2365 = vadd.f32 %v2201, %v2283
  %v2366 = vadd.f32 %v2202, %v2283
  %v2367 = vadd.f32 %v2203, %v2283
  %v2368 = vadd.f32 %v2204, %v2283
  %v2369 = vadd.f32 %v2205, %v2283
  %v2370 = vadd.f32 %v2206, %v2283
  %v2371 = vadd.f32 %v2207, %v2283
  %v2372 = vadd.f32 %v2208, %v2283
  %v2373 = vadd.f32 %v2209, %v2283
  %v2374 = vadd.f32 %v2210, %v2283
  %v2375 = vadd.f32 %v2211, %v2283
  %v2376 = vadd.f32 %v2212, %v2283
  %v2377 = vadd.f32 %v2213, %v2283
  %v2378 = vadd.f32 %v2214, %v2283
  %v2379 = vadd.f32 %v2215, %v2283
  %v2380 = vadd.f32 %v2216, %v2283
  %v2381 = vadd.f32 %v2217, %v2283
  %v2382 = vadd.f32 %v2218, %v2283
  %v2383 = vadd.f32 %v2219, %v2283
  %v2384 = vadd.f32 %v2220, %v2283
  %v2385 = vadd.f32 %v2221, %v2283
  %v2386 = vadd.f32 %v2222, %v2283
  %v2387 = vadd.f32 %v2223, %v2283
  %v2388 = vadd.f32 %v2224, %v2283
  %v2389 = vadd.f32 %v2225, %v2283
  %v2390 = vadd.f32 %v2226, %v2283
  %v2391 = vadd.f32 %v2227, %v2283
  %v2392 = vadd.f32 %v2228, %v2283
  %v2393 = vadd.f32 %v2229, %v2283
  %v2394 = vadd.f32 %v2230, %v2283
  %v2395 = vadd.f32 %v2231, %v2283
  %v2396 = vadd.f32 %v2232, %v2283
  %v2397 = vadd.f32 %v2233, %v2283
  %v2398 = vadd.f32 %v2234, %v2288
  %v2399 = vadd.f32 %v2235, %v2288
  %v2400 = vadd.f32 %v2236, %v2288
  %v2401 = vadd.f32 %v2237, %v2288
  %v2402 = vadd.f32 %v2238, %v2288
  %v2403 = vadd.f32 %v2239, %v2288
  %v2404 = vadd.f32 %v2240, %v2288
  %v2405 = vadd.f32 %v2241, %v2288
  %v2406 = vadd.f32 %v2242, %v2288
  %v2407 = vadd.f32 %v2243, %v2288
  %v2408 = vadd.f32 %v2244, %v2288
  %v2409 = vadd.f32 %v2245, %v2288
  %v2410 = vadd.f32 %v2246, %v2288
  %v2411 = vadd.f32 %v2247, %v2288
  %v2412 = vadd.f32 %v2248, %v2288
  %v2413 = vadd.f32 %v2249, %v2288
  %v2414 = vadd.f32 %v2250, %v2288
  %v2415 = vadd.f32 %v2251, %v2288
  %v2416 = vadd.f32 %v2252, %v2288
  %v2417 = vadd.f32 %v2253, %v2288
  %v2418 = vadd.f32 %v2254, %v2288
  %v2419 = vadd.f32 %v2255, %v2288
  %v2420 = vadd.f32 %v2256, %v2288
  %v2421 = vadd.f32 %v2257, %v2288
  %v2422 = vadd.f32 %v2258, %v2288
  %v2423 = vadd.f32 %v2259, %v2288
  %v2424 = vadd.f32 %v2260, %v2288
  %v2425 = vadd.f32 %v2261, %v2288
  %v2426 = vadd.f32 %v2262, %v2288
  %v2427 = vadd.f32 %v2263, %v2288
  %v2428 = vadd.f32 %v2264, %v2288
  %v2429 = vadd.f32 %v2265, %v2288
  %v2430 = vadd.f32 %v2266, %v2288
  %v2431 = vadd.f32 %v2267, %v2288
  %v2432 = vadd.f32 %v2268, %v2288
  %v2433 = vadd.f32 %v2269, %v2288
  %v2434 = vmax.f32 %v2290, 0.0
  %v2435 = vmax.f32 %v2291, 0.0
  %v2436 = vmax.f32 %v2292, 0.0
  %v2437 = vmax.f32 %v2293, 0.0
  %v2438 = vmax.f32 %v2294, 0.0
  %v2439 = vmax.f32 %v2295, 0.0
  %v2440 = vmax.f32 %v2296, 0.0
  %v2441 = vmax.f32 %v2297, 0.0
  %v2442 = vmax.f32 %v2298, 0.0
  %v2443 = vmax.f32 %v2299, 0.0
  %v2444 = vmax.f32 %v2300, 0.0
  %v2445 = vmax.f32 %v2301, 0.0
  %v2446 = vmax.f32 %v2302, 0.0
  %v2447 = vmax.f32 %v2303, 0.0
  %v2448 = vmax.f32 %v2304, 0.0
  %v2449 = vmax.f32 %v2305, 0.0
  %v2450 = vmax.f32 %v2306, 0.0
  %v2451 = vmax.f32 %v2307, 0.0
  %v2452 = vmax.f32 %v2308, 0.0
  %v2453 = vmax.f32 %v2309, 0.0
  %v2454 = vmax.f32 %v2310, 0.0
  %v2455 = vmax.f32 %v2311, 0.0
  %v2456 = vmax.f32 %v2312, 0.0
  %v2457 = vmax.f32 %v2313, 0.0
  %v2458 = vmax.f32 %v2314, 0.0
  %v2459 = vmax.f32 %v2315, 0.0
  %v2460 = vmax.f32 %v2316, 0.0
  %v2461 = vmax.f32 %v2317, 0.0
  %v2462 = vmax.f32 %v2318, 0.0
  %v2463 = vmax.f32 %v2319, 0.0
  %v2464 = vmax.f32 %v2320, 0.0
  %v2465 = vmax.f32 %v2321, 0.0
  %v2466 = vmax.f32 %v2322, 0.0
  %v2467 = vmax.f32 %v2323, 0.0
  %v2468 = vmax.f32 %v2324, 0.0
  %v2469 = vmax.f32 %v2325, 0.0
  %v2470 = vmax.f32 %v2326, 0.0
  %v2471 = vmax.f32 %v2327, 0.0
  %v2472 = vmax.f32 %v2328, 0.0
  %v2473 = vmax.f32 %v2329, 0.0
  %v2474 = vmax.f32 %v2330, 0.0
  %v2475 = vmax.f32 %v2331, 0.0
  %v2476 = vmax.f32 %v2332, 0.0
  %v2477 = vmax.f32 %v2333, 0.0
  %v2478 = vmax.f32 %v2334, 0.0
  %v2479 = vmax.f32 %v2335, 0.0
  %v2480 = vmax.f32 %v2336, 0.0
  %v2481 = vmax.f32 %v2337, 0.0
  %v2482 = vmax.f32 %v2338, 0.0
  %v2483 = vmax.f32 %v2339, 0.0
  %v2484 = vmax.f32 %v2340, 0.0
  %v2485 = vmax.f32 %v2341, 0.0
  %v2486 = vmax.f32 %v2342, 0.0
  %v2487 = vmax.f32 %v2343, 0.0
  %v2488 = vmax.f32 %v2344, 0.0
  %v2489 = vmax.f32 %v2345, 0.0
  %v2490 = vmax.f32 %v2346, 0.0
  %v2491 = vmax.f32 %v2347, 0.0
  %v2492 = vmax.f32 %v2348, 0.0
  %v2493 = vmax.f32 %v2349, 0.0
  %v2494 = vmax.f32 %v2350, 0.0
  %v2495 = vmax.f32 %v2351, 0.0
  %v2496 = vmax.f32 %v2352, 0.0
  %v2497 = vmax.f32 %v2353, 0.0
  %v2498 = vmax.f32 %v2354, 0.0
  %v2499 = vmax.f32 %v2355, 0.0
  %v2500 = vmax.f32 %v2356, 0.0
  %v2501 = vmax.f32 %v2357, 0.0
  %v2502 = vmax.f32 %v2358, 0.0
  %v2503 = vmax.f32 %v2359, 0.0
  %v2504 = vmax.f32 %v2360, 0.0
  %v2505 = vmax.f32 %v2361, 0.0
  %v2506 = vmax.f32 %v2362, 0.0
  %v2507 = vmax.f32 %v2363, 0.0
  %v2508 = vmax.f32 %v2364, 0.0
  %v2509 = vmax.f32 %v2365, 0.0
  %v2510 = vmax.f32 %v2366, 0.0
  %v2511 = vmax.f32 %v2367, 0.0
  %v2512 = vmax.f32 %v2368, 0.0
  %v2513 = vmax.f32 %v2369, 0.0
  %v2514 = vmax.f32 %v2370, 0.0
  %v2515 = vmax.f32 %v2371, 0.0
  %v2516 = vmax.f32 %v2372, 0.0
  %v2517 = vmax.f32 %v2373, 0.0
  %v2518 = vmax.f32 %v2374, 0.0
  %v2519 = vmax.f32 %v2375, 0.0
  %v2520 = vmax.f32 %v2376, 0.0
  %v2521 = vmax.f32 %v2377, 0.0
  %v2522 = vmax.f32 %v2378, 0.0
  %v2523 = vmax.f32 %v2379, 0.0
  %v2524 = vmax.f32 %v2380, 0.0
  %v2525 = vmax.f32 %v2381, 0.0
  %v2526 = vmax.f32 %v2382, 0.0
  %v2527 = vmax.f32 %v2383, 0.0
  %v2528 = vmax.f32 %v2384, 0.0
  %v2529 = vmax.f32 %v2385, 0.0
  %v2530 = vmax.f32 %v2386, 0.0
  %v2531 = vmax.f32 %v2387, 0.0
  %v2532 = vmax.f32 %v2388, 0.0
  %v2533 = vmax.f32 %v2389, 0.0
  %v2534 = vmax.f32 %v2390, 0.0
  %v2535 = vmax.f32 %v2391, 0.0
  %v2536 = vmax.f32 %v2392, 0.0
  %v2537 = vmax.f32 %v2393, 0.0
  %v2538 = vmax.f32 %v2394, 0.0
  %v2539 = vmax.f32 %v2395, 0.0
  %v2540 = vmax.f32 %v2396, 0.0
  %v2541 = vmax.f32 %v2397, 0.0
  %v2542 = vmax.f32 %v2398, 0.0
  %v2543 = vmax.f32 %v2399, 0.0
  %v2544 = vmax.f32 %v2400, 0.0
  %v2545 = vmax.f32 %v2401, 0.0
  %v2546 = vmax.f32 %v2402, 0.0
  %v2547 = vmax.f32 %v2403, 0.0
  %v2548 = vmax.f32 %v2404, 0.0
  %v2549 = vmax.f32 %v2405, 0.0
  %v2550 = vmax.f32 %v2406, 0.0
  %v2551 = vmax.f32 %v2407, 0.0
  %v2552 = vmax.f32 %v2408, 0.0
  %v2553 = vmax.f32 %v2409, 0.0
  %v2554 = vmax.f32 %v2410, 0.0
  %v2555 = vmax.f32 %v2411, 0.0
  %v2556 = vmax.f32 %v2412, 0.0
  %v2557 = vmax.f32 %v2413, 0.0
  %v2558 = vmax.f32 %v2414, 0.0
  %v2559 = vmax.f32 %v2415, 0.0
  %v2560 = vmax.f32 %v2416, 0.0
  %v2561 = vmax.f32 %v2417, 0.0
  %v2562 = vmax.f32 %v2418, 0.0
  %v2563 = vmax.f32 %v2419, 0.0
  %v2564 = vmax.f32 %v2420, 0.0
  %v2565 = vmax.f32 %v2421, 0.0
  %v2566 = vmax.f32 %v2422, 0.0
  %v2567 = vmax.f32 %v2423, 0.0
  %v2568 = vmax.f32 %v2424, 0.0
  %v2569 = vmax.f32 %v2425, 0.0
  %v2570 = vmax.f32 %v2426, 0.0
  %v2571 = vmax.f32 %v2427, 0.0
  %v2572 = vmax.f32 %v2428, 0.0
  %v2573 = vmax.f32 %v2429, 0.0
  %v2574 = vmax.f32 %v2430, 0.0
  %v2575 = vmax.f32 %v2431, 0.0
  %v2576 = vmax.f32 %v2432, 0.0
  %v2577 = vmax.f32 %v2433, 0.0
  %v2578 = vpack.c.bf16 %v2470, %v2434
  %v2579 = vpack.c.bf16 %v2471, %v2435
  %v2580 = vpack.c.bf16 %v2472, %v2436
  %v2581 = vpack.c.bf16 %v2473, %v2437
  %v2582 = vpack.c.bf16 %v2474, %v2438
  %v2583 = vpack.c.bf16 %v2475, %v2439
  %v2584 = vpack.c.bf16 %v2476, %v2440
  %v2585 = vpack.c.bf16 %v2477, %v2441
  %v2586 = vpack.c.bf16 %v2478, %v2442
  %v2587 = vpack.c.bf16 %v2479, %v2443
  %v2588 = vpack.c.bf16 %v2480, %v2444
  %v2589 = vpack.c.bf16 %v2481, %v2445
  %v2590 = vpack.c.bf16 %v2482, %v2446
  %v2591 = vpack.c.bf16 %v2483, %v2447
  %v2592 = vpack.c.bf16 %v2484, %v2448
  %v2593 = vpack.c.bf16 %v2485, %v2449
  %v2594 = vpack.c.bf16 %v2486, %v2450
  %v2595 = vpack.c.bf16 %v2487, %v2451
  %v2596 = vpack.c.bf16 %v2488, %v2452
  %v2597 = vpack.c.bf16 %v2489, %v2453
  %v2598 = vpack.c.bf16 %v2490, %v2454
  %v2599 = vpack.c.bf16 %v2491, %v2455
  %v2600 = vpack.c.bf16 %v2492, %v2456
  %v2601 = vpack.c.bf16 %v2493, %v2457
  %v2602 = vpack.c.bf16 %v2494, %v2458
  %v2603 = vpack.c.bf16 %v2495, %v2459
  %v2604 = vpack.c.bf16 %v2496, %v2460
  %v2605 = vpack.c.bf16 %v2497, %v2461
  %v2606 = vpack.c.bf16 %v2498, %v2462
  %v2607 = vpack.c.bf16 %v2499, %v2463
  %v2608 = vpack.c.bf16 %v2500, %v2464
  %v2609 = vpack.c.bf16 %v2501, %v2465
  %v2610 = vpack.c.bf16 %v2502, %v2466
  %v2611 = vpack.c.bf16 %v2503, %v2467
  %v2612 = vpack.c.bf16 %v2504, %v2468
  %v2613 = vpack.c.bf16 %v2505, %v2469
  %v2614 = vpack.c.bf16 %v2542, %v2506
  %v2615 = vpack.c.bf16 %v2543, %v2507
  %v2616 = vpack.c.bf16 %v2544, %v2508
  %v2617 = vpack.c.bf16 %v2545, %v2509
  %v2618 = vpack.c.bf16 %v2546, %v2510
  %v2619 = vpack.c.bf16 %v2547, %v2511
  %v2620 = vpack.c.bf16 %v2548, %v2512
  %v2621 = vpack.c.bf16 %v2549, %v2513
  %v2622 = vpack.c.bf16 %v2550, %v2514
  %v2623 = vpack.c.bf16 %v2551, %v2515
  %v2624 = vpack.c.bf16 %v2552, %v2516
  %v2625 = vpack.c.bf16 %v2553, %v2517
  %v2626 = vpack.c.bf16 %v2554, %v2518
  %v2627 = vpack.c.bf16 %v2555, %v2519
  %v2628 = vpack.c.bf16 %v2556, %v2520
  %v2629 = vpack.c.bf16 %v2557, %v2521
  %v2630 = vpack.c.bf16 %v2558, %v2522
  %v2631 = vpack.c.bf16 %v2559, %v2523
  %v2632 = vpack.c.bf16 %v2560, %v2524
  %v2633 = vpack.c.bf16 %v2561, %v2525
  %v2634 = vpack.c.bf16 %v2562, %v2526
  %v2635 = vpack.c.bf16 %v2563, %v2527
  %v2636 = vpack.c.bf16 %v2564, %v2528
  %v2637 = vpack.c.bf16 %v2565, %v2529
  %v2638 = vpack.c.bf16 %v2566, %v2530
  %v2639 = vpack.c.bf16 %v2567, %v2531
  %v2640 = vpack.c.bf16 %v2568, %v2532
  %v2641 = vpack.c.bf16 %v2569, %v2533
  %v2642 = vpack.c.bf16 %v2570, %v2534
  %v2643 = vpack.c.bf16 %v2571, %v2535
  %v2644 = vpack.c.bf16 %v2572, %v2536
  %v2645 = vpack.c.bf16 %v2573, %v2537
  %v2646 = vpack.c.bf16 %v2574, %v2538
  %v2647 = vpack.c.bf16 %v2575, %v2539
  %v2648 = vpack.c.bf16 %v2576, %v2540
  %v2649 = vpack.c.bf16 %v2577, %v2541
  %v2722 = vunpack.c.l.b16 %v2578
  %v2723 = vunpack.c.l.b16 %v2579
  %v2724 = vunpack.c.l.b16 %v2580
  %v2725 = vunpack.c.l.b16 %v2581
  %v2726 = vunpack.c.l.b16 %v2582
  %v2727 = vunpack.c.l.b16 %v2583
  %v2728 = vunpack.c.l.b16 %v2584
  %v2729 = vunpack.c.l.b16 %v2585
  %v2730 = vunpack.c.l.b16 %v2586
  %v2731 = vunpack.c.l.b16 %v2587
  %v2732 = vunpack.c.l.b16 %v2588
  %v2733 = vunpack.c.l.b16 %v2589
  %v2734 = vunpack.c.l.b16 %v2590
  %v2735 = vunpack.c.l.b16 %v2591
  %v2736 = vunpack.c.l.b16 %v2592
  %v2737 = vunpack.c.l.b16 %v2593
  %v2738 = vunpack.c.l.b16 %v2594
  %v2739 = vunpack.c.l.b16 %v2595
  %v2740 = vunpack.c.l.b16 %v2596
  %v2741 = vunpack.c.l.b16 %v2597
  %v2742 = vunpack.c.l.b16 %v2598
  %v2743 = vunpack.c.l.b16 %v2599
  %v2744 = vunpack.c.l.b16 %v2600
  %v2745 = vunpack.c.l.b16 %v2601
  %v2746 = vunpack.c.l.b16 %v2602
  %v2747 = vunpack.c.l.b16 %v2603
  %v2748 = vunpack.c.l.b16 %v2604
  %v2749 = vunpack.c.l.b16 %v2605
  %v2750 = vunpack.c.l.b16 %v2606
  %v2751 = vunpack.c.l.b16 %v2607
  %v2752 = vunpack.c.l.b16 %v2608
  %v2753 = vunpack.c.l.b16 %v2609
  %v2754 = vunpack.c.l.b16 %v2610
  %v2755 = vunpack.c.l.b16 %v2611
  %v2756 = vunpack.c.l.b16 %v2612
  %v2757 = vunpack.c.l.b16 %v2613
  %v2758 = vunpack.c.h.b16 %v2578
  %v2759 = vunpack.c.h.b16 %v2579
  %v2760 = vunpack.c.h.b16 %v2580
  %v2761 = vunpack.c.h.b16 %v2581
  %v2762 = vunpack.c.h.b16 %v2582
  %v2763 = vunpack.c.h.b16 %v2583
  %v2764 = vunpack.c.h.b16 %v2584
  %v2765 = vunpack.c.h.b16 %v2585
  %v2766 = vunpack.c.h.b16 %v2586
  %v2767 = vunpack.c.h.b16 %v2587
  %v2768 = vunpack.c.h.b16 %v2588
  %v2769 = vunpack.c.h.b16 %v2589
  %v2770 = vunpack.c.h.b16 %v2590
  %v2771 = vunpack.c.h.b16 %v2591
  %v2772 = vunpack.c.h.b16 %v2592
  %v2773 = vunpack.c.h.b16 %v2593
  %v2774 = vunpack.c.h.b16 %v2594
  %v2775 = vunpack.c.h.b16 %v2595
  %v2776 = vunpack.c.h.b16 %v2596
  %v2777 = vunpack.c.h.b16 %v2597
  %v2778 = vunpack.c.h.b16 %v2598
  %v2779 = vunpack.c.h.b16 %v2599
  %v2780 = vunpack.c.h.b16 %v2600
  %v2781 = vunpack.c.h.b16 %v2601
  %v2782 = vunpack.c.h.b16 %v2602
  %v2783 = vunpack.c.h.b16 %v2603
  %v2784 = vunpack.c.h.b16 %v2604
  %v2785 = vunpack.c.h.b16 %v2605
  %v2786 = vunpack.c.h.b16 %v2606
  %v2787 = vunpack.c.h.b16 %v2607
  %v2788 = vunpack.c.h.b16 %v2608
  %v2789 = vunpack.c.h.b16 %v2609
  %v2790 = vunpack.c.h.b16 %v2610
  %v2791 = vunpack.c.h.b16 %v2611
  %v2792 = vunpack.c.h.b16 %v2612
  %v2793 = vunpack.c.h.b16 %v2613
  %v2794 = vunpack.c.l.b16 %v2614
  %v2795 = vunpack.c.l.b16 %v2615
  %v2796 = vunpack.c.l.b16 %v2616
  %v2797 = vunpack.c.l.b16 %v2617
  %v2798 = vunpack.c.l.b16 %v2618
  %v2799 = vunpack.c.l.b16 %v2619
  %v2800 = vunpack.c.l.b16 %v2620
  %v2801 = vunpack.c.l.b16 %v2621
  %v2802 = vunpack.c.l.b16 %v2622
  %v2803 = vunpack.c.l.b16 %v2623
  %v2804 = vunpack.c.l.b16 %v2624
  %v2805 = vunpack.c.l.b16 %v2625
  %v2806 = vunpack.c.l.b16 %v2626
  %v2807 = vunpack.c.l.b16 %v2627
  %v2808 = vunpack.c.l.b16 %v2628
  %v2809 = vunpack.c.l.b16 %v2629
  %v2810 = vunpack.c.l.b16 %v2630
  %v2811 = vunpack.c.l.b16 %v2631
  %v2812 = vunpack.c.l.b16 %v2632
  %v2813 = vunpack.c.l.b16 %v2633
  %v2814 = vunpack.c.l.b16 %v2634
  %v2815 = vunpack.c.l.b16 %v2635
  %v2816 = vunpack.c.l.b16 %v2636
  %v2817 = vunpack.c.l.b16 %v2637
  %v2818 = vunpack.c.l.b16 %v2638
  %v2819 = vunpack.c.l.b16 %v2639
  %v2820 = vunpack.c.l.b16 %v2640
  %v2821 = vunpack.c.l.b16 %v2641
  %v2822 = vunpack.c.l.b16 %v2642
  %v2823 = vunpack.c.l.b16 %v2643
  %v2824 = vunpack.c.l.b16 %v2644
  %v2825 = vunpack.c.l.b16 %v2645
  %v2826 = vunpack.c.l.b16 %v2646
  %v2827 = vunpack.c.l.b16 %v2647
  %v2828 = vunpack.c.l.b16 %v2648
  %v2829 = vunpack.c.l.b16 %v2649
  %v2830 = vunpack.c.h.b16 %v2614
  %v2831 = vunpack.c.h.b16 %v2615
  %v2832 = vunpack.c.h.b16 %v2616
  %v2833 = vunpack.c.h.b16 %v2617
  %v2834 = vunpack.c.h.b16 %v2618
  %v2835 = vunpack.c.h.b16 %v2619
  %v2836 = vunpack.c.h.b16 %v2620
  %v2837 = vunpack.c.h.b16 %v2621
  %v2838 = vunpack.c.h.b16 %v2622
  %v2839 = vunpack.c.h.b16 %v2623
  %v2840 = vunpack.c.h.b16 %v2624
  %v2841 = vunpack.c.h.b16 %v2625
  %v2842 = vunpack.c.h.b16 %v2626
  %v2843 = vunpack.c.h.b16 %v2627
  %v2844 = vunpack.c.h.b16 %v2628
  %v2845 = vunpack.c.h.b16 %v2629
  %v2846 = vunpack.c.h.b16 %v2630
  %v2847 = vunpack.c.h.b16 %v2631
  %v2848 = vunpack.c.h.b16 %v2632
  %v2849 = vunpack.c.h.b16 %v2633
  %v2850 = vunpack.c.h.b16 %v2634
  %v2851 = vunpack.c.h.b16 %v2635
  %v2852 = vunpack.c.h.b16 %v2636
  %v2853 = vunpack.c.h.b16 %v2637
  %v2854 = vunpack.c.h.b16 %v2638
  %v2855 = vunpack.c.h.b16 %v2639
  %v2856 = vunpack.c.h.b16 %v2640
  %v2857 = vunpack.c.h.b16 %v2641
  %v2858 = vunpack.c.h.b16 %v2642
  %v2859 = vunpack.c.h.b16 %v2643
  %v2860 = vunpack.c.h.b16 %v2644
  %v2861 = vunpack.c.h.b16 %v2645
  %v2862 = vunpack.c.h.b16 %v2646
  %v2863 = vunpack.c.h.b16 %v2647
  %v2864 = vunpack.c.h.b16 %v2648
  %v2865 = vunpack.c.h.b16 %v2649
  %v2866 = vpack.c.b16 %v2723, %v2722
  %v2867 = vpack.c.b16 %v2725, %v2724
  %v2868 = vpack.c.b16 %v2727, %v2726
  %v2869 = vpack.c.b16 %v2729, %v2728
  %v2870 = vpack.c.b16 %v2731, %v2730
  %v2871 = vpack.c.b16 %v2733, %v2732
  %v2872 = vpack.c.b16 %v2735, %v2734
  %v2873 = vpack.c.b16 %v2737, %v2736
  %v2874 = vpack.c.b16 %v2739, %v2738
  %v2875 = vpack.c.b16 %v2741, %v2740
  %v2876 = vpack.c.b16 %v2743, %v2742
  %v2877 = vpack.c.b16 %v2745, %v2744
  %v2878 = vpack.c.b16 %v2747, %v2746
  %v2879 = vpack.c.b16 %v2749, %v2748
  %v2880 = vpack.c.b16 %v2751, %v2750
  %v2881 = vpack.c.b16 %v2753, %v2752
  %v2882 = vpack.c.b16 %v2755, %v2754
  %v2883 = vpack.c.b16 %v2757, %v2756
  %v2884 = vpack.c.b16 %v2759, %v2758
  %v2885 = vpack.c.b16 %v2761, %v2760
  %v2886 = vpack.c.b16 %v2763, %v2762
  %v2887 = vpack.c.b16 %v2765, %v2764
  %v2888 = vpack.c.b16 %v2767, %v2766
  %v2889 = vpack.c.b16 %v2769, %v2768
  %v2890 = vpack.c.b16 %v2771, %v2770
  %v2891 = vpack.c.b16 %v2773, %v2772
  %v2892 = vpack.c.b16 %v2775, %v2774
  %v2893 = vpack.c.b16 %v2777, %v2776
  %v2894 = vpack.c.b16 %v2779, %v2778
  %v2895 = vpack.c.b16 %v2781, %v2780
  %v2896 = vpack.c.b16 %v2783, %v2782
  %v2897 = vpack.c.b16 %v2785, %v2784
  %v2898 = vpack.c.b16 %v2787, %v2786
  %v2899 = vpack.c.b16 %v2789, %v2788
  %v2900 = vpack.c.b16 %v2791, %v2790
  %v2901 = vpack.c.b16 %v2793, %v2792
  %v2902 = vpack.c.b16 %v2795, %v2794
  %v2903 = vpack.c.b16 %v2797, %v2796
  %v2904 = vpack.c.b16 %v2799, %v2798
  %v2905 = vpack.c.b16 %v2801, %v2800
  %v2906 = vpack.c.b16 %v2803, %v2802
  %v2907 = vpack.c.b16 %v2805, %v2804
  %v2908 = vpack.c.b16 %v2807, %v2806
  %v2909 = vpack.c.b16 %v2809, %v2808
  %v2910 = vpack.c.b16 %v2811, %v2810
  %v2911 = vpack.c.b16 %v2813, %v2812
  %v2912 = vpack.c.b16 %v2815, %v2814
  %v2913 = vpack.c.b16 %v2817, %v2816
  %v2914 = vpack.c.b16 %v2819, %v2818
  %v2915 = vpack.c.b16 %v2821, %v2820
  %v2916 = vpack.c.b16 %v2823, %v2822
  %v2917 = vpack.c.b16 %v2825, %v2824
  %v2918 = vpack.c.b16 %v2827, %v2826
  %v2919 = vpack.c.b16 %v2829, %v2828
  %v2920 = vpack.c.b16 %v2831, %v2830
  %v2921 = vpack.c.b16 %v2833, %v2832
  %v2922 = vpack.c.b16 %v2835, %v2834
  %v2923 = vpack.c.b16 %v2837, %v2836
  %v2924 = vpack.c.b16 %v2839, %v2838
  %v2925 = vpack.c.b16 %v2841, %v2840
  %v2926 = vpack.c.b16 %v2843, %v2842
  %v2927 = vpack.c.b16 %v2845, %v2844
  %v2928 = vpack.c.b16 %v2847, %v2846
  %v2929 = vpack.c.b16 %v2849, %v2848
  %v2930 = vpack.c.b16 %v2851, %v2850
  %v2931 = vpack.c.b16 %v2853, %v2852
  %v2932 = vpack.c.b16 %v2855, %v2854
  %v2933 = vpack.c.b16 %v2857, %v2856
  %v2934 = vpack.c.b16 %v2859, %v2858
  %v2935 = vpack.c.b16 %v2861, %v2860
  %v2936 = vpack.c.b16 %v2863, %v2862
  %v2937 = vpack.c.b16 %v2865, %v2864
  %3010 = vst [vmem:[%s3] sm:$0xff] %v2866
  %3011 = vst [vmem:[%s3 + $0x8] sm:$0xff] %v2867
  %3012 = vst [vmem:[%s3 + $0x10] sm:$0xff] %v2868
  %3013 = vst [vmem:[%s3 + $0x18] sm:$0xff] %v2869
  %3014 = vst [vmem:[%s3 + $0x20] sm:$0xff] %v2870
  %3015 = vst [vmem:[%s3 + $0x28] sm:$0xff] %v2871
  %3016 = vst [vmem:[%s3 + $0x30] sm:$0xff] %v2872
  %3017 = vst [vmem:[%s3 + $0x38] sm:$0xff] %v2873
  %3018 = vst [vmem:[%s3 + $0x40] sm:$0xff] %v2874
  %3019 = vst [vmem:[%s3 + $0x48] sm:$0xff] %v2875
  %3020 = vst [vmem:[%s3 + $0x50] sm:$0xff] %v2876
  %3021 = vst [vmem:[%s3 + $0x58] sm:$0xff] %v2877
  %3022 = vst [vmem:[%s3 + $0x60] sm:$0xff] %v2878
  %3023 = vst [vmem:[%s3 + $0x68] sm:$0xff] %v2879
  %3024 = vst [vmem:[%s3 + $0x70] sm:$0xff] %v2880
  %3025 = vst [vmem:[%s3 + $0x78] sm:$0xff] %v2881
  %3026 = vst [vmem:[%s3 + $0x80] sm:$0xff] %v2882
  %3027 = vst [vmem:[%s3 + $0x88] sm:$0xff] %v2883
  %3028 = vst [vmem:[%s3 + $0x90] sm:$0xff] %v2884
  %3029 = vst [vmem:[%s3 + $0x98] sm:$0xff] %v2885
  %3030 = vst [vmem:[%s3 + $0xa0] sm:$0xff] %v2886
  %3031 = vst [vmem:[%s3 + $0xa8] sm:$0xff] %v2887
  %3032 = vst [vmem:[%s3 + $0xb0] sm:$0xff] %v2888
  %3033 = vst [vmem:[%s3 + $0xb8] sm:$0xff] %v2889
  %3034 = vst [vmem:[%s3 + $0xc0] sm:$0xff] %v2890
  %3035 = vst [vmem:[%s3 + $0xc8] sm:$0xff] %v2891
  %3036 = vst [vmem:[%s3 + $0xd0] sm:$0xff] %v2892
  %3037 = vst [vmem:[%s3 + $0xd8] sm:$0xff] %v2893
  %3038 = vst [vmem:[%s3 + $0xe0] sm:$0xff] %v2894
  %3039 = vst [vmem:[%s3 + $0xe8] sm:$0xff] %v2895
  %3040 = vst [vmem:[%s3 + $0xf0] sm:$0xff] %v2896
  %3041 = vst [vmem:[%s3 + $0xf8] sm:$0xff] %v2897
  %3042 = vst [vmem:[%s3 + $0x100] sm:$0xff] %v2898
  %3043 = vst [vmem:[%s3 + $0x108] sm:$0xff] %v2899
  %3044 = vst [vmem:[%s3 + $0x110] sm:$0xff] %v2900
  %3045 = vst [vmem:[%s3 + $0x118] sm:$0xff] %v2901
  %3046 = vst [vmem:[%s3 + $0x120] sm:$0xff] %v2902
  %3047 = vst [vmem:[%s3 + $0x128] sm:$0xff] %v2903
  %3048 = vst [vmem:[%s3 + $0x130] sm:$0xff] %v2904
  %3049 = vst [vmem:[%s3 + $0x138] sm:$0xff] %v2905
  %3050 = vst [vmem:[%s3 + $0x140] sm:$0xff] %v2906
  %3051 = vst [vmem:[%s3 + $0x148] sm:$0xff] %v2907
  %3052 = vst [vmem:[%s3 + $0x150] sm:$0xff] %v2908
  %3053 = vst [vmem:[%s3 + $0x158] sm:$0xff] %v2909
  %3054 = vst [vmem:[%s3 + $0x160] sm:$0xff] %v2910
  %3055 = vst [vmem:[%s3 + $0x168] sm:$0xff] %v2911
  %3056 = vst [vmem:[%s3 + $0x170] sm:$0xff] %v2912
  %3057 = vst [vmem:[%s3 + $0x178] sm:$0xff] %v2913
  %3058 = vst [vmem:[%s3 + $0x180] sm:$0xff] %v2914
  %3059 = vst [vmem:[%s3 + $0x188] sm:$0xff] %v2915
  %3060 = vst [vmem:[%s3 + $0x190] sm:$0xff] %v2916
  %3061 = vst [vmem:[%s3 + $0x198] sm:$0xff] %v2917
  %3062 = vst [vmem:[%s3 + $0x1a0] sm:$0xff] %v2918
  %3063 = vst [vmem:[%s3 + $0x1a8] sm:$0xff] %v2919
  %3064 = vst [vmem:[%s3 + $0x1b0] sm:$0xff] %v2920
  %3065 = vst [vmem:[%s3 + $0x1b8] sm:$0xff] %v2921
  %3066 = vst [vmem:[%s3 + $0x1c0] sm:$0xff] %v2922
  %3067 = vst [vmem:[%s3 + $0x1c8] sm:$0xff] %v2923
  %3068 = vst [vmem:[%s3 + $0x1d0] sm:$0xff] %v2924
  %3069 = vst [vmem:[%s3 + $0x1d8] sm:$0xff] %v2925
  %3070 = vst [vmem:[%s3 + $0x1e0] sm:$0xff] %v2926
  %3071 = vst [vmem:[%s3 + $0x1e8] sm:$0xff] %v2927
  %3072 = vst [vmem:[%s3 + $0x1f0] sm:$0xff] %v2928
  %3073 = vst [vmem:[%s3 + $0x1f8] sm:$0xff] %v2929
  %3074 = vst [vmem:[%s3 + $0x200] sm:$0xff] %v2930
  %3075 = vst [vmem:[%s3 + $0x208] sm:$0xff] %v2931
  %3076 = vst [vmem:[%s3 + $0x210] sm:$0xff] %v2932
  %3077 = vst [vmem:[%s3 + $0x218] sm:$0xff] %v2933
  %3078 = vst [vmem:[%s3 + $0x220] sm:$0xff] %v2934
  %3079 = vst [vmem:[%s3 + $0x228] sm:$0xff] %v2935
  %3080 = vst [vmem:[%s3 + $0x230] sm:$0xff] %v2936
  %3081 = vst [vmem:[%s3 + $0x238] sm:$0xff] %v2937
  // Predicated region
  $region14: #{policy_forward.5} parent=0 // pred_check
    _
  $region15: #{policy_forward.5} parent=0 // pred_check_branch
    %3083 = sbr.rel (0) target = $region17
  $region16: #{policy_forward.5} parent=0 // pred_region
    _
  $region17: #{policy_forward.5} parent=0 // pred_fallthru
    _
  // Predicated region
  $region18: #{policy_forward.5} parent=0 // pred_check
    _
  $region19: #{policy_forward.5} parent=0 // pred_check_branch
    %3085 = sbr.rel (0) target = $region21
  $region20: #{policy_forward.5} parent=0 // pred_region
    _
  $region21: #{policy_forward.5} parent=0 // pred_fallthru
    _

// kernel: policy_forward.6
$region0: #{policy_forward.6}
  #allocation0 [shape = 'u32[]', space=smem, size = 0x4, offset = 0x4, fixed_abs, tag = 'smem constant byte address 0x4 - core index']
  #allocation1 [shape = 'u32[144,128]{1,0:T(1,128)}', space=vmem, size = 0x12000, scoped, tag = 'internal scratch']
  %s0 = inlined_call_operand.vmem [shape: bf16[288,1152], index: 0, kind: input, shape index: {}]
  %s1 = inlined_call_operand.vmem [shape: bf16[32,288], index: 1, kind: input, shape index: {}]
  %s2 = inlined_call_operand.vmem [shape: f32[32,2], index: 2, kind: input, shape index: {}]
  %s3 = inlined_call_operand.vmem [shape: bf16[32,1152], index: 3, kind: output, shape index: {}]
  %s4 = sld [smem:[#allocation0]]
  $region22: #{policy_forward.6} parent=0
    _
  %s6 = ssub.s32 1, %s4
  %s7 = scalar_select 0, %s6, %s4
  // Predicated region
  $region2: #{policy_forward.6} parent=0 // pred_check
    _
  $region3: #{policy_forward.6} parent=0 // pred_check_branch
    %9 = sbr.rel (0) target = $region5
  $region4: #{policy_forward.6} parent=0 // pred_region
    _
  $region5: #{policy_forward.6} parent=0 // pred_fallthru
    _
  // Predicated region
  $region6: #{policy_forward.6} parent=0 // pred_check
    _
  $region7: #{policy_forward.6} parent=0 // pred_check_branch
    %11 = sbr.rel (0) target = $region9
  $region8: #{policy_forward.6} parent=0 // pred_region
    _
  $region9: #{policy_forward.6} parent=0 // pred_fallthru
    _
  // Predicated region
  $region10: #{policy_forward.6} parent=0 // pred_check
    _
  $region11: #{policy_forward.6} parent=0 // pred_check_branch
    %13 = sbr.rel (0) target = $region13
  $region12: #{policy_forward.6} parent=0 // pred_region
    _
  $region13: #{policy_forward.6} parent=0 // pred_fallthru
    _
  %v15 = vld [vmem:[%s1] sm:$0xff]
  %v16 = vld [vmem:[%s1 + $0x8] sm:$0xf]
  %v17 = vld [vmem:[%s1 + $0xc] sm:$0xff]
  %v18 = vld [vmem:[%s1 + $0x14] sm:$0xf]
  %v19 = vld [vmem:[%s1 + $0x18] sm:$0xff]
  %v20 = vld [vmem:[%s1 + $0x20] sm:$0xf]
  %v21 = vld [vmem:[%s1 + $0x24] sm:$0xff]
  %v22 = vld [vmem:[%s1 + $0x2c] sm:$0xf]
  %v23 = vld [vmem:[%s0] sm:$0xff]
  %v24 = vld [vmem:[%s0 + $0x8] sm:$0xff]
  %v25 = vld [vmem:[%s0 + $0x10] sm:$0xff]
  %v26 = vld [vmem:[%s0 + $0x18] sm:$0xff]
  %v27 = vld [vmem:[%s0 + $0x20] sm:$0xf]
  %v28 = vld [vmem:[%s0 + $0x24] sm:$0xff]
  %v29 = vld [vmem:[%s0 + $0x2c] sm:$0xff]
  %v30 = vld [vmem:[%s0 + $0x34] sm:$0xff]
  %v31 = vld [vmem:[%s0 + $0x3c] sm:$0xff]
  %v32 = vld [vmem:[%s0 + $0x44] sm:$0xf]
  %v33 = vld [vmem:[%s0 + $0x48] sm:$0xff]
  %v34 = vld [vmem:[%s0 + $0x50] sm:$0xff]
  %v35 = vld [vmem:[%s0 + $0x58] sm:$0xff]
  %v36 = vld [vmem:[%s0 + $0x60] sm:$0xff]
  %v37 = vld [vmem:[%s0 + $0x68] sm:$0xf]
  %v38 = vld [vmem:[%s0 + $0x6c] sm:$0xff]
  %v39 = vld [vmem:[%s0 + $0x74] sm:$0xff]
  %v40 = vld [vmem:[%s0 + $0x7c] sm:$0xff]
  %v41 = vld [vmem:[%s0 + $0x84] sm:$0xff]
  %v42 = vld [vmem:[%s0 + $0x8c] sm:$0xf]
  %v43 = vld [vmem:[%s0 + $0x90] sm:$0xff]
  %v44 = vld [vmem:[%s0 + $0x98] sm:$0xff]
  %v45 = vld [vmem:[%s0 + $0xa0] sm:$0xff]
  %v46 = vld [vmem:[%s0 + $0xa8] sm:$0xff]
  %v47 = vld [vmem:[%s0 + $0xb0] sm:$0xf]
  %v48 = vld [vmem:[%s0 + $0xb4] sm:$0xff]
  %v49 = vld [vmem:[%s0 + $0xbc] sm:$0xff]
  %v50 = vld [vmem:[%s0 + $0xc4] sm:$0xff]
  %v51 = vld [vmem:[%s0 + $0xcc] sm:$0xff]
  %v52 = vld [vmem:[%s0 + $0xd4] sm:$0xf]
  %v53 = vld [vmem:[%s0 + $0xd8] sm:$0xff]
  %v54 = vld [vmem:[%s0 + $0xe0] sm:$0xff]
  %v55 = vld [vmem:[%s0 + $0xe8] sm:$0xff]
  %v56 = vld [vmem:[%s0 + $0xf0] sm:$0xff]
  %v57 = vld [vmem:[%s0 + $0xf8] sm:$0xf]
  %v58 = vld [vmem:[%s0 + $0xfc] sm:$0xff]
  %v59 = vld [vmem:[%s0 + $0x104] sm:$0xff]
  %v60 = vld [vmem:[%s0 + $0x10c] sm:$0xff]
  %v61 = vld [vmem:[%s0 + $0x114] sm:$0xff]
  %v62 = vld [vmem:[%s0 + $0x11c] sm:$0xf]
  %v63 = vld [vmem:[%s0 + $0x120] sm:$0xff]
  %v64 = vld [vmem:[%s0 + $0x128] sm:$0xff]
  %v65 = vld [vmem:[%s0 + $0x130] sm:$0xff]
  %v66 = vld [vmem:[%s0 + $0x138] sm:$0xff]
  %v67 = vld [vmem:[%s0 + $0x140] sm:$0xf]
  %v68 = vld [vmem:[%s0 + $0x144] sm:$0xff]
  %v69 = vld [vmem:[%s0 + $0x14c] sm:$0xff]
  %v70 = vld [vmem:[%s0 + $0x154] sm:$0xff]
  %v71 = vld [vmem:[%s0 + $0x15c] sm:$0xff]
  %v72 = vld [vmem:[%s0 + $0x164] sm:$0xf]
  %v73 = vld [vmem:[%s0 + $0x168] sm:$0xff]
  %v74 = vld [vmem:[%s0 + $0x170] sm:$0xff]
  %v75 = vld [vmem:[%s0 + $0x178] sm:$0xff]
  %v76 = vld [vmem:[%s0 + $0x180] sm:$0xff]
  %v77 = vld [vmem:[%s0 + $0x188] sm:$0xf]
  %v78 = vld [vmem:[%s0 + $0x18c] sm:$0xff]
  %v79 = vld [vmem:[%s0 + $0x194] sm:$0xff]
  %v80 = vld [vmem:[%s0 + $0x19c] sm:$0xff]
  %v81 = vld [vmem:[%s0 + $0x1a4] sm:$0xff]
  %v82 = vld [vmem:[%s0 + $0x1ac] sm:$0xf]
  %v83 = vld [vmem:[%s0 + $0x1b0] sm:$0xff]
  %v84 = vld [vmem:[%s0 + $0x1b8] sm:$0xff]
  %v85 = vld [vmem:[%s0 + $0x1c0] sm:$0xff]
  %v86 = vld [vmem:[%s0 + $0x1c8] sm:$0xff]
  %v87 = vld [vmem:[%s0 + $0x1d0] sm:$0xf]
  %v88 = vld [vmem:[%s0 + $0x1d4] sm:$0xff]
  %v89 = vld [vmem:[%s0 + $0x1dc] sm:$0xff]
  %v90 = vld [vmem:[%s0 + $0x1e4] sm:$0xff]
  %v91 = vld [vmem:[%s0 + $0x1ec] sm:$0xff]
  %v92 = vld [vmem:[%s0 + $0x1f4] sm:$0xf]
  %v93 = vld [vmem:[%s0 + $0x1f8] sm:$0xff]
  %v94 = vld [vmem:[%s0 + $0x200] sm:$0xff]
  %v95 = vld [vmem:[%s0 + $0x208] sm:$0xff]
  %v96 = vld [vmem:[%s0 + $0x210] sm:$0xff]
  %v97 = vld [vmem:[%s0 + $0x218] sm:$0xf]
  %v98 = vld [vmem:[%s0 + $0x21c] sm:$0xff]
  %v99 = vld [vmem:[%s0 + $0x224] sm:$0xff]
  %v100 = vld [vmem:[%s0 + $0x22c] sm:$0xff]
  %v101 = vld [vmem:[%s0 + $0x234] sm:$0xff]
  %v102 = vld [vmem:[%s0 + $0x23c] sm:$0xf]
  %v103 = vld [vmem:[%s0 + $0x240] sm:$0xff]
  %v104 = vld [vmem:[%s0 + $0x248] sm:$0xff]
  %v105 = vld [vmem:[%s0 + $0x250] sm:$0xff]
  %v106 = vld [vmem:[%s0 + $0x258] sm:$0xff]
  %v107 = vld [vmem:[%s0 + $0x260] sm:$0xf]
  %v108 = vld [vmem:[%s0 + $0x264] sm:$0xff]
  %v109 = vld [vmem:[%s0 + $0x26c] sm:$0xff]
  %v110 = vld [vmem:[%s0 + $0x274] sm:$0xff]
  %v111 = vld [vmem:[%s0 + $0x27c] sm:$0xff]
  %v112 = vld [vmem:[%s0 + $0x284] sm:$0xf]
  %v113 = vld [vmem:[%s0 + $0x288] sm:$0xff]
  %v114 = vld [vmem:[%s0 + $0x290] sm:$0xff]
  %v115 = vld [vmem:[%s0 + $0x298] sm:$0xff]
  %v116 = vld [vmem:[%s0 + $0x2a0] sm:$0xff]
  %v117 = vld [vmem:[%s0 + $0x2a8] sm:$0xf]
  %v118 = vld [vmem:[%s0 + $0x2ac] sm:$0xff]
  %v119 = vld [vmem:[%s0 + $0x2b4] sm:$0xff]
  %v120 = vld [vmem:[%s0 + $0x2bc] sm:$0xff]
  %v121 = vld [vmem:[%s0 + $0x2c4] sm:$0xff]
  %v122 = vld [vmem:[%s0 + $0x2cc] sm:$0xf]
  %v123 = vld [vmem:[%s0 + $0x2d0] sm:$0xff]
  %v124 = vld [vmem:[%s0 + $0x2d8] sm:$0xff]
  %v125 = vld [vmem:[%s0 + $0x2e0] sm:$0xff]
  %v126 = vld [vmem:[%s0 + $0x2e8] sm:$0xff]
  %v127 = vld [vmem:[%s0 + $0x2f0] sm:$0xf]
  %v128 = vld [vmem:[%s0 + $0x2f4] sm:$0xff]
  %v129 = vld [vmem:[%s0 + $0x2fc] sm:$0xff]
  %v130 = vld [vmem:[%s0 + $0x304] sm:$0xff]
  %v131 = vld [vmem:[%s0 + $0x30c] sm:$0xff]
  %v132 = vld [vmem:[%s0 + $0x314] sm:$0xf]
  %v133 = vld [vmem:[%s0 + $0x318] sm:$0xff]
  %v134 = vld [vmem:[%s0 + $0x320] sm:$0xff]
  %v135 = vld [vmem:[%s0 + $0x328] sm:$0xff]
  %v136 = vld [vmem:[%s0 + $0x330] sm:$0xff]
  %v137 = vld [vmem:[%s0 + $0x338] sm:$0xf]
  %v138 = vld [vmem:[%s0 + $0x33c] sm:$0xff]
  %v139 = vld [vmem:[%s0 + $0x344] sm:$0xff]
  %v140 = vld [vmem:[%s0 + $0x34c] sm:$0xff]
  %v141 = vld [vmem:[%s0 + $0x354] sm:$0xff]
  %v142 = vld [vmem:[%s0 + $0x35c] sm:$0xf]
  %v143 = vld [vmem:[%s0 + $0x360] sm:$0xff]
  %v144 = vld [vmem:[%s0 + $0x368] sm:$0xff]
  %v145 = vld [vmem:[%s0 + $0x370] sm:$0xff]
  %v146 = vld [vmem:[%s0 + $0x378] sm:$0xff]
  %v147 = vld [vmem:[%s0 + $0x380] sm:$0xf]
  %v148 = vld [vmem:[%s0 + $0x384] sm:$0xff]
  %v149 = vld [vmem:[%s0 + $0x38c] sm:$0xff]
  %v150 = vld [vmem:[%s0 + $0x394] sm:$0xff]
  %v151 = vld [vmem:[%s0 + $0x39c] sm:$0xff]
  %v152 = vld [vmem:[%s0 + $0x3a4] sm:$0xf]
  %v153 = vld [vmem:[%s0 + $0x3a8] sm:$0xff]
  %v154 = vld [vmem:[%s0 + $0x3b0] sm:$0xff]
  %v155 = vld [vmem:[%s0 + $0x3b8] sm:$0xff]
  %v156 = vld [vmem:[%s0 + $0x3c0] sm:$0xff]
  %v157 = vld [vmem:[%s0 + $0x3c8] sm:$0xf]
  %v158 = vld [vmem:[%s0 + $0x3cc] sm:$0xff]
  %v159 = vld [vmem:[%s0 + $0x3d4] sm:$0xff]
  %v160 = vld [vmem:[%s0 + $0x3dc] sm:$0xff]
  %v161 = vld [vmem:[%s0 + $0x3e4] sm:$0xff]
  %v162 = vld [vmem:[%s0 + $0x3ec] sm:$0xf]
  %v163 = vld [vmem:[%s0 + $0x3f0] sm:$0xff]
  %v164 = vld [vmem:[%s0 + $0x3f8] sm:$0xff]
  %v165 = vld [vmem:[%s0 + $0x400] sm:$0xff]
  %v166 = vld [vmem:[%s0 + $0x408] sm:$0xff]
  %v167 = vld [vmem:[%s0 + $0x410] sm:$0xf]
  %v168 = vld [vmem:[%s0 + $0x414] sm:$0xff]
  %v169 = vld [vmem:[%s0 + $0x41c] sm:$0xff]
  %v170 = vld [vmem:[%s0 + $0x424] sm:$0xff]
  %v171 = vld [vmem:[%s0 + $0x42c] sm:$0xff]
  %v172 = vld [vmem:[%s0 + $0x434] sm:$0xf]
  %v173 = vld [vmem:[%s0 + $0x438] sm:$0xff]
  %v174 = vld [vmem:[%s0 + $0x440] sm:$0xff]
  %v175 = vld [vmem:[%s0 + $0x448] sm:$0xff]
  %v176 = vld [vmem:[%s0 + $0x450] sm:$0xff]
  %v177 = vld [vmem:[%s0 + $0x458] sm:$0xf]
  %v178 = vld [vmem:[%s0 + $0x45c] sm:$0xff]
  %v179 = vld [vmem:[%s0 + $0x464] sm:$0xff]
  %v180 = vld [vmem:[%s0 + $0x46c] sm:$0xff]
  %v181 = vld [vmem:[%s0 + $0x474] sm:$0xff]
  %v182 = vld [vmem:[%s0 + $0x47c] sm:$0xf]
  %v183 = vld [vmem:[%s0 + $0x480] sm:$0xff]
  %v184 = vld [vmem:[%s0 + $0x488] sm:$0xff]
  %v185 = vld [vmem:[%s0 + $0x490] sm:$0xff]
  %v186 = vld [vmem:[%s0 + $0x498] sm:$0xff]
  %v187 = vld [vmem:[%s0 + $0x4a0] sm:$0xf]
  %v188 = vld [vmem:[%s0 + $0x4a4] sm:$0xff]
  %v189 = vld [vmem:[%s0 + $0x4ac] sm:$0xff]
  %v190 = vld [vmem:[%s0 + $0x4b4] sm:$0xff]
  %v191 = vld [vmem:[%s0 + $0x4bc] sm:$0xff]
  %v192 = vld [vmem:[%s0 + $0x4c4] sm:$0xf]
  %v193 = vld [vmem:[%s0 + $0x4c8] sm:$0xff]
  %v194 = vld [vmem:[%s0 + $0x4d0] sm:$0xff]
  %v195 = vld [vmem:[%s0 + $0x4d8] sm:$0xff]
  %v196 = vld [vmem:[%s0 + $0x4e0] sm:$0xff]
  %v197 = vld [vmem:[%s0 + $0x4e8] sm:$0xf]
  %v198 = vld [vmem:[%s0 + $0x4ec] sm:$0xff]
  %v199 = vld [vmem:[%s0 + $0x4f4] sm:$0xff]
  %v200 = vld [vmem:[%s0 + $0x4fc] sm:$0xff]
  %v201 = vld [vmem:[%s0 + $0x504] sm:$0xff]
  %v202 = vld [vmem:[%s0 + $0x50c] sm:$0xf]
  %v211 = vunpack.c.l.b16 %v15
  %v212 = vunpack.c.h.b16 %v15
  %v213 = vunpack.c.l.b16 %v16
  %v214 = vunpack.c.l.b16 %v17
  %v215 = vunpack.c.h.b16 %v17
  %v216 = vunpack.c.l.b16 %v18
  %v217 = vunpack.c.l.b16 %v19
  %v218 = vunpack.c.h.b16 %v19
  %v219 = vunpack.c.l.b16 %v20
  %v220 = vunpack.c.l.b16 %v21
  %v221 = vunpack.c.h.b16 %v21
  %v222 = vunpack.c.l.b16 %v22
  %v223 = vpack.c.b16 %v214, %v211
  %v224 = vpack.c.b16 %v215, %v212
  %v225 = vpack.c.b16 %v216, %v213
  %v226 = vpack.c.b16 %v220, %v217
  %v227 = vpack.c.b16 %v221, %v218
  %v228 = vpack.c.b16 %v222, %v219
  %v413 = vunpack.c.l.b16 %v23
  %v414 = vunpack.c.h.b16 %v23
  %v415 = vunpack.c.l.b16 %v24
  %v416 = vunpack.c.h.b16 %v24
  %v417 = vunpack.c.l.b16 %v25
  %v418 = vunpack.c.h.b16 %v25
  %v419 = vunpack.c.l.b16 %v26
  %v420 = vunpack.c.h.b16 %v26
  %v421 = vunpack.c.l.b16 %v27
  %v422 = vunpack.c.l.b16 %v28
  %v423 = vunpack.c.h.b16 %v28
  %v424 = vunpack.c.l.b16 %v29
  %v425 = vunpack.c.h.b16 %v29
  %v426 = vunpack.c.l.b16 %v30
  %v427 = vunpack.c.h.b16 %v30
  %v428 = vunpack.c.l.b16 %v31
  %v429 = vunpack.c.h.b16 %v31
  %v430 = vunpack.c.l.b16 %v32
  %v431 = vunpack.c.l.b16 %v33
  %v432 = vunpack.c.h.b16 %v33
  %v433 = vunpack.c.l.b16 %v34
  %v434 = vunpack.c.h.b16 %v34
  %v435 = vunpack.c.l.b16 %v35
  %v436 = vunpack.c.h.b16 %v35
  %v437 = vunpack.c.l.b16 %v36
  %v438 = vunpack.c.h.b16 %v36
  %v439 = vunpack.c.l.b16 %v37
  %v440 = vunpack.c.l.b16 %v38
  %v441 = vunpack.c.h.b16 %v38
  %v442 = vunpack.c.l.b16 %v39
  %v443 = vunpack.c.h.b16 %v39
  %v444 = vunpack.c.l.b16 %v40
  %v445 = vunpack.c.h.b16 %v40
  %v446 = vunpack.c.l.b16 %v41
  %v447 = vunpack.c.h.b16 %v41
  %v448 = vunpack.c.l.b16 %v42
  %v449 = vunpack.c.l.b16 %v43
  %v450 = vunpack.c.h.b16 %v43
  %v451 = vunpack.c.l.b16 %v44
  %v452 = vunpack.c.h.b16 %v44
  %v453 = vunpack.c.l.b16 %v45
  %v454 = vunpack.c.h.b16 %v45
  %v455 = vunpack.c.l.b16 %v46
  %v456 = vunpack.c.h.b16 %v46
  %v457 = vunpack.c.l.b16 %v47
  %v458 = vunpack.c.l.b16 %v48
  %v459 = vunpack.c.h.b16 %v48
  %v460 = vunpack.c.l.b16 %v49
  %v461 = vunpack.c.h.b16 %v49
  %v462 = vunpack.c.l.b16 %v50
  %v463 = vunpack.c.h.b16 %v50
  %v464 = vunpack.c.l.b16 %v51
  %v465 = vunpack.c.h.b16 %v51
  %v466 = vunpack.c.l.b16 %v52
  %v467 = vunpack.c.l.b16 %v53
  %v468 = vunpack.c.h.b16 %v53
  %v469 = vunpack.c.l.b16 %v54
  %v470 = vunpack.c.h.b16 %v54
  %v471 = vunpack.c.l.b16 %v55
  %v472 = vunpack.c.h.b16 %v55
  %v473 = vunpack.c.l.b16 %v56
  %v474 = vunpack.c.h.b16 %v56
  %v475 = vunpack.c.l.b16 %v57
  %v476 = vunpack.c.l.b16 %v58
  %v477 = vunpack.c.h.b16 %v58
  %v478 = vunpack.c.l.b16 %v59
  %v479 = vunpack.c.h.b16 %v59
  %v480 = vunpack.c.l.b16 %v60
  %v481 = vunpack.c.h.b16 %v60
  %v482 = vunpack.c.l.b16 %v61
  %v483 = vunpack.c.h.b16 %v61
  %v484 = vunpack.c.l.b16 %v62
  %v485 = vunpack.c.l.b16 %v63
  %v486 = vunpack.c.h.b16 %v63
  %v487 = vunpack.c.l.b16 %v64
  %v488 = vunpack.c.h.b16 %v64
  %v489 = vunpack.c.l.b16 %v65
  %v490 = vunpack.c.h.b16 %v65
  %v491 = vunpack.c.l.b16 %v66
  %v492 = vunpack.c.h.b16 %v66
  %v493 = vunpack.c.l.b16 %v67
  %v494 = vunpack.c.l.b16 %v68
  %v495 = vunpack.c.h.b16 %v68
  %v496 = vunpack.c.l.b16 %v69
  %v497 = vunpack.c.h.b16 %v69
  %v498 = vunpack.c.l.b16 %v70
  %v499 = vunpack.c.h.b16 %v70
  %v500 = vunpack.c.l.b16 %v71
  %v501 = vunpack.c.h.b16 %v71
  %v502 = vunpack.c.l.b16 %v72
  %v503 = vunpack.c.l.b16 %v73
  %v504 = vunpack.c.h.b16 %v73
  %v505 = vunpack.c.l.b16 %v74
  %v506 = vunpack.c.h.b16 %v74
  %v507 = vunpack.c.l.b16 %v75
  %v508 = vunpack.c.h.b16 %v75
  %v509 = vunpack.c.l.b16 %v76
  %v510 = vunpack.c.h.b16 %v76
  %v511 = vunpack.c.l.b16 %v77
  %v512 = vunpack.c.l.b16 %v78
  %v513 = vunpack.c.h.b16 %v78
  %v514 = vunpack.c.l.b16 %v79
  %v515 = vunpack.c.h.b16 %v79
  %v516 = vunpack.c.l.b16 %v80
  %v517 = vunpack.c.h.b16 %v80
  %v518 = vunpack.c.l.b16 %v81
  %v519 = vunpack.c.h.b16 %v81
  %v520 = vunpack.c.l.b16 %v82
  %v521 = vunpack.c.l.b16 %v83
  %v522 = vunpack.c.h.b16 %v83
  %v523 = vunpack.c.l.b16 %v84
  %v524 = vunpack.c.h.b16 %v84
  %v525 = vunpack.c.l.b16 %v85
  %v526 = vunpack.c.h.b16 %v85
  %v527 = vunpack.c.l.b16 %v86
  %v528 = vunpack.c.h.b16 %v86
  %v529 = vunpack.c.l.b16 %v87
  %v530 = vunpack.c.l.b16 %v88
  %v531 = vunpack.c.h.b16 %v88
  %v532 = vunpack.c.l.b16 %v89
  %v533 = vunpack.c.h.b16 %v89
  %v534 = vunpack.c.l.b16 %v90
  %v535 = vunpack.c.h.b16 %v90
  %v536 = vunpack.c.l.b16 %v91
  %v537 = vunpack.c.h.b16 %v91
  %v538 = vunpack.c.l.b16 %v92
  %v539 = vunpack.c.l.b16 %v93
  %v540 = vunpack.c.h.b16 %v93
  %v541 = vunpack.c.l.b16 %v94
  %v542 = vunpack.c.h.b16 %v94
  %v543 = vunpack.c.l.b16 %v95
  %v544 = vunpack.c.h.b16 %v95
  %v545 = vunpack.c.l.b16 %v96
  %v546 = vunpack.c.h.b16 %v96
  %v547 = vunpack.c.l.b16 %v97
  %v548 = vunpack.c.l.b16 %v98
  %v549 = vunpack.c.h.b16 %v98
  %v550 = vunpack.c.l.b16 %v99
  %v551 = vunpack.c.h.b16 %v99
  %v552 = vunpack.c.l.b16 %v100
  %v553 = vunpack.c.h.b16 %v100
  %v554 = vunpack.c.l.b16 %v101
  %v555 = vunpack.c.h.b16 %v101
  %v556 = vunpack.c.l.b16 %v102
  %v557 = vunpack.c.l.b16 %v103
  %v558 = vunpack.c.h.b16 %v103
  %v559 = vunpack.c.l.b16 %v104
  %v560 = vunpack.c.h.b16 %v104
  %v561 = vunpack.c.l.b16 %v105
  %v562 = vunpack.c.h.b16 %v105
  %v563 = vunpack.c.l.b16 %v106
  %v564 = vunpack.c.h.b16 %v106
  %v565 = vunpack.c.l.b16 %v107
  %v566 = vunpack.c.l.b16 %v108
  %v567 = vunpack.c.h.b16 %v108
  %v568 = vunpack.c.l.b16 %v109
  %v569 = vunpack.c.h.b16 %v109
  %v570 = vunpack.c.l.b16 %v110
  %v571 = vunpack.c.h.b16 %v110
  %v572 = vunpack.c.l.b16 %v111
  %v573 = vunpack.c.h.b16 %v111
  %v574 = vunpack.c.l.b16 %v112
  %v575 = vunpack.c.l.b16 %v113
  %v576 = vunpack.c.h.b16 %v113
  %v577 = vunpack.c.l.b16 %v114
  %v578 = vunpack.c.h.b16 %v114
  %v579 = vunpack.c.l.b16 %v115
  %v580 = vunpack.c.h.b16 %v115
  %v581 = vunpack.c.l.b16 %v116
  %v582 = vunpack.c.h.b16 %v116
  %v583 = vunpack.c.l.b16 %v117
  %v584 = vunpack.c.l.b16 %v118
  %v585 = vunpack.c.h.b16 %v118
  %v586 = vunpack.c.l.b16 %v119
  %v587 = vunpack.c.h.b16 %v119
  %v588 = vunpack.c.l.b16 %v120
  %v589 = vunpack.c.h.b16 %v120
  %v590 = vunpack.c.l.b16 %v121
  %v591 = vunpack.c.h.b16 %v121
  %v592 = vunpack.c.l.b16 %v122
  %v593 = vunpack.c.l.b16 %v123
  %v594 = vunpack.c.h.b16 %v123
  %v595 = vunpack.c.l.b16 %v124
  %v596 = vunpack.c.h.b16 %v124
  %v597 = vunpack.c.l.b16 %v125
  %v598 = vunpack.c.h.b16 %v125
  %v599 = vunpack.c.l.b16 %v126
  %v600 = vunpack.c.h.b16 %v126
  %v601 = vunpack.c.l.b16 %v127
  %v602 = vunpack.c.l.b16 %v128
  %v603 = vunpack.c.h.b16 %v128
  %v604 = vunpack.c.l.b16 %v129
  %v605 = vunpack.c.h.b16 %v129
  %v606 = vunpack.c.l.b16 %v130
  %v607 = vunpack.c.h.b16 %v130
  %v608 = vunpack.c.l.b16 %v131
  %v609 = vunpack.c.h.b16 %v131
  %v610 = vunpack.c.l.b16 %v132
  %v611 = vunpack.c.l.b16 %v133
  %v612 = vunpack.c.h.b16 %v133
  %v613 = vunpack.c.l.b16 %v134
  %v614 = vunpack.c.h.b16 %v134
  %v615 = vunpack.c.l.b16 %v135
  %v616 = vunpack.c.h.b16 %v135
  %v617 = vunpack.c.l.b16 %v136
  %v618 = vunpack.c.h.b16 %v136
  %v619 = vunpack.c.l.b16 %v137
  %v620 = vunpack.c.l.b16 %v138
  %v621 = vunpack.c.h.b16 %v138
  %v622 = vunpack.c.l.b16 %v139
  %v623 = vunpack.c.h.b16 %v139
  %v624 = vunpack.c.l.b16 %v140
  %v625 = vunpack.c.h.b16 %v140
  %v626 = vunpack.c.l.b16 %v141
  %v627 = vunpack.c.h.b16 %v141
  %v628 = vunpack.c.l.b16 %v142
  %v629 = vunpack.c.l.b16 %v143
  %v630 = vunpack.c.h.b16 %v143
  %v631 = vunpack.c.l.b16 %v144
  %v632 = vunpack.c.h.b16 %v144
  %v633 = vunpack.c.l.b16 %v145
  %v634 = vunpack.c.h.b16 %v145
  %v635 = vunpack.c.l.b16 %v146
  %v636 = vunpack.c.h.b16 %v146
  %v637 = vunpack.c.l.b16 %v147
  %v638 = vunpack.c.l.b16 %v148
  %v639 = vunpack.c.h.b16 %v148
  %v640 = vunpack.c.l.b16 %v149
  %v641 = vunpack.c.h.b16 %v149
  %v642 = vunpack.c.l.b16 %v150
  %v643 = vunpack.c.h.b16 %v150
  %v644 = vunpack.c.l.b16 %v151
  %v645 = vunpack.c.h.b16 %v151
  %v646 = vunpack.c.l.b16 %v152
  %v647 = vunpack.c.l.b16 %v153
  %v648 = vunpack.c.h.b16 %v153
  %v649 = vunpack.c.l.b16 %v154
  %v650 = vunpack.c.h.b16 %v154
  %v651 = vunpack.c.l.b16 %v155
  %v652 = vunpack.c.h.b16 %v155
  %v653 = vunpack.c.l.b16 %v156
  %v654 = vunpack.c.h.b16 %v156
  %v655 = vunpack.c.l.b16 %v157
  %v656 = vunpack.c.l.b16 %v158
  %v657 = vunpack.c.h.b16 %v158
  %v658 = vunpack.c.l.b16 %v159
  %v659 = vunpack.c.h.b16 %v159
  %v660 = vunpack.c.l.b16 %v160
  %v661 = vunpack.c.h.b16 %v160
  %v662 = vunpack.c.l.b16 %v161
  %v663 = vunpack.c.h.b16 %v161
  %v664 = vunpack.c.l.b16 %v162
  %v665 = vunpack.c.l.b16 %v163
  %v666 = vunpack.c.h.b16 %v163
  %v667 = vunpack.c.l.b16 %v164
  %v668 = vunpack.c.h.b16 %v164
  %v669 = vunpack.c.l.b16 %v165
  %v670 = vunpack.c.h.b16 %v165
  %v671 = vunpack.c.l.b16 %v166
  %v672 = vunpack.c.h.b16 %v166
  %v673 = vunpack.c.l.b16 %v167
  %v674 = vunpack.c.l.b16 %v168
  %v675 = vunpack.c.h.b16 %v168
  %v676 = vunpack.c.l.b16 %v169
  %v677 = vunpack.c.h.b16 %v169
  %v678 = vunpack.c.l.b16 %v170
  %v679 = vunpack.c.h.b16 %v170
  %v680 = vunpack.c.l.b16 %v171
  %v681 = vunpack.c.h.b16 %v171
  %v682 = vunpack.c.l.b16 %v172
  %v683 = vunpack.c.l.b16 %v173
  %v684 = vunpack.c.h.b16 %v173
  %v685 = vunpack.c.l.b16 %v174
  %v686 = vunpack.c.h.b16 %v174
  %v687 = vunpack.c.l.b16 %v175
  %v688 = vunpack.c.h.b16 %v175
  %v689 = vunpack.c.l.b16 %v176
  %v690 = vunpack.c.h.b16 %v176
  %v691 = vunpack.c.l.b16 %v177
  %v692 = vunpack.c.l.b16 %v178
  %v693 = vunpack.c.h.b16 %v178
  %v694 = vunpack.c.l.b16 %v179
  %v695 = vunpack.c.h.b16 %v179
  %v696 = vunpack.c.l.b16 %v180
  %v697 = vunpack.c.h.b16 %v180
  %v698 = vunpack.c.l.b16 %v181
  %v699 = vunpack.c.h.b16 %v181
  %v700 = vunpack.c.l.b16 %v182
  %v701 = vunpack.c.l.b16 %v183
  %v702 = vunpack.c.h.b16 %v183
  %v703 = vunpack.c.l.b16 %v184
  %v704 = vunpack.c.h.b16 %v184
  %v705 = vunpack.c.l.b16 %v185
  %v706 = vunpack.c.h.b16 %v185
  %v707 = vunpack.c.l.b16 %v186
  %v708 = vunpack.c.h.b16 %v186
  %v709 = vunpack.c.l.b16 %v187
  %v710 = vunpack.c.l.b16 %v188
  %v711 = vunpack.c.h.b16 %v188
  %v712 = vunpack.c.l.b16 %v189
  %v713 = vunpack.c.h.b16 %v189
  %v714 = vunpack.c.l.b16 %v190
  %v715 = vunpack.c.h.b16 %v190
  %v716 = vunpack.c.l.b16 %v191
  %v717 = vunpack.c.h.b16 %v191
  %v718 = vunpack.c.l.b16 %v192
  %v719 = vunpack.c.l.b16 %v193
  %v720 = vunpack.c.h.b16 %v193
  %v721 = vunpack.c.l.b16 %v194
  %v722 = vunpack.c.h.b16 %v194
  %v723 = vunpack.c.l.b16 %v195
  %v724 = vunpack.c.h.b16 %v195
  %v725 = vunpack.c.l.b16 %v196
  %v726 = vunpack.c.h.b16 %v196
  %v727 = vunpack.c.l.b16 %v197
  %v728 = vunpack.c.l.b16 %v198
  %v729 = vunpack.c.h.b16 %v198
  %v730 = vunpack.c.l.b16 %v199
  %v731 = vunpack.c.h.b16 %v199
  %v732 = vunpack.c.l.b16 %v200
  %v733 = vunpack.c.h.b16 %v200
  %v734 = vunpack.c.l.b16 %v201
  %v735 = vunpack.c.h.b16 %v201
  %v736 = vunpack.c.l.b16 %v202
  %v737 = vpack.c.b16 %v422, %v413
  %v738 = vpack.c.b16 %v423, %v414
  %v739 = vpack.c.b16 %v424, %v415
  %v740 = vpack.c.b16 %v425, %v416
  %v741 = vpack.c.b16 %v426, %v417
  %v742 = vpack.c.b16 %v427, %v418
  %v743 = vpack.c.b16 %v428, %v419
  %v744 = vpack.c.b16 %v429, %v420
  %v745 = vpack.c.b16 %v430, %v421
  %v746 = vpack.c.b16 %v440, %v431
  %v747 = vpack.c.b16 %v441, %v432
  %v748 = vpack.c.b16 %v442, %v433
  %v749 = vpack.c.b16 %v443, %v434
  %v750 = vpack.c.b16 %v444, %v435
  %v751 = vpack.c.b16 %v445, %v436
  %v752 = vpack.c.b16 %v446, %v437
  %v753 = vpack.c.b16 %v447, %v438
  %v754 = vpack.c.b16 %v448, %v439
  %v755 = vpack.c.b16 %v458, %v449
  %v756 = vpack.c.b16 %v459, %v450
  %v757 = vpack.c.b16 %v460, %v451
  %v758 = vpack.c.b16 %v461, %v452
  %v759 = vpack.c.b16 %v462, %v453
  %v760 = vpack.c.b16 %v463, %v454
  %v761 = vpack.c.b16 %v464, %v455
  %v762 = vpack.c.b16 %v465, %v456
  %v763 = vpack.c.b16 %v466, %v457
  %v764 = vpack.c.b16 %v476, %v467
  %v765 = vpack.c.b16 %v477, %v468
  %v766 = vpack.c.b16 %v478, %v469
  %v767 = vpack.c.b16 %v479, %v470
  %v768 = vpack.c.b16 %v480, %v471
  %v769 = vpack.c.b16 %v481, %v472
  %v770 = vpack.c.b16 %v482, %v473
  %v771 = vpack.c.b16 %v483, %v474
  %v772 = vpack.c.b16 %v484, %v475
  %v773 = vpack.c.b16 %v494, %v485
  %v774 = vpack.c.b16 %v495, %v486
  %v775 = vpack.c.b16 %v496, %v487
  %v776 = vpack.c.b16 %v497, %v488
  %v777 = vpack.c.b16 %v498, %v489
  %v778 = vpack.c.b16 %v499, %v490
  %v779 = vpack.c.b16 %v500, %v491
  %v780 = vpack.c.b16 %v501, %v492
  %v781 = vpack.c.b16 %v502, %v493
  %v782 = vpack.c.b16 %v512, %v503
  %v783 = vpack.c.b16 %v513, %v504
  %v784 = vpack.c.b16 %v514, %v505
  %v785 = vpack.c.b16 %v515, %v506
  %v786 = vpack.c.b16 %v516, %v507
  %v787 = vpack.c.b16 %v517, %v508
  %v788 = vpack.c.b16 %v518, %v509
  %v789 = vpack.c.b16 %v519, %v510
  %v790 = vpack.c.b16 %v520, %v511
  %v791 = vpack.c.b16 %v530, %v521
  %v792 = vpack.c.b16 %v531, %v522
  %v793 = vpack.c.b16 %v532, %v523
  %v794 = vpack.c.b16 %v533, %v524
  %v795 = vpack.c.b16 %v534, %v525
  %v796 = vpack.c.b16 %v535, %v526
  %v797 = vpack.c.b16 %v536, %v527
  %v798 = vpack.c.b16 %v537, %v528
  %v799 = vpack.c.b16 %v538, %v529
  %v800 = vpack.c.b16 %v548, %v539
  %v801 = vpack.c.b16 %v549, %v540
  %v802 = vpack.c.b16 %v550, %v541
  %v803 = vpack.c.b16 %v551, %v542
  %v804 = vpack.c.b16 %v552, %v543
  %v805 = vpack.c.b16 %v553, %v544
  %v806 = vpack.c.b16 %v554, %v545
  %v807 = vpack.c.b16 %v555, %v546
  %v808 = vpack.c.b16 %v556, %v547
  %v809 = vpack.c.b16 %v566, %v557
  %v810 = vpack.c.b16 %v567, %v558
  %v811 = vpack.c.b16 %v568, %v559
  %v812 = vpack.c.b16 %v569, %v560
  %v813 = vpack.c.b16 %v570, %v561
  %v814 = vpack.c.b16 %v571, %v562
  %v815 = vpack.c.b16 %v572, %v563
  %v816 = vpack.c.b16 %v573, %v564
  %v817 = vpack.c.b16 %v574, %v565
  %v818 = vpack.c.b16 %v584, %v575
  %v819 = vpack.c.b16 %v585, %v576
  %v820 = vpack.c.b16 %v586, %v577
  %v821 = vpack.c.b16 %v587, %v578
  %v822 = vpack.c.b16 %v588, %v579
  %v823 = vpack.c.b16 %v589, %v580
  %v824 = vpack.c.b16 %v590, %v581
  %v825 = vpack.c.b16 %v591, %v582
  %v826 = vpack.c.b16 %v592, %v583
  %v827 = vpack.c.b16 %v602, %v593
  %v828 = vpack.c.b16 %v603, %v594
  %v829 = vpack.c.b16 %v604, %v595
  %v830 = vpack.c.b16 %v605, %v596
  %v831 = vpack.c.b16 %v606, %v597
  %v832 = vpack.c.b16 %v607, %v598
  %v833 = vpack.c.b16 %v608, %v599
  %v834 = vpack.c.b16 %v609, %v600
  %v835 = vpack.c.b16 %v610, %v601
  %v836 = vpack.c.b16 %v620, %v611
  %v837 = vpack.c.b16 %v621, %v612
  %v838 = vpack.c.b16 %v622, %v613
  %v839 = vpack.c.b16 %v623, %v614
  %v840 = vpack.c.b16 %v624, %v615
  %v841 = vpack.c.b16 %v625, %v616
  %v842 = vpack.c.b16 %v626, %v617
  %v843 = vpack.c.b16 %v627, %v618
  %v844 = vpack.c.b16 %v628, %v619
  %v845 = vpack.c.b16 %v638, %v629
  %v846 = vpack.c.b16 %v639, %v630
  %v847 = vpack.c.b16 %v640, %v631
  %v848 = vpack.c.b16 %v641, %v632
  %v849 = vpack.c.b16 %v642, %v633
  %v850 = vpack.c.b16 %v643, %v634
  %v851 = vpack.c.b16 %v644, %v635
  %v852 = vpack.c.b16 %v645, %v636
  %v853 = vpack.c.b16 %v646, %v637
  %v854 = vpack.c.b16 %v656, %v647
  %v855 = vpack.c.b16 %v657, %v648
  %v856 = vpack.c.b16 %v658, %v649
  %v857 = vpack.c.b16 %v659, %v650
  %v858 = vpack.c.b16 %v660, %v651
  %v859 = vpack.c.b16 %v661, %v652
  %v860 = vpack.c.b16 %v662, %v653
  %v861 = vpack.c.b16 %v663, %v654
  %v862 = vpack.c.b16 %v664, %v655
  %v863 = vpack.c.b16 %v674, %v665
  %v864 = vpack.c.b16 %v675, %v666
  %v865 = vpack.c.b16 %v676, %v667
  %v866 = vpack.c.b16 %v677, %v668
  %v867 = vpack.c.b16 %v678, %v669
  %v868 = vpack.c.b16 %v679, %v670
  %v869 = vpack.c.b16 %v680, %v671
  %v870 = vpack.c.b16 %v681, %v672
  %v871 = vpack.c.b16 %v682, %v673
  %v872 = vpack.c.b16 %v692, %v683
  %v873 = vpack.c.b16 %v693, %v684
  %v874 = vpack.c.b16 %v694, %v685
  %v875 = vpack.c.b16 %v695, %v686
  %v876 = vpack.c.b16 %v696, %v687
  %v877 = vpack.c.b16 %v697, %v688
  %v878 = vpack.c.b16 %v698, %v689
  %v879 = vpack.c.b16 %v699, %v690
  %v880 = vpack.c.b16 %v700, %v691
  %v881 = vpack.c.b16 %v710, %v701
  %v882 = vpack.c.b16 %v711, %v702
  %v883 = vpack.c.b16 %v712, %v703
  %v884 = vpack.c.b16 %v713, %v704
  %v885 = vpack.c.b16 %v714, %v705
  %v886 = vpack.c.b16 %v715, %v706
  %v887 = vpack.c.b16 %v716, %v707
  %v888 = vpack.c.b16 %v717, %v708
  %v889 = vpack.c.b16 %v718, %v709
  %v890 = vpack.c.b16 %v728, %v719
  %v891 = vpack.c.b16 %v729, %v720
  %v892 = vpack.c.b16 %v730, %v721
  %v893 = vpack.c.b16 %v731, %v722
  %v894 = vpack.c.b16 %v732, %v723
  %v895 = vpack.c.b16 %v733, %v724
  %v896 = vpack.c.b16 %v734, %v725
  %v897 = vpack.c.b16 %v735, %v726
  %v898 = vpack.c.b16 %v736, %v727
  %vm1061 = vcmask 261120
  %v1063 = vsel %vm1061, %v225, 0
  %v1066 = vsel %vm1061, %v228, 0
  %1068 = vmatprep.subr.bf16.mxu0 %v801
  %1069 = vmatpush1.bf16.msra.mxu0 %v800
  %1070 = vmatprep.subr.bf16.mxu0 %v792
  %1071 = vmatpush1.bf16.msra.mxu0 %v791
  %1072 = vmatprep.subr.bf16.mxu0 %v783
  %1073 = vmatpush1.bf16.msra.mxu0 %v782
  %1074 = vmatprep.subr.bf16.mxu0 %v774
  %1075 = vmatpush1.bf16.msra.mxu0 %v773
  %1076 = vmatprep.subr.bf16.mxu0 %v765
  %1077 = vmatpush1.bf16.msra.mxu0 %v764
  %1078 = vmatprep.subr.bf16.mxu0 %v756
  %1079 = vmatpush1.bf16.msra.mxu0 %v755
  %1080 = vmatprep.subr.bf16.mxu0 %v747
  %1081 = vmatpush1.bf16.msra.mxu0 %v746
  %1082 = vmatprep.subr.bf16.mxu0 %v738
  %1083 = vmatpush1.bf16.msra.mxu0 %v737
  %1084 = vmatprep.subr.bf16.mxu0 %v873
  %1085 = vmatpush2.bf16.msra.mxu0 %v872
  %1086 = vmatprep.subr.bf16.mxu0 %v864
  %1087 = vmatpush2.bf16.msra.mxu0 %v863
  %1088 = vmatprep.subr.bf16.mxu0 %v855
  %1089 = vmatpush2.bf16.msra.mxu0 %v854
  %1090 = vmatprep.subr.bf16.mxu0 %v846
  %1091 = vmatpush2.bf16.msra.mxu0 %v845
  %1092 = vmatprep.subr.bf16.mxu0 %v837
  %1093 = vmatpush2.bf16.msra.mxu0 %v836
  %1094 = vmatprep.subr.bf16.mxu0 %v828
  %1095 = vmatpush2.bf16.msra.mxu0 %v827
  %1096 = vmatprep.subr.bf16.mxu0 %v819
  %1097 = vmatpush2.bf16.msra.mxu0 %v818
  %1098 = vmatprep.subr.bf16.mxu0 %v810
  %1099 = vmatpush2.bf16.msra.mxu0 %v809
  %1100 = vmatprep.mubr.bf16.mxu0 %v224
  %1101 = vmatmul.mubr.bf16.gmra.mxu0 %v223
  %v1102 = vpop.f32.mrf.mxu0
  %v1103 = vadd.f32 0.0, %v1102
  %v1104 = vpop.f32.mrf.mxu0
  %v1105 = vadd.f32 0.0, %v1104
  %v1106 = vpop.f32.mrf.mxu0
  %v1107 = vadd.f32 0.0, %v1106
  %v1108 = vpop.f32.mrf.mxu0
  %v1109 = vadd.f32 0.0, %v1108
  %1110 = vmatprep.mubr.bf16.mxu0 %v227
  %1111 = vmatmul.mubr.bf16.gmra.mxu0 %v226
  %v1112 = vpop.f32.mrf.mxu0
  %v1113 = vadd.f32 0.0, %v1112
  %v1114 = vpop.f32.mrf.mxu0
  %v1115 = vadd.f32 0.0, %v1114
  %v1116 = vpop.f32.mrf.mxu0
  %v1117 = vadd.f32 0.0, %v1116
  %v1118 = vpop.f32.mrf.mxu0
  %v1119 = vadd.f32 0.0, %v1118
  %1120 = vdwg.mxu0
  %1121 = vmatprep.subr.bf16.mxu0 0
  %1122 = vmatpush1.bf16.msra.mxu0 0
  %1123 = vmatprep.subr.bf16.mxu0 0
  %1124 = vmatpush1.bf16.msra.mxu0 0
  %1125 = vmatprep.subr.bf16.mxu0 0
  %1126 = vmatpush1.bf16.msra.mxu0 0
  %1127 = vmatprep.subr.bf16.mxu0 0
  %1128 = vmatpush1.bf16.msra.mxu0 0
  %1129 = vmatprep.subr.bf16.mxu0 0
  %1130 = vmatpush1.bf16.msra.mxu0 0
  %1131 = vmatprep.subr.bf16.mxu0 0
  %1132 = vmatpush1.bf16.msra.mxu0 0
  %1133 = vmatprep.subr.bf16.mxu0 %v891
  %1134 = vmatpush1.bf16.msra.mxu0 %v890
  %1135 = vmatprep.subr.bf16.mxu0 %v882
  %1136 = vmatpush1.bf16.msra.mxu0 %v881
  %1137 = vmatprep.subr.bf16.mxu0 0
  %1138 = vmatpush2.bf16.msra.mxu0 0
  %1139 = vmatprep.subr.bf16.mxu0 0
  %1140 = vmatpush2.bf16.msra.mxu0 0
  %1141 = vmatprep.subr.bf16.mxu0 0
  %1142 = vmatpush2.bf16.msra.mxu0 0
  %1143 = vmatprep.subr.bf16.mxu0 0
  %1144 = vmatpush2.bf16.msra.mxu0 0
  %1145 = vmatprep.subr.bf16.mxu0 0
  %1146 = vmatpush2.bf16.msra.mxu0 0
  %1147 = vmatprep.subr.bf16.mxu0 0
  %1148 = vmatpush2.bf16.msra.mxu0 0
  %1149 = vmatprep.subr.bf16.mxu0 0
  %1150 = vmatpush2.bf16.msra.mxu0 0
  %1151 = vmatprep.subr.bf16.mxu0 0
  %1152 = vmatpush2.bf16.msra.mxu0 0
  %1153 = vmatprep.mubr.bf16.mxu0 0
  %1154 = vmatmul.mubr.bf16.gmra.mxu0 %v1063
  %v1155 = vpop.f32.mrf.mxu0
  %v1156 = vadd.f32 %v1103, %v1155
  %v1157 = vpop.f32.mrf.mxu0
  %v1158 = vadd.f32 %v1105, %v1157
  %v1159 = vpop.f32.mrf.mxu0
  %v1160 = vadd.f32 %v1107, %v1159
  %v1161 = vpop.f32.mrf.mxu0
  %v1162 = vadd.f32 %v1109, %v1161
  %1163 = vmatprep.mubr.bf16.mxu0 0
  %1164 = vmatmul.mubr.bf16.gmra.mxu0 %v1066
  %v1165 = vpop.f32.mrf.mxu0
  %v1166 = vadd.f32 %v1113, %v1165
  %v1167 = vpop.f32.mrf.mxu0
  %v1168 = vadd.f32 %v1115, %v1167
  %v1169 = vpop.f32.mrf.mxu0
  %v1170 = vadd.f32 %v1117, %v1169
  %v1171 = vpop.f32.mrf.mxu0
  %v1172 = vadd.f32 %v1119, %v1171
  %1173 = vdwg.mxu0
  %1174 = vmatprep.subr.bf16.mxu0 %v803
  %1175 = vmatpush1.bf16.msra.mxu0 %v802
  %1176 = vmatprep.subr.bf16.mxu0 %v794
  %1177 = vmatpush1.bf16.msra.mxu0 %v793
  %1178 = vmatprep.subr.bf16.mxu0 %v785
  %1179 = vmatpush1.bf16.msra.mxu0 %v784
  %1180 = vmatprep.subr.bf16.mxu0 %v776
  %1181 = vmatpush1.bf16.msra.mxu0 %v775
  %1182 = vmatprep.subr.bf16.mxu0 %v767
  %1183 = vmatpush1.bf16.msra.mxu0 %v766
  %1184 = vmatprep.subr.bf16.mxu0 %v758
  %1185 = vmatpush1.bf16.msra.mxu0 %v757
  %1186 = vmatprep.subr.bf16.mxu0 %v749
  %1187 = vmatpush1.bf16.msra.mxu0 %v748
  %1188 = vmatprep.subr.bf16.mxu0 %v740
  %1189 = vmatpush1.bf16.msra.mxu0 %v739
  %1190 = vmatprep.subr.bf16.mxu0 %v875
  %1191 = vmatpush2.bf16.msra.mxu0 %v874
  %1192 = vmatprep.subr.bf16.mxu0 %v866
  %1193 = vmatpush2.bf16.msra.mxu0 %v865
  %1194 = vmatprep.subr.bf16.mxu0 %v857
  %1195 = vmatpush2.bf16.msra.mxu0 %v856
  %1196 = vmatprep.subr.bf16.mxu0 %v848
  %1197 = vmatpush2.bf16.msra.mxu0 %v847
  %1198 = vmatprep.subr.bf16.mxu0 %v839
  %1199 = vmatpush2.bf16.msra.mxu0 %v838
  %1200 = vmatprep.subr.bf16.mxu0 %v830
  %1201 = vmatpush2.bf16.msra.mxu0 %v829
  %1202 = vmatprep.subr.bf16.mxu0 %v821
  %1203 = vmatpush2.bf16.msra.mxu0 %v820
  %1204 = vmatprep.subr.bf16.mxu0 %v812
  %1205 = vmatpush2.bf16.msra.mxu0 %v811
  %1206 = vmatprep.mubr.bf16.mxu0 %v224
  %1207 = vmatmul.mubr.bf16.gmra.mxu0 %v223
  %v1208 = vpop.f32.mrf.mxu0
  %v1209 = vadd.f32 0.0, %v1208
  %v1210 = vpop.f32.mrf.mxu0
  %v1211 = vadd.f32 0.0, %v1210
  %v1212 = vpop.f32.mrf.mxu0
  %v1213 = vadd.f32 0.0, %v1212
  %v1214 = vpop.f32.mrf.mxu0
  %v1215 = vadd.f32 0.0, %v1214
  %1216 = vmatprep.mubr.bf16.mxu0 %v227
  %1217 = vmatmul.mubr.bf16.gmra.mxu0 %v226
  %v1218 = vpop.f32.mrf.mxu0
  %v1219 = vadd.f32 0.0, %v1218
  %v1220 = vpop.f32.mrf.mxu0
  %v1221 = vadd.f32 0.0, %v1220
  %v1222 = vpop.f32.mrf.mxu0
  %v1223 = vadd.f32 0.0, %v1222
  %v1224 = vpop.f32.mrf.mxu0
  %v1225 = vadd.f32 0.0, %v1224
  %1226 = vdwg.mxu0
  %1227 = vmatprep.subr.bf16.mxu0 0
  %1228 = vmatpush1.bf16.msra.mxu0 0
  %1229 = vmatprep.subr.bf16.mxu0 0
  %1230 = vmatpush1.bf16.msra.mxu0 0
  %1231 = vmatprep.subr.bf16.mxu0 0
  %1232 = vmatpush1.bf16.msra.mxu0 0
  %1233 = vmatprep.subr.bf16.mxu0 0
  %1234 = vmatpush1.bf16.msra.mxu0 0
  %1235 = vmatprep.subr.bf16.mxu0 0
  %1236 = vmatpush1.bf16.msra.mxu0 0
  %1237 = vmatprep.subr.bf16.mxu0 0
  %1238 = vmatpush1.bf16.msra.mxu0 0
  %1239 = vmatprep.subr.bf16.mxu0 %v893
  %1240 = vmatpush1.bf16.msra.mxu0 %v892
  %1241 = vmatprep.subr.bf16.mxu0 %v884
  %1242 = vmatpush1.bf16.msra.mxu0 %v883
  %1243 = vmatprep.subr.bf16.mxu0 0
  %1244 = vmatpush2.bf16.msra.mxu0 0
  %1245 = vmatprep.subr.bf16.mxu0 0
  %1246 = vmatpush2.bf16.msra.mxu0 0
  %1247 = vmatprep.subr.bf16.mxu0 0
  %1248 = vmatpush2.bf16.msra.mxu0 0
  %1249 = vmatprep.subr.bf16.mxu0 0
  %1250 = vmatpush2.bf16.msra.mxu0 0
  %1251 = vmatprep.subr.bf16.mxu0 0
  %1252 = vmatpush2.bf16.msra.mxu0 0
  %1253 = vmatprep.subr.bf16.mxu0 0
  %1254 = vmatpush2.bf16.msra.mxu0 0
  %1255 = vmatprep.subr.bf16.mxu0 0
  %1256 = vmatpush2.bf16.msra.mxu0 0
  %1257 = vmatprep.subr.bf16.mxu0 0
  %1258 = vmatpush2.bf16.msra.mxu0 0
  %1259 = vmatprep.mubr.bf16.mxu0 0
  %1260 = vmatmul.mubr.bf16.gmra.mxu0 %v1063
  %v1261 = vpop.f32.mrf.mxu0
  %v1262 = vadd.f32 %v1209, %v1261
  %v1263 = vpop.f32.mrf.mxu0
  %v1264 = vadd.f32 %v1211, %v1263
  %v1265 = vpop.f32.mrf.mxu0
  %v1266 = vadd.f32 %v1213, %v1265
  %v1267 = vpop.f32.mrf.mxu0
  %v1268 = vadd.f32 %v1215, %v1267
  %1269 = vmatprep.mubr.bf16.mxu0 0
  %1270 = vmatmul.mubr.bf16.gmra.mxu0 %v1066
  %v1271 = vpop.f32.mrf.mxu0
  %v1272 = vadd.f32 %v1219, %v1271
  %v1273 = vpop.f32.mrf.mxu0
  %v1274 = vadd.f32 %v1221, %v1273
  %v1275 = vpop.f32.mrf.mxu0
  %v1276 = vadd.f32 %v1223, %v1275
  %v1277 = vpop.f32.mrf.mxu0
  %v1278 = vadd.f32 %v1225, %v1277
  %1279 = vdwg.mxu0
  %1280 = vmatprep.subr.bf16.mxu0 %v805
  %1281 = vmatpush1.bf16.msra.mxu0 %v804
  %1282 = vmatprep.subr.bf16.mxu0 %v796
  %1283 = vmatpush1.bf16.msra.mxu0 %v795
  %1284 = vmatprep.subr.bf16.mxu0 %v787
  %1285 = vmatpush1.bf16.msra.mxu0 %v786
  %1286 = vmatprep.subr.bf16.mxu0 %v778
  %1287 = vmatpush1.bf16.msra.mxu0 %v777
  %1288 = vmatprep.subr.bf16.mxu0 %v769
  %1289 = vmatpush1.bf16.msra.mxu0 %v768
  %1290 = vmatprep.subr.bf16.mxu0 %v760
  %1291 = vmatpush1.bf16.msra.mxu0 %v759
  %1292 = vmatprep.subr.bf16.mxu0 %v751
  %1293 = vmatpush1.bf16.msra.mxu0 %v750
  %1294 = vmatprep.subr.bf16.mxu0 %v742
  %1295 = vmatpush1.bf16.msra.mxu0 %v741
  %1296 = vmatprep.subr.bf16.mxu0 %v877
  %1297 = vmatpush2.bf16.msra.mxu0 %v876
  %1298 = vmatprep.subr.bf16.mxu0 %v868
  %1299 = vmatpush2.bf16.msra.mxu0 %v867
  %1300 = vmatprep.subr.bf16.mxu0 %v859
  %1301 = vmatpush2.bf16.msra.mxu0 %v858
  %1302 = vmatprep.subr.bf16.mxu0 %v850
  %1303 = vmatpush2.bf16.msra.mxu0 %v849
  %1304 = vmatprep.subr.bf16.mxu0 %v841
  %1305 = vmatpush2.bf16.msra.mxu0 %v840
  %1306 = vmatprep.subr.bf16.mxu0 %v832
  %1307 = vmatpush2.bf16.msra.mxu0 %v831
  %1308 = vmatprep.subr.bf16.mxu0 %v823
  %1309 = vmatpush2.bf16.msra.mxu0 %v822
  %1310 = vmatprep.subr.bf16.mxu0 %v814
  %1311 = vmatpush2.bf16.msra.mxu0 %v813
  %1312 = vmatprep.mubr.bf16.mxu0 %v224
  %1313 = vmatmul.mubr.bf16.gmra.mxu0 %v223
  %v1314 = vpop.f32.mrf.mxu0
  %v1315 = vadd.f32 0.0, %v1314
  %v1316 = vpop.f32.mrf.mxu0
  %v1317 = vadd.f32 0.0, %v1316
  %v1318 = vpop.f32.mrf.mxu0
  %v1319 = vadd.f32 0.0, %v1318
  %v1320 = vpop.f32.mrf.mxu0
  %v1321 = vadd.f32 0.0, %v1320
  %1322 = vmatprep.mubr.bf16.mxu0 %v227
  %1323 = vmatmul.mubr.bf16.gmra.mxu0 %v226
  %v1324 = vpop.f32.mrf.mxu0
  %v1325 = vadd.f32 0.0, %v1324
  %v1326 = vpop.f32.mrf.mxu0
  %v1327 = vadd.f32 0.0, %v1326
  %v1328 = vpop.f32.mrf.mxu0
  %v1329 = vadd.f32 0.0, %v1328
  %v1330 = vpop.f32.mrf.mxu0
  %v1331 = vadd.f32 0.0, %v1330
  %1332 = vdwg.mxu0
  %1333 = vmatprep.subr.bf16.mxu0 0
  %1334 = vmatpush1.bf16.msra.mxu0 0
  %1335 = vmatprep.subr.bf16.mxu0 0
  %1336 = vmatpush1.bf16.msra.mxu0 0
  %1337 = vmatprep.subr.bf16.mxu0 0
  %1338 = vmatpush1.bf16.msra.mxu0 0
  %1339 = vmatprep.subr.bf16.mxu0 0
  %1340 = vmatpush1.bf16.msra.mxu0 0
  %1341 = vmatprep.subr.bf16.mxu0 0
  %1342 = vmatpush1.bf16.msra.mxu0 0
  %1343 = vmatprep.subr.bf16.mxu0 0
  %1344 = vmatpush1.bf16.msra.mxu0 0
  %1345 = vmatprep.subr.bf16.mxu0 %v895
  %1346 = vmatpush1.bf16.msra.mxu0 %v894
  %1347 = vmatprep.subr.bf16.mxu0 %v886
  %1348 = vmatpush1.bf16.msra.mxu0 %v885
  %1349 = vmatprep.subr.bf16.mxu0 0
  %1350 = vmatpush2.bf16.msra.mxu0 0
  %1351 = vmatprep.subr.bf16.mxu0 0
  %1352 = vmatpush2.bf16.msra.mxu0 0
  %1353 = vmatprep.subr.bf16.mxu0 0
  %1354 = vmatpush2.bf16.msra.mxu0 0
  %1355 = vmatprep.subr.bf16.mxu0 0
  %1356 = vmatpush2.bf16.msra.mxu0 0
  %1357 = vmatprep.subr.bf16.mxu0 0
  %1358 = vmatpush2.bf16.msra.mxu0 0
  %1359 = vmatprep.subr.bf16.mxu0 0
  %1360 = vmatpush2.bf16.msra.mxu0 0
  %1361 = vmatprep.subr.bf16.mxu0 0
  %1362 = vmatpush2.bf16.msra.mxu0 0
  %1363 = vmatprep.subr.bf16.mxu0 0
  %1364 = vmatpush2.bf16.msra.mxu0 0
  %1365 = vmatprep.mubr.bf16.mxu0 0
  %1366 = vmatmul.mubr.bf16.gmra.mxu0 %v1063
  %v1367 = vpop.f32.mrf.mxu0
  %v1368 = vadd.f32 %v1315, %v1367
  %v1369 = vpop.f32.mrf.mxu0
  %v1370 = vadd.f32 %v1317, %v1369
  %v1371 = vpop.f32.mrf.mxu0
  %v1372 = vadd.f32 %v1319, %v1371
  %v1373 = vpop.f32.mrf.mxu0
  %v1374 = vadd.f32 %v1321, %v1373
  %1375 = vmatprep.mubr.bf16.mxu0 0
  %1376 = vmatmul.mubr.bf16.gmra.mxu0 %v1066
  %v1377 = vpop.f32.mrf.mxu0
  %v1378 = vadd.f32 %v1325, %v1377
  %v1379 = vpop.f32.mrf.mxu0
  %v1380 = vadd.f32 %v1327, %v1379
  %v1381 = vpop.f32.mrf.mxu0
  %v1382 = vadd.f32 %v1329, %v1381
  %v1383 = vpop.f32.mrf.mxu0
  %v1384 = vadd.f32 %v1331, %v1383
  %1385 = vdwg.mxu0
  %1386 = vmatprep.subr.bf16.mxu0 %v807
  %1387 = vmatpush1.bf16.msra.mxu0 %v806
  %1388 = vmatprep.subr.bf16.mxu0 %v798
  %1389 = vmatpush1.bf16.msra.mxu0 %v797
  %1390 = vmatprep.subr.bf16.mxu0 %v789
  %1391 = vmatpush1.bf16.msra.mxu0 %v788
  %1392 = vmatprep.subr.bf16.mxu0 %v780
  %1393 = vmatpush1.bf16.msra.mxu0 %v779
  %1394 = vmatprep.subr.bf16.mxu0 %v771
  %1395 = vmatpush1.bf16.msra.mxu0 %v770
  %1396 = vmatprep.subr.bf16.mxu0 %v762
  %1397 = vmatpush1.bf16.msra.mxu0 %v761
  %1398 = vmatprep.subr.bf16.mxu0 %v753
  %1399 = vmatpush1.bf16.msra.mxu0 %v752
  %1400 = vmatprep.subr.bf16.mxu0 %v744
  %1401 = vmatpush1.bf16.msra.mxu0 %v743
  %1402 = vmatprep.subr.bf16.mxu0 %v879
  %1403 = vmatpush2.bf16.msra.mxu0 %v878
  %1404 = vmatprep.subr.bf16.mxu0 %v870
  %1405 = vmatpush2.bf16.msra.mxu0 %v869
  %1406 = vmatprep.subr.bf16.mxu0 %v861
  %1407 = vmatpush2.bf16.msra.mxu0 %v860
  %1408 = vmatprep.subr.bf16.mxu0 %v852
  %1409 = vmatpush2.bf16.msra.mxu0 %v851
  %1410 = vmatprep.subr.bf16.mxu0 %v843
  %1411 = vmatpush2.bf16.msra.mxu0 %v842
  %1412 = vmatprep.subr.bf16.mxu0 %v834
  %1413 = vmatpush2.bf16.msra.mxu0 %v833
  %1414 = vmatprep.subr.bf16.mxu0 %v825
  %1415 = vmatpush2.bf16.msra.mxu0 %v824
  %1416 = vmatprep.subr.bf16.mxu0 %v816
  %1417 = vmatpush2.bf16.msra.mxu0 %v815
  %1418 = vmatprep.mubr.bf16.mxu0 %v224
  %1419 = vmatmul.mubr.bf16.gmra.mxu0 %v223
  %v1420 = vpop.f32.mrf.mxu0
  %v1421 = vadd.f32 0.0, %v1420
  %v1422 = vpop.f32.mrf.mxu0
  %v1423 = vadd.f32 0.0, %v1422
  %v1424 = vpop.f32.mrf.mxu0
  %v1425 = vadd.f32 0.0, %v1424
  %v1426 = vpop.f32.mrf.mxu0
  %v1427 = vadd.f32 0.0, %v1426
  %1428 = vmatprep.mubr.bf16.mxu0 %v227
  %1429 = vmatmul.mubr.bf16.gmra.mxu0 %v226
  %v1430 = vpop.f32.mrf.mxu0
  %v1431 = vadd.f32 0.0, %v1430
  %v1432 = vpop.f32.mrf.mxu0
  %v1433 = vadd.f32 0.0, %v1432
  %v1434 = vpop.f32.mrf.mxu0
  %v1435 = vadd.f32 0.0, %v1434
  %v1436 = vpop.f32.mrf.mxu0
  %v1437 = vadd.f32 0.0, %v1436
  %1438 = vdwg.mxu0
  %1439 = vmatprep.subr.bf16.mxu0 0
  %1440 = vmatpush1.bf16.msra.mxu0 0
  %1441 = vmatprep.subr.bf16.mxu0 0
  %1442 = vmatpush1.bf16.msra.mxu0 0
  %1443 = vmatprep.subr.bf16.mxu0 0
  %1444 = vmatpush1.bf16.msra.mxu0 0
  %1445 = vmatprep.subr.bf16.mxu0 0
  %1446 = vmatpush1.bf16.msra.mxu0 0
  %1447 = vmatprep.subr.bf16.mxu0 0
  %1448 = vmatpush1.bf16.msra.mxu0 0
  %1449 = vmatprep.subr.bf16.mxu0 0
  %1450 = vmatpush1.bf16.msra.mxu0 0
  %1451 = vmatprep.subr.bf16.mxu0 %v897
  %1452 = vmatpush1.bf16.msra.mxu0 %v896
  %1453 = vmatprep.subr.bf16.mxu0 %v888
  %1454 = vmatpush1.bf16.msra.mxu0 %v887
  %1455 = vmatprep.subr.bf16.mxu0 0
  %1456 = vmatpush2.bf16.msra.mxu0 0
  %1457 = vmatprep.subr.bf16.mxu0 0
  %1458 = vmatpush2.bf16.msra.mxu0 0
  %1459 = vmatprep.subr.bf16.mxu0 0
  %1460 = vmatpush2.bf16.msra.mxu0 0
  %1461 = vmatprep.subr.bf16.mxu0 0
  %1462 = vmatpush2.bf16.msra.mxu0 0
  %1463 = vmatprep.subr.bf16.mxu0 0
  %1464 = vmatpush2.bf16.msra.mxu0 0
  %1465 = vmatprep.subr.bf16.mxu0 0
  %1466 = vmatpush2.bf16.msra.mxu0 0
  %1467 = vmatprep.subr.bf16.mxu0 0
  %1468 = vmatpush2.bf16.msra.mxu0 0
  %1469 = vmatprep.subr.bf16.mxu0 0
  %1470 = vmatpush2.bf16.msra.mxu0 0
  %1471 = vmatprep.mubr.bf16.mxu0 0
  %1472 = vmatmul.mubr.bf16.gmra.mxu0 %v1063
  %v1473 = vpop.f32.mrf.mxu0
  %v1474 = vadd.f32 %v1421, %v1473
  %v1475 = vpop.f32.mrf.mxu0
  %v1476 = vadd.f32 %v1423, %v1475
  %v1477 = vpop.f32.mrf.mxu0
  %v1478 = vadd.f32 %v1425, %v1477
  %v1479 = vpop.f32.mrf.mxu0
  %v1480 = vadd.f32 %v1427, %v1479
  %1481 = vmatprep.mubr.bf16.mxu0 0
  %1482 = vmatmul.mubr.bf16.gmra.mxu0 %v1066
  %v1483 = vpop.f32.mrf.mxu0
  %v1484 = vadd.f32 %v1431, %v1483
  %v1485 = vpop.f32.mrf.mxu0
  %v1486 = vadd.f32 %v1433, %v1485
  %v1487 = vpop.f32.mrf.mxu0
  %v1488 = vadd.f32 %v1435, %v1487
  %v1489 = vpop.f32.mrf.mxu0
  %v1490 = vadd.f32 %v1437, %v1489
  %1491 = vdwg.mxu0
  %1492 = vmatprep.subr.bf16.mxu0 0
  %1493 = vmatpush1.bf16.msra.mxu0 %v808
  %1494 = vmatprep.subr.bf16.mxu0 0
  %1495 = vmatpush1.bf16.msra.mxu0 %v799
  %1496 = vmatprep.subr.bf16.mxu0 0
  %1497 = vmatpush1.bf16.msra.mxu0 %v790
  %1498 = vmatprep.subr.bf16.mxu0 0
  %1499 = vmatpush1.bf16.msra.mxu0 %v781
  %1500 = vmatprep.subr.bf16.mxu0 0
  %1501 = vmatpush1.bf16.msra.mxu0 %v772
  %1502 = vmatprep.subr.bf16.mxu0 0
  %1503 = vmatpush1.bf16.msra.mxu0 %v763
  %1504 = vmatprep.subr.bf16.mxu0 0
  %1505 = vmatpush1.bf16.msra.mxu0 %v754
  %1506 = vmatprep.subr.bf16.mxu0 0
  %1507 = vmatpush1.bf16.msra.mxu0 %v745
  %1508 = vmatprep.subr.bf16.mxu0 0
  %1509 = vmatpush2.bf16.msra.mxu0 %v880
  %1510 = vmatprep.subr.bf16.mxu0 0
  %1511 = vmatpush2.bf16.msra.mxu0 %v871
  %1512 = vmatprep.subr.bf16.mxu0 0
  %1513 = vmatpush2.bf16.msra.mxu0 %v862
  %1514 = vmatprep.subr.bf16.mxu0 0
  %1515 = vmatpush2.bf16.msra.mxu0 %v853
  %1516 = vmatprep.subr.bf16.mxu0 0
  %1517 = vmatpush2.bf16.msra.mxu0 %v844
  %1518 = vmatprep.subr.bf16.mxu0 0
  %1519 = vmatpush2.bf16.msra.mxu0 %v835
  %1520 = vmatprep.subr.bf16.mxu0 0
  %1521 = vmatpush2.bf16.msra.mxu0 %v826
  %1522 = vmatprep.subr.bf16.mxu0 0
  %1523 = vmatpush2.bf16.msra.mxu0 %v817
  %1524 = vmatprep.mubr.bf16.mxu0 %v224
  %1525 = vmatmul.mubr.bf16.gmra.mxu0 %v223
  %v1526 = vpop.f32.mrf.mxu0
  %v1527 = vadd.f32 0.0, %v1526
  %v1528 = vpop.f32.mrf.mxu0
  %v1529 = vpop.f32.mrf.mxu0
  %v1530 = vadd.f32 0.0, %v1529
  %v1531 = vpop.f32.mrf.mxu0
  %1532 = vmatprep.mubr.bf16.mxu0 %v227
  %1533 = vmatmul.mubr.bf16.gmra.mxu0 %v226
  %v1534 = vpop.f32.mrf.mxu0
  %v1535 = vadd.f32 0.0, %v1534
  %v1536 = vpop.f32.mrf.mxu0
  %v1537 = vpop.f32.mrf.mxu0
  %v1538 = vadd.f32 0.0, %v1537
  %v1539 = vpop.f32.mrf.mxu0
  %1540 = vdwg.mxu0
  %1541 = vmatprep.subr.bf16.mxu0 0
  %1542 = vmatpush1.bf16.msra.mxu0 0
  %1543 = vmatprep.subr.bf16.mxu0 0
  %1544 = vmatpush1.bf16.msra.mxu0 0
  %1545 = vmatprep.subr.bf16.mxu0 0
  %1546 = vmatpush1.bf16.msra.mxu0 0
  %1547 = vmatprep.subr.bf16.mxu0 0
  %1548 = vmatpush1.bf16.msra.mxu0 0
  %1549 = vmatprep.subr.bf16.mxu0 0
  %1550 = vmatpush1.bf16.msra.mxu0 0
  %1551 = vmatprep.subr.bf16.mxu0 0
  %1552 = vmatpush1.bf16.msra.mxu0 0
  %1553 = vmatprep.subr.bf16.mxu0 0
  %1554 = vmatpush1.bf16.msra.mxu0 %v898
  %1555 = vmatprep.subr.bf16.mxu0 0
  %1556 = vmatpush1.bf16.msra.mxu0 %v889
  %1557 = vmatprep.subr.bf16.mxu0 0
  %1558 = vmatpush2.bf16.msra.mxu0 0
  %1559 = vmatprep.subr.bf16.mxu0 0
  %1560 = vmatpush2.bf16.msra.mxu0 0
  %1561 = vmatprep.subr.bf16.mxu0 0
  %1562 = vmatpush2.bf16.msra.mxu0 0
  %1563 = vmatprep.subr.bf16.mxu0 0
  %1564 = vmatpush2.bf16.msra.mxu0 0
  %1565 = vmatprep.subr.bf16.mxu0 0
  %1566 = vmatpush2.bf16.msra.mxu0 0
  %1567 = vmatprep.subr.bf16.mxu0 0
  %1568 = vmatpush2.bf16.msra.mxu0 0
  %1569 = vmatprep.subr.bf16.mxu0 0
  %1570 = vmatpush2.bf16.msra.mxu0 0
  %1571 = vmatprep.subr.bf16.mxu0 0
  %1572 = vmatpush2.bf16.msra.mxu0 0
  %1573 = vmatprep.mubr.bf16.mxu0 0
  %1574 = vmatmul.mubr.bf16.gmra.mxu0 %v1063
  %v1575 = vpop.f32.mrf.mxu0
  %v1576 = vadd.f32 %v1527, %v1575
  %v1577 = vpop.f32.mrf.mxu0
  %v1578 = vpop.f32.mrf.mxu0
  %v1579 = vadd.f32 %v1530, %v1578
  %v1580 = vpop.f32.mrf.mxu0
  %1581 = vmatprep.mubr.bf16.mxu0 0
  %1582 = vmatmul.mubr.bf16.gmra.mxu0 %v1066
  %v1583 = vpop.f32.mrf.mxu0
  %v1584 = vadd.f32 %v1535, %v1583
  %v1585 = vpop.f32.mrf.mxu0
  %v1586 = vpop.f32.mrf.mxu0
  %v1587 = vadd.f32 %v1538, %v1586
  %v1588 = vpop.f32.mrf.mxu0
  %1589 = vdwg.mxu0
  %v1590 = vadd.f32 %v1156, %v1158
  %v1591 = vadd.f32 %v1590, %v1262
  %v1592 = vadd.f32 %v1591, %v1264
  %v1593 = vadd.f32 %v1592, %v1368
  %v1594 = vadd.f32 %v1593, %v1370
  %v1595 = vadd.f32 %v1594, %v1474
  %v1596 = vadd.f32 %v1595, %v1476
  %v1597 = vadd.f32 %v1596, %v1576
  %1598 = vadd.xlane.f32.xlu0 %v1597
  %v1599 = vpop.xlane.xlu0 %1598
  %v1600 = vadd.f32 %v1160, %v1162
  %v1601 = vadd.f32 %v1600, %v1266
  %v1602 = vadd.f32 %v1601, %v1268
  %v1603 = vadd.f32 %v1602, %v1372
  %v1604 = vadd.f32 %v1603, %v1374
  %v1605 = vadd.f32 %v1604, %v1478
  %v1606 = vadd.f32 %v1605, %v1480
  %v1607 = vadd.f32 %v1606, %v1579
  %1608 = vadd.xlane.f32.xlu0 %v1607
  %v1609 = vpop.xlane.xlu0 %1608
  %v1610 = vadd.f32 %v1166, %v1168
  %v1611 = vadd.f32 %v1610, %v1272
  %v1612 = vadd.f32 %v1611, %v1274
  %v1613 = vadd.f32 %v1612, %v1378
  %v1614 = vadd.f32 %v1613, %v1380
  %v1615 = vadd.f32 %v1614, %v1484
  %v1616 = vadd.f32 %v1615, %v1486
  %v1617 = vadd.f32 %v1616, %v1584
  %1618 = vadd.xlane.f32.xlu0 %v1617
  %v1619 = vpop.xlane.xlu0 %1618
  %v1620 = vadd.f32 %v1170, %v1172
  %v1621 = vadd.f32 %v1620, %v1276
  %v1622 = vadd.f32 %v1621, %v1278
  %v1623 = vadd.f32 %v1622, %v1382
  %v1624 = vadd.f32 %v1623, %v1384
  %v1625 = vadd.f32 %v1624, %v1488
  %v1626 = vadd.f32 %v1625, %v1490
  %v1627 = vadd.f32 %v1626, %v1587
  %1628 = vadd.xlane.f32.xlu0 %v1627
  %v1629 = vpop.xlane.xlu0 %1628
  %v1630 = vmul.f32 %v1599, 0.00086805556
  %v1631 = vmul.f32 %v1609, 0.00086805556
  %v1632 = vmul.f32 %v1619, 0.00086805556
  %v1633 = vmul.f32 %v1629, 0.00086805556
  %v1634 = vsub.f32 %v1156, %v1630
  %v1635 = vsub.f32 %v1158, %v1630
  %v1636 = vsub.f32 %v1262, %v1630
  %v1637 = vsub.f32 %v1264, %v1630
  %v1638 = vsub.f32 %v1368, %v1630
  %v1639 = vsub.f32 %v1370, %v1630
  %v1640 = vsub.f32 %v1474, %v1630
  %v1641 = vsub.f32 %v1476, %v1630
  %v1642 = vsub.f32 %v1576, %v1630
  %v1643 = vsub.f32 %v1160, %v1631
  %v1644 = vsub.f32 %v1162, %v1631
  %v1645 = vsub.f32 %v1266, %v1631
  %v1646 = vsub.f32 %v1268, %v1631
  %v1647 = vsub.f32 %v1372, %v1631
  %v1648 = vsub.f32 %v1374, %v1631
  %v1649 = vsub.f32 %v1478, %v1631
  %v1650 = vsub.f32 %v1480, %v1631
  %v1651 = vsub.f32 %v1579, %v1631
  %v1652 = vsub.f32 %v1166, %v1632
  %v1653 = vsub.f32 %v1168, %v1632
  %v1654 = vsub.f32 %v1272, %v1632
  %v1655 = vsub.f32 %v1274, %v1632
  %v1656 = vsub.f32 %v1378, %v1632
  %v1657 = vsub.f32 %v1380, %v1632
  %v1658 = vsub.f32 %v1484, %v1632
  %v1659 = vsub.f32 %v1486, %v1632
  %v1660 = vsub.f32 %v1584, %v1632
  %v1661 = vsub.f32 %v1170, %v1633
  %v1662 = vsub.f32 %v1172, %v1633
  %v1663 = vsub.f32 %v1276, %v1633
  %v1664 = vsub.f32 %v1278, %v1633
  %v1665 = vsub.f32 %v1382, %v1633
  %v1666 = vsub.f32 %v1384, %v1633
  %v1667 = vsub.f32 %v1488, %v1633
  %v1668 = vsub.f32 %v1490, %v1633
  %v1669 = vsub.f32 %v1587, %v1633
  %v1670 = vmul.f32 %v1634, %v1634
  %v1671 = vmul.f32 %v1635, %v1635
  %v1672 = vmul.f32 %v1636, %v1636
  %v1673 = vmul.f32 %v1637, %v1637
  %v1674 = vmul.f32 %v1638, %v1638
  %v1675 = vmul.f32 %v1639, %v1639
  %v1676 = vmul.f32 %v1640, %v1640
  %v1677 = vmul.f32 %v1641, %v1641
  %v1678 = vmul.f32 %v1642, %v1642
  %v1679 = vmul.f32 %v1643, %v1643
  %v1680 = vmul.f32 %v1644, %v1644
  %v1681 = vmul.f32 %v1645, %v1645
  %v1682 = vmul.f32 %v1646, %v1646
  %v1683 = vmul.f32 %v1647, %v1647
  %v1684 = vmul.f32 %v1648, %v1648
  %v1685 = vmul.f32 %v1649, %v1649
  %v1686 = vmul.f32 %v1650, %v1650
  %v1687 = vmul.f32 %v1651, %v1651
  %v1688 = vmul.f32 %v1652, %v1652
  %v1689 = vmul.f32 %v1653, %v1653
  %v1690 = vmul.f32 %v1654, %v1654
  %v1691 = vmul.f32 %v1655, %v1655
  %v1692 = vmul.f32 %v1656, %v1656
  %v1693 = vmul.f32 %v1657, %v1657
  %v1694 = vmul.f32 %v1658, %v1658
  %v1695 = vmul.f32 %v1659, %v1659
  %v1696 = vmul.f32 %v1660, %v1660
  %v1697 = vmul.f32 %v1661, %v1661
  %v1698 = vmul.f32 %v1662, %v1662
  %v1699 = vmul.f32 %v1663, %v1663
  %v1700 = vmul.f32 %v1664, %v1664
  %v1701 = vmul.f32 %v1665, %v1665
  %v1702 = vmul.f32 %v1666, %v1666
  %v1703 = vmul.f32 %v1667, %v1667
  %v1704 = vmul.f32 %v1668, %v1668
  %v1705 = vmul.f32 %v1669, %v1669
  %v1706 = vadd.f32 %v1670, %v1671
  %v1707 = vadd.f32 %v1706, %v1672
  %v1708 = vadd.f32 %v1707, %v1673
  %v1709 = vadd.f32 %v1708, %v1674
  %v1710 = vadd.f32 %v1709, %v1675
  %v1711 = vadd.f32 %v1710, %v1676
  %v1712 = vadd.f32 %v1711, %v1677
  %v1713 = vadd.f32 %v1712, %v1678
  %1714 = vadd.xlane.f32.xlu0 %v1713
  %v1715 = vpop.xlane.xlu0 %1714
  %v1716 = vadd.f32 %v1679, %v1680
  %v1717 = vadd.f32 %v1716, %v1681
  %v1718 = vadd.f32 %v1717, %v1682
  %v1719 = vadd.f32 %v1718, %v1683
  %v1720 = vadd.f32 %v1719, %v1684
  %v1721 = vadd.f32 %v1720, %v1685
  %v1722 = vadd.f32 %v1721, %v1686
  %v1723 = vadd.f32 %v1722, %v1687
  %1724 = vadd.xlane.f32.xlu0 %v1723
  %v1725 = vpop.xlane.xlu0 %1724
  %v1726 = vadd.f32 %v1688, %v1689
  %v1727 = vadd.f32 %v1726, %v1690
  %v1728 = vadd.f32 %v1727, %v1691
  %v1729 = vadd.f32 %v1728, %v1692
  %v1730 = vadd.f32 %v1729, %v1693
  %v1731 = vadd.f32 %v1730, %v1694
  %v1732 = vadd.f32 %v1731, %v1695
  %v1733 = vadd.f32 %v1732, %v1696
  %1734 = vadd.xlane.f32.xlu0 %v1733
  %v1735 = vpop.xlane.xlu0 %1734
  %v1736 = vadd.f32 %v1697, %v1698
  %v1737 = vadd.f32 %v1736, %v1699
  %v1738 = vadd.f32 %v1737, %v1700
  %v1739 = vadd.f32 %v1738, %v1701
  %v1740 = vadd.f32 %v1739, %v1702
  %v1741 = vadd.f32 %v1740, %v1703
  %v1742 = vadd.f32 %v1741, %v1704
  %v1743 = vadd.f32 %v1742, %v1705
  %1744 = vadd.xlane.f32.xlu0 %v1743
  %v1745 = vpop.xlane.xlu0 %1744
  %v1746 = vmul.f32 %v1715, 0.00086805556
  %v1747 = vmul.f32 %v1725, 0.00086805556
  %v1748 = vmul.f32 %v1735, 0.00086805556
  %v1749 = vmul.f32 %v1745, 0.00086805556
  %v1750 = vld [vmem:[%s2] sm:$0xff]
  %v1751 = vld [vmem:[%s2 + $0x8] sm:$0xff]
  %v1752 = vld [vmem:[%s2 + $0x10] sm:$0xff]
  %v1753 = vld [vmem:[%s2 + $0x18] sm:$0xff]
  %v1754 = vadd.f32 %v1746, 1e-05
  %v1755 = vadd.f32 %v1747, 1e-05
  %v1756 = vadd.f32 %v1748, 1e-05
  %v1757 = vadd.f32 %v1749, 1e-05
  %v1758 = vrsqrt.pop %v1754
  %v1759 = vrsqrt.pop %v1755
  %v1760 = vrsqrt.pop %v1756
  %v1761 = vrsqrt.pop %v1757
  %v1762 = vmul.f32 %v1750, %v1758
  %v1763 = vmul.f32 %v1751, %v1759
  %v1764 = vmul.f32 %v1752, %v1760
  %v1765 = vmul.f32 %v1753, %v1761
  %1767 = vset.pattern.permute.xlu0 0
  %1768 = vperm.xlu0 %1767, %v1762
  %v1769 = vpop.permute.xlu0 %1768
  %1772 = vset.pattern.permute.xlu0 0
  %1773 = vperm.xlu0 %1772, %v1763
  %v1774 = vpop.permute.xlu0 %1773
  %1777 = vset.pattern.permute.xlu0 0
  %1778 = vperm.xlu0 %1777, %v1764
  %v1779 = vpop.permute.xlu0 %1778
  %1782 = vset.pattern.permute.xlu0 0
  %1783 = vperm.xlu0 %1782, %v1765
  %v1784 = vpop.permute.xlu0 %1783
  %v1786 = vmul.f32 %v1634, %v1769
  %v1787 = vmul.f32 %v1635, %v1769
  %v1788 = vmul.f32 %v1636, %v1769
  %v1789 = vmul.f32 %v1637, %v1769
  %v1790 = vmul.f32 %v1638, %v1769
  %v1791 = vmul.f32 %v1639, %v1769
  %v1792 = vmul.f32 %v1640, %v1769
  %v1793 = vmul.f32 %v1641, %v1769
  %v1794 = vmul.f32 %v1642, %v1769
  %v1795 = vmul.f32 %v1643, %v1774
  %v1796 = vmul.f32 %v1644, %v1774
  %v1797 = vmul.f32 %v1645, %v1774
  %v1798 = vmul.f32 %v1646, %v1774
  %v1799 = vmul.f32 %v1647, %v1774
  %v1800 = vmul.f32 %v1648, %v1774
  %v1801 = vmul.f32 %v1649, %v1774
  %v1802 = vmul.f32 %v1650, %v1774
  %v1803 = vmul.f32 %v1651, %v1774
  %v1804 = vmul.f32 %v1652, %v1779
  %v1805 = vmul.f32 %v1653, %v1779
  %v1806 = vmul.f32 %v1654, %v1779
  %v1807 = vmul.f32 %v1655, %v1779
  %v1808 = vmul.f32 %v1656, %v1779
  %v1809 = vmul.f32 %v1657, %v1779
  %v1810 = vmul.f32 %v1658, %v1779
  %v1811 = vmul.f32 %v1659, %v1779
  %v1812 = vmul.f32 %v1660, %v1779
  %v1813 = vmul.f32 %v1661, %v1784
  %v1814 = vmul.f32 %v1662, %v1784
  %v1815 = vmul.f32 %v1663, %v1784
  %v1816 = vmul.f32 %v1664, %v1784
  %v1817 = vmul.f32 %v1665, %v1784
  %v1818 = vmul.f32 %v1666, %v1784
  %v1819 = vmul.f32 %v1667, %v1784
  %v1820 = vmul.f32 %v1668, %v1784
  %v1821 = vmul.f32 %v1669, %v1784
  %1823 = vset.pattern.permute.xlu0 1
  %1824 = vperm.xlu0 %1823, %v1750
  %v1825 = vpop.permute.xlu0 %1824
  %1828 = vset.pattern.permute.xlu0 1
  %1829 = vperm.xlu0 %1828, %v1751
  %v1830 = vpop.permute.xlu0 %1829
  %1833 = vset.pattern.permute.xlu0 1
  %1834 = vperm.xlu0 %1833, %v1752
  %v1835 = vpop.permute.xlu0 %1834
  %1838 = vset.pattern.permute.xlu0 1
  %1839 = vperm.xlu0 %1838, %v1753
  %v1840 = vpop.permute.xlu0 %1839
  %v1842 = vadd.f32 %v1786, %v1825
  %v1843 = vadd.f32 %v1787, %v1825
  %v1844 = vadd.f32 %v1788, %v1825
  %v1845 = vadd.f32 %v1789, %v1825
  %v1846 = vadd.f32 %v1790, %v1825
  %v1847 = vadd.f32 %v1791, %v1825
  %v1848 = vadd.f32 %v1792, %v1825
  %v1849 = vadd.f32 %v1793, %v1825
  %v1850 = vadd.f32 %v1794, %v1825
  %v1851 = vadd.f32 %v1795, %v1830
  %v1852 = vadd.f32 %v1796, %v1830
  %v1853 = vadd.f32 %v1797, %v1830
  %v1854 = vadd.f32 %v1798, %v1830
  %v1855 = vadd.f32 %v1799, %v1830
  %v1856 = vadd.f32 %v1800, %v1830
  %v1857 = vadd.f32 %v1801, %v1830
  %v1858 = vadd.f32 %v1802, %v1830
  %v1859 = vadd.f32 %v1803, %v1830
  %v1860 = vadd.f32 %v1804, %v1835
  %v1861 = vadd.f32 %v1805, %v1835
  %v1862 = vadd.f32 %v1806, %v1835
  %v1863 = vadd.f32 %v1807, %v1835
  %v1864 = vadd.f32 %v1808, %v1835
  %v1865 = vadd.f32 %v1809, %v1835
  %v1866 = vadd.f32 %v1810, %v1835
  %v1867 = vadd.f32 %v1811, %v1835
  %v1868 = vadd.f32 %v1812, %v1835
  %v1869 = vadd.f32 %v1813, %v1840
  %v1870 = vadd.f32 %v1814, %v1840
  %v1871 = vadd.f32 %v1815, %v1840
  %v1872 = vadd.f32 %v1816, %v1840
  %v1873 = vadd.f32 %v1817, %v1840
  %v1874 = vadd.f32 %v1818, %v1840
  %v1875 = vadd.f32 %v1819, %v1840
  %v1876 = vadd.f32 %v1820, %v1840
  %v1877 = vadd.f32 %v1821, %v1840
  %v1878 = vmax.f32 %v1842, 0.0
  %v1879 = vmax.f32 %v1843, 0.0
  %v1880 = vmax.f32 %v1844, 0.0
  %v1881 = vmax.f32 %v1845, 0.0
  %v1882 = vmax.f32 %v1846, 0.0
  %v1883 = vmax.f32 %v1847, 0.0
  %v1884 = vmax.f32 %v1848, 0.0
  %v1885 = vmax.f32 %v1849, 0.0
  %v1886 = vmax.f32 %v1850, 0.0
  %v1887 = vmax.f32 %v1851, 0.0
  %v1888 = vmax.f32 %v1852, 0.0
  %v1889 = vmax.f32 %v1853, 0.0
  %v1890 = vmax.f32 %v1854, 0.0
  %v1891 = vmax.f32 %v1855, 0.0
  %v1892 = vmax.f32 %v1856, 0.0
  %v1893 = vmax.f32 %v1857, 0.0
  %v1894 = vmax.f32 %v1858, 0.0
  %v1895 = vmax.f32 %v1859, 0.0
  %v1896 = vmax.f32 %v1860, 0.0
  %v1897 = vmax.f32 %v1861, 0.0
  %v1898 = vmax.f32 %v1862, 0.0
  %v1899 = vmax.f32 %v1863, 0.0
  %v1900 = vmax.f32 %v1864, 0.0
  %v1901 = vmax.f32 %v1865, 0.0
  %v1902 = vmax.f32 %v1866, 0.0
  %v1903 = vmax.f32 %v1867, 0.0
  %v1904 = vmax.f32 %v1868, 0.0
  %v1905 = vmax.f32 %v1869, 0.0
  %v1906 = vmax.f32 %v1870, 0.0
  %v1907 = vmax.f32 %v1871, 0.0
  %v1908 = vmax.f32 %v1872, 0.0
  %v1909 = vmax.f32 %v1873, 0.0
  %v1910 = vmax.f32 %v1874, 0.0
  %v1911 = vmax.f32 %v1875, 0.0
  %v1912 = vmax.f32 %v1876, 0.0
  %v1913 = vmax.f32 %v1877, 0.0
  %v1914 = vpack.c.bf16 %v1887, %v1878
  %v1915 = vpack.c.bf16 %v1888, %v1879
  %v1916 = vpack.c.bf16 %v1889, %v1880
  %v1917 = vpack.c.bf16 %v1890, %v1881
  %v1918 = vpack.c.bf16 %v1891, %v1882
  %v1919 = vpack.c.bf16 %v1892, %v1883
  %v1920 = vpack.c.bf16 %v1893, %v1884
  %v1921 = vpack.c.bf16 %v1894, %v1885
  %v1922 = vpack.c.bf16 %v1895, %v1886
  %v1923 = vpack.c.bf16 %v1905, %v1896
  %v1924 = vpack.c.bf16 %v1906, %v1897
  %v1925 = vpack.c.bf16 %v1907, %v1898
  %v1926 = vpack.c.bf16 %v1908, %v1899
  %v1927 = vpack.c.bf16 %v1909, %v1900
  %v1928 = vpack.c.bf16 %v1910, %v1901
  %v1929 = vpack.c.bf16 %v1911, %v1902
  %v1930 = vpack.c.bf16 %v1912, %v1903
  %v1931 = vpack.c.bf16 %v1913, %v1904
  %v1950 = vunpack.c.l.b16 %v1914
  %v1951 = vunpack.c.l.b16 %v1915
  %v1952 = vunpack.c.l.b16 %v1916
  %v1953 = vunpack.c.l.b16 %v1917
  %v1954 = vunpack.c.l.b16 %v1918
  %v1955 = vunpack.c.l.b16 %v1919
  %v1956 = vunpack.c.l.b16 %v1920
  %v1957 = vunpack.c.l.b16 %v1921
  %v1958 = vunpack.c.l.b16 %v1922
  %v1959 = vunpack.c.h.b16 %v1914
  %v1960 = vunpack.c.h.b16 %v1915
  %v1961 = vunpack.c.h.b16 %v1916
  %v1962 = vunpack.c.h.b16 %v1917
  %v1963 = vunpack.c.h.b16 %v1918
  %v1964 = vunpack.c.h.b16 %v1919
  %v1965 = vunpack.c.h.b16 %v1920
  %v1966 = vunpack.c.h.b16 %v1921
  %v1967 = vunpack.c.h.b16 %v1922
  %v1968 = vunpack.c.l.b16 %v1923
  %v1969 = vunpack.c.l.b16 %v1924
  %v1970 = vunpack.c.l.b16 %v1925
  %v1971 = vunpack.c.l.b16 %v1926
  %v1972 = vunpack.c.l.b16 %v1927
  %v1973 = vunpack.c.l.b16 %v1928
  %v1974 = vunpack.c.l.b16 %v1929
  %v1975 = vunpack.c.l.b16 %v1930
  %v1976 = vunpack.c.l.b16 %v1931
  %v1977 = vunpack.c.h.b16 %v1923
  %v1978 = vunpack.c.h.b16 %v1924
  %v1979 = vunpack.c.h.b16 %v1925
  %v1980 = vunpack.c.h.b16 %v1926
  %v1981 = vunpack.c.h.b16 %v1927
  %v1982 = vunpack.c.h.b16 %v1928
  %v1983 = vunpack.c.h.b16 %v1929
  %v1984 = vunpack.c.h.b16 %v1930
  %v1985 = vunpack.c.h.b16 %v1931
  %v1986 = vpack.c.b16 %v1951, %v1950
  %v1987 = vpack.c.b16 %v1953, %v1952
  %v1988 = vpack.c.b16 %v1955, %v1954
  %v1989 = vpack.c.b16 %v1957, %v1956
  %v1990 = vpack.c.b16 %v1958, %v1958
  %v1991 = vpack.c.b16 %v1960, %v1959
  %v1992 = vpack.c.b16 %v1962, %v1961
  %v1993 = vpack.c.b16 %v1964, %v1963
  %v1994 = vpack.c.b16 %v1966, %v1965
  %v1995 = vpack.c.b16 %v1967, %v1967
  %v1996 = vpack.c.b16 %v1969, %v1968
  %v1997 = vpack.c.b16 %v1971, %v1970
  %v1998 = vpack.c.b16 %v1973, %v1972
  %v1999 = vpack.c.b16 %v1975, %v1974
  %v2000 = vpack.c.b16 %v1976, %v1976
  %v2001 = vpack.c.b16 %v1978, %v1977
  %v2002 = vpack.c.b16 %v1980, %v1979
  %v2003 = vpack.c.b16 %v1982, %v1981
  %v2004 = vpack.c.b16 %v1984, %v1983
  %v2005 = vpack.c.b16 %v1985, %v1985
  %2026 = vst [vmem:[%s3] sm:$0xff] %v1986
  %2027 = vst [vmem:[%s3 + $0x8] sm:$0xff] %v1987
  %2028 = vst [vmem:[%s3 + $0x10] sm:$0xff] %v1988
  %2029 = vst [vmem:[%s3 + $0x18] sm:$0xff] %v1989
  %2030 = vst [vmem:[%s3 + $0x20] sm:$0xf] %v1990
  %2031 = vst [vmem:[%s3 + $0x24] sm:$0xff] %v1991
  %2032 = vst [vmem:[%s3 + $0x2c] sm:$0xff] %v1992
  %2033 = vst [vmem:[%s3 + $0x34] sm:$0xff] %v1993
  %2034 = vst [vmem:[%s3 + $0x3c] sm:$0xff] %v1994
  %2035 = vst [vmem:[%s3 + $0x44] sm:$0xf] %v1995
  %2036 = vst [vmem:[%s3 + $0x48] sm:$0xff] %v1996
  %2037 = vst [vmem:[%s3 + $0x50] sm:$0xff] %v1997
  %2038 = vst [vmem:[%s3 + $0x58] sm:$0xff] %v1998
  %2039 = vst [vmem:[%s3 + $0x60] sm:$0xff] %v1999
  %2040 = vst [vmem:[%s3 + $0x68] sm:$0xf] %v2000
  %2041 = vst [vmem:[%s3 + $0x6c] sm:$0xff] %v2001
  %2042 = vst [vmem:[%s3 + $0x74] sm:$0xff] %v2002
  %2043 = vst [vmem:[%s3 + $0x7c] sm:$0xff] %v2003
  %2044 = vst [vmem:[%s3 + $0x84] sm:$0xff] %v2004
  %2045 = vst [vmem:[%s3 + $0x8c] sm:$0xf] %v2005
  // Predicated region
  $region14: #{policy_forward.6} parent=0 // pred_check
    _
  $region15: #{policy_forward.6} parent=0 // pred_check_branch
    %2047 = sbr.rel (0) target = $region17
  $region16: #{policy_forward.6} parent=0 // pred_region
    _
  $region17: #{policy_forward.6} parent=0 // pred_fallthru
    _
  // Predicated region
  $region18: #{policy_forward.6} parent=0 // pred_check
    _
  $region19: #{policy_forward.6} parent=0 // pred_check_branch
    %2049 = sbr.rel (0) target = $region21
  $region20: #{policy_forward.6} parent=0 // pred_region
    _
  $region21: #{policy_forward.6} parent=0 // pred_fallthru
    _

// kernel: policy_forward.7
$region0: #{policy_forward.7}
  #allocation0 [shape = 'u32[]', space=smem, size = 0x4, offset = 0x4, fixed_abs, tag = 'smem constant byte address 0x4 - core index']
  #allocation1 [shape = 'u32[144,128]{1,0:T(1,128)}', space=vmem, size = 0x12000, scoped, tag = 'internal scratch']
  %s0 = inlined_call_operand.vmem [shape: bf16[288,288], index: 0, kind: input, shape index: {}]
  %s1 = inlined_call_operand.vmem [shape: bf16[32,288], index: 1, kind: input, shape index: {}]
  %s2 = inlined_call_operand.vmem [shape: f32[32,2], index: 2, kind: input, shape index: {}]
  %s3 = inlined_call_operand.vmem [shape: bf16[32,288], index: 3, kind: output, shape index: {}]
  %s4 = sld [smem:[#allocation0]]
  $region22: #{policy_forward.7} parent=0
    _
  %s6 = ssub.s32 1, %s4
  %s7 = scalar_select 0, %s6, %s4
  // Predicated region
  $region2: #{policy_forward.7} parent=0 // pred_check
    _
  $region3: #{policy_forward.7} parent=0 // pred_check_branch
    %9 = sbr.rel (0) target = $region5
  $region4: #{policy_forward.7} parent=0 // pred_region
    _
  $region5: #{policy_forward.7} parent=0 // pred_fallthru
    _
  // Predicated region
  $region6: #{policy_forward.7} parent=0 // pred_check
    _
  $region7: #{policy_forward.7} parent=0 // pred_check_branch
    %11 = sbr.rel (0) target = $region9
  $region8: #{policy_forward.7} parent=0 // pred_region
    _
  $region9: #{policy_forward.7} parent=0 // pred_fallthru
    _
  // Predicated region
  $region10: #{policy_forward.7} parent=0 // pred_check
    _
  $region11: #{policy_forward.7} parent=0 // pred_check_branch
    %13 = sbr.rel (0) target = $region13
  $region12: #{policy_forward.7} parent=0 // pred_region
    _
  $region13: #{policy_forward.7} parent=0 // pred_fallthru
    _
  %v15 = vld [vmem:[%s1] sm:$0xff]
  %v16 = vld [vmem:[%s1 + $0x8] sm:$0xf]
  %v17 = vld [vmem:[%s1 + $0xc] sm:$0xff]
  %v18 = vld [vmem:[%s1 + $0x14] sm:$0xf]
  %v19 = vld [vmem:[%s1 + $0x18] sm:$0xff]
  %v20 = vld [vmem:[%s1 + $0x20] sm:$0xf]
  %v21 = vld [vmem:[%s1 + $0x24] sm:$0xff]
  %v22 = vld [vmem:[%s1 + $0x2c] sm:$0xf]
  %v23 = vld [vmem:[%s0] sm:$0xff]
  %v24 = vld [vmem:[%s0 + $0x8] sm:$0xf]
  %v25 = vld [vmem:[%s0 + $0xc] sm:$0xff]
  %v26 = vld [vmem:[%s0 + $0x14] sm:$0xf]
  %v27 = vld [vmem:[%s0 + $0x18] sm:$0xff]
  %v28 = vld [vmem:[%s0 + $0x20] sm:$0xf]
  %v29 = vld [vmem:[%s0 + $0x24] sm:$0xff]
  %v30 = vld [vmem:[%s0 + $0x2c] sm:$0xf]
  %v31 = vld [vmem:[%s0 + $0x30] sm:$0xff]
  %v32 = vld [vmem:[%s0 + $0x38] sm:$0xf]
  %v33 = vld [vmem:[%s0 + $0x3c] sm:$0xff]
  %v34 = vld [vmem:[%s0 + $0x44] sm:$0xf]
  %v35 = vld [vmem:[%s0 + $0x48] sm:$0xff]
  %v36 = vld [vmem:[%s0 + $0x50] sm:$0xf]
  %v37 = vld [vmem:[%s0 + $0x54] sm:$0xff]
  %v38 = vld [vmem:[%s0 + $0x5c] sm:$0xf]
  %v39 = vld [vmem:[%s0 + $0x60] sm:$0xff]
  %v40 = vld [vmem:[%s0 + $0x68] sm:$0xf]
  %v41 = vld [vmem:[%s0 + $0x6c] sm:$0xff]
  %v42 = vld [vmem:[%s0 + $0x74] sm:$0xf]
  %v43 = vld [vmem:[%s0 + $0x78] sm:$0xff]
  %v44 = vld [vmem:[%s0 + $0x80] sm:$0xf]
  %v45 = vld [vmem:[%s0 + $0x84] sm:$0xff]
  %v46 = vld [vmem:[%s0 + $0x8c] sm:$0xf]
  %v47 = vld [vmem:[%s0 + $0x90] sm:$0xff]
  %v48 = vld [vmem:[%s0 + $0x98] sm:$0xf]
  %v49 = vld [vmem:[%s0 + $0x9c] sm:$0xff]
  %v50 = vld [vmem:[%s0 + $0xa4] sm:$0xf]
  %v51 = vld [vmem:[%s0 + $0xa8] sm:$0xff]
  %v52 = vld [vmem:[%s0 + $0xb0] sm:$0xf]
  %v53 = vld [vmem:[%s0 + $0xb4] sm:$0xff]
  %v54 = vld [vmem:[%s0 + $0xbc] sm:$0xf]
  %v55 = vld [vmem:[%s0 + $0xc0] sm:$0xff]
  %v56 = vld [vmem:[%s0 + $0xc8] sm:$0xf]
  %v57 = vld [vmem:[%s0 + $0xcc] sm:$0xff]
  %v58 = vld [vmem:[%s0 + $0xd4] sm:$0xf]
  %v59 = vld [vmem:[%s0 + $0xd8] sm:$0xff]
  %v60 = vld [vmem:[%s0 + $0xe0] sm:$0xf]
  %v61 = vld [vmem:[%s0 + $0xe4] sm:$0xff]
  %v62 = vld [vmem:[%s0 + $0xec] sm:$0xf]
  %v63 = vld [vmem:[%s0 + $0xf0] sm:$0xff]
  %v64 = vld [vmem:[%s0 + $0xf8] sm:$0xf]
  %v65 = vld [vmem:[%s0 + $0xfc] sm:$0xff]
  %v66 = vld [vmem:[%s0 + $0x104] sm:$0xf]
  %v67 = vld [vmem:[%s0 + $0x108] sm:$0xff]
  %v68 = vld [vmem:[%s0 + $0x110] sm:$0xf]
  %v69 = vld [vmem:[%s0 + $0x114] sm:$0xff]
  %v70 = vld [vmem:[%s0 + $0x11c] sm:$0xf]
  %v71 = vld [vmem:[%s0 + $0x120] sm:$0xff]
  %v72 = vld [vmem:[%s0 + $0x128] sm:$0xf]
  %v73 = vld [vmem:[%s0 + $0x12c] sm:$0xff]
  %v74 = vld [vmem:[%s0 + $0x134] sm:$0xf]
  %v75 = vld [vmem:[%s0 + $0x138] sm:$0xff]
  %v76 = vld [vmem:[%s0 + $0x140] sm:$0xf]
  %v77 = vld [vmem:[%s0 + $0x144] sm:$0xff]
  %v78 = vld [vmem:[%s0 + $0x14c] sm:$0xf]
  %v79 = vld [vmem:[%s0 + $0x150] sm:$0xff]
  %v80 = vld [vmem:[%s0 + $0x158] sm:$0xf]
  %v81 = vld [vmem:[%s0 + $0x15c] sm:$0xff]
  %v82 = vld [vmem:[%s0 + $0x164] sm:$0xf]
  %v83 = vld [vmem:[%s0 + $0x168] sm:$0xff]
  %v84 = vld [vmem:[%s0 + $0x170] sm:$0xf]
  %v85 = vld [vmem:[%s0 + $0x174] sm:$0xff]
  %v86 = vld [vmem:[%s0 + $0x17c] sm:$0xf]
  %v87 = vld [vmem:[%s0 + $0x180] sm:$0xff]
  %v88 = vld [vmem:[%s0 + $0x188] sm:$0xf]
  %v89 = vld [vmem:[%s0 + $0x18c] sm:$0xff]
  %v90 = vld [vmem:[%s0 + $0x194] sm:$0xf]
  %v91 = vld [vmem:[%s0 + $0x198] sm:$0xff]
  %v92 = vld [vmem:[%s0 + $0x1a0] sm:$0xf]
  %v93 = vld [vmem:[%s0 + $0x1a4] sm:$0xff]
  %v94 = vld [vmem:[%s0 + $0x1ac] sm:$0xf]
  %v103 = vunpack.c.l.b16 %v15
  %v104 = vunpack.c.h.b16 %v15
  %v105 = vunpack.c.l.b16 %v16
  %v106 = vunpack.c.l.b16 %v17
  %v107 = vunpack.c.h.b16 %v17
  %v108 = vunpack.c.l.b16 %v18
  %v109 = vunpack.c.l.b16 %v19
  %v110 = vunpack.c.h.b16 %v19
  %v111 = vunpack.c.l.b16 %v20
  %v112 = vunpack.c.l.b16 %v21
  %v113 = vunpack.c.h.b16 %v21
  %v114 = vunpack.c.l.b16 %v22
  %v115 = vpack.c.b16 %v106, %v103
  %v116 = vpack.c.b16 %v107, %v104
  %v117 = vpack.c.b16 %v108, %v105
  %v118 = vpack.c.b16 %v112, %v109
  %v119 = vpack.c.b16 %v113, %v110
  %v120 = vpack.c.b16 %v114, %v111
  %v197 = vunpack.c.l.b16 %v23
  %v198 = vunpack.c.h.b16 %v23
  %v199 = vunpack.c.l.b16 %v24
  %v200 = vunpack.c.l.b16 %v25
  %v201 = vunpack.c.h.b16 %v25
  %v202 = vunpack.c.l.b16 %v26
  %v203 = vunpack.c.l.b16 %v27
  %v204 = vunpack.c.h.b16 %v27
  %v205 = vunpack.c.l.b16 %v28
  %v206 = vunpack.c.l.b16 %v29
  %v207 = vunpack.c.h.b16 %v29
  %v208 = vunpack.c.l.b16 %v30
  %v209 = vunpack.c.l.b16 %v31
  %v210 = vunpack.c.h.b16 %v31
  %v211 = vunpack.c.l.b16 %v32
  %v212 = vunpack.c.l.b16 %v33
  %v213 = vunpack.c.h.b16 %v33
  %v214 = vunpack.c.l.b16 %v34
  %v215 = vunpack.c.l.b16 %v35
  %v216 = vunpack.c.h.b16 %v35
  %v217 = vunpack.c.l.b16 %v36
  %v218 = vunpack.c.l.b16 %v37
  %v219 = vunpack.c.h.b16 %v37
  %v220 = vunpack.c.l.b16 %v38
  %v221 = vunpack.c.l.b16 %v39
  %v222 = vunpack.c.h.b16 %v39
  %v223 = vunpack.c.l.b16 %v40
  %v224 = vunpack.c.l.b16 %v41
  %v225 = vunpack.c.h.b16 %v41
  %v226 = vunpack.c.l.b16 %v42
  %v227 = vunpack.c.l.b16 %v43
  %v228 = vunpack.c.h.b16 %v43
  %v229 = vunpack.c.l.b16 %v44
  %v230 = vunpack.c.l.b16 %v45
  %v231 = vunpack.c.h.b16 %v45
  %v232 = vunpack.c.l.b16 %v46
  %v233 = vunpack.c.l.b16 %v47
  %v234 = vunpack.c.h.b16 %v47
  %v235 = vunpack.c.l.b16 %v48
  %v236 = vunpack.c.l.b16 %v49
  %v237 = vunpack.c.h.b16 %v49
  %v238 = vunpack.c.l.b16 %v50
  %v239 = vunpack.c.l.b16 %v51
  %v240 = vunpack.c.h.b16 %v51
  %v241 = vunpack.c.l.b16 %v52
  %v242 = vunpack.c.l.b16 %v53
  %v243 = vunpack.c.h.b16 %v53
  %v244 = vunpack.c.l.b16 %v54
  %v245 = vunpack.c.l.b16 %v55
  %v246 = vunpack.c.h.b16 %v55
  %v247 = vunpack.c.l.b16 %v56
  %v248 = vunpack.c.l.b16 %v57
  %v249 = vunpack.c.h.b16 %v57
  %v250 = vunpack.c.l.b16 %v58
  %v251 = vunpack.c.l.b16 %v59
  %v252 = vunpack.c.h.b16 %v59
  %v253 = vunpack.c.l.b16 %v60
  %v254 = vunpack.c.l.b16 %v61
  %v255 = vunpack.c.h.b16 %v61
  %v256 = vunpack.c.l.b16 %v62
  %v257 = vunpack.c.l.b16 %v63
  %v258 = vunpack.c.h.b16 %v63
  %v259 = vunpack.c.l.b16 %v64
  %v260 = vunpack.c.l.b16 %v65
  %v261 = vunpack.c.h.b16 %v65
  %v262 = vunpack.c.l.b16 %v66
  %v263 = vunpack.c.l.b16 %v67
  %v264 = vunpack.c.h.b16 %v67
  %v265 = vunpack.c.l.b16 %v68
  %v266 = vunpack.c.l.b16 %v69
  %v267 = vunpack.c.h.b16 %v69
  %v268 = vunpack.c.l.b16 %v70
  %v269 = vunpack.c.l.b16 %v71
  %v270 = vunpack.c.h.b16 %v71
  %v271 = vunpack.c.l.b16 %v72
  %v272 = vunpack.c.l.b16 %v73
  %v273 = vunpack.c.h.b16 %v73
  %v274 = vunpack.c.l.b16 %v74
  %v275 = vunpack.c.l.b16 %v75
  %v276 = vunpack.c.h.b16 %v75
  %v277 = vunpack.c.l.b16 %v76
  %v278 = vunpack.c.l.b16 %v77
  %v279 = vunpack.c.h.b16 %v77
  %v280 = vunpack.c.l.b16 %v78
  %v281 = vunpack.c.l.b16 %v79
  %v282 = vunpack.c.h.b16 %v79
  %v283 = vunpack.c.l.b16 %v80
  %v284 = vunpack.c.l.b16 %v81
  %v285 = vunpack.c.h.b16 %v81
  %v286 = vunpack.c.l.b16 %v82
  %v287 = vunpack.c.l.b16 %v83
  %v288 = vunpack.c.h.b16 %v83
  %v289 = vunpack.c.l.b16 %v84
  %v290 = vunpack.c.l.b16 %v85
  %v291 = vunpack.c.h.b16 %v85
  %v292 = vunpack.c.l.b16 %v86
  %v293 = vunpack.c.l.b16 %v87
  %v294 = vunpack.c.h.b16 %v87
  %v295 = vunpack.c.l.b16 %v88
  %v296 = vunpack.c.l.b16 %v89
  %v297 = vunpack.c.h.b16 %v89
  %v298 = vunpack.c.l.b16 %v90
  %v299 = vunpack.c.l.b16 %v91
  %v300 = vunpack.c.h.b16 %v91
  %v301 = vunpack.c.l.b16 %v92
  %v302 = vunpack.c.l.b16 %v93
  %v303 = vunpack.c.h.b16 %v93
  %v304 = vunpack.c.l.b16 %v94
  %v305 = vpack.c.b16 %v200, %v197
  %v306 = vpack.c.b16 %v201, %v198
  %v307 = vpack.c.b16 %v202, %v199
  %v308 = vpack.c.b16 %v206, %v203
  %v309 = vpack.c.b16 %v207, %v204
  %v310 = vpack.c.b16 %v208, %v205
  %v311 = vpack.c.b16 %v212, %v209
  %v312 = vpack.c.b16 %v213, %v210
  %v313 = vpack.c.b16 %v214, %v211
  %v314 = vpack.c.b16 %v218, %v215
  %v315 = vpack.c.b16 %v219, %v216
  %v316 = vpack.c.b16 %v220, %v217
  %v317 = vpack.c.b16 %v224, %v221
  %v318 = vpack.c.b16 %v225, %v222
  %v319 = vpack.c.b16 %v226, %v223
  %v320 = vpack.c.b16 %v230, %v227
  %v321 = vpack.c.b16 %v231, %v228
  %v322 = vpack.c.b16 %v232, %v229
  %v323 = vpack.c.b16 %v236, %v233
  %v324 = vpack.c.b16 %v237, %v234
  %v325 = vpack.c.b16 %v238, %v235
  %v326 = vpack.c.b16 %v242, %v239
  %v327 = vpack.c.b16 %v243, %v240
  %v328 = vpack.c.b16 %v244, %v241
  %v329 = vpack.c.b16 %v248, %v245
  %v330 = vpack.c.b16 %v249, %v246
  %v331 = vpack.c.b16 %v250, %v247
  %v332 = vpack.c.b16 %v254, %v251
  %v333 = vpack.c.b16 %v255, %v252
  %v334 = vpack.c.b16 %v256, %v253
  %v335 = vpack.c.b16 %v260, %v257
  %v336 = vpack.c.b16 %v261, %v258
  %v337 = vpack.c.b16 %v262, %v259
  %v338 = vpack.c.b16 %v266, %v263
  %v339 = vpack.c.b16 %v267, %v264
  %v340 = vpack.c.b16 %v268, %v265
  %v341 = vpack.c.b16 %v272, %v269
  %v342 = vpack.c.b16 %v273, %v270
  %v343 = vpack.c.b16 %v274, %v271
  %v344 = vpack.c.b16 %v278, %v275
  %v345 = vpack.c.b16 %v279, %v276
  %v346 = vpack.c.b16 %v280, %v277
  %v347 = vpack.c.b16 %v284, %v281
  %v348 = vpack.c.b16 %v285, %v282
  %v349 = vpack.c.b16 %v286, %v283
  %v350 = vpack.c.b16 %v290, %v287
  %v351 = vpack.c.b16 %v291, %v288
  %v352 = vpack.c.b16 %v292, %v289
  %v353 = vpack.c.b16 %v296, %v293
  %v354 = vpack.c.b16 %v297, %v294
  %v355 = vpack.c.b16 %v298, %v295
  %v356 = vpack.c.b16 %v302, %v299
  %v357 = vpack.c.b16 %v303, %v300
  %v358 = vpack.c.b16 %v304, %v301
  %vm413 = vcmask 261120
  %v415 = vsel %vm413, %v117, 0
  %v418 = vsel %vm413, %v120, 0
  %420 = vmatprep.subr.bf16.mxu0 %v327
  %421 = vmatpush1.bf16.msra.mxu0 %v326
  %422 = vmatprep.subr.bf16.mxu0 %v324
  %423 = vmatpush1.bf16.msra.mxu0 %v323
  %424 = vmatprep.subr.bf16.mxu0 %v321
  %425 = vmatpush1.bf16.msra.mxu0 %v320
  %426 = vmatprep.subr.bf16.mxu0 %v318
  %427 = vmatpush1.bf16.msra.mxu0 %v317
  %428 = vmatprep.subr.bf16.mxu0 %v315
  %429 = vmatpush1.bf16.msra.mxu0 %v314
  %430 = vmatprep.subr.bf16.mxu0 %v312
  %431 = vmatpush1.bf16.msra.mxu0 %v311
  %432 = vmatprep.subr.bf16.mxu0 %v309
  %433 = vmatpush1.bf16.msra.mxu0 %v308
  %434 = vmatprep.subr.bf16.mxu0 %v306
  %435 = vmatpush1.bf16.msra.mxu0 %v305
  %436 = vmatprep.subr.bf16.mxu0 %v351
  %437 = vmatpush2.bf16.msra.mxu0 %v350
  %438 = vmatprep.subr.bf16.mxu0 %v348
  %439 = vmatpush2.bf16.msra.mxu0 %v347
  %440 = vmatprep.subr.bf16.mxu0 %v345
  %441 = vmatpush2.bf16.msra.mxu0 %v344
  %442 = vmatprep.subr.bf16.mxu0 %v342
  %443 = vmatpush2.bf16.msra.mxu0 %v341
  %444 = vmatprep.subr.bf16.mxu0 %v339
  %445 = vmatpush2.bf16.msra.mxu0 %v338
  %446 = vmatprep.subr.bf16.mxu0 %v336
  %447 = vmatpush2.bf16.msra.mxu0 %v335
  %448 = vmatprep.subr.bf16.mxu0 %v333
  %449 = vmatpush2.bf16.msra.mxu0 %v332
  %450 = vmatprep.subr.bf16.mxu0 %v330
  %451 = vmatpush2.bf16.msra.mxu0 %v329
  %452 = vmatprep.mubr.bf16.mxu0 %v116
  %453 = vmatmul.mubr.bf16.gmra.mxu0 %v115
  %v454 = vpop.f32.mrf.mxu0
  %v455 = vadd.f32 0.0, %v454
  %v456 = vpop.f32.mrf.mxu0
  %v457 = vadd.f32 0.0, %v456
  %v458 = vpop.f32.mrf.mxu0
  %v459 = vadd.f32 0.0, %v458
  %v460 = vpop.f32.mrf.mxu0
  %v461 = vadd.f32 0.0, %v460
  %462 = vmatprep.mubr.bf16.mxu0 %v119
  %463 = vmatmul.mubr.bf16.gmra.mxu0 %v118
  %v464 = vpop.f32.mrf.mxu0
  %v465 = vadd.f32 0.0, %v464
  %v466 = vpop.f32.mrf.mxu0
  %v467 = vadd.f32 0.0, %v466
  %v468 = vpop.f32.mrf.mxu0
  %v469 = vadd.f32 0.0, %v468
  %v470 = vpop.f32.mrf.mxu0
  %v471 = vadd.f32 0.0, %v470
  %472 = vdwg.mxu0
  %473 = vmatprep.subr.bf16.mxu0 0
  %474 = vmatpush1.bf16.msra.mxu0 0
  %475 = vmatprep.subr.bf16.mxu0 0
  %476 = vmatpush1.bf16.msra.mxu0 0
  %477 = vmatprep.subr.bf16.mxu0 0
  %478 = vmatpush1.bf16.msra.mxu0 0
  %479 = vmatprep.subr.bf16.mxu0 0
  %480 = vmatpush1.bf16.msra.mxu0 0
  %481 = vmatprep.subr.bf16.mxu0 0
  %482 = vmatpush1.bf16.msra.mxu0 0
  %483 = vmatprep.subr.bf16.mxu0 0
  %484 = vmatpush1.bf16.msra.mxu0 0
  %485 = vmatprep.subr.bf16.mxu0 %v357
  %486 = vmatpush1.bf16.msra.mxu0 %v356
  %487 = vmatprep.subr.bf16.mxu0 %v354
  %488 = vmatpush1.bf16.msra.mxu0 %v353
  %489 = vmatprep.subr.bf16.mxu0 0
  %490 = vmatpush2.bf16.msra.mxu0 0
  %491 = vmatprep.subr.bf16.mxu0 0
  %492 = vmatpush2.bf16.msra.mxu0 0
  %493 = vmatprep.subr.bf16.mxu0 0
  %494 = vmatpush2.bf16.msra.mxu0 0
  %495 = vmatprep.subr.bf16.mxu0 0
  %496 = vmatpush2.bf16.msra.mxu0 0
  %497 = vmatprep.subr.bf16.mxu0 0
  %498 = vmatpush2.bf16.msra.mxu0 0
  %499 = vmatprep.subr.bf16.mxu0 0
  %500 = vmatpush2.bf16.msra.mxu0 0
  %501 = vmatprep.subr.bf16.mxu0 0
  %502 = vmatpush2.bf16.msra.mxu0 0
  %503 = vmatprep.subr.bf16.mxu0 0
  %504 = vmatpush2.bf16.msra.mxu0 0
  %505 = vmatprep.mubr.bf16.mxu0 0
  %506 = vmatmul.mubr.bf16.gmra.mxu0 %v415
  %v507 = vpop.f32.mrf.mxu0
  %v508 = vadd.f32 %v455, %v507
  %v509 = vpop.f32.mrf.mxu0
  %v510 = vadd.f32 %v457, %v509
  %v511 = vpop.f32.mrf.mxu0
  %v512 = vadd.f32 %v459, %v511
  %v513 = vpop.f32.mrf.mxu0
  %v514 = vadd.f32 %v461, %v513
  %515 = vmatprep.mubr.bf16.mxu0 0
  %516 = vmatmul.mubr.bf16.gmra.mxu0 %v418
  %v517 = vpop.f32.mrf.mxu0
  %v518 = vadd.f32 %v465, %v517
  %v519 = vpop.f32.mrf.mxu0
  %v520 = vadd.f32 %v467, %v519
  %v521 = vpop.f32.mrf.mxu0
  %v522 = vadd.f32 %v469, %v521
  %v523 = vpop.f32.mrf.mxu0
  %v524 = vadd.f32 %v471, %v523
  %525 = vdwg.mxu0
  %526 = vmatprep.subr.bf16.mxu0 0
  %527 = vmatpush1.bf16.msra.mxu0 %v328
  %528 = vmatprep.subr.bf16.mxu0 0
  %529 = vmatpush1.bf16.msra.mxu0 %v325
  %530 = vmatprep.subr.bf16.mxu0 0
  %531 = vmatpush1.bf16.msra.mxu0 %v322
  %532 = vmatprep.subr.bf16.mxu0 0
  %533 = vmatpush1.bf16.msra.mxu0 %v319
  %534 = vmatprep.subr.bf16.mxu0 0
  %535 = vmatpush1.bf16.msra.mxu0 %v316
  %536 = vmatprep.subr.bf16.mxu0 0
  %537 = vmatpush1.bf16.msra.mxu0 %v313
  %538 = vmatprep.subr.bf16.mxu0 0
  %539 = vmatpush1.bf16.msra.mxu0 %v310
  %540 = vmatprep.subr.bf16.mxu0 0
  %541 = vmatpush1.bf16.msra.mxu0 %v307
  %542 = vmatprep.subr.bf16.mxu0 0
  %543 = vmatpush2.bf16.msra.mxu0 %v352
  %544 = vmatprep.subr.bf16.mxu0 0
  %545 = vmatpush2.bf16.msra.mxu0 %v349
  %546 = vmatprep.subr.bf16.mxu0 0
  %547 = vmatpush2.bf16.msra.mxu0 %v346
  %548 = vmatprep.subr.bf16.mxu0 0
  %549 = vmatpush2.bf16.msra.mxu0 %v343
  %550 = vmatprep.subr.bf16.mxu0 0
  %551 = vmatpush2.bf16.msra.mxu0 %v340
  %552 = vmatprep.subr.bf16.mxu0 0
  %553 = vmatpush2.bf16.msra.mxu0 %v337
  %554 = vmatprep.subr.bf16.mxu0 0
  %555 = vmatpush2.bf16.msra.mxu0 %v334
  %556 = vmatprep.subr.bf16.mxu0 0
  %557 = vmatpush2.bf16.msra.mxu0 %v331
  %558 = vmatprep.mubr.bf16.mxu0 %v116
  %559 = vmatmul.mubr.bf16.gmra.mxu0 %v115
  %v560 = vpop.f32.mrf.mxu0
  %v561 = vadd.f32 0.0, %v560
  %v562 = vpop.f32.mrf.mxu0
  %v563 = vpop.f32.mrf.mxu0
  %v564 = vadd.f32 0.0, %v563
  %v565 = vpop.f32.mrf.mxu0
  %566 = vmatprep.mubr.bf16.mxu0 %v119
  %567 = vmatmul.mubr.bf16.gmra.mxu0 %v118
  %v568 = vpop.f32.mrf.mxu0
  %v569 = vadd.f32 0.0, %v568
  %v570 = vpop.f32.mrf.mxu0
  %v571 = vpop.f32.mrf.mxu0
  %v572 = vadd.f32 0.0, %v571
  %v573 = vpop.f32.mrf.mxu0
  %574 = vdwg.mxu0
  %575 = vmatprep.subr.bf16.mxu0 0
  %576 = vmatpush1.bf16.msra.mxu0 0
  %577 = vmatprep.subr.bf16.mxu0 0
  %578 = vmatpush1.bf16.msra.mxu0 0
  %579 = vmatprep.subr.bf16.mxu0 0
  %580 = vmatpush1.bf16.msra.mxu0 0
  %581 = vmatprep.subr.bf16.mxu0 0
  %582 = vmatpush1.bf16.msra.mxu0 0
  %583 = vmatprep.subr.bf16.mxu0 0
  %584 = vmatpush1.bf16.msra.mxu0 0
  %585 = vmatprep.subr.bf16.mxu0 0
  %586 = vmatpush1.bf16.msra.mxu0 0
  %587 = vmatprep.subr.bf16.mxu0 0
  %588 = vmatpush1.bf16.msra.mxu0 %v358
  %589 = vmatprep.subr.bf16.mxu0 0
  %590 = vmatpush1.bf16.msra.mxu0 %v355
  %591 = vmatprep.subr.bf16.mxu0 0
  %592 = vmatpush2.bf16.msra.mxu0 0
  %593 = vmatprep.subr.bf16.mxu0 0
  %594 = vmatpush2.bf16.msra.mxu0 0
  %595 = vmatprep.subr.bf16.mxu0 0
  %596 = vmatpush2.bf16.msra.mxu0 0
  %597 = vmatprep.subr.bf16.mxu0 0
  %598 = vmatpush2.bf16.msra.mxu0 0
  %599 = vmatprep.subr.bf16.mxu0 0
  %600 = vmatpush2.bf16.msra.mxu0 0
  %601 = vmatprep.subr.bf16.mxu0 0
  %602 = vmatpush2.bf16.msra.mxu0 0
  %603 = vmatprep.subr.bf16.mxu0 0
  %604 = vmatpush2.bf16.msra.mxu0 0
  %605 = vmatprep.subr.bf16.mxu0 0
  %606 = vmatpush2.bf16.msra.mxu0 0
  %607 = vmatprep.mubr.bf16.mxu0 0
  %608 = vmatmul.mubr.bf16.gmra.mxu0 %v415
  %v609 = vpop.f32.mrf.mxu0
  %v610 = vadd.f32 %v561, %v609
  %v611 = vpop.f32.mrf.mxu0
  %v612 = vpop.f32.mrf.mxu0
  %v613 = vadd.f32 %v564, %v612
  %v614 = vpop.f32.mrf.mxu0
  %615 = vmatprep.mubr.bf16.mxu0 0
  %616 = vmatmul.mubr.bf16.gmra.mxu0 %v418
  %v617 = vpop.f32.mrf.mxu0
  %v618 = vadd.f32 %v569, %v617
  %v619 = vpop.f32.mrf.mxu0
  %v620 = vpop.f32.mrf.mxu0
  %v621 = vadd.f32 %v572, %v620
  %v622 = vpop.f32.mrf.mxu0
  %623 = vdwg.mxu0
  %v624 = vadd.f32 %v508, %v510
  %v625 = vsel %vm413, %v610, 0.0
  %v626 = vadd.f32 %v624, %v625
  %627 = vadd.xlane.f32.xlu0 %v626
  %v628 = vpop.xlane.xlu0 %627
  %v629 = vadd.f32 %v512, %v514
  %v630 = vsel %vm413, %v613, 0.0
  %v631 = vadd.f32 %v629, %v630
  %632 = vadd.xlane.f32.xlu0 %v631
  %v633 = vpop.xlane.xlu0 %632
  %v634 = vadd.f32 %v518, %v520
  %v635 = vsel %vm413, %v618, 0.0
  %v636 = vadd.f32 %v634, %v635
  %637 = vadd.xlane.f32.xlu0 %v636
  %v638 = vpop.xlane.xlu0 %637
  %v639 = vadd.f32 %v522, %v524
  %v640 = vsel %vm413, %v621, 0.0
  %v641 = vadd.f32 %v639, %v640
  %642 = vadd.xlane.f32.xlu0 %v641
  %v643 = vpop.xlane.xlu0 %642
  %v644 = vmul.f32 %v628, 0.0034722222
  %v645 = vmul.f32 %v633, 0.0034722222
  %v646 = vmul.f32 %v638, 0.0034722222
  %v647 = vmul.f32 %v643, 0.0034722222
  %v648 = vsub.f32 %v508, %v644
  %v649 = vsub.f32 %v510, %v644
  %v650 = vsub.f32 %v610, %v644
  %v651 = vsub.f32 %v512, %v645
  %v652 = vsub.f32 %v514, %v645
  %v653 = vsub.f32 %v613, %v645
  %v654 = vsub.f32 %v518, %v646
  %v655 = vsub.f32 %v520, %v646
  %v656 = vsub.f32 %v618, %v646
  %v657 = vsub.f32 %v522, %v647
  %v658 = vsub.f32 %v524, %v647
  %v659 = vsub.f32 %v621, %v647
  %v660 = vmul.f32 %v648, %v648
  %v661 = vmul.f32 %v649, %v649
  %v662 = vmul.f32 %v650, %v650
  %v663 = vmul.f32 %v651, %v651
  %v664 = vmul.f32 %v652, %v652
  %v665 = vmul.f32 %v653, %v653
  %v666 = vmul.f32 %v654, %v654
  %v667 = vmul.f32 %v655, %v655
  %v668 = vmul.f32 %v656, %v656
  %v669 = vmul.f32 %v657, %v657
  %v670 = vmul.f32 %v658, %v658
  %v671 = vmul.f32 %v659, %v659
  %v672 = vadd.f32 %v660, %v661
  %v673 = vsel %vm413, %v662, 0.0
  %v674 = vadd.f32 %v672, %v673
  %675 = vadd.xlane.f32.xlu0 %v674
  %v676 = vpop.xlane.xlu0 %675
  %v677 = vadd.f32 %v663, %v664
  %v678 = vsel %vm413, %v665, 0.0
  %v679 = vadd.f32 %v677, %v678
  %680 = vadd.xlane.f32.xlu0 %v679
  %v681 = vpop.xlane.xlu0 %680
  %v682 = vadd.f32 %v666, %v667
  %v683 = vsel %vm413, %v668, 0.0
  %v684 = vadd.f32 %v682, %v683
  %685 = vadd.xlane.f32.xlu0 %v684
  %v686 = vpop.xlane.xlu0 %685
  %v687 = vadd.f32 %v669, %v670
  %v688 = vsel %vm413, %v671, 0.0
  %v689 = vadd.f32 %v687, %v688
  %690 = vadd.xlane.f32.xlu0 %v689
  %v691 = vpop.xlane.xlu0 %690
  %v692 = vmul.f32 %v676, 0.0034722222
  %v693 = vmul.f32 %v681, 0.0034722222
  %v694 = vmul.f32 %v686, 0.0034722222
  %v695 = vmul.f32 %v691, 0.0034722222
  %v696 = vld [vmem:[%s2] sm:$0xff]
  %v697 = vld [vmem:[%s2 + $0x8] sm:$0xff]
  %v698 = vld [vmem:[%s2 + $0x10] sm:$0xff]
  %v699 = vld [vmem:[%s2 + $0x18] sm:$0xff]
  %v700 = vadd.f32 %v692, 1e-05
  %v701 = vadd.f32 %v693, 1e-05
  %v702 = vadd.f32 %v694, 1e-05
  %v703 = vadd.f32 %v695, 1e-05
  %v704 = vrsqrt.pop %v700
  %v705 = vrsqrt.pop %v701
  %v706 = vrsqrt.pop %v702
  %v707 = vrsqrt.pop %v703
  %v708 = vmul.f32 %v696, %v704
  %v709 = vmul.f32 %v697, %v705
  %v710 = vmul.f32 %v698, %v706
  %v711 = vmul.f32 %v699, %v707
  %713 = vset.pattern.permute.xlu0 0
  %714 = vperm.xlu0 %713, %v708
  %v715 = vpop.permute.xlu0 %714
  %718 = vset.pattern.permute.xlu0 0
  %719 = vperm.xlu0 %718, %v709
  %v720 = vpop.permute.xlu0 %719
  %723 = vset.pattern.permute.xlu0 0
  %724 = vperm.xlu0 %723, %v710
  %v725 = vpop.permute.xlu0 %724
  %728 = vset.pattern.permute.xlu0 0
  %729 = vperm.xlu0 %728, %v711
  %v730 = vpop.permute.xlu0 %729
  %v732 = vmul.f32 %v648, %v715
  %v733 = vmul.f32 %v649, %v715
  %v734 = vmul.f32 %v650, %v715
  %v735 = vmul.f32 %v651, %v720
  %v736 = vmul.f32 %v652, %v720
  %v737 = vmul.f32 %v653, %v720
  %v738 = vmul.f32 %v654, %v725
  %v739 = vmul.f32 %v655, %v725
  %v740 = vmul.f32 %v656, %v725
  %v741 = vmul.f32 %v657, %v730
  %v742 = vmul.f32 %v658, %v730
  %v743 = vmul.f32 %v659, %v730
  %745 = vset.pattern.permute.xlu0 1
  %746 = vperm.xlu0 %745, %v696
  %v747 = vpop.permute.xlu0 %746
  %750 = vset.pattern.permute.xlu0 1
  %751 = vperm.xlu0 %750, %v697
  %v752 = vpop.permute.xlu0 %751
  %755 = vset.pattern.permute.xlu0 1
  %756 = vperm.xlu0 %755, %v698
  %v757 = vpop.permute.xlu0 %756
  %760 = vset.pattern.permute.xlu0 1
  %761 = vperm.xlu0 %760, %v699
  %v762 = vpop.permute.xlu0 %761
  %v764 = vadd.f32 %v732, %v747
  %v765 = vadd.f32 %v733, %v747
  %v766 = vadd.f32 %v734, %v747
  %v767 = vadd.f32 %v735, %v752
  %v768 = vadd.f32 %v736, %v752
  %v769 = vadd.f32 %v737, %v752
  %v770 = vadd.f32 %v738, %v757
  %v771 = vadd.f32 %v739, %v757
  %v772 = vadd.f32 %v740, %v757
  %v773 = vadd.f32 %v741, %v762
  %v774 = vadd.f32 %v742, %v762
  %v775 = vadd.f32 %v743, %v762
  %v776 = vmax.f32 %v764, 0.0
  %v777 = vmax.f32 %v765, 0.0
  %v778 = vmax.f32 %v766, 0.0
  %v779 = vmax.f32 %v767, 0.0
  %v780 = vmax.f32 %v768, 0.0
  %v781 = vmax.f32 %v769, 0.0
  %v782 = vmax.f32 %v770, 0.0
  %v783 = vmax.f32 %v771, 0.0
  %v784 = vmax.f32 %v772, 0.0
  %v785 = vmax.f32 %v773, 0.0
  %v786 = vmax.f32 %v774, 0.0
  %v787 = vmax.f32 %v775, 0.0
  %v788 = vpack.c.bf16 %v779, %v776
  %v789 = vpack.c.bf16 %v780, %v777
  %v790 = vpack.c.bf16 %v781, %v778
  %v791 = vpack.c.bf16 %v785, %v782
  %v792 = vpack.c.bf16 %v786, %v783
  %v793 = vpack.c.bf16 %v787, %v784
  %v800 = vunpack.c.l.b16 %v788
  %v801 = vunpack.c.l.b16 %v789
  %v802 = vunpack.c.l.b16 %v790
  %v803 = vunpack.c.h.b16 %v788
  %v804 = vunpack.c.h.b16 %v789
  %v805 = vunpack.c.h.b16 %v790
  %v806 = vunpack.c.l.b16 %v791
  %v807 = vunpack.c.l.b16 %v792
  %v808 = vunpack.c.l.b16 %v793
  %v809 = vunpack.c.h.b16 %v791
  %v810 = vunpack.c.h.b16 %v792
  %v811 = vunpack.c.h.b16 %v793
  %v812 = vpack.c.b16 %v801, %v800
  %v813 = vpack.c.b16 %v802, %v802
  %v814 = vpack.c.b16 %v804, %v803
  %v815 = vpack.c.b16 %v805, %v805
  %v816 = vpack.c.b16 %v807, %v806
  %v817 = vpack.c.b16 %v808, %v808
  %v818 = vpack.c.b16 %v810, %v809
  %v819 = vpack.c.b16 %v811, %v811
  %828 = vst [vmem:[%s3] sm:$0xff] %v812
  %vm829 = vcmask 257024
  %830 = vst.msk [vmem:[%s3 + $0x8] sm:$0xf] %vm829, %v813
  %831 = vst [vmem:[%s3 + $0xc] sm:$0xff] %v814
  %832 = vst.msk [vmem:[%s3 + $0x14] sm:$0xf] %vm829, %v815
  %833 = vst [vmem:[%s3 + $0x18] sm:$0xff] %v816
  %834 = vst.msk [vmem:[%s3 + $0x20] sm:$0xf] %vm829, %v817
  %835 = vst [vmem:[%s3 + $0x24] sm:$0xff] %v818
  %836 = vst.msk [vmem:[%s3 + $0x2c] sm:$0xf] %vm829, %v819
  // Predicated region
  $region14: #{policy_forward.7} parent=0 // pred_check
    _
  $region15: #{policy_forward.7} parent=0 // pred_check_branch
    %838 = sbr.rel (0) target = $region17
  $region16: #{policy_forward.7} parent=0 // pred_region
    _
  $region17: #{policy_forward.7} parent=0 // pred_fallthru
    _
  // Predicated region
  $region18: #{policy_forward.7} parent=0 // pred_check
    _
  $region19: #{policy_forward.7} parent=0 // pred_check_branch
    %840 = sbr.rel (0) target = $region21
  $region20: #{policy_forward.7} parent=0 // pred_region
    _
  $region21: #{policy_forward.7} parent=0 // pred_fallthru
    _

// kernel: policy_forward.8
$region0: #{policy_forward.8}
  #allocation0 [shape = 'u32[]', space=smem, size = 0x4, offset = 0x4, fixed_abs, tag = 'smem constant byte address 0x4 - core index']
  #allocation1 [shape = 'u32[144,128]{1,0:T(1,128)}', space=vmem, size = 0x12000, scoped, tag = 'internal scratch']
  %s0 = inlined_call_operand.vmem [shape: bf16[288,72], index: 0, kind: input, shape index: {}]
  %s1 = inlined_call_operand.vmem [shape: bf16[32,288], index: 1, kind: input, shape index: {}]
  %s2 = inlined_call_operand.vmem [shape: f32[32,2], index: 2, kind: input, shape index: {}]
  %s3 = inlined_call_operand.vmem [shape: bf16[32,72], index: 3, kind: output, shape index: {}]
  %s4 = sld [smem:[#allocation0]]
  $region22: #{policy_forward.8} parent=0
    _
  %s6 = ssub.s32 1, %s4
  %s7 = scalar_select 0, %s6, %s4
  // Predicated region
  $region2: #{policy_forward.8} parent=0 // pred_check
    _
  $region3: #{policy_forward.8} parent=0 // pred_check_branch
    %9 = sbr.rel (0) target = $region5
  $region4: #{policy_forward.8} parent=0 // pred_region
    _
  $region5: #{policy_forward.8} parent=0 // pred_fallthru
    _
  // Predicated region
  $region6: #{policy_forward.8} parent=0 // pred_check
    _
  $region7: #{policy_forward.8} parent=0 // pred_check_branch
    %11 = sbr.rel (0) target = $region9
  $region8: #{policy_forward.8} parent=0 // pred_region
    _
  $region9: #{policy_forward.8} parent=0 // pred_fallthru
    _
  // Predicated region
  $region10: #{policy_forward.8} parent=0 // pred_check
    _
  $region11: #{policy_forward.8} parent=0 // pred_check_branch
    %13 = sbr.rel (0) target = $region13
  $region12: #{policy_forward.8} parent=0 // pred_region
    _
  $region13: #{policy_forward.8} parent=0 // pred_fallthru
    _
  %v15 = vld [vmem:[%s1] sm:$0xff]
  %v16 = vld [vmem:[%s1 + $0x8] sm:$0xf]
  %v17 = vld [vmem:[%s1 + $0xc] sm:$0xff]
  %v18 = vld [vmem:[%s1 + $0x14] sm:$0xf]
  %v19 = vld [vmem:[%s1 + $0x18] sm:$0xff]
  %v20 = vld [vmem:[%s1 + $0x20] sm:$0xf]
  %v21 = vld [vmem:[%s1 + $0x24] sm:$0xff]
  %v22 = vld [vmem:[%s1 + $0x2c] sm:$0xf]
  %v23 = vld [vmem:[%s0] sm:$0xf]
  %v24 = vld [vmem:[%s0 + $0x4] sm:$0xf]
  %v25 = vld [vmem:[%s0 + $0x8] sm:$0xf]
  %v26 = vld [vmem:[%s0 + $0xc] sm:$0xf]
  %v27 = vld [vmem:[%s0 + $0x10] sm:$0xf]
  %v28 = vld [vmem:[%s0 + $0x14] sm:$0xf]
  %v29 = vld [vmem:[%s0 + $0x18] sm:$0xf]
  %v30 = vld [vmem:[%s0 + $0x1c] sm:$0xf]
  %v31 = vld [vmem:[%s0 + $0x20] sm:$0xf]
  %v32 = vld [vmem:[%s0 + $0x24] sm:$0xf]
  %v33 = vld [vmem:[%s0 + $0x28] sm:$0xf]
  %v34 = vld [vmem:[%s0 + $0x2c] sm:$0xf]
  %v35 = vld [vmem:[%s0 + $0x30] sm:$0xf]
  %v36 = vld [vmem:[%s0 + $0x34] sm:$0xf]
  %v37 = vld [vmem:[%s0 + $0x38] sm:$0xf]
  %v38 = vld [vmem:[%s0 + $0x3c] sm:$0xf]
  %v39 = vld [vmem:[%s0 + $0x40] sm:$0xf]
  %v40 = vld [vmem:[%s0 + $0x44] sm:$0xf]
  %v41 = vld [vmem:[%s0 + $0x48] sm:$0xf]
  %v42 = vld [vmem:[%s0 + $0x4c] sm:$0xf]
  %v43 = vld [vmem:[%s0 + $0x50] sm:$0xf]
  %v44 = vld [vmem:[%s0 + $0x54] sm:$0xf]
  %v45 = vld [vmem:[%s0 + $0x58] sm:$0xf]
  %v46 = vld [vmem:[%s0 + $0x5c] sm:$0xf]
  %v47 = vld [vmem:[%s0 + $0x60] sm:$0xf]
  %v48 = vld [vmem:[%s0 + $0x64] sm:$0xf]
  %v49 = vld [vmem:[%s0 + $0x68] sm:$0xf]
  %v50 = vld [vmem:[%s0 + $0x6c] sm:$0xf]
  %v51 = vld [vmem:[%s0 + $0x70] sm:$0xf]
  %v52 = vld [vmem:[%s0 + $0x74] sm:$0xf]
  %v53 = vld [vmem:[%s0 + $0x78] sm:$0xf]
  %v54 = vld [vmem:[%s0 + $0x7c] sm:$0xf]
  %v55 = vld [vmem:[%s0 + $0x80] sm:$0xf]
  %v56 = vld [vmem:[%s0 + $0x84] sm:$0xf]
  %v57 = vld [vmem:[%s0 + $0x88] sm:$0xf]
  %v58 = vld [vmem:[%s0 + $0x8c] sm:$0xf]
  %v67 = vunpack.c.l.b16 %v15
  %v68 = vunpack.c.h.b16 %v15
  %v69 = vunpack.c.l.b16 %v16
  %v70 = vunpack.c.l.b16 %v17
  %v71 = vunpack.c.h.b16 %v17
  %v72 = vunpack.c.l.b16 %v18
  %v73 = vunpack.c.l.b16 %v19
  %v74 = vunpack.c.h.b16 %v19
  %v75 = vunpack.c.l.b16 %v20
  %v76 = vunpack.c.l.b16 %v21
  %v77 = vunpack.c.h.b16 %v21
  %v78 = vunpack.c.l.b16 %v22
  %v79 = vpack.c.b16 %v70, %v67
  %v80 = vpack.c.b16 %v71, %v68
  %v81 = vpack.c.b16 %v72, %v69
  %v82 = vpack.c.b16 %v76, %v73
  %v83 = vpack.c.b16 %v77, %v74
  %v84 = vpack.c.b16 %v78, %v75
  %v125 = vunpack.c.l.b16 %v23
  %v126 = vunpack.c.l.b16 %v24
  %v127 = vunpack.c.l.b16 %v25
  %v128 = vunpack.c.l.b16 %v26
  %v129 = vunpack.c.l.b16 %v27
  %v130 = vunpack.c.l.b16 %v28
  %v131 = vunpack.c.l.b16 %v29
  %v132 = vunpack.c.l.b16 %v30
  %v133 = vunpack.c.l.b16 %v31
  %v134 = vunpack.c.l.b16 %v32
  %v135 = vunpack.c.l.b16 %v33
  %v136 = vunpack.c.l.b16 %v34
  %v137 = vunpack.c.l.b16 %v35
  %v138 = vunpack.c.l.b16 %v36
  %v139 = vunpack.c.l.b16 %v37
  %v140 = vunpack.c.l.b16 %v38
  %v141 = vunpack.c.l.b16 %v39
  %v142 = vunpack.c.l.b16 %v40
  %v143 = vunpack.c.l.b16 %v41
  %v144 = vunpack.c.l.b16 %v42
  %v145 = vunpack.c.l.b16 %v43
  %v146 = vunpack.c.l.b16 %v44
  %v147 = vunpack.c.l.b16 %v45
  %v148 = vunpack.c.l.b16 %v46
  %v149 = vunpack.c.l.b16 %v47
  %v150 = vunpack.c.l.b16 %v48
  %v151 = vunpack.c.l.b16 %v49
  %v152 = vunpack.c.l.b16 %v50
  %v153 = vunpack.c.l.b16 %v51
  %v154 = vunpack.c.l.b16 %v52
  %v155 = vunpack.c.l.b16 %v53
  %v156 = vunpack.c.l.b16 %v54
  %v157 = vunpack.c.l.b16 %v55
  %v158 = vunpack.c.l.b16 %v56
  %v159 = vunpack.c.l.b16 %v57
  %v160 = vunpack.c.l.b16 %v58
  %v161 = vpack.c.b16 %v126, %v125
  %v162 = vpack.c.b16 %v128, %v127
  %v163 = vpack.c.b16 %v130, %v129
  %v164 = vpack.c.b16 %v132, %v131
  %v165 = vpack.c.b16 %v134, %v133
  %v166 = vpack.c.b16 %v136, %v135
  %v167 = vpack.c.b16 %v138, %v137
  %v168 = vpack.c.b16 %v140, %v139
  %v169 = vpack.c.b16 %v142, %v141
  %v170 = vpack.c.b16 %v144, %v143
  %v171 = vpack.c.b16 %v146, %v145
  %v172 = vpack.c.b16 %v148, %v147
  %v173 = vpack.c.b16 %v150, %v149
  %v174 = vpack.c.b16 %v152, %v151
  %v175 = vpack.c.b16 %v154, %v153
  %v176 = vpack.c.b16 %v156, %v155
  %v177 = vpack.c.b16 %v158, %v157
  %v178 = vpack.c.b16 %v160, %v159
  %vm197 = vcmask 261120
  %v199 = vsel %vm197, %v81, 0
  %v202 = vsel %vm197, %v84, 0
  %204 = vmatprep.subr.bf16.mxu0 0
  %205 = vmatpush1.bf16.msra.mxu0 %v168
  %206 = vmatprep.subr.bf16.mxu0 0
  %207 = vmatpush1.bf16.msra.mxu0 %v167
  %208 = vmatprep.subr.bf16.mxu0 0
  %209 = vmatpush1.bf16.msra.mxu0 %v166
  %210 = vmatprep.subr.bf16.mxu0 0
  %211 = vmatpush1.bf16.msra.mxu0 %v165
  %212 = vmatprep.subr.bf16.mxu0 0
  %213 = vmatpush1.bf16.msra.mxu0 %v164
  %214 = vmatprep.subr.bf16.mxu0 0
  %215 = vmatpush1.bf16.msra.mxu0 %v163
  %216 = vmatprep.subr.bf16.mxu0 0
  %217 = vmatpush1.bf16.msra.mxu0 %v162
  %218 = vmatprep.subr.bf16.mxu0 0
  %219 = vmatpush1.bf16.msra.mxu0 %v161
  %220 = vmatprep.subr.bf16.mxu0 0
  %221 = vmatpush2.bf16.msra.mxu0 %v176
  %222 = vmatprep.subr.bf16.mxu0 0
  %223 = vmatpush2.bf16.msra.mxu0 %v175
  %224 = vmatprep.subr.bf16.mxu0 0
  %225 = vmatpush2.bf16.msra.mxu0 %v174
  %226 = vmatprep.subr.bf16.mxu0 0
  %227 = vmatpush2.bf16.msra.mxu0 %v173
  %228 = vmatprep.subr.bf16.mxu0 0
  %229 = vmatpush2.bf16.msra.mxu0 %v172
  %230 = vmatprep.subr.bf16.mxu0 0
  %231 = vmatpush2.bf16.msra.mxu0 %v171
  %232 = vmatprep.subr.bf16.mxu0 0
  %233 = vmatpush2.bf16.msra.mxu0 %v170
  %234 = vmatprep.subr.bf16.mxu0 0
  %235 = vmatpush2.bf16.msra.mxu0 %v169
  %236 = vmatprep.mubr.bf16.mxu0 %v80
  %237 = vmatmul.mubr.bf16.gmra.mxu0 %v79
  %v238 = vpop.f32.mrf.mxu0
  %v239 = vadd.f32 0.0, %v238
  %v240 = vpop.f32.mrf.mxu0
  %v241 = vpop.f32.mrf.mxu0
  %v242 = vadd.f32 0.0, %v241
  %v243 = vpop.f32.mrf.mxu0
  %244 = vmatprep.mubr.bf16.mxu0 %v83
  %245 = vmatmul.mubr.bf16.gmra.mxu0 %v82
  %v246 = vpop.f32.mrf.mxu0
  %v247 = vadd.f32 0.0, %v246
  %v248 = vpop.f32.mrf.mxu0
  %v249 = vpop.f32.mrf.mxu0
  %v250 = vadd.f32 0.0, %v249
  %v251 = vpop.f32.mrf.mxu0
  %252 = vdwg.mxu0
  %253 = vmatprep.subr.bf16.mxu0 0
  %254 = vmatpush1.bf16.msra.mxu0 0
  %255 = vmatprep.subr.bf16.mxu0 0
  %256 = vmatpush1.bf16.msra.mxu0 0
  %257 = vmatprep.subr.bf16.mxu0 0
  %258 = vmatpush1.bf16.msra.mxu0 0
  %259 = vmatprep.subr.bf16.mxu0 0
  %260 = vmatpush1.bf16.msra.mxu0 0
  %261 = vmatprep.subr.bf16.mxu0 0
  %262 = vmatpush1.bf16.msra.mxu0 0
  %263 = vmatprep.subr.bf16.mxu0 0
  %264 = vmatpush1.bf16.msra.mxu0 0
  %265 = vmatprep.subr.bf16.mxu0 0
  %266 = vmatpush1.bf16.msra.mxu0 %v178
  %267 = vmatprep.subr.bf16.mxu0 0
  %268 = vmatpush1.bf16.msra.mxu0 %v177
  %269 = vmatprep.subr.bf16.mxu0 0
  %270 = vmatpush2.bf16.msra.mxu0 0
  %271 = vmatprep.subr.bf16.mxu0 0
  %272 = vmatpush2.bf16.msra.mxu0 0
  %273 = vmatprep.subr.bf16.mxu0 0
  %274 = vmatpush2.bf16.msra.mxu0 0
  %275 = vmatprep.subr.bf16.mxu0 0
  %276 = vmatpush2.bf16.msra.mxu0 0
  %277 = vmatprep.subr.bf16.mxu0 0
  %278 = vmatpush2.bf16.msra.mxu0 0
  %279 = vmatprep.subr.bf16.mxu0 0
  %280 = vmatpush2.bf16.msra.mxu0 0
  %281 = vmatprep.subr.bf16.mxu0 0
  %282 = vmatpush2.bf16.msra.mxu0 0
  %283 = vmatprep.subr.bf16.mxu0 0
  %284 = vmatpush2.bf16.msra.mxu0 0
  %285 = vmatprep.mubr.bf16.mxu0 0
  %286 = vmatmul.mubr.bf16.gmra.mxu0 %v199
  %v287 = vpop.f32.mrf.mxu0
  %v288 = vadd.f32 %v239, %v287
  %v289 = vpop.f32.mrf.mxu0
  %v290 = vpop.f32.mrf.mxu0
  %v291 = vadd.f32 %v242, %v290
  %v292 = vpop.f32.mrf.mxu0
  %293 = vmatprep.mubr.bf16.mxu0 0
  %294 = vmatmul.mubr.bf16.gmra.mxu0 %v202
  %v295 = vpop.f32.mrf.mxu0
  %v296 = vadd.f32 %v247, %v295
  %v297 = vpop.f32.mrf.mxu0
  %v298 = vpop.f32.mrf.mxu0
  %v299 = vadd.f32 %v250, %v298
  %v300 = vpop.f32.mrf.mxu0
  %301 = vdwg.mxu0
  %vm302 = vcmask 588800
  %v303 = vsel %vm302, %v288, 0.0
  %304 = vadd.xlane.f32.xlu0 %v303
  %v305 = vpop.xlane.xlu0 %304
  %v306 = vsel %vm302, %v291, 0.0
  %307 = vadd.xlane.f32.xlu0 %v306
  %v308 = vpop.xlane.xlu0 %307
  %v309 = vsel %vm302, %v296, 0.0
  %310 = vadd.xlane.f32.xlu0 %v309
  %v311 = vpop.xlane.xlu0 %310
  %v312 = vsel %vm302, %v299, 0.0
  %313 = vadd.xlane.f32.xlu0 %v312
  %v314 = vpop.xlane.xlu0 %313
  %v315 = vmul.f32 %v305, 0.013888889
  %v316 = vmul.f32 %v308, 0.013888889
  %v317 = vmul.f32 %v311, 0.013888889
  %v318 = vmul.f32 %v314, 0.013888889
  %v319 = vsub.f32 %v288, %v315
  %v320 = vsub.f32 %v291, %v316
  %v321 = vsub.f32 %v296, %v317
  %v322 = vsub.f32 %v299, %v318
  %v323 = vmul.f32 %v319, %v319
  %v324 = vmul.f32 %v320, %v320
  %v325 = vmul.f32 %v321, %v321
  %v326 = vmul.f32 %v322, %v322
  %v327 = vsel %vm302, %v323, 0.0
  %328 = vadd.xlane.f32.xlu0 %v327
  %v329 = vpop.xlane.xlu0 %328
  %v330 = vsel %vm302, %v324, 0.0
  %331 = vadd.xlane.f32.xlu0 %v330
  %v332 = vpop.xlane.xlu0 %331
  %v333 = vsel %vm302, %v325, 0.0
  %334 = vadd.xlane.f32.xlu0 %v333
  %v335 = vpop.xlane.xlu0 %334
  %v336 = vsel %vm302, %v326, 0.0
  %337 = vadd.xlane.f32.xlu0 %v336
  %v338 = vpop.xlane.xlu0 %337
  %v339 = vmul.f32 %v329, 0.013888889
  %v340 = vmul.f32 %v332, 0.013888889
  %v341 = vmul.f32 %v335, 0.013888889
  %v342 = vmul.f32 %v338, 0.013888889
  %v343 = vld [vmem:[%s2] sm:$0xff]
  %v344 = vld [vmem:[%s2 + $0x8] sm:$0xff]
  %v345 = vld [vmem:[%s2 + $0x10] sm:$0xff]
  %v346 = vld [vmem:[%s2 + $0x18] sm:$0xff]
  %v347 = vadd.f32 %v339, 1e-05
  %v348 = vadd.f32 %v340, 1e-05
  %v349 = vadd.f32 %v341, 1e-05
  %v350 = vadd.f32 %v342, 1e-05
  %v351 = vrsqrt.pop %v347
  %v352 = vrsqrt.pop %v348
  %v353 = vrsqrt.pop %v349
  %v354 = vrsqrt.pop %v350
  %v355 = vmul.f32 %v343, %v351
  %v356 = vmul.f32 %v344, %v352
  %v357 = vmul.f32 %v345, %v353
  %v358 = vmul.f32 %v346, %v354
  %360 = vset.pattern.permute.xlu0 0
  %361 = vperm.xlu0 %360, %v355
  %v362 = vpop.permute.xlu0 %361
  %365 = vset.pattern.permute.xlu0 0
  %366 = vperm.xlu0 %365, %v356
  %v367 = vpop.permute.xlu0 %366
  %370 = vset.pattern.permute.xlu0 0
  %371 = vperm.xlu0 %370, %v357
  %v372 = vpop.permute.xlu0 %371
  %375 = vset.pattern.permute.xlu0 0
  %376 = vperm.xlu0 %375, %v358
  %v377 = vpop.permute.xlu0 %376
  %v379 = vmul.f32 %v319, %v362
  %v380 = vmul.f32 %v320, %v367
  %v381 = vmul.f32 %v321, %v372
  %v382 = vmul.f32 %v322, %v377
  %384 = vset.pattern.permute.xlu0 1
  %385 = vperm.xlu0 %384, %v343
  %v386 = vpop.permute.xlu0 %385
  %389 = vset.pattern.permute.xlu0 1
  %390 = vperm.xlu0 %389, %v344
  %v391 = vpop.permute.xlu0 %390
  %394 = vset.pattern.permute.xlu0 1
  %395 = vperm.xlu0 %394, %v345
  %v396 = vpop.permute.xlu0 %395
  %399 = vset.pattern.permute.xlu0 1
  %400 = vperm.xlu0 %399, %v346
  %v401 = vpop.permute.xlu0 %400
  %v403 = vadd.f32 %v379, %v386
  %v404 = vadd.f32 %v380, %v391
  %v405 = vadd.f32 %v381, %v396
  %v406 = vadd.f32 %v382, %v401
  %v407 = vmax.f32 %v403, 0.0
  %v408 = vmax.f32 %v404, 0.0
  %v409 = vmax.f32 %v405, 0.0
  %v410 = vmax.f32 %v406, 0.0
  %v411 = vpack.c.bf16 %v408, %v407
  %v412 = vpack.c.bf16 %v410, %v409
  %v415 = vunpack.c.l.b16 %v411
  %v416 = vunpack.c.h.b16 %v411
  %v417 = vunpack.c.l.b16 %v412
  %v418 = vunpack.c.h.b16 %v412
  %v419 = vpack.c.b16 %v415, %v415
  %v420 = vpack.c.b16 %v416, %v416
  %v421 = vpack.c.b16 %v417, %v417
  %v422 = vpack.c.b16 %v418, %v418
  %vm427 = vcmask 584704
  %428 = vst.msk [vmem:[%s3] sm:$0xf] %vm427, %v419
  %429 = vst.msk [vmem:[%s3 + $0x4] sm:$0xf] %vm427, %v420
  %430 = vst.msk [vmem:[%s3 + $0x8] sm:$0xf] %vm427, %v421
  %431 = vst.msk [vmem:[%s3 + $0xc] sm:$0xf] %vm427, %v422
  // Predicated region
  $region14: #{policy_forward.8} parent=0 // pred_check
    _
  $region15: #{policy_forward.8} parent=0 // pred_check_branch
    %433 = sbr.rel (0) target = $region17
  $region16: #{policy_forward.8} parent=0 // pred_region
    _
  $region17: #{policy_forward.8} parent=0 // pred_fallthru
    _
  // Predicated region
  $region18: #{policy_forward.8} parent=0 // pred_check
    _
  $region19: #{policy_forward.8} parent=0 // pred_check_branch
    %435 = sbr.rel (0) target = $region21
  $region20: #{policy_forward.8} parent=0 // pred_region
    _
  $region21: #{policy_forward.8} parent=0 // pred_fallthru
    _

// kernel: policy_forward.9
$region0: #{policy_forward.9}
  #allocation0 [shape = 'u32[]', space=smem, size = 0x4, offset = 0x4, fixed_abs, tag = 'smem constant byte address 0x4 - core index']
  #allocation1 [shape = 'u32[144,128]{1,0:T(1,128)}', space=vmem, size = 0x12000, scoped, tag = 'internal scratch']
  #allocation2 [shape = 'f32[4,2,256]{2,1,0:T(2,128)}', space=vmem, size = 0x2000, scoped, tag = 'scratch operand']
  %s0 = inlined_call_operand.vmem [shape: bf16[2,1152], index: 0, kind: input, shape index: {}]
  %s1 = inlined_call_operand.vmem [shape: f32[2,256], index: 1, kind: input, shape index: {}]
  %s2 = inlined_call_operand.vmem [shape: f32[2,256], index: 2, kind: input, shape index: {}]
  %s3 = inlined_call_operand.vmem [shape: bf16[1152,1024], index: 3, kind: input, shape index: {}]
  %s4 = inlined_call_operand.vmem [shape: bf16[256,1024], index: 4, kind: input, shape index: {}]
  %s5 = inlined_call_operand.vmem [shape: f32[1,1024], index: 5, kind: input, shape index: {}]
  %s6 = inlined_call_operand.vmem [shape: f32[256,7], index: 6, kind: input, shape index: {}]
  %s7 = inlined_call_operand.vmem [shape: f32[1,7], index: 7, kind: input, shape index: {}]
  %s8 = inlined_call_operand.hbm [shape: f32[2,256], index: 8, kind: output, shape index: {0}]
  %s9 = inlined_call_operand.hbm [shape: f32[2,256], index: 9, kind: output, shape index: {1}]
  %s10 = inlined_call_operand.vmem [shape: f32[2,7], index: 10, kind: output, shape index: {2}]
  %11 = xla_tuple %s8, %s9, %s10
  %s12 = sld [smem:[#allocation0]]
  $region161: #{policy_forward.9} parent=0
    _
  %s14 = ssub.s32 1, %s12
  %s15 = scalar_select 0, %s14, %s12
  $region1: #{policy_forward.9} parent=0
    #allocation3 [shape = 'u8[1179648]{0}', space=vmem, size = 0x120000, scoped, tag = 'input window, operand 3']
    #allocation4 [shape = 'u8[262144]{0}', space=vmem, size = 0x40000, scoped, tag = 'input window, operand 4']
    #allocation5 [shape = 'u8[2048]{0}', space=vmem, size = 0x800, scoped, tag = 'output window, operand 0, single buffered']
    #allocation6 [shape = 's32[2]{0}', space=sflag, size = 0x8, scoped, tag = 'scoped memory for policy_forward.9']
    #allocation7 [shape = 'u8[2048]{0}', space=vmem, size = 0x800, scoped, tag = 'output window, operand 1, single buffered']
    #allocation8 [shape = 's32[1]{0}', space=sflag, size = 0x4, scoped, tag = 'scoped memory for policy_forward.9']
    %16 = vsyncpa [#allocation6], 0
    %17 = vsyncpa [#allocation8], 0
    loop: start=0, step=1, limit=6
    $region2: #{policy_forward.9} parent=1 // loop_pre_header
      _
    $region3: #{policy_forward.9} parent=1 // loop_header
      %s19 = sphi 0, %s23
      %p20 = scmp.ge.s32.totalorder %s19, 6
      %s27 = sphi 0, %s27
      %s29 = sphi 0, %s27
      %s30 = sphi 0, %s29
      %s44 = sphi 0, %s30
      %s48 = sphi 0, %s48
      %s50 = sphi 0, %s48
      %s51 = sphi 0, %s50
      %s65 = sphi 0, %s51
      %s69 = sphi 0, %s69
      %s71 = sphi 0, %s69
      %s72 = sphi 0, %s71
      %s86 = sphi 0, %s72
      %s92 = sphi 0, %s94
      %s95 = sphi 0, %s92
      %s96 = sphi 0, %s95
      %s112 = sphi 0, %s96
      %s118 = sphi 0, %s120
      %s121 = sphi 0, %s118
      %s122 = sphi 0, %s121
      %s138 = sphi 0, %s122
      %s144 = sphi 0, %s146
      %s147 = sphi 0, %s144
      %s148 = sphi 0, %s147
      %s164 = sphi 0, %s148
      %s168 = sphi 0, %s168
      %s170 = sphi 0, %s168
      %s171 = sphi 0, %s170
      %s185 = sphi 0, %s171
      %s189 = sphi 0, %s189
      %s191 = sphi 0, %s189
      %s192 = sphi 0, %s191
      %s206 = sphi 0, %s192
      %s210 = sphi 0, %s210
      %s212 = sphi 0, %s210
      %s213 = sphi 0, %s212
      %s227 = sphi 0, %s213
      %s231 = sphi 0, %s231
      %s233 = sphi 0, %s231
      %s234 = sphi 0, %s233
      %s248 = sphi 0, %s234
      %s252 = sphi 0, %s252
      %s254 = sphi 0, %s252
      %s255 = sphi 0, %s254
      %s269 = sphi 0, %s255
    $region4: #{policy_forward.9} parent=1 // loop_header_branch
      %22 = sbr.rel (%p20) target = $region8
    $region5: #{policy_forward.9} parent=1 // loop_body
      %s24 = ssub.s32 %s19, 1
      %s25 = ssub.s32 %s19, 2
      %s26 = sadd.s32 %s19, 1
      %s28 = sadd.s32 %s27, 1
      %p31 = scmp.eq.s32.totalorder %s19, 3
      %p32 = scmp.ne.s32.totalorder %s27, %s29
      %p33 = scmp.eq.s32.totalorder %s19, 0
      %p34 = por %p32, %p33
      %p35 = scmp.ne.s32.totalorder %s27, %s29
      %p36 = scmp.eq.s32.totalorder %s24, 3
      %p37 = por %p35, %p36
      %p38 = scmp.ne.s32.totalorder %s29, %s30
      %p39 = scmp.eq.s32.totalorder %s24, 0
      %p40 = por %p38, %p39
      %p41 = scmp.ne.s32.totalorder %s29, %s30
      %p42 = scmp.eq.s32.totalorder %s25, 3
      %p43 = por %p41, %p42
      %p45 = scmp.ne.s32.totalorder %s30, %s44
      %p46 = scmp.eq.s32.totalorder %s25, 0
      %p47 = por %p45, %p46
      %s49 = sadd.s32 %s48, 1
      %p52 = scmp.eq.s32.totalorder %s19, 3
      %p53 = scmp.ne.s32.totalorder %s48, %s50
      %p54 = scmp.eq.s32.totalorder %s19, 0
      %p55 = por %p53, %p54
      %p56 = scmp.ne.s32.totalorder %s48, %s50
      %p57 = scmp.eq.s32.totalorder %s24, 3
      %p58 = por %p56, %p57
      %p59 = scmp.ne.s32.totalorder %s50, %s51
      %p60 = scmp.eq.s32.totalorder %s24, 0
      %p61 = por %p59, %p60
      %p62 = scmp.ne.s32.totalorder %s50, %s51
      %p63 = scmp.eq.s32.totalorder %s25, 3
      %p64 = por %p62, %p63
      %p66 = scmp.ne.s32.totalorder %s51, %s65
      %p67 = scmp.eq.s32.totalorder %s25, 0
      %p68 = por %p66, %p67
      %s70 = sadd.s32 %s69, 1
      %p73 = scmp.eq.s32.totalorder %s19, 3
      %p74 = scmp.ne.s32.totalorder %s69, %s71
      %p75 = scmp.eq.s32.totalorder %s19, 0
      %p76 = por %p74, %p75
      %p77 = scmp.ne.s32.totalorder %s69, %s71
      %p78 = scmp.eq.s32.totalorder %s24, 3
      %p79 = por %p77, %p78
      %p80 = scmp.ne.s32.totalorder %s71, %s72
      %p81 = scmp.eq.s32.totalorder %s24, 0
      %p82 = por %p80, %p81
      %p83 = scmp.ne.s32.totalorder %s71, %s72
      %p84 = scmp.eq.s32.totalorder %s25, 3
      %p85 = por %p83, %p84
      %p87 = scmp.ne.s32.totalorder %s72, %s86
      %p88 = scmp.eq.s32.totalorder %s25, 0
      %p89 = por %p87, %p88
      %s90 = ssub.s32 %s19, %s26
      %p91 = scmp.eq.s32.totalorder %s90, 0
      %s93 = sadd.s32 %s92, 1
      %s94 = scalar_select %p91, %s92, %s93
      %p97 = pneg %p91
      %p98 = scmp.eq.s32.totalorder %s19, 3
      %p99 = por %p97, %p98
      %p100 = scmp.ne.s32.totalorder %s92, %s95
      %p101 = scmp.eq.s32.totalorder %s19, 0
      %p102 = por %p100, %p101
      %p103 = scmp.ne.s32.totalorder %s92, %s95
      %p104 = scmp.eq.s32.totalorder %s24, 3
      %p105 = por %p103, %p104
      %p106 = scmp.ne.s32.totalorder %s95, %s96
      %p107 = scmp.eq.s32.totalorder %s24, 0
      %p108 = por %p106, %p107
      %p109 = scmp.ne.s32.totalorder %s95, %s96
      %p110 = scmp.eq.s32.totalorder %s25, 3
      %p111 = por %p109, %p110
      %p113 = scmp.ne.s32.totalorder %s96, %s112
      %p114 = scmp.eq.s32.totalorder %s25, 0
      %p115 = por %p113, %p114
      %s116 = ssub.s32 %s19, %s26
      %p117 = scmp.eq.s32.totalorder %s116, 0
      %s119 = sadd.s32 %s118, 1
      %s120 = scalar_select %p117, %s118, %s119
      %p123 = pneg %p117
      %p124 = scmp.eq.s32.totalorder %s19, 3
      %p125 = por %p123, %p124
      %p126 = scmp.ne.s32.totalorder %s118, %s121
      %p127 = scmp.eq.s32.totalorder %s19, 0
      %p128 = por %p126, %p127
      %p129 = scmp.ne.s32.totalorder %s118, %s121
      %p130 = scmp.eq.s32.totalorder %s24, 3
      %p131 = por %p129, %p130
      %p132 = scmp.ne.s32.totalorder %s121, %s122
      %p133 = scmp.eq.s32.totalorder %s24, 0
      %p134 = por %p132, %p133
      %p135 = scmp.ne.s32.totalorder %s121, %s122
      %p136 = scmp.eq.s32.totalorder %s25, 3
      %p137 = por %p135, %p136
      %p139 = scmp.ne.s32.totalorder %s122, %s138
      %p140 = scmp.eq.s32.totalorder %s25, 0
      %p141 = por %p139, %p140
      %s142 = ssub.s32 %s19, %s26
      %p143 = scmp.eq.s32.totalorder %s142, 0
      %s145 = sadd.s32 %s144, 1
      %s146 = scalar_select %p143, %s144, %s145
      %p149 = pneg %p143
      %p150 = scmp.eq.s32.totalorder %s19, 3
      %p151 = por %p149, %p150
      %p152 = scmp.ne.s32.totalorder %s144, %s147
      %p153 = scmp.eq.s32.totalorder %s19, 0
      %p154 = por %p152, %p153
      %p155 = scmp.ne.s32.totalorder %s144, %s147
      %p156 = scmp.eq.s32.totalorder %s24, 3
      %p157 = por %p155, %p156
      %p158 = scmp.ne.s32.totalorder %s147, %s148
      %p159 = scmp.eq.s32.totalorder %s24, 0
      %p160 = por %p158, %p159
      %p161 = scmp.ne.s32.totalorder %s147, %s148
      %p162 = scmp.eq.s32.totalorder %s25, 3
      %p163 = por %p161, %p162
      %p165 = scmp.ne.s32.totalorder %s148, %s164
      %p166 = scmp.eq.s32.totalorder %s25, 0
      %p167 = por %p165, %p166
      %s169 = sadd.s32 %s168, 1
      %p172 = scmp.eq.s32.totalorder %s19, 3
      %p173 = scmp.ne.s32.totalorder %s168, %s170
      %p174 = scmp.eq.s32.totalorder %s19, 0
      %p175 = por %p173, %p174
      %p176 = scmp.ne.s32.totalorder %s168, %s170
      %p177 = scmp.eq.s32.totalorder %s24, 3
      %p178 = por %p176, %p177
      %p179 = scmp.ne.s32.totalorder %s170, %s171
      %p180 = scmp.eq.s32.totalorder %s24, 0
      %p181 = por %p179, %p180
      %p182 = scmp.ne.s32.totalorder %s170, %s171
      %p183 = scmp.eq.s32.totalorder %s25, 3
      %p184 = por %p182, %p183
      %p186 = scmp.ne.s32.totalorder %s171, %s185
      %p187 = scmp.eq.s32.totalorder %s25, 0
      %p188 = por %p186, %p187
      %s190 = sadd.s32 %s189, 1
      %p193 = scmp.eq.s32.totalorder %s19, 3
      %p194 = scmp.ne.s32.totalorder %s189, %s191
      %p195 = scmp.eq.s32.totalorder %s19, 0
      %p196 = por %p194, %p195
      %p197 = scmp.ne.s32.totalorder %s189, %s191
      %p198 = scmp.eq.s32.totalorder %s24, 3
      %p199 = por %p197, %p198
      %p200 = scmp.ne.s32.totalorder %s191, %s192
      %p201 = scmp.eq.s32.totalorder %s24, 0
      %p202 = por %p200, %p201
      %p203 = scmp.ne.s32.totalorder %s191, %s192
      %p204 = scmp.eq.s32.totalorder %s25, 3
      %p205 = por %p203, %p204
      %p207 = scmp.ne.s32.totalorder %s192, %s206
      %p208 = scmp.eq.s32.totalorder %s25, 0
      %p209 = por %p207, %p208
      %s211 = sadd.s32 %s210, 1
      %p214 = scmp.eq.s32.totalorder %s19, 3
      %p215 = scmp.ne.s32.totalorder %s210, %s212
      %p216 = scmp.eq.s32.totalorder %s19, 0
      %p217 = por %p215, %p216
      %p218 = scmp.ne.s32.totalorder %s210, %s212
      %p219 = scmp.eq.s32.totalorder %s24, 3
      %p220 = por %p218, %p219
      %p221 = scmp.ne.s32.totalorder %s212, %s213
      %p222 = scmp.eq.s32.totalorder %s24, 0
      %p223 = por %p221, %p222
      %p224 = scmp.ne.s32.totalorder %s212, %s213
      %p225 = scmp.eq.s32.totalorder %s25, 3
      %p226 = por %p224, %p225
      %p228 = scmp.ne.s32.totalorder %s213, %s227
      %p229 = scmp.eq.s32.totalorder %s25, 0
      %p230 = por %p228, %p229
      %s232 = sadd.s32 %s231, 1
      %p235 = scmp.eq.s32.totalorder %s19, 3
      %p236 = scmp.ne.s32.totalorder %s231, %s233
      %p237 = scmp.eq.s32.totalorder %s19, 0
      %p238 = por %p236, %p237
      %p239 = scmp.ne.s32.totalorder %s231, %s233
      %p240 = scmp.eq.s32.totalorder %s24, 3
      %p241 = por %p239, %p240
      %p242 = scmp.ne.s32.totalorder %s233, %s234
      %p243 = scmp.eq.s32.totalorder %s24, 0
      %p244 = por %p242, %p243
      %p245 = scmp.ne.s32.totalorder %s233, %s234
      %p246 = scmp.eq.s32.totalorder %s25, 3
      %p247 = por %p245, %p246
      %p249 = scmp.ne.s32.totalorder %s234, %s248
      %p250 = scmp.eq.s32.totalorder %s25, 0
      %p251 = por %p249, %p250
      %s253 = sadd.s32 %s252, 1
      %p256 = scmp.eq.s32.totalorder %s19, 3
      %p257 = scmp.ne.s32.totalorder %s252, %s254
      %p258 = scmp.eq.s32.totalorder %s19, 0
      %p259 = por %p257, %p258
      %p260 = scmp.ne.s32.totalorder %s252, %s254
      %p261 = scmp.eq.s32.totalorder %s24, 3
      %p262 = por %p260, %p261
      %p263 = scmp.ne.s32.totalorder %s254, %s255
      %p264 = scmp.eq.s32.totalorder %s24, 0
      %p265 = por %p263, %p264
      %p266 = scmp.ne.s32.totalorder %s254, %s255
      %p267 = scmp.eq.s32.totalorder %s25, 3
      %p268 = por %p266, %p267
      %p270 = scmp.ne.s32.totalorder %s255, %s269
      %p271 = scmp.eq.s32.totalorder %s25, 0
      %p272 = por %p270, %p271
      %p273 = scmp.le.s32.totalorder 1, %s19
      %p274 = scmp.lt.s32.totalorder %s19, 5
      %p275 = pnand %p273, %p274
      %p276 = pneg %p275
      // Predicated region
      $region9: #{policy_forward.9} parent=5 // pred_check
        _
      $region10: #{policy_forward.9} parent=5 // pred_check_branch
        %278 = sbr.rel (%p275) target = $region12
      $region11: #{policy_forward.9} parent=5 // pred_region
        %s279 = ssub.s32 %s19, 1
        // Predicated region
        $region13: #{policy_forward.9} parent=11 // pred_check
          %p280 = pneg %p40
        $region14: #{policy_forward.9} parent=11 // pred_check_branch
          %282 = sbr.rel (%p280) target = $region16
        $region15: #{policy_forward.9} parent=11 // pred_region
          _
        $region16: #{policy_forward.9} parent=11 // pred_fallthru
          _
        // Predicated region
        $region17: #{policy_forward.9} parent=11 // pred_check
          %p283 = pneg %p61
        $region18: #{policy_forward.9} parent=11 // pred_check_branch
          %285 = sbr.rel (%p283) target = $region20
        $region19: #{policy_forward.9} parent=11 // pred_region
          _
        $region20: #{policy_forward.9} parent=11 // pred_fallthru
          _
        // Predicated region
        $region21: #{policy_forward.9} parent=11 // pred_check
          %p286 = pneg %p82
        $region22: #{policy_forward.9} parent=11 // pred_check_branch
          %288 = sbr.rel (%p286) target = $region24
        $region23: #{policy_forward.9} parent=11 // pred_region
          _
        $region24: #{policy_forward.9} parent=11 // pred_fallthru
          _
        // Predicated region
        $region25: #{policy_forward.9} parent=11 // pred_check
          %p289 = pneg %p181
        $region26: #{policy_forward.9} parent=11 // pred_check_branch
          %291 = sbr.rel (%p289) target = $region28
        $region27: #{policy_forward.9} parent=11 // pred_region
          _
        $region28: #{policy_forward.9} parent=11 // pred_fallthru
          _
        // Predicated region
        $region29: #{policy_forward.9} parent=11 // pred_check
          %p292 = pneg %p202
        $region30: #{policy_forward.9} parent=11 // pred_check_branch
          %294 = sbr.rel (%p292) target = $region32
        $region31: #{policy_forward.9} parent=11 // pred_region
          _
        $region32: #{policy_forward.9} parent=11 // pred_fallthru
          _
      $region12: #{policy_forward.9} parent=5 // pred_fallthru
        _
      %p295 = scmp.lt.s32.totalorder %s19, 4
      // Predicated region
      $region33: #{policy_forward.9} parent=5 // pred_check
        %p296 = pneg %p295
      $region34: #{policy_forward.9} parent=5 // pred_check_branch
        %298 = sbr.rel (%p296) target = $region36
      $region35: #{policy_forward.9} parent=5 // pred_region
        // Predicated region
        $region37: #{policy_forward.9} parent=35 // pred_check
          %p299 = pneg %p102
        $region38: #{policy_forward.9} parent=35 // pred_check_branch
          %301 = sbr.rel (%p299) target = $region40
        $region39: #{policy_forward.9} parent=35 // pred_region
          %s302 = sand.u32 %s92, 1
          %s303 = sand.u32 %s92, 1
          %s304 = smul.addr %s303, 1152
          %s305 = scalar_lea.vmem [#allocation3], %s304
          %s306 = smul.u32 2, %s19
          %s307 = smul.addr %s306, 4
          %s308 = scalar_lea.vmem %s3, %s307
          // Predicated region
          $region41: #{policy_forward.9} parent=39 // pred_check
            _
          $region42: #{policy_forward.9} parent=39 // pred_check_branch
            %310 = sbr.rel (0) target = $region44
          $region43: #{policy_forward.9} parent=39 // pred_region
            // Predicated region
            $region45: #{policy_forward.9} parent=43 // pred_check
              _
            $region46: #{policy_forward.9} parent=43 // pred_check_branch
              %312 = sbr.rel (0) target = $region48
            $region47: #{policy_forward.9} parent=43 // pred_region
              // Predicated region
              $region60: #{policy_forward.9} parent=47 // pred_check
                _
              $region61: #{policy_forward.9} parent=47 // pred_check_branch
                %614 = sbr.rel (0) target = $region63
              $region62: #{policy_forward.9} parent=47 // pred_region
                loop: start=0, step=1, limit=1
                $region64: #{policy_forward.9} parent=62 // loop_pre_header
                  _
                $region65: #{policy_forward.9} parent=62 // loop_header
                  %s616 = sphi 0, %s620
                  %p617 = scmp.ge.s32.totalorder %s616, 1
                  %s621 = sphi %s308, %s308
                  %s622 = sphi %s305, %s305
                $region66: #{policy_forward.9} parent=62 // loop_header_branch
                  %619 = sbr.rel (%p617) target = $region70
                $region67: #{policy_forward.9} parent=62 // loop_body
                  %v623 = vld [vmem:[%s621] sm:$0xff]
                  %624 = vst [vmem:[%s622] sm:$0xff] %v623
                  %v625 = vld [vmem:[%s621 + $0x20] sm:$0xff]
                  %626 = vst [vmem:[%s622 + $0x8] sm:$0xff] %v625
                  %v627 = vld [vmem:[%s621 + $0x40] sm:$0xff]
                  %628 = vst [vmem:[%s622 + $0x10] sm:$0xff] %v627
                  %v629 = vld [vmem:[%s621 + $0x60] sm:$0xff]
                  %630 = vst [vmem:[%s622 + $0x18] sm:$0xff] %v629
                  %v631 = vld [vmem:[%s621 + $0x80] sm:$0xff]
                  %632 = vst [vmem:[%s622 + $0x20] sm:$0xff] %v631
                  %v633 = vld [vmem:[%s621 + $0xa0] sm:$0xff]
                  %634 = vst [vmem:[%s622 + $0x28] sm:$0xff] %v633
                  %v635 = vld [vmem:[%s621 + $0xc0] sm:$0xff]
                  %636 = vst [vmem:[%s622 + $0x30] sm:$0xff] %v635
                  %v637 = vld [vmem:[%s621 + $0xe0] sm:$0xff]
                  %638 = vst [vmem:[%s622 + $0x38] sm:$0xff] %v637
                  %v639 = vld [vmem:[%s621 + $0x100] sm:$0xff]
                  %640 = vst [vmem:[%s622 + $0x40] sm:$0xff] %v639
                  %v641 = vld [vmem:[%s621 + $0x120] sm:$0xff]
                  %642 = vst [vmem:[%s622 + $0x48] sm:$0xff] %v641
                  %v643 = vld [vmem:[%s621 + $0x140] sm:$0xff]
                  %644 = vst [vmem:[%s622 + $0x50] sm:$0xff] %v643
                  %v645 = vld [vmem:[%s621 + $0x160] sm:$0xff]
                  %646 = vst [vmem:[%s622 + $0x58] sm:$0xff] %v645
                  %v647 = vld [vmem:[%s621 + $0x180] sm:$0xff]
                  %648 = vst [vmem:[%s622 + $0x60] sm:$0xff] %v647
                  %v649 = vld [vmem:[%s621 + $0x1a0] sm:$0xff]
                  %650 = vst [vmem:[%s622 + $0x68] sm:$0xff] %v649
                  %v651 = vld [vmem:[%s621 + $0x1c0] sm:$0xff]
                  %652 = vst [vmem:[%s622 + $0x70] sm:$0xff] %v651
                  %v653 = vld [vmem:[%s621 + $0x1e0] sm:$0xff]
                  %654 = vst [vmem:[%s622 + $0x78] sm:$0xff] %v653
                  %v655 = vld [vmem:[%s621 + $0x200] sm:$0xff]
                  %656 = vst [vmem:[%s622 + $0x80] sm:$0xff] %v655
                  %v657 = vld [vmem:[%s621 + $0x220] sm:$0xff]
                  %658 = vst [vmem:[%s622 + $0x88] sm:$0xff] %v657
                  %v659 = vld [vmem:[%s621 + $0x240] sm:$0xff]
                  %660 = vst [vmem:[%s622 + $0x90] sm:$0xff] %v659
                  %v661 = vld [vmem:[%s621 + $0x260] sm:$0xff]
                  %662 = vst [vmem:[%s622 + $0x98] sm:$0xff] %v661
                  %v663 = vld [vmem:[%s621 + $0x280] sm:$0xff]
                  %664 = vst [vmem:[%s622 + $0xa0] sm:$0xff] %v663
                  %v665 = vld [vmem:[%s621 + $0x2a0] sm:$0xff]
                  %666 = vst [vmem:[%s622 + $0xa8] sm:$0xff] %v665
                  %v667 = vld [vmem:[%s621 + $0x2c0] sm:$0xff]
                  %668 = vst [vmem:[%s622 + $0xb0] sm:$0xff] %v667
                  %v669 = vld [vmem:[%s621 + $0x2e0] sm:$0xff]
                  %670 = vst [vmem:[%s622 + $0xb8] sm:$0xff] %v669
                  %v671 = vld [vmem:[%s621 + $0x300] sm:$0xff]
                  %672 = vst [vmem:[%s622 + $0xc0] sm:$0xff] %v671
                  %v673 = vld [vmem:[%s621 + $0x320] sm:$0xff]
                  %674 = vst [vmem:[%s622 + $0xc8] sm:$0xff] %v673
                  %v675 = vld [vmem:[%s621 + $0x340] sm:$0xff]
                  %676 = vst [vmem:[%s622 + $0xd0] sm:$0xff] %v675
                  %v677 = vld [vmem:[%s621 + $0x360] sm:$0xff]
                  %678 = vst [vmem:[%s622 + $0xd8] sm:$0xff] %v677
                  %v679 = vld [vmem:[%s621 + $0x380] sm:$0xff]
                  %680 = vst [vmem:[%s622 + $0xe0] sm:$0xff] %v679
                  %v681 = vld [vmem:[%s621 + $0x3a0] sm:$0xff]
                  %682 = vst [vmem:[%s622 + $0xe8] sm:$0xff] %v681
                  %v683 = vld [vmem:[%s621 + $0x3c0] sm:$0xff]
                  %684 = vst [vmem:[%s622 + $0xf0] sm:$0xff] %v683
                  %v685 = vld [vmem:[%s621 + $0x3e0] sm:$0xff]
                  %686 = vst [vmem:[%s622 + $0xf8] sm:$0xff] %v685
                  %v687 = vld [vmem:[%s621 + $0x400] sm:$0xff]
                  %688 = vst [vmem:[%s622 + $0x100] sm:$0xff] %v687
                  %v689 = vld [vmem:[%s621 + $0x420] sm:$0xff]
                  %690 = vst [vmem:[%s622 + $0x108] sm:$0xff] %v689
                  %v691 = vld [vmem:[%s621 + $0x440] sm:$0xff]
                  %692 = vst [vmem:[%s622 + $0x110] sm:$0xff] %v691
                  %v693 = vld [vmem:[%s621 + $0x460] sm:$0xff]
                  %694 = vst [vmem:[%s622 + $0x118] sm:$0xff] %v693
                  %v695 = vld [vmem:[%s621 + $0x480] sm:$0xff]
                  %696 = vst [vmem:[%s622 + $0x120] sm:$0xff] %v695
                  %v697 = vld [vmem:[%s621 + $0x4a0] sm:$0xff]
                  %698 = vst [vmem:[%s622 + $0x128] sm:$0xff] %v697
                  %v699 = vld [vmem:[%s621 + $0x4c0] sm:$0xff]
                  %700 = vst [vmem:[%s622 + $0x130] sm:$0xff] %v699
                  %v701 = vld [vmem:[%s621 + $0x4e0] sm:$0xff]
                  %702 = vst [vmem:[%s622 + $0x138] sm:$0xff] %v701
                  %v703 = vld [vmem:[%s621 + $0x500] sm:$0xff]
                  %704 = vst [vmem:[%s622 + $0x140] sm:$0xff] %v703
                  %v705 = vld [vmem:[%s621 + $0x520] sm:$0xff]
                  %706 = vst [vmem:[%s622 + $0x148] sm:$0xff] %v705
                  %v707 = vld [vmem:[%s621 + $0x540] sm:$0xff]
                  %708 = vst [vmem:[%s622 + $0x150] sm:$0xff] %v707
                  %v709 = vld [vmem:[%s621 + $0x560] sm:$0xff]
                  %710 = vst [vmem:[%s622 + $0x158] sm:$0xff] %v709
                  %v711 = vld [vmem:[%s621 + $0x580] sm:$0xff]
                  %712 = vst [vmem:[%s622 + $0x160] sm:$0xff] %v711
                  %v713 = vld [vmem:[%s621 + $0x5a0] sm:$0xff]
                  %714 = vst [vmem:[%s622 + $0x168] sm:$0xff] %v713
                  %v715 = vld [vmem:[%s621 + $0x5c0] sm:$0xff]
                  %716 = vst [vmem:[%s622 + $0x170] sm:$0xff] %v715
                  %v717 = vld [vmem:[%s621 + $0x5e0] sm:$0xff]
                  %718 = vst [vmem:[%s622 + $0x178] sm:$0xff] %v717
                  %v719 = vld [vmem:[%s621 + $0x600] sm:$0xff]
                  %720 = vst [vmem:[%s622 + $0x180] sm:$0xff] %v719
                  %v721 = vld [vmem:[%s621 + $0x620] sm:$0xff]
                  %722 = vst [vmem:[%s622 + $0x188] sm:$0xff] %v721
                  %v723 = vld [vmem:[%s621 + $0x640] sm:$0xff]
                  %724 = vst [vmem:[%s622 + $0x190] sm:$0xff] %v723
                  %v725 = vld [vmem:[%s621 + $0x660] sm:$0xff]
                  %726 = vst [vmem:[%s622 + $0x198] sm:$0xff] %v725
                  %v727 = vld [vmem:[%s621 + $0x680] sm:$0xff]
                  %728 = vst [vmem:[%s622 + $0x1a0] sm:$0xff] %v727
                  %v729 = vld [vmem:[%s621 + $0x6a0] sm:$0xff]
                  %730 = vst [vmem:[%s622 + $0x1a8] sm:$0xff] %v729
                  %v731 = vld [vmem:[%s621 + $0x6c0] sm:$0xff]
                  %732 = vst [vmem:[%s622 + $0x1b0] sm:$0xff] %v731
                  %v733 = vld [vmem:[%s621 + $0x6e0] sm:$0xff]
                  %734 = vst [vmem:[%s622 + $0x1b8] sm:$0xff] %v733
                  %v735 = vld [vmem:[%s621 + $0x700] sm:$0xff]
                  %736 = vst [vmem:[%s622 + $0x1c0] sm:$0xff] %v735
                  %v737 = vld [vmem:[%s621 + $0x720] sm:$0xff]
                  %738 = vst [vmem:[%s622 + $0x1c8] sm:$0xff] %v737
                  %v739 = vld [vmem:[%s621 + $0x740] sm:$0xff]
                  %740 = vst [vmem:[%s622 + $0x1d0] sm:$0xff] %v739
                  %v741 = vld [vmem:[%s621 + $0x760] sm:$0xff]
                  %742 = vst [vmem:[%s622 + $0x1d8] sm:$0xff] %v741
                  %v743 = vld [vmem:[%s621 + $0x780] sm:$0xff]
                  %744 = vst [vmem:[%s622 + $0x1e0] sm:$0xff] %v743
                  %v745 = vld [vmem:[%s621 + $0x7a0] sm:$0xff]
                  %746 = vst [vmem:[%s622 + $0x1e8] sm:$0xff] %v745
                  %v747 = vld [vmem:[%s621 + $0x7c0] sm:$0xff]
                  %748 = vst [vmem:[%s622 + $0x1f0] sm:$0xff] %v747
                  %v749 = vld [vmem:[%s621 + $0x7e0] sm:$0xff]
                  %750 = vst [vmem:[%s622 + $0x1f8] sm:$0xff] %v749
                  %v751 = vld [vmem:[%s621 + $0x800] sm:$0xff]
                  %752 = vst [vmem:[%s622 + $0x200] sm:$0xff] %v751
                  %v753 = vld [vmem:[%s621 + $0x820] sm:$0xff]
                  %754 = vst [vmem:[%s622 + $0x208] sm:$0xff] %v753
                  %v755 = vld [vmem:[%s621 + $0x840] sm:$0xff]
                  %756 = vst [vmem:[%s622 + $0x210] sm:$0xff] %v755
                  %v757 = vld [vmem:[%s621 + $0x860] sm:$0xff]
                  %758 = vst [vmem:[%s622 + $0x218] sm:$0xff] %v757
                  %v759 = vld [vmem:[%s621 + $0x880] sm:$0xff]
                  %760 = vst [vmem:[%s622 + $0x220] sm:$0xff] %v759
                  %v761 = vld [vmem:[%s621 + $0x8a0] sm:$0xff]
                  %762 = vst [vmem:[%s622 + $0x228] sm:$0xff] %v761
                  %v763 = vld [vmem:[%s621 + $0x8c0] sm:$0xff]
                  %764 = vst [vmem:[%s622 + $0x230] sm:$0xff] %v763
                  %v765 = vld [vmem:[%s621 + $0x8e0] sm:$0xff]
                  %766 = vst [vmem:[%s622 + $0x238] sm:$0xff] %v765
                  %v767 = vld [vmem:[%s621 + $0x900] sm:$0xff]
                  %768 = vst [vmem:[%s622 + $0x240] sm:$0xff] %v767
                  %v769 = vld [vmem:[%s621 + $0x920] sm:$0xff]
                  %770 = vst [vmem:[%s622 + $0x248] sm:$0xff] %v769
                  %v771 = vld [vmem:[%s621 + $0x940] sm:$0xff]
                  %772 = vst [vmem:[%s622 + $0x250] sm:$0xff] %v771
                  %v773 = vld [vmem:[%s621 + $0x960] sm:$0xff]
                  %774 = vst [vmem:[%s622 + $0x258] sm:$0xff] %v773
                  %v775 = vld [vmem:[%s621 + $0x980] sm:$0xff]
                  %776 = vst [vmem:[%s622 + $0x260] sm:$0xff] %v775
                  %v777 = vld [vmem:[%s621 + $0x9a0] sm:$0xff]
                  %778 = vst [vmem:[%s622 + $0x268] sm:$0xff] %v777
                  %v779 = vld [vmem:[%s621 + $0x9c0] sm:$0xff]
                  %780 = vst [vmem:[%s622 + $0x270] sm:$0xff] %v779
                  %v781 = vld [vmem:[%s621 + $0x9e0] sm:$0xff]
                  %782 = vst [vmem:[%s622 + $0x278] sm:$0xff] %v781
                  %v783 = vld [vmem:[%s621 + $0xa00] sm:$0xff]
                  %784 = vst [vmem:[%s622 + $0x280] sm:$0xff] %v783
                  %v785 = vld [vmem:[%s621 + $0xa20] sm:$0xff]
                  %786 = vst [vmem:[%s622 + $0x288] sm:$0xff] %v785
                  %v787 = vld [vmem:[%s621 + $0xa40] sm:$0xff]
                  %788 = vst [vmem:[%s622 + $0x290] sm:$0xff] %v787
                  %v789 = vld [vmem:[%s621 + $0xa60] sm:$0xff]
                  %790 = vst [vmem:[%s622 + $0x298] sm:$0xff] %v789
                  %v791 = vld [vmem:[%s621 + $0xa80] sm:$0xff]
                  %792 = vst [vmem:[%s622 + $0x2a0] sm:$0xff] %v791
                  %v793 = vld [vmem:[%s621 + $0xaa0] sm:$0xff]
                  %794 = vst [vmem:[%s622 + $0x2a8] sm:$0xff] %v793
                  %v795 = vld [vmem:[%s621 + $0xac0] sm:$0xff]
                  %796 = vst [vmem:[%s622 + $0x2b0] sm:$0xff] %v795
                  %v797 = vld [vmem:[%s621 + $0xae0] sm:$0xff]
                  %798 = vst [vmem:[%s622 + $0x2b8] sm:$0xff] %v797
                  %v799 = vld [vmem:[%s621 + $0xb00] sm:$0xff]
                  %800 = vst [vmem:[%s622 + $0x2c0] sm:$0xff] %v799
                  %v801 = vld [vmem:[%s621 + $0xb20] sm:$0xff]
                  %802 = vst [vmem:[%s622 + $0x2c8] sm:$0xff] %v801
                  %v803 = vld [vmem:[%s621 + $0xb40] sm:$0xff]
                  %804 = vst [vmem:[%s622 + $0x2d0] sm:$0xff] %v803
                  %v805 = vld [vmem:[%s621 + $0xb60] sm:$0xff]
                  %806 = vst [vmem:[%s622 + $0x2d8] sm:$0xff] %v805
                  %v807 = vld [vmem:[%s621 + $0xb80] sm:$0xff]
                  %808 = vst [vmem:[%s622 + $0x2e0] sm:$0xff] %v807
                  %v809 = vld [vmem:[%s621 + $0xba0] sm:$0xff]
                  %810 = vst [vmem:[%s622 + $0x2e8] sm:$0xff] %v809
                  %v811 = vld [vmem:[%s621 + $0xbc0] sm:$0xff]
                  %812 = vst [vmem:[%s622 + $0x2f0] sm:$0xff] %v811
                  %v813 = vld [vmem:[%s621 + $0xbe0] sm:$0xff]
                  %814 = vst [vmem:[%s622 + $0x2f8] sm:$0xff] %v813
                  %v815 = vld [vmem:[%s621 + $0xc00] sm:$0xff]
                  %816 = vst [vmem:[%s622 + $0x300] sm:$0xff] %v815
                  %v817 = vld [vmem:[%s621 + $0xc20] sm:$0xff]
                  %818 = vst [vmem:[%s622 + $0x308] sm:$0xff] %v817
                  %v819 = vld [vmem:[%s621 + $0xc40] sm:$0xff]
                  %820 = vst [vmem:[%s622 + $0x310] sm:$0xff] %v819
                  %v821 = vld [vmem:[%s621 + $0xc60] sm:$0xff]
                  %822 = vst [vmem:[%s622 + $0x318] sm:$0xff] %v821
                  %v823 = vld [vmem:[%s621 + $0xc80] sm:$0xff]
                  %824 = vst [vmem:[%s622 + $0x320] sm:$0xff] %v823
                  %v825 = vld [vmem:[%s621 + $0xca0] sm:$0xff]
                  %826 = vst [vmem:[%s622 + $0x328] sm:$0xff] %v825
                  %v827 = vld [vmem:[%s621 + $0xcc0] sm:$0xff]
                  %828 = vst [vmem:[%s622 + $0x330] sm:$0xff] %v827
                  %v829 = vld [vmem:[%s621 + $0xce0] sm:$0xff]
                  %830 = vst [vmem:[%s622 + $0x338] sm:$0xff] %v829
                  %v831 = vld [vmem:[%s621 + $0xd00] sm:$0xff]
                  %832 = vst [vmem:[%s622 + $0x340] sm:$0xff] %v831
                  %v833 = vld [vmem:[%s621 + $0xd20] sm:$0xff]
                  %834 = vst [vmem:[%s622 + $0x348] sm:$0xff] %v833
                  %v835 = vld [vmem:[%s621 + $0xd40] sm:$0xff]
                  %836 = vst [vmem:[%s622 + $0x350] sm:$0xff] %v835
                  %v837 = vld [vmem:[%s621 + $0xd60] sm:$0xff]
                  %838 = vst [vmem:[%s622 + $0x358] sm:$0xff] %v837
                  %v839 = vld [vmem:[%s621 + $0xd80] sm:$0xff]
                  %840 = vst [vmem:[%s622 + $0x360] sm:$0xff] %v839
                  %v841 = vld [vmem:[%s621 + $0xda0] sm:$0xff]
                  %842 = vst [vmem:[%s622 + $0x368] sm:$0xff] %v841
                  %v843 = vld [vmem:[%s621 + $0xdc0] sm:$0xff]
                  %844 = vst [vmem:[%s622 + $0x370] sm:$0xff] %v843
                  %v845 = vld [vmem:[%s621 + $0xde0] sm:$0xff]
                  %846 = vst [vmem:[%s622 + $0x378] sm:$0xff] %v845
                  %v847 = vld [vmem:[%s621 + $0xe00] sm:$0xff]
                  %848 = vst [vmem:[%s622 + $0x380] sm:$0xff] %v847
                  %v849 = vld [vmem:[%s621 + $0xe20] sm:$0xff]
                  %850 = vst [vmem:[%s622 + $0x388] sm:$0xff] %v849
                  %v851 = vld [vmem:[%s621 + $0xe40] sm:$0xff]
                  %852 = vst [vmem:[%s622 + $0x390] sm:$0xff] %v851
                  %v853 = vld [vmem:[%s621 + $0xe60] sm:$0xff]
                  %854 = vst [vmem:[%s622 + $0x398] sm:$0xff] %v853
                  %v855 = vld [vmem:[%s621 + $0xe80] sm:$0xff]
                  %856 = vst [vmem:[%s622 + $0x3a0] sm:$0xff] %v855
                  %v857 = vld [vmem:[%s621 + $0xea0] sm:$0xff]
                  %858 = vst [vmem:[%s622 + $0x3a8] sm:$0xff] %v857
                  %v859 = vld [vmem:[%s621 + $0xec0] sm:$0xff]
                  %860 = vst [vmem:[%s622 + $0x3b0] sm:$0xff] %v859
                  %v861 = vld [vmem:[%s621 + $0xee0] sm:$0xff]
                  %862 = vst [vmem:[%s622 + $0x3b8] sm:$0xff] %v861
                  %v863 = vld [vmem:[%s621 + $0xf00] sm:$0xff]
                  %864 = vst [vmem:[%s622 + $0x3c0] sm:$0xff] %v863
                  %v865 = vld [vmem:[%s621 + $0xf20] sm:$0xff]
                  %866 = vst [vmem:[%s622 + $0x3c8] sm:$0xff] %v865
                  %v867 = vld [vmem:[%s621 + $0xf40] sm:$0xff]
                  %868 = vst [vmem:[%s622 + $0x3d0] sm:$0xff] %v867
                  %v869 = vld [vmem:[%s621 + $0xf60] sm:$0xff]
                  %870 = vst [vmem:[%s622 + $0x3d8] sm:$0xff] %v869
                  %v871 = vld [vmem:[%s621 + $0xf80] sm:$0xff]
                  %872 = vst [vmem:[%s622 + $0x3e0] sm:$0xff] %v871
                  %v873 = vld [vmem:[%s621 + $0xfa0] sm:$0xff]
                  %874 = vst [vmem:[%s622 + $0x3e8] sm:$0xff] %v873
                  %v875 = vld [vmem:[%s621 + $0xfc0] sm:$0xff]
                  %876 = vst [vmem:[%s622 + $0x3f0] sm:$0xff] %v875
                  %v877 = vld [vmem:[%s621 + $0xfe0] sm:$0xff]
                  %878 = vst [vmem:[%s622 + $0x3f8] sm:$0xff] %v877
                  %v879 = vld [vmem:[%s621 + $0x1000] sm:$0xff]
                  %880 = vst [vmem:[%s622 + $0x400] sm:$0xff] %v879
                  %v881 = vld [vmem:[%s621 + $0x1020] sm:$0xff]
                  %882 = vst [vmem:[%s622 + $0x408] sm:$0xff] %v881
                  %v883 = vld [vmem:[%s621 + $0x1040] sm:$0xff]
                  %884 = vst [vmem:[%s622 + $0x410] sm:$0xff] %v883
                  %v885 = vld [vmem:[%s621 + $0x1060] sm:$0xff]
                  %886 = vst [vmem:[%s622 + $0x418] sm:$0xff] %v885
                  %v887 = vld [vmem:[%s621 + $0x1080] sm:$0xff]
                  %888 = vst [vmem:[%s622 + $0x420] sm:$0xff] %v887
                  %v889 = vld [vmem:[%s621 + $0x10a0] sm:$0xff]
                  %890 = vst [vmem:[%s622 + $0x428] sm:$0xff] %v889
                  %v891 = vld [vmem:[%s621 + $0x10c0] sm:$0xff]
                  %892 = vst [vmem:[%s622 + $0x430] sm:$0xff] %v891
                  %v893 = vld [vmem:[%s621 + $0x10e0] sm:$0xff]
                  %894 = vst [vmem:[%s622 + $0x438] sm:$0xff] %v893
                  %v895 = vld [vmem:[%s621 + $0x1100] sm:$0xff]
                  %896 = vst [vmem:[%s622 + $0x440] sm:$0xff] %v895
                  %v897 = vld [vmem:[%s621 + $0x1120] sm:$0xff]
                  %898 = vst [vmem:[%s622 + $0x448] sm:$0xff] %v897
                  %v899 = vld [vmem:[%s621 + $0x1140] sm:$0xff]
                  %900 = vst [vmem:[%s622 + $0x450] sm:$0xff] %v899
                  %v901 = vld [vmem:[%s621 + $0x1160] sm:$0xff]
                  %902 = vst [vmem:[%s622 + $0x458] sm:$0xff] %v901
                  %v903 = vld [vmem:[%s621 + $0x1180] sm:$0xff]
                  %904 = vst [vmem:[%s622 + $0x460] sm:$0xff] %v903
                  %v905 = vld [vmem:[%s621 + $0x11a0] sm:$0xff]
                  %906 = vst [vmem:[%s622 + $0x468] sm:$0xff] %v905
                  %v907 = vld [vmem:[%s621 + $0x11c0] sm:$0xff]
                  %908 = vst [vmem:[%s622 + $0x470] sm:$0xff] %v907
                  %v909 = vld [vmem:[%s621 + $0x11e0] sm:$0xff]
                  %910 = vst [vmem:[%s622 + $0x478] sm:$0xff] %v909
                $region68: #{policy_forward.9} parent=62 // loop_footer
                  %s620 = sadd.s32 1, %s616
                $region69: #{policy_forward.9} parent=62 // loop_footer_branch
                  %615 = sbr.rel target = $region65
                $region70: #{policy_forward.9} parent=62 // loop_exit
                  _
              $region63: #{policy_forward.9} parent=47 // pred_fallthru
                _
              // Predicated region
              $region71: #{policy_forward.9} parent=47 // pred_check
                _
              $region72: #{policy_forward.9} parent=47 // pred_check_branch
                %912 = sbr.rel target = $region74
              $region73: #{policy_forward.9} parent=47 // pred_region
                _
              $region74: #{policy_forward.9} parent=47 // pred_fallthru
                _
            $region48: #{policy_forward.9} parent=43 // pred_fallthru
              _
            // Predicated region
            $region49: #{policy_forward.9} parent=43 // pred_check
              _
            $region50: #{policy_forward.9} parent=43 // pred_check_branch
              %314 = sbr.rel target = $region52
            $region51: #{policy_forward.9} parent=43 // pred_region
              %s316 = ssub.s32 256, 1
              loop: start=0, step=1, limit=1
              $region53: #{policy_forward.9} parent=51 // loop_pre_header
                _
              $region54: #{policy_forward.9} parent=51 // loop_header
                %s318 = sphi 0, %s322
                %p319 = scmp.ge.s32.totalorder %s318, 1
                %s323 = sphi %s308, %s308
                %s324 = sphi %s305, %s305
              $region55: #{policy_forward.9} parent=51 // loop_header_branch
                %321 = sbr.rel (%p319) target = $region59
              $region56: #{policy_forward.9} parent=51 // loop_body
                %v325 = vld [vmem:[%s323] sm:%s316]
                %326 = vst [vmem:[%s324] sm:%s316] %v325
                %v327 = vld [vmem:[%s323 + $0x20] sm:%s316]
                %328 = vst [vmem:[%s324 + $0x8] sm:%s316] %v327
                %v329 = vld [vmem:[%s323 + $0x40] sm:%s316]
                %330 = vst [vmem:[%s324 + $0x10] sm:%s316] %v329
                %v331 = vld [vmem:[%s323 + $0x60] sm:%s316]
                %332 = vst [vmem:[%s324 + $0x18] sm:%s316] %v331
                %v333 = vld [vmem:[%s323 + $0x80] sm:%s316]
                %334 = vst [vmem:[%s324 + $0x20] sm:%s316] %v333
                %v335 = vld [vmem:[%s323 + $0xa0] sm:%s316]
                %336 = vst [vmem:[%s324 + $0x28] sm:%s316] %v335
                %v337 = vld [vmem:[%s323 + $0xc0] sm:%s316]
                %338 = vst [vmem:[%s324 + $0x30] sm:%s316] %v337
                %v339 = vld [vmem:[%s323 + $0xe0] sm:%s316]
                %340 = vst [vmem:[%s324 + $0x38] sm:%s316] %v339
                %v341 = vld [vmem:[%s323 + $0x100] sm:%s316]
                %342 = vst [vmem:[%s324 + $0x40] sm:%s316] %v341
                %v343 = vld [vmem:[%s323 + $0x120] sm:%s316]
                %344 = vst [vmem:[%s324 + $0x48] sm:%s316] %v343
                %v345 = vld [vmem:[%s323 + $0x140] sm:%s316]
                %346 = vst [vmem:[%s324 + $0x50] sm:%s316] %v345
                %v347 = vld [vmem:[%s323 + $0x160] sm:%s316]
                %348 = vst [vmem:[%s324 + $0x58] sm:%s316] %v347
                %v349 = vld [vmem:[%s323 + $0x180] sm:%s316]
                %350 = vst [vmem:[%s324 + $0x60] sm:%s316] %v349
                %v351 = vld [vmem:[%s323 + $0x1a0] sm:%s316]
                %352 = vst [vmem:[%s324 + $0x68] sm:%s316] %v351
                %v353 = vld [vmem:[%s323 + $0x1c0] sm:%s316]
                %354 = vst [vmem:[%s324 + $0x70] sm:%s316] %v353
                %v355 = vld [vmem:[%s323 + $0x1e0] sm:%s316]
                %356 = vst [vmem:[%s324 + $0x78] sm:%s316] %v355
                %v357 = vld [vmem:[%s323 + $0x200] sm:%s316]
                %358 = vst [vmem:[%s324 + $0x80] sm:%s316] %v357
                %v359 = vld [vmem:[%s323 + $0x220] sm:%s316]
                %360 = vst [vmem:[%s324 + $0x88] sm:%s316] %v359
                %v361 = vld [vmem:[%s323 + $0x240] sm:%s316]
                %362 = vst [vmem:[%s324 + $0x90] sm:%s316] %v361
                %v363 = vld [vmem:[%s323 + $0x260] sm:%s316]
                %364 = vst [vmem:[%s324 + $0x98] sm:%s316] %v363
                %v365 = vld [vmem:[%s323 + $0x280] sm:%s316]
                %366 = vst [vmem:[%s324 + $0xa0] sm:%s316] %v365
                %v367 = vld [vmem:[%s323 + $0x2a0] sm:%s316]
                %368 = vst [vmem:[%s324 + $0xa8] sm:%s316] %v367
                %v369 = vld [vmem:[%s323 + $0x2c0] sm:%s316]
                %370 = vst [vmem:[%s324 + $0xb0] sm:%s316] %v369
                %v371 = vld [vmem:[%s323 + $0x2e0] sm:%s316]
                %372 = vst [vmem:[%s324 + $0xb8] sm:%s316] %v371
                %v373 = vld [vmem:[%s323 + $0x300] sm:%s316]
                %374 = vst [vmem:[%s324 + $0xc0] sm:%s316] %v373
                %v375 = vld [vmem:[%s323 + $0x320] sm:%s316]
                %376 = vst [vmem:[%s324 + $0xc8] sm:%s316] %v375
                %v377 = vld [vmem:[%s323 + $0x340] sm:%s316]
                %378 = vst [vmem:[%s324 + $0xd0] sm:%s316] %v377
                %v379 = vld [vmem:[%s323 + $0x360] sm:%s316]
                %380 = vst [vmem:[%s324 + $0xd8] sm:%s316] %v379
                %v381 = vld [vmem:[%s323 + $0x380] sm:%s316]
                %382 = vst [vmem:[%s324 + $0xe0] sm:%s316] %v381
                %v383 = vld [vmem:[%s323 + $0x3a0] sm:%s316]
                %384 = vst [vmem:[%s324 + $0xe8] sm:%s316] %v383
                %v385 = vld [vmem:[%s323 + $0x3c0] sm:%s316]
                %386 = vst [vmem:[%s324 + $0xf0] sm:%s316] %v385
                %v387 = vld [vmem:[%s323 + $0x3e0] sm:%s316]
                %388 = vst [vmem:[%s324 + $0xf8] sm:%s316] %v387
                %v389 = vld [vmem:[%s323 + $0x400] sm:%s316]
                %390 = vst [vmem:[%s324 + $0x100] sm:%s316] %v389
                %v391 = vld [vmem:[%s323 + $0x420] sm:%s316]
                %392 = vst [vmem:[%s324 + $0x108] sm:%s316] %v391
                %v393 = vld [vmem:[%s323 + $0x440] sm:%s316]
                %394 = vst [vmem:[%s324 + $0x110] sm:%s316] %v393
                %v395 = vld [vmem:[%s323 + $0x460] sm:%s316]
                %396 = vst [vmem:[%s324 + $0x118] sm:%s316] %v395
                %v397 = vld [vmem:[%s323 + $0x480] sm:%s316]
                %398 = vst [vmem:[%s324 + $0x120] sm:%s316] %v397
                %v399 = vld [vmem:[%s323 + $0x4a0] sm:%s316]
                %400 = vst [vmem:[%s324 + $0x128] sm:%s316] %v399
                %v401 = vld [vmem:[%s323 + $0x4c0] sm:%s316]
                %402 = vst [vmem:[%s324 + $0x130] sm:%s316] %v401
                %v403 = vld [vmem:[%s323 + $0x4e0] sm:%s316]
                %404 = vst [vmem:[%s324 + $0x138] sm:%s316] %v403
                %v405 = vld [vmem:[%s323 + $0x500] sm:%s316]
                %406 = vst [vmem:[%s324 + $0x140] sm:%s316] %v405
                %v407 = vld [vmem:[%s323 + $0x520] sm:%s316]
                %408 = vst [vmem:[%s324 + $0x148] sm:%s316] %v407
                %v409 = vld [vmem:[%s323 + $0x540] sm:%s316]
                %410 = vst [vmem:[%s324 + $0x150] sm:%s316] %v409
                %v411 = vld [vmem:[%s323 + $0x560] sm:%s316]
                %412 = vst [vmem:[%s324 + $0x158] sm:%s316] %v411
                %v413 = vld [vmem:[%s323 + $0x580] sm:%s316]
                %414 = vst [vmem:[%s324 + $0x160] sm:%s316] %v413
                %v415 = vld [vmem:[%s323 + $0x5a0] sm:%s316]
                %416 = vst [vmem:[%s324 + $0x168] sm:%s316] %v415
                %v417 = vld [vmem:[%s323 + $0x5c0] sm:%s316]
                %418 = vst [vmem:[%s324 + $0x170] sm:%s316] %v417
                %v419 = vld [vmem:[%s323 + $0x5e0] sm:%s316]
                %420 = vst [vmem:[%s324 + $0x178] sm:%s316] %v419
                %v421 = vld [vmem:[%s323 + $0x600] sm:%s316]
                %422 = vst [vmem:[%s324 + $0x180] sm:%s316] %v421
                %v423 = vld [vmem:[%s323 + $0x620] sm:%s316]
                %424 = vst [vmem:[%s324 + $0x188] sm:%s316] %v423
                %v425 = vld [vmem:[%s323 + $0x640] sm:%s316]
                %426 = vst [vmem:[%s324 + $0x190] sm:%s316] %v425
                %v427 = vld [vmem:[%s323 + $0x660] sm:%s316]
                %428 = vst [vmem:[%s324 + $0x198] sm:%s316] %v427
                %v429 = vld [vmem:[%s323 + $0x680] sm:%s316]
                %430 = vst [vmem:[%s324 + $0x1a0] sm:%s316] %v429
                %v431 = vld [vmem:[%s323 + $0x6a0] sm:%s316]
                %432 = vst [vmem:[%s324 + $0x1a8] sm:%s316] %v431
                %v433 = vld [vmem:[%s323 + $0x6c0] sm:%s316]
                %434 = vst [vmem:[%s324 + $0x1b0] sm:%s316] %v433
                %v435 = vld [vmem:[%s323 + $0x6e0] sm:%s316]
                %436 = vst [vmem:[%s324 + $0x1b8] sm:%s316] %v435
                %v437 = vld [vmem:[%s323 + $0x700] sm:%s316]
                %438 = vst [vmem:[%s324 + $0x1c0] sm:%s316] %v437
                %v439 = vld [vmem:[%s323 + $0x720] sm:%s316]
                %440 = vst [vmem:[%s324 + $0x1c8] sm:%s316] %v439
                %v441 = vld [vmem:[%s323 + $0x740] sm:%s316]
                %442 = vst [vmem:[%s324 + $0x1d0] sm:%s316] %v441
                %v443 = vld [vmem:[%s323 + $0x760] sm:%s316]
                %444 = vst [vmem:[%s324 + $0x1d8] sm:%s316] %v443
                %v445 = vld [vmem:[%s323 + $0x780] sm:%s316]
                %446 = vst [vmem:[%s324 + $0x1e0] sm:%s316] %v445
                %v447 = vld [vmem:[%s323 + $0x7a0] sm:%s316]
                %448 = vst [vmem:[%s324 + $0x1e8] sm:%s316] %v447
                %v449 = vld [vmem:[%s323 + $0x7c0] sm:%s316]
                %450 = vst [vmem:[%s324 + $0x1f0] sm:%s316] %v449
                %v451 = vld [vmem:[%s323 + $0x7e0] sm:%s316]
                %452 = vst [vmem:[%s324 + $0x1f8] sm:%s316] %v451
                %v453 = vld [vmem:[%s323 + $0x800] sm:%s316]
                %454 = vst [vmem:[%s324 + $0x200] sm:%s316] %v453
                %v455 = vld [vmem:[%s323 + $0x820] sm:%s316]
                %456 = vst [vmem:[%s324 + $0x208] sm:%s316] %v455
                %v457 = vld [vmem:[%s323 + $0x840] sm:%s316]
                %458 = vst [vmem:[%s324 + $0x210] sm:%s316] %v457
                %v459 = vld [vmem:[%s323 + $0x860] sm:%s316]
                %460 = vst [vmem:[%s324 + $0x218] sm:%s316] %v459
                %v461 = vld [vmem:[%s323 + $0x880] sm:%s316]
                %462 = vst [vmem:[%s324 + $0x220] sm:%s316] %v461
                %v463 = vld [vmem:[%s323 + $0x8a0] sm:%s316]
                %464 = vst [vmem:[%s324 + $0x228] sm:%s316] %v463
                %v465 = vld [vmem:[%s323 + $0x8c0] sm:%s316]
                %466 = vst [vmem:[%s324 + $0x230] sm:%s316] %v465
                %v467 = vld [vmem:[%s323 + $0x8e0] sm:%s316]
                %468 = vst [vmem:[%s324 + $0x238] sm:%s316] %v467
                %v469 = vld [vmem:[%s323 + $0x900] sm:%s316]
                %470 = vst [vmem:[%s324 + $0x240] sm:%s316] %v469
                %v471 = vld [vmem:[%s323 + $0x920] sm:%s316]
                %472 = vst [vmem:[%s324 + $0x248] sm:%s316] %v471
                %v473 = vld [vmem:[%s323 + $0x940] sm:%s316]
                %474 = vst [vmem:[%s324 + $0x250] sm:%s316] %v473
                %v475 = vld [vmem:[%s323 + $0x960] sm:%s316]
                %476 = vst [vmem:[%s324 + $0x258] sm:%s316] %v475
                %v477 = vld [vmem:[%s323 + $0x980] sm:%s316]
                %478 = vst [vmem:[%s324 + $0x260] sm:%s316] %v477
                %v479 = vld [vmem:[%s323 + $0x9a0] sm:%s316]
                %480 = vst [vmem:[%s324 + $0x268] sm:%s316] %v479
                %v481 = vld [vmem:[%s323 + $0x9c0] sm:%s316]
                %482 = vst [vmem:[%s324 + $0x270] sm:%s316] %v481
                %v483 = vld [vmem:[%s323 + $0x9e0] sm:%s316]
                %484 = vst [vmem:[%s324 + $0x278] sm:%s316] %v483
                %v485 = vld [vmem:[%s323 + $0xa00] sm:%s316]
                %486 = vst [vmem:[%s324 + $0x280] sm:%s316] %v485
                %v487 = vld [vmem:[%s323 + $0xa20] sm:%s316]
                %488 = vst [vmem:[%s324 + $0x288] sm:%s316] %v487
                %v489 = vld [vmem:[%s323 + $0xa40] sm:%s316]
                %490 = vst [vmem:[%s324 + $0x290] sm:%s316] %v489
                %v491 = vld [vmem:[%s323 + $0xa60] sm:%s316]
                %492 = vst [vmem:[%s324 + $0x298] sm:%s316] %v491
                %v493 = vld [vmem:[%s323 + $0xa80] sm:%s316]
                %494 = vst [vmem:[%s324 + $0x2a0] sm:%s316] %v493
                %v495 = vld [vmem:[%s323 + $0xaa0] sm:%s316]
                %496 = vst [vmem:[%s324 + $0x2a8] sm:%s316] %v495
                %v497 = vld [vmem:[%s323 + $0xac0] sm:%s316]
                %498 = vst [vmem:[%s324 + $0x2b0] sm:%s316] %v497
                %v499 = vld [vmem:[%s323 + $0xae0] sm:%s316]
                %500 = vst [vmem:[%s324 + $0x2b8] sm:%s316] %v499
                %v501 = vld [vmem:[%s323 + $0xb00] sm:%s316]
                %502 = vst [vmem:[%s324 + $0x2c0] sm:%s316] %v501
                %v503 = vld [vmem:[%s323 + $0xb20] sm:%s316]
                %504 = vst [vmem:[%s324 + $0x2c8] sm:%s316] %v503
                %v505 = vld [vmem:[%s323 + $0xb40] sm:%s316]
                %506 = vst [vmem:[%s324 + $0x2d0] sm:%s316] %v505
                %v507 = vld [vmem:[%s323 + $0xb60] sm:%s316]
                %508 = vst [vmem:[%s324 + $0x2d8] sm:%s316] %v507
                %v509 = vld [vmem:[%s323 + $0xb80] sm:%s316]
                %510 = vst [vmem:[%s324 + $0x2e0] sm:%s316] %v509
                %v511 = vld [vmem:[%s323 + $0xba0] sm:%s316]
                %512 = vst [vmem:[%s324 + $0x2e8] sm:%s316] %v511
                %v513 = vld [vmem:[%s323 + $0xbc0] sm:%s316]
                %514 = vst [vmem:[%s324 + $0x2f0] sm:%s316] %v513
                %v515 = vld [vmem:[%s323 + $0xbe0] sm:%s316]
                %516 = vst [vmem:[%s324 + $0x2f8] sm:%s316] %v515
                %v517 = vld [vmem:[%s323 + $0xc00] sm:%s316]
                %518 = vst [vmem:[%s324 + $0x300] sm:%s316] %v517
                %v519 = vld [vmem:[%s323 + $0xc20] sm:%s316]
                %520 = vst [vmem:[%s324 + $0x308] sm:%s316] %v519
                %v521 = vld [vmem:[%s323 + $0xc40] sm:%s316]
                %522 = vst [vmem:[%s324 + $0x310] sm:%s316] %v521
                %v523 = vld [vmem:[%s323 + $0xc60] sm:%s316]
                %524 = vst [vmem:[%s324 + $0x318] sm:%s316] %v523
                %v525 = vld [vmem:[%s323 + $0xc80] sm:%s316]
                %526 = vst [vmem:[%s324 + $0x320] sm:%s316] %v525
                %v527 = vld [vmem:[%s323 + $0xca0] sm:%s316]
                %528 = vst [vmem:[%s324 + $0x328] sm:%s316] %v527
                %v529 = vld [vmem:[%s323 + $0xcc0] sm:%s316]
                %530 = vst [vmem:[%s324 + $0x330] sm:%s316] %v529
                %v531 = vld [vmem:[%s323 + $0xce0] sm:%s316]
                %532 = vst [vmem:[%s324 + $0x338] sm:%s316] %v531
                %v533 = vld [vmem:[%s323 + $0xd00] sm:%s316]
                %534 = vst [vmem:[%s324 + $0x340] sm:%s316] %v533
                %v535 = vld [vmem:[%s323 + $0xd20] sm:%s316]
                %536 = vst [vmem:[%s324 + $0x348] sm:%s316] %v535
                %v537 = vld [vmem:[%s323 + $0xd40] sm:%s316]
                %538 = vst [vmem:[%s324 + $0x350] sm:%s316] %v537
                %v539 = vld [vmem:[%s323 + $0xd60] sm:%s316]
                %540 = vst [vmem:[%s324 + $0x358] sm:%s316] %v539
                %v541 = vld [vmem:[%s323 + $0xd80] sm:%s316]
                %542 = vst [vmem:[%s324 + $0x360] sm:%s316] %v541
                %v543 = vld [vmem:[%s323 + $0xda0] sm:%s316]
                %544 = vst [vmem:[%s324 + $0x368] sm:%s316] %v543
                %v545 = vld [vmem:[%s323 + $0xdc0] sm:%s316]
                %546 = vst [vmem:[%s324 + $0x370] sm:%s316] %v545
                %v547 = vld [vmem:[%s323 + $0xde0] sm:%s316]
                %548 = vst [vmem:[%s324 + $0x378] sm:%s316] %v547
                %v549 = vld [vmem:[%s323 + $0xe00] sm:%s316]
                %550 = vst [vmem:[%s324 + $0x380] sm:%s316] %v549
                %v551 = vld [vmem:[%s323 + $0xe20] sm:%s316]
                %552 = vst [vmem:[%s324 + $0x388] sm:%s316] %v551
                %v553 = vld [vmem:[%s323 + $0xe40] sm:%s316]
                %554 = vst [vmem:[%s324 + $0x390] sm:%s316] %v553
                %v555 = vld [vmem:[%s323 + $0xe60] sm:%s316]
                %556 = vst [vmem:[%s324 + $0x398] sm:%s316] %v555
                %v557 = vld [vmem:[%s323 + $0xe80] sm:%s316]
                %558 = vst [vmem:[%s324 + $0x3a0] sm:%s316] %v557
                %v559 = vld [vmem:[%s323 + $0xea0] sm:%s316]
                %560 = vst [vmem:[%s324 + $0x3a8] sm:%s316] %v559
                %v561 = vld [vmem:[%s323 + $0xec0] sm:%s316]
                %562 = vst [vmem:[%s324 + $0x3b0] sm:%s316] %v561
                %v563 = vld [vmem:[%s323 + $0xee0] sm:%s316]
                %564 = vst [vmem:[%s324 + $0x3b8] sm:%s316] %v563
                %v565 = vld [vmem:[%s323 + $0xf00] sm:%s316]
                %566 = vst [vmem:[%s324 + $0x3c0] sm:%s316] %v565
                %v567 = vld [vmem:[%s323 + $0xf20] sm:%s316]
                %568 = vst [vmem:[%s324 + $0x3c8] sm:%s316] %v567
                %v569 = vld [vmem:[%s323 + $0xf40] sm:%s316]
                %570 = vst [vmem:[%s324 + $0x3d0] sm:%s316] %v569
                %v571 = vld [vmem:[%s323 + $0xf60] sm:%s316]
                %572 = vst [vmem:[%s324 + $0x3d8] sm:%s316] %v571
                %v573 = vld [vmem:[%s323 + $0xf80] sm:%s316]
                %574 = vst [vmem:[%s324 + $0x3e0] sm:%s316] %v573
                %v575 = vld [vmem:[%s323 + $0xfa0] sm:%s316]
                %576 = vst [vmem:[%s324 + $0x3e8] sm:%s316] %v575
                %v577 = vld [vmem:[%s323 + $0xfc0] sm:%s316]
                %578 = vst [vmem:[%s324 + $0x3f0] sm:%s316] %v577
                %v579 = vld [vmem:[%s323 + $0xfe0] sm:%s316]
                %580 = vst [vmem:[%s324 + $0x3f8] sm:%s316] %v579
                %v581 = vld [vmem:[%s323 + $0x1000] sm:%s316]
                %582 = vst [vmem:[%s324 + $0x400] sm:%s316] %v581
                %v583 = vld [vmem:[%s323 + $0x1020] sm:%s316]
                %584 = vst [vmem:[%s324 + $0x408] sm:%s316] %v583
                %v585 = vld [vmem:[%s323 + $0x1040] sm:%s316]
                %586 = vst [vmem:[%s324 + $0x410] sm:%s316] %v585
                %v587 = vld [vmem:[%s323 + $0x1060] sm:%s316]
                %588 = vst [vmem:[%s324 + $0x418] sm:%s316] %v587
                %v589 = vld [vmem:[%s323 + $0x1080] sm:%s316]
                %590 = vst [vmem:[%s324 + $0x420] sm:%s316] %v589
                %v591 = vld [vmem:[%s323 + $0x10a0] sm:%s316]
                %592 = vst [vmem:[%s324 + $0x428] sm:%s316] %v591
                %v593 = vld [vmem:[%s323 + $0x10c0] sm:%s316]
                %594 = vst [vmem:[%s324 + $0x430] sm:%s316] %v593
                %v595 = vld [vmem:[%s323 + $0x10e0] sm:%s316]
                %596 = vst [vmem:[%s324 + $0x438] sm:%s316] %v595
                %v597 = vld [vmem:[%s323 + $0x1100] sm:%s316]
                %598 = vst [vmem:[%s324 + $0x440] sm:%s316] %v597
                %v599 = vld [vmem:[%s323 + $0x1120] sm:%s316]
                %600 = vst [vmem:[%s324 + $0x448] sm:%s316] %v599
                %v601 = vld [vmem:[%s323 + $0x1140] sm:%s316]
                %602 = vst [vmem:[%s324 + $0x450] sm:%s316] %v601
                %v603 = vld [vmem:[%s323 + $0x1160] sm:%s316]
                %604 = vst [vmem:[%s324 + $0x458] sm:%s316] %v603
                %v605 = vld [vmem:[%s323 + $0x1180] sm:%s316]
                %606 = vst [vmem:[%s324 + $0x460] sm:%s316] %v605
                %v607 = vld [vmem:[%s323 + $0x11a0] sm:%s316]
                %608 = vst [vmem:[%s324 + $0x468] sm:%s316] %v607
                %v609 = vld [vmem:[%s323 + $0x11c0] sm:%s316]
                %610 = vst [vmem:[%s324 + $0x470] sm:%s316] %v609
                %v611 = vld [vmem:[%s323 + $0x11e0] sm:%s316]
                %612 = vst [vmem:[%s324 + $0x478] sm:%s316] %v611
              $region57: #{policy_forward.9} parent=51 // loop_footer
                %s322 = sadd.s32 1, %s318
              $region58: #{policy_forward.9} parent=51 // loop_footer_branch
                %317 = sbr.rel target = $region54
              $region59: #{policy_forward.9} parent=51 // loop_exit
                _
            $region52: #{policy_forward.9} parent=43 // pred_fallthru
              _
          $region44: #{policy_forward.9} parent=39 // pred_fallthru
            _
          %913 = vnop
        $region40: #{policy_forward.9} parent=35 // pred_fallthru
          _
        // Predicated region
        $region75: #{policy_forward.9} parent=35 // pred_check
          %p914 = pneg %p128
        $region76: #{policy_forward.9} parent=35 // pred_check_branch
          %916 = sbr.rel (%p914) target = $region78
        $region77: #{policy_forward.9} parent=35 // pred_region
          %s917 = sand.u32 %s118, 1
          %s918 = sand.u32 %s118, 1
          %s919 = smul.addr %s918, 256
          %s920 = scalar_lea.vmem [#allocation4], %s919
          %s921 = smul.u32 2, %s19
          %s922 = smul.addr %s921, 4
          %s923 = scalar_lea.vmem %s4, %s922
          // Predicated region
          $region79: #{policy_forward.9} parent=77 // pred_check
            _
          $region80: #{policy_forward.9} parent=77 // pred_check_branch
            %925 = sbr.rel (0) target = $region82
          $region81: #{policy_forward.9} parent=77 // pred_region
            // Predicated region
            $region83: #{policy_forward.9} parent=81 // pred_check
              _
            $region84: #{policy_forward.9} parent=81 // pred_check_branch
              %927 = sbr.rel (0) target = $region86
            $region85: #{policy_forward.9} parent=81 // pred_region
              // Predicated region
              $region98: #{policy_forward.9} parent=85 // pred_check
                _
              $region99: #{policy_forward.9} parent=85 // pred_check_branch
                %1005 = sbr.rel (0) target = $region101
              $region100: #{policy_forward.9} parent=85 // pred_region
                loop: start=0, step=1, limit=1
                $region102: #{policy_forward.9} parent=100 // loop_pre_header
                  _
                $region103: #{policy_forward.9} parent=100 // loop_header
                  %s1007 = sphi 0, %s1011
                  %p1008 = scmp.ge.s32.totalorder %s1007, 1
                  %s1012 = sphi %s923, %s923
                  %s1013 = sphi %s920, %s920
                $region104: #{policy_forward.9} parent=100 // loop_header_branch
                  %1010 = sbr.rel (%p1008) target = $region108
                $region105: #{policy_forward.9} parent=100 // loop_body
                  %v1014 = vld [vmem:[%s1012] sm:$0xff]
                  %1015 = vst [vmem:[%s1013] sm:$0xff] %v1014
                  %v1016 = vld [vmem:[%s1012 + $0x20] sm:$0xff]
                  %1017 = vst [vmem:[%s1013 + $0x8] sm:$0xff] %v1016
                  %v1018 = vld [vmem:[%s1012 + $0x40] sm:$0xff]
                  %1019 = vst [vmem:[%s1013 + $0x10] sm:$0xff] %v1018
                  %v1020 = vld [vmem:[%s1012 + $0x60] sm:$0xff]
                  %1021 = vst [vmem:[%s1013 + $0x18] sm:$0xff] %v1020
                  %v1022 = vld [vmem:[%s1012 + $0x80] sm:$0xff]
                  %1023 = vst [vmem:[%s1013 + $0x20] sm:$0xff] %v1022
                  %v1024 = vld [vmem:[%s1012 + $0xa0] sm:$0xff]
                  %1025 = vst [vmem:[%s1013 + $0x28] sm:$0xff] %v1024
                  %v1026 = vld [vmem:[%s1012 + $0xc0] sm:$0xff]
                  %1027 = vst [vmem:[%s1013 + $0x30] sm:$0xff] %v1026
                  %v1028 = vld [vmem:[%s1012 + $0xe0] sm:$0xff]
                  %1029 = vst [vmem:[%s1013 + $0x38] sm:$0xff] %v1028
                  %v1030 = vld [vmem:[%s1012 + $0x100] sm:$0xff]
                  %1031 = vst [vmem:[%s1013 + $0x40] sm:$0xff] %v1030
                  %v1032 = vld [vmem:[%s1012 + $0x120] sm:$0xff]
                  %1033 = vst [vmem:[%s1013 + $0x48] sm:$0xff] %v1032
                  %v1034 = vld [vmem:[%s1012 + $0x140] sm:$0xff]
                  %1035 = vst [vmem:[%s1013 + $0x50] sm:$0xff] %v1034
                  %v1036 = vld [vmem:[%s1012 + $0x160] sm:$0xff]
                  %1037 = vst [vmem:[%s1013 + $0x58] sm:$0xff] %v1036
                  %v1038 = vld [vmem:[%s1012 + $0x180] sm:$0xff]
                  %1039 = vst [vmem:[%s1013 + $0x60] sm:$0xff] %v1038
                  %v1040 = vld [vmem:[%s1012 + $0x1a0] sm:$0xff]
                  %1041 = vst [vmem:[%s1013 + $0x68] sm:$0xff] %v1040
                  %v1042 = vld [vmem:[%s1012 + $0x1c0] sm:$0xff]
                  %1043 = vst [vmem:[%s1013 + $0x70] sm:$0xff] %v1042
                  %v1044 = vld [vmem:[%s1012 + $0x1e0] sm:$0xff]
                  %1045 = vst [vmem:[%s1013 + $0x78] sm:$0xff] %v1044
                  %v1046 = vld [vmem:[%s1012 + $0x200] sm:$0xff]
                  %1047 = vst [vmem:[%s1013 + $0x80] sm:$0xff] %v1046
                  %v1048 = vld [vmem:[%s1012 + $0x220] sm:$0xff]
                  %1049 = vst [vmem:[%s1013 + $0x88] sm:$0xff] %v1048
                  %v1050 = vld [vmem:[%s1012 + $0x240] sm:$0xff]
                  %1051 = vst [vmem:[%s1013 + $0x90] sm:$0xff] %v1050
                  %v1052 = vld [vmem:[%s1012 + $0x260] sm:$0xff]
                  %1053 = vst [vmem:[%s1013 + $0x98] sm:$0xff] %v1052
                  %v1054 = vld [vmem:[%s1012 + $0x280] sm:$0xff]
                  %1055 = vst [vmem:[%s1013 + $0xa0] sm:$0xff] %v1054
                  %v1056 = vld [vmem:[%s1012 + $0x2a0] sm:$0xff]
                  %1057 = vst [vmem:[%s1013 + $0xa8] sm:$0xff] %v1056
                  %v1058 = vld [vmem:[%s1012 + $0x2c0] sm:$0xff]
                  %1059 = vst [vmem:[%s1013 + $0xb0] sm:$0xff] %v1058
                  %v1060 = vld [vmem:[%s1012 + $0x2e0] sm:$0xff]
                  %1061 = vst [vmem:[%s1013 + $0xb8] sm:$0xff] %v1060
                  %v1062 = vld [vmem:[%s1012 + $0x300] sm:$0xff]
                  %1063 = vst [vmem:[%s1013 + $0xc0] sm:$0xff] %v1062
                  %v1064 = vld [vmem:[%s1012 + $0x320] sm:$0xff]
                  %1065 = vst [vmem:[%s1013 + $0xc8] sm:$0xff] %v1064
                  %v1066 = vld [vmem:[%s1012 + $0x340] sm:$0xff]
                  %1067 = vst [vmem:[%s1013 + $0xd0] sm:$0xff] %v1066
                  %v1068 = vld [vmem:[%s1012 + $0x360] sm:$0xff]
                  %1069 = vst [vmem:[%s1013 + $0xd8] sm:$0xff] %v1068
                  %v1070 = vld [vmem:[%s1012 + $0x380] sm:$0xff]
                  %1071 = vst [vmem:[%s1013 + $0xe0] sm:$0xff] %v1070
                  %v1072 = vld [vmem:[%s1012 + $0x3a0] sm:$0xff]
                  %1073 = vst [vmem:[%s1013 + $0xe8] sm:$0xff] %v1072
                  %v1074 = vld [vmem:[%s1012 + $0x3c0] sm:$0xff]
                  %1075 = vst [vmem:[%s1013 + $0xf0] sm:$0xff] %v1074
                  %v1076 = vld [vmem:[%s1012 + $0x3e0] sm:$0xff]
                  %1077 = vst [vmem:[%s1013 + $0xf8] sm:$0xff] %v1076
                $region106: #{policy_forward.9} parent=100 // loop_footer
                  %s1011 = sadd.s32 1, %s1007
                $region107: #{policy_forward.9} parent=100 // loop_footer_branch
                  %1006 = sbr.rel target = $region103
                $region108: #{policy_forward.9} parent=100 // loop_exit
                  _
              $region101: #{policy_forward.9} parent=85 // pred_fallthru
                _
              // Predicated region
              $region109: #{policy_forward.9} parent=85 // pred_check
                _
              $region110: #{policy_forward.9} parent=85 // pred_check_branch
                %1079 = sbr.rel target = $region112
              $region111: #{policy_forward.9} parent=85 // pred_region
                _
              $region112: #{policy_forward.9} parent=85 // pred_fallthru
                _
            $region86: #{policy_forward.9} parent=81 // pred_fallthru
              _
            // Predicated region
            $region87: #{policy_forward.9} parent=81 // pred_check
              _
            $region88: #{policy_forward.9} parent=81 // pred_check_branch
              %929 = sbr.rel target = $region90
            $region89: #{policy_forward.9} parent=81 // pred_region
              %s931 = ssub.s32 256, 1
              loop: start=0, step=1, limit=1
              $region91: #{policy_forward.9} parent=89 // loop_pre_header
                _
              $region92: #{policy_forward.9} parent=89 // loop_header
                %s933 = sphi 0, %s937
                %p934 = scmp.ge.s32.totalorder %s933, 1
                %s938 = sphi %s923, %s923
                %s939 = sphi %s920, %s920
              $region93: #{policy_forward.9} parent=89 // loop_header_branch
                %936 = sbr.rel (%p934) target = $region97
              $region94: #{policy_forward.9} parent=89 // loop_body
                %v940 = vld [vmem:[%s938] sm:%s931]
                %941 = vst [vmem:[%s939] sm:%s931] %v940
                %v942 = vld [vmem:[%s938 + $0x20] sm:%s931]
                %943 = vst [vmem:[%s939 + $0x8] sm:%s931] %v942
                %v944 = vld [vmem:[%s938 + $0x40] sm:%s931]
                %945 = vst [vmem:[%s939 + $0x10] sm:%s931] %v944
                %v946 = vld [vmem:[%s938 + $0x60] sm:%s931]
                %947 = vst [vmem:[%s939 + $0x18] sm:%s931] %v946
                %v948 = vld [vmem:[%s938 + $0x80] sm:%s931]
                %949 = vst [vmem:[%s939 + $0x20] sm:%s931] %v948
                %v950 = vld [vmem:[%s938 + $0xa0] sm:%s931]
                %951 = vst [vmem:[%s939 + $0x28] sm:%s931] %v950
                %v952 = vld [vmem:[%s938 + $0xc0] sm:%s931]
                %953 = vst [vmem:[%s939 + $0x30] sm:%s931] %v952
                %v954 = vld [vmem:[%s938 + $0xe0] sm:%s931]
                %955 = vst [vmem:[%s939 + $0x38] sm:%s931] %v954
                %v956 = vld [vmem:[%s938 + $0x100] sm:%s931]
                %957 = vst [vmem:[%s939 + $0x40] sm:%s931] %v956
                %v958 = vld [vmem:[%s938 + $0x120] sm:%s931]
                %959 = vst [vmem:[%s939 + $0x48] sm:%s931] %v958
                %v960 = vld [vmem:[%s938 + $0x140] sm:%s931]
                %961 = vst [vmem:[%s939 + $0x50] sm:%s931] %v960
                %v962 = vld [vmem:[%s938 + $0x160] sm:%s931]
                %963 = vst [vmem:[%s939 + $0x58] sm:%s931] %v962
                %v964 = vld [vmem:[%s938 + $0x180] sm:%s931]
                %965 = vst [vmem:[%s939 + $0x60] sm:%s931] %v964
                %v966 = vld [vmem:[%s938 + $0x1a0] sm:%s931]
                %967 = vst [vmem:[%s939 + $0x68] sm:%s931] %v966
                %v968 = vld [vmem:[%s938 + $0x1c0] sm:%s931]
                %969 = vst [vmem:[%s939 + $0x70] sm:%s931] %v968
                %v970 = vld [vmem:[%s938 + $0x1e0] sm:%s931]
                %971 = vst [vmem:[%s939 + $0x78] sm:%s931] %v970
                %v972 = vld [vmem:[%s938 + $0x200] sm:%s931]
                %973 = vst [vmem:[%s939 + $0x80] sm:%s931] %v972
                %v974 = vld [vmem:[%s938 + $0x220] sm:%s931]
                %975 = vst [vmem:[%s939 + $0x88] sm:%s931] %v974
                %v976 = vld [vmem:[%s938 + $0x240] sm:%s931]
                %977 = vst [vmem:[%s939 + $0x90] sm:%s931] %v976
                %v978 = vld [vmem:[%s938 + $0x260] sm:%s931]
                %979 = vst [vmem:[%s939 + $0x98] sm:%s931] %v978
                %v980 = vld [vmem:[%s938 + $0x280] sm:%s931]
                %981 = vst [vmem:[%s939 + $0xa0] sm:%s931] %v980
                %v982 = vld [vmem:[%s938 + $0x2a0] sm:%s931]
                %983 = vst [vmem:[%s939 + $0xa8] sm:%s931] %v982
                %v984 = vld [vmem:[%s938 + $0x2c0] sm:%s931]
                %985 = vst [vmem:[%s939 + $0xb0] sm:%s931] %v984
                %v986 = vld [vmem:[%s938 + $0x2e0] sm:%s931]
                %987 = vst [vmem:[%s939 + $0xb8] sm:%s931] %v986
                %v988 = vld [vmem:[%s938 + $0x300] sm:%s931]
                %989 = vst [vmem:[%s939 + $0xc0] sm:%s931] %v988
                %v990 = vld [vmem:[%s938 + $0x320] sm:%s931]
                %991 = vst [vmem:[%s939 + $0xc8] sm:%s931] %v990
                %v992 = vld [vmem:[%s938 + $0x340] sm:%s931]
                %993 = vst [vmem:[%s939 + $0xd0] sm:%s931] %v992
                %v994 = vld [vmem:[%s938 + $0x360] sm:%s931]
                %995 = vst [vmem:[%s939 + $0xd8] sm:%s931] %v994
                %v996 = vld [vmem:[%s938 + $0x380] sm:%s931]
                %997 = vst [vmem:[%s939 + $0xe0] sm:%s931] %v996
                %v998 = vld [vmem:[%s938 + $0x3a0] sm:%s931]
                %999 = vst [vmem:[%s939 + $0xe8] sm:%s931] %v998
                %v1000 = vld [vmem:[%s938 + $0x3c0] sm:%s931]
                %1001 = vst [vmem:[%s939 + $0xf0] sm:%s931] %v1000
                %v1002 = vld [vmem:[%s938 + $0x3e0] sm:%s931]
                %1003 = vst [vmem:[%s939 + $0xf8] sm:%s931] %v1002
              $region95: #{policy_forward.9} parent=89 // loop_footer
                %s937 = sadd.s32 1, %s933
              $region96: #{policy_forward.9} parent=89 // loop_footer_branch
                %932 = sbr.rel target = $region92
              $region97: #{policy_forward.9} parent=89 // loop_exit
                _
            $region90: #{policy_forward.9} parent=81 // pred_fallthru
              _
          $region82: #{policy_forward.9} parent=77 // pred_fallthru
            _
          %1080 = vnop
        $region78: #{policy_forward.9} parent=35 // pred_fallthru
          _
        // Predicated region
        $region113: #{policy_forward.9} parent=35 // pred_check
          %p1081 = pneg %p154
        $region114: #{policy_forward.9} parent=35 // pred_check_branch
          %1083 = sbr.rel (%p1081) target = $region116
        $region115: #{policy_forward.9} parent=35 // pred_region
          %s1084 = smul.u32 2, %s19
          %p1085 = scmp.lt.s32.totalorder %s1084, 7
          %s1086 = scalar_select %p1085, %s1084, 7
          %s1087 = scalar_lea.vmem %s5, %s1086
          %s1088 = smul.u32 2, %s19
        $region116: #{policy_forward.9} parent=35 // pred_fallthru
          _
      $region36: #{policy_forward.9} parent=5 // pred_fallthru
        _
      %p1089 = scmp.le.s32.totalorder 1, %s19
      %p1090 = scmp.lt.s32.totalorder %s19, 5
      %p1091 = pnand %p1089, %p1090
      %p1092 = pneg %p1091
      // Predicated region
      $region117: #{policy_forward.9} parent=5 // pred_check
        _
      $region118: #{policy_forward.9} parent=5 // pred_check_branch
        %1094 = sbr.rel (%p1091) target = $region120
      $region119: #{policy_forward.9} parent=5 // pred_region
        %s1095 = ssub.s32 %s19, 1
        %s1096 = sand.u32 %s95, 1
        %s1097 = sand.u32 %s95, 1
        %s1098 = smul.addr %s1097, 1152
        %s1099 = scalar_lea.vmem [#allocation3], %s1098
        // Predicated region
        $region121: #{policy_forward.9} parent=119 // pred_check
          %p1100 = pneg %p108
        $region122: #{policy_forward.9} parent=119 // pred_check_branch
          %1102 = sbr.rel (%p1100) target = $region124
        $region123: #{policy_forward.9} parent=119 // pred_region
          _
        $region124: #{policy_forward.9} parent=119 // pred_fallthru
          _
        %s1103 = sand.u32 %s121, 1
        %s1104 = sand.u32 %s121, 1
        %s1105 = smul.addr %s1104, 256
        %s1106 = scalar_lea.vmem [#allocation4], %s1105
        // Predicated region
        $region125: #{policy_forward.9} parent=119 // pred_check
          %p1107 = pneg %p134
        $region126: #{policy_forward.9} parent=119 // pred_check_branch
          %1109 = sbr.rel (%p1107) target = $region128
        $region127: #{policy_forward.9} parent=119 // pred_region
          _
        $region128: #{policy_forward.9} parent=119 // pred_fallthru
          _
        %p1110 = pneg %p40
        %p1111 = pneg %p37
        %p1112 = pneg %p61
        %p1113 = pneg %p58
        %p1114 = pneg %p82
        %p1115 = pneg %p79
        %s1116 = sand.u32 %s95, 1
        %s1117 = sand.u32 %s95, 1
        %s1118 = smul.addr %s1117, 1152
        %s1119 = scalar_lea.vmem [#allocation3], %s1118
        %p1120 = pneg %p108
        %p1121 = pneg %p105
        %s1122 = sand.u32 %s121, 1
        %s1123 = sand.u32 %s121, 1
        %s1124 = smul.addr %s1123, 256
        %s1125 = scalar_lea.vmem [#allocation4], %s1124
        %p1126 = pneg %p134
        %p1127 = pneg %p131
        %s1128 = smul.u32 2, %s24
        %p1129 = scmp.lt.s32.totalorder %s1128, 7
        %s1130 = scalar_select %p1129, %s1128, 7
        %s1131 = scalar_lea.vmem %s5, %s1130
        %p1132 = pneg %p160
        %p1133 = pneg %p157
        %p1134 = pneg %p181
        %p1135 = pneg %p178
        %p1136 = pneg %p202
        %p1137 = pneg %p199
        %p1138 = pneg %p223
        %p1139 = pneg %p220
        %p1140 = pneg %p244
        %p1141 = pneg %p241
        %p1142 = pneg %p265
        %p1143 = pneg %p262
        %s1144 = smul.u32 2, %s24
        %s1145 = smul.u32 2, %s24
        %s1146 = smul.u32 2, %s24
        %p1147 = scmp.lt.s32.totalorder %s1146, 7
        %s1148 = scalar_select %p1147, %s1146, 7
        %s1149 = scalar_lea.vmem %s5, %s1148
        %s1150 = smul.u32 2, %s24
        %v1152 = vld [vmem:[%s0] sm:$0xff]
        %v1153 = vld [vmem:[%s0 + $0x8] sm:$0x1]
        %v1154 = vld [vmem:[%s1] sm:$0xf]
        %v1157 = vunpack.c.l.s4 1983009808
        %v1158 = vunpack.c.0.s8 %v1157
        %v1159 = vlaneseq
        %v1160 = vshrl.u32 %v1159, 7
        %v1161 = vsub.s32 %v1158, %v1160
        %v1162 = vrot.slane %v1154, %v1161
        %v1163 = vcombine.high %v1162, %v1162
        %v1166 = vpack.c.bf16 %v1162, %v1162
        %v1167 = vpack.c.bf16 %v1163, %v1163
        %v1168 = vld [vmem:[%s1099] sm:$0xff]
        %v1169 = vld [vmem:[%s1099 + $0x8] sm:$0xff]
        %v1170 = vld [vmem:[%s1099 + $0x10] sm:$0xff]
        %v1171 = vld [vmem:[%s1099 + $0x18] sm:$0xff]
        %v1172 = vld [vmem:[%s1099 + $0x20] sm:$0xff]
        %v1173 = vld [vmem:[%s1099 + $0x28] sm:$0xff]
        %v1174 = vld [vmem:[%s1099 + $0x30] sm:$0xff]
        %v1175 = vld [vmem:[%s1099 + $0x38] sm:$0xff]
        %v1176 = vld [vmem:[%s1099 + $0x40] sm:$0xff]
        %v1177 = vld [vmem:[%s1099 + $0x48] sm:$0xff]
        %v1178 = vld [vmem:[%s1099 + $0x50] sm:$0xff]
        %v1179 = vld [vmem:[%s1099 + $0x58] sm:$0xff]
        %v1180 = vld [vmem:[%s1099 + $0x60] sm:$0xff]
        %v1181 = vld [vmem:[%s1099 + $0x68] sm:$0xff]
        %v1182 = vld [vmem:[%s1099 + $0x70] sm:$0xff]
        %v1183 = vld [vmem:[%s1099 + $0x78] sm:$0xff]
        %v1184 = vld [vmem:[%s1099 + $0x80] sm:$0xff]
        %v1185 = vld [vmem:[%s1099 + $0x88] sm:$0xff]
        %v1186 = vld [vmem:[%s1099 + $0x90] sm:$0xff]
        %v1187 = vld [vmem:[%s1099 + $0x98] sm:$0xff]
        %v1188 = vld [vmem:[%s1099 + $0xa0] sm:$0xff]
        %v1189 = vld [vmem:[%s1099 + $0xa8] sm:$0xff]
        %v1190 = vld [vmem:[%s1099 + $0xb0] sm:$0xff]
        %v1191 = vld [vmem:[%s1099 + $0xb8] sm:$0xff]
        %v1192 = vld [vmem:[%s1099 + $0xc0] sm:$0xff]
        %v1193 = vld [vmem:[%s1099 + $0xc8] sm:$0xff]
        %v1194 = vld [vmem:[%s1099 + $0xd0] sm:$0xff]
        %v1195 = vld [vmem:[%s1099 + $0xd8] sm:$0xff]
        %v1196 = vld [vmem:[%s1099 + $0xe0] sm:$0xff]
        %v1197 = vld [vmem:[%s1099 + $0xe8] sm:$0xff]
        %v1198 = vld [vmem:[%s1099 + $0xf0] sm:$0xff]
        %v1199 = vld [vmem:[%s1099 + $0xf8] sm:$0xff]
        %v1200 = vld [vmem:[%s1099 + $0x100] sm:$0xff]
        %v1201 = vld [vmem:[%s1099 + $0x108] sm:$0xff]
        %v1202 = vld [vmem:[%s1099 + $0x110] sm:$0xff]
        %v1203 = vld [vmem:[%s1099 + $0x118] sm:$0xff]
        %v1204 = vld [vmem:[%s1099 + $0x120] sm:$0xff]
        %v1205 = vld [vmem:[%s1099 + $0x128] sm:$0xff]
        %v1206 = vld [vmem:[%s1099 + $0x130] sm:$0xff]
        %v1207 = vld [vmem:[%s1099 + $0x138] sm:$0xff]
        %v1208 = vld [vmem:[%s1099 + $0x140] sm:$0xff]
        %v1209 = vld [vmem:[%s1099 + $0x148] sm:$0xff]
        %v1210 = vld [vmem:[%s1099 + $0x150] sm:$0xff]
        %v1211 = vld [vmem:[%s1099 + $0x158] sm:$0xff]
        %v1212 = vld [vmem:[%s1099 + $0x160] sm:$0xff]
        %v1213 = vld [vmem:[%s1099 + $0x168] sm:$0xff]
        %v1214 = vld [vmem:[%s1099 + $0x170] sm:$0xff]
        %v1215 = vld [vmem:[%s1099 + $0x178] sm:$0xff]
        %v1216 = vld [vmem:[%s1099 + $0x180] sm:$0xff]
        %v1217 = vld [vmem:[%s1099 + $0x188] sm:$0xff]
        %v1218 = vld [vmem:[%s1099 + $0x190] sm:$0xff]
        %v1219 = vld [vmem:[%s1099 + $0x198] sm:$0xff]
        %v1220 = vld [vmem:[%s1099 + $0x1a0] sm:$0xff]
        %v1221 = vld [vmem:[%s1099 + $0x1a8] sm:$0xff]
        %v1222 = vld [vmem:[%s1099 + $0x1b0] sm:$0xff]
        %v1223 = vld [vmem:[%s1099 + $0x1b8] sm:$0xff]
        %v1224 = vld [vmem:[%s1099 + $0x1c0] sm:$0xff]
        %v1225 = vld [vmem:[%s1099 + $0x1c8] sm:$0xff]
        %v1226 = vld [vmem:[%s1099 + $0x1d0] sm:$0xff]
        %v1227 = vld [vmem:[%s1099 + $0x1d8] sm:$0xff]
        %v1228 = vld [vmem:[%s1099 + $0x1e0] sm:$0xff]
        %v1229 = vld [vmem:[%s1099 + $0x1e8] sm:$0xff]
        %v1230 = vld [vmem:[%s1099 + $0x1f0] sm:$0xff]
        %v1231 = vld [vmem:[%s1099 + $0x1f8] sm:$0xff]
        %v1232 = vld [vmem:[%s1099 + $0x200] sm:$0xff]
        %v1233 = vld [vmem:[%s1099 + $0x208] sm:$0xff]
        %v1234 = vld [vmem:[%s1099 + $0x210] sm:$0xff]
        %v1235 = vld [vmem:[%s1099 + $0x218] sm:$0xff]
        %v1236 = vld [vmem:[%s1099 + $0x220] sm:$0xff]
        %v1237 = vld [vmem:[%s1099 + $0x228] sm:$0xff]
        %v1238 = vld [vmem:[%s1099 + $0x230] sm:$0xff]
        %v1239 = vld [vmem:[%s1099 + $0x238] sm:$0xff]
        %v1240 = vld [vmem:[%s1099 + $0x240] sm:$0xff]
        %v1241 = vld [vmem:[%s1099 + $0x248] sm:$0xff]
        %v1242 = vld [vmem:[%s1099 + $0x250] sm:$0xff]
        %v1243 = vld [vmem:[%s1099 + $0x258] sm:$0xff]
        %v1244 = vld [vmem:[%s1099 + $0x260] sm:$0xff]
        %v1245 = vld [vmem:[%s1099 + $0x268] sm:$0xff]
        %v1246 = vld [vmem:[%s1099 + $0x270] sm:$0xff]
        %v1247 = vld [vmem:[%s1099 + $0x278] sm:$0xff]
        %v1248 = vld [vmem:[%s1099 + $0x280] sm:$0xff]
        %v1249 = vld [vmem:[%s1099 + $0x288] sm:$0xff]
        %v1250 = vld [vmem:[%s1099 + $0x290] sm:$0xff]
        %v1251 = vld [vmem:[%s1099 + $0x298] sm:$0xff]
        %v1252 = vld [vmem:[%s1099 + $0x2a0] sm:$0xff]
        %v1253 = vld [vmem:[%s1099 + $0x2a8] sm:$0xff]
        %v1254 = vld [vmem:[%s1099 + $0x2b0] sm:$0xff]
        %v1255 = vld [vmem:[%s1099 + $0x2b8] sm:$0xff]
        %v1256 = vld [vmem:[%s1099 + $0x2c0] sm:$0xff]
        %v1257 = vld [vmem:[%s1099 + $0x2c8] sm:$0xff]
        %v1258 = vld [vmem:[%s1099 + $0x2d0] sm:$0xff]
        %v1259 = vld [vmem:[%s1099 + $0x2d8] sm:$0xff]
        %v1260 = vld [vmem:[%s1099 + $0x2e0] sm:$0xff]
        %v1261 = vld [vmem:[%s1099 + $0x2e8] sm:$0xff]
        %v1262 = vld [vmem:[%s1099 + $0x2f0] sm:$0xff]
        %v1263 = vld [vmem:[%s1099 + $0x2f8] sm:$0xff]
        %v1264 = vld [vmem:[%s1099 + $0x300] sm:$0xff]
        %v1265 = vld [vmem:[%s1099 + $0x308] sm:$0xff]
        %v1266 = vld [vmem:[%s1099 + $0x310] sm:$0xff]
        %v1267 = vld [vmem:[%s1099 + $0x318] sm:$0xff]
        %v1268 = vld [vmem:[%s1099 + $0x320] sm:$0xff]
        %v1269 = vld [vmem:[%s1099 + $0x328] sm:$0xff]
        %v1270 = vld [vmem:[%s1099 + $0x330] sm:$0xff]
        %v1271 = vld [vmem:[%s1099 + $0x338] sm:$0xff]
        %v1272 = vld [vmem:[%s1099 + $0x340] sm:$0xff]
        %v1273 = vld [vmem:[%s1099 + $0x348] sm:$0xff]
        %v1274 = vld [vmem:[%s1099 + $0x350] sm:$0xff]
        %v1275 = vld [vmem:[%s1099 + $0x358] sm:$0xff]
        %v1276 = vld [vmem:[%s1099 + $0x360] sm:$0xff]
        %v1277 = vld [vmem:[%s1099 + $0x368] sm:$0xff]
        %v1278 = vld [vmem:[%s1099 + $0x370] sm:$0xff]
        %v1279 = vld [vmem:[%s1099 + $0x378] sm:$0xff]
        %v1280 = vld [vmem:[%s1099 + $0x380] sm:$0xff]
        %v1281 = vld [vmem:[%s1099 + $0x388] sm:$0xff]
        %v1282 = vld [vmem:[%s1099 + $0x390] sm:$0xff]
        %v1283 = vld [vmem:[%s1099 + $0x398] sm:$0xff]
        %v1284 = vld [vmem:[%s1099 + $0x3a0] sm:$0xff]
        %v1285 = vld [vmem:[%s1099 + $0x3a8] sm:$0xff]
        %v1286 = vld [vmem:[%s1099 + $0x3b0] sm:$0xff]
        %v1287 = vld [vmem:[%s1099 + $0x3b8] sm:$0xff]
        %v1288 = vld [vmem:[%s1099 + $0x3c0] sm:$0xff]
        %v1289 = vld [vmem:[%s1099 + $0x3c8] sm:$0xff]
        %v1290 = vld [vmem:[%s1099 + $0x3d0] sm:$0xff]
        %v1291 = vld [vmem:[%s1099 + $0x3d8] sm:$0xff]
        %v1292 = vld [vmem:[%s1099 + $0x3e0] sm:$0xff]
        %v1293 = vld [vmem:[%s1099 + $0x3e8] sm:$0xff]
        %v1294 = vld [vmem:[%s1099 + $0x3f0] sm:$0xff]
        %v1295 = vld [vmem:[%s1099 + $0x3f8] sm:$0xff]
        %v1296 = vld [vmem:[%s1099 + $0x400] sm:$0xff]
        %v1297 = vld [vmem:[%s1099 + $0x408] sm:$0xff]
        %v1298 = vld [vmem:[%s1099 + $0x410] sm:$0xff]
        %v1299 = vld [vmem:[%s1099 + $0x418] sm:$0xff]
        %v1300 = vld [vmem:[%s1099 + $0x420] sm:$0xff]
        %v1301 = vld [vmem:[%s1099 + $0x428] sm:$0xff]
        %v1302 = vld [vmem:[%s1099 + $0x430] sm:$0xff]
        %v1303 = vld [vmem:[%s1099 + $0x438] sm:$0xff]
        %v1304 = vld [vmem:[%s1099 + $0x440] sm:$0xff]
        %v1305 = vld [vmem:[%s1099 + $0x448] sm:$0xff]
        %v1306 = vld [vmem:[%s1099 + $0x450] sm:$0xff]
        %v1307 = vld [vmem:[%s1099 + $0x458] sm:$0xff]
        %v1308 = vld [vmem:[%s1099 + $0x460] sm:$0xff]
        %v1309 = vld [vmem:[%s1099 + $0x468] sm:$0xff]
        %v1310 = vld [vmem:[%s1099 + $0x470] sm:$0xff]
        %v1311 = vld [vmem:[%s1099 + $0x478] sm:$0xff]
        %v1312 = vld [vmem:[%s1106] sm:$0xff]
        %v1313 = vld [vmem:[%s1106 + $0x8] sm:$0xff]
        %v1314 = vld [vmem:[%s1106 + $0x10] sm:$0xff]
        %v1315 = vld [vmem:[%s1106 + $0x18] sm:$0xff]
        %v1316 = vld [vmem:[%s1106 + $0x20] sm:$0xff]
        %v1317 = vld [vmem:[%s1106 + $0x28] sm:$0xff]
        %v1318 = vld [vmem:[%s1106 + $0x30] sm:$0xff]
        %v1319 = vld [vmem:[%s1106 + $0x38] sm:$0xff]
        %v1320 = vld [vmem:[%s1106 + $0x40] sm:$0xff]
        %v1321 = vld [vmem:[%s1106 + $0x48] sm:$0xff]
        %v1322 = vld [vmem:[%s1106 + $0x50] sm:$0xff]
        %v1323 = vld [vmem:[%s1106 + $0x58] sm:$0xff]
        %v1324 = vld [vmem:[%s1106 + $0x60] sm:$0xff]
        %v1325 = vld [vmem:[%s1106 + $0x68] sm:$0xff]
        %v1326 = vld [vmem:[%s1106 + $0x70] sm:$0xff]
        %v1327 = vld [vmem:[%s1106 + $0x78] sm:$0xff]
        %v1328 = vld [vmem:[%s1106 + $0x80] sm:$0xff]
        %v1329 = vld [vmem:[%s1106 + $0x88] sm:$0xff]
        %v1330 = vld [vmem:[%s1106 + $0x90] sm:$0xff]
        %v1331 = vld [vmem:[%s1106 + $0x98] sm:$0xff]
        %v1332 = vld [vmem:[%s1106 + $0xa0] sm:$0xff]
        %v1333 = vld [vmem:[%s1106 + $0xa8] sm:$0xff]
        %v1334 = vld [vmem:[%s1106 + $0xb0] sm:$0xff]
        %v1335 = vld [vmem:[%s1106 + $0xb8] sm:$0xff]
        %v1336 = vld [vmem:[%s1106 + $0xc0] sm:$0xff]
        %v1337 = vld [vmem:[%s1106 + $0xc8] sm:$0xff]
        %v1338 = vld [vmem:[%s1106 + $0xd0] sm:$0xff]
        %v1339 = vld [vmem:[%s1106 + $0xd8] sm:$0xff]
        %v1340 = vld [vmem:[%s1106 + $0xe0] sm:$0xff]
        %v1341 = vld [vmem:[%s1106 + $0xe8] sm:$0xff]
        %v1342 = vld [vmem:[%s1106 + $0xf0] sm:$0xff]
        %v1343 = vld [vmem:[%s1106 + $0xf8] sm:$0xff]
        %v1376 = vunpack.c.l.b16 %v1312
        %v1377 = vunpack.c.h.b16 %v1312
        %v1378 = vunpack.c.l.b16 %v1313
        %v1379 = vunpack.c.h.b16 %v1313
        %v1380 = vunpack.c.l.b16 %v1314
        %v1381 = vunpack.c.h.b16 %v1314
        %v1382 = vunpack.c.l.b16 %v1315
        %v1383 = vunpack.c.h.b16 %v1315
        %v1384 = vunpack.c.l.b16 %v1316
        %v1385 = vunpack.c.h.b16 %v1316
        %v1386 = vunpack.c.l.b16 %v1317
        %v1387 = vunpack.c.h.b16 %v1317
        %v1388 = vunpack.c.l.b16 %v1318
        %v1389 = vunpack.c.h.b16 %v1318
        %v1390 = vunpack.c.l.b16 %v1319
        %v1391 = vunpack.c.h.b16 %v1319
        %v1392 = vunpack.c.l.b16 %v1320
        %v1393 = vunpack.c.h.b16 %v1320
        %v1394 = vunpack.c.l.b16 %v1321
        %v1395 = vunpack.c.h.b16 %v1321
        %v1396 = vunpack.c.l.b16 %v1322
        %v1397 = vunpack.c.h.b16 %v1322
        %v1398 = vunpack.c.l.b16 %v1323
        %v1399 = vunpack.c.h.b16 %v1323
        %v1400 = vunpack.c.l.b16 %v1324
        %v1401 = vunpack.c.h.b16 %v1324
        %v1402 = vunpack.c.l.b16 %v1325
        %v1403 = vunpack.c.h.b16 %v1325
        %v1404 = vunpack.c.l.b16 %v1326
        %v1405 = vunpack.c.h.b16 %v1326
        %v1406 = vunpack.c.l.b16 %v1327
        %v1407 = vunpack.c.h.b16 %v1327
        %v1408 = vunpack.c.l.b16 %v1328
        %v1409 = vunpack.c.h.b16 %v1328
        %v1410 = vunpack.c.l.b16 %v1329
        %v1411 = vunpack.c.h.b16 %v1329
        %v1412 = vunpack.c.l.b16 %v1330
        %v1413 = vunpack.c.h.b16 %v1330
        %v1414 = vunpack.c.l.b16 %v1331
        %v1415 = vunpack.c.h.b16 %v1331
        %v1416 = vunpack.c.l.b16 %v1332
        %v1417 = vunpack.c.h.b16 %v1332
        %v1418 = vunpack.c.l.b16 %v1333
        %v1419 = vunpack.c.h.b16 %v1333
        %v1420 = vunpack.c.l.b16 %v1334
        %v1421 = vunpack.c.h.b16 %v1334
        %v1422 = vunpack.c.l.b16 %v1335
        %v1423 = vunpack.c.h.b16 %v1335
        %v1424 = vunpack.c.l.b16 %v1336
        %v1425 = vunpack.c.h.b16 %v1336
        %v1426 = vunpack.c.l.b16 %v1337
        %v1427 = vunpack.c.h.b16 %v1337
        %v1428 = vunpack.c.l.b16 %v1338
        %v1429 = vunpack.c.h.b16 %v1338
        %v1430 = vunpack.c.l.b16 %v1339
        %v1431 = vunpack.c.h.b16 %v1339
        %v1432 = vunpack.c.l.b16 %v1340
        %v1433 = vunpack.c.h.b16 %v1340
        %v1434 = vunpack.c.l.b16 %v1341
        %v1435 = vunpack.c.h.b16 %v1341
        %v1436 = vunpack.c.l.b16 %v1342
        %v1437 = vunpack.c.h.b16 %v1342
        %v1438 = vunpack.c.l.b16 %v1343
        %v1439 = vunpack.c.h.b16 %v1343
        %v1440 = vpack.c.b16 %v1378, %v1376
        %v1441 = vpack.c.b16 %v1379, %v1377
        %v1442 = vpack.c.b16 %v1382, %v1380
        %v1443 = vpack.c.b16 %v1383, %v1381
        %v1444 = vpack.c.b16 %v1386, %v1384
        %v1445 = vpack.c.b16 %v1387, %v1385
        %v1446 = vpack.c.b16 %v1390, %v1388
        %v1447 = vpack.c.b16 %v1391, %v1389
        %v1448 = vpack.c.b16 %v1394, %v1392
        %v1449 = vpack.c.b16 %v1395, %v1393
        %v1450 = vpack.c.b16 %v1398, %v1396
        %v1451 = vpack.c.b16 %v1399, %v1397
        %v1452 = vpack.c.b16 %v1402, %v1400
        %v1453 = vpack.c.b16 %v1403, %v1401
        %v1454 = vpack.c.b16 %v1406, %v1404
        %v1455 = vpack.c.b16 %v1407, %v1405
        %v1456 = vpack.c.b16 %v1410, %v1408
        %v1457 = vpack.c.b16 %v1411, %v1409
        %v1458 = vpack.c.b16 %v1414, %v1412
        %v1459 = vpack.c.b16 %v1415, %v1413
        %v1460 = vpack.c.b16 %v1418, %v1416
        %v1461 = vpack.c.b16 %v1419, %v1417
        %v1462 = vpack.c.b16 %v1422, %v1420
        %v1463 = vpack.c.b16 %v1423, %v1421
        %v1464 = vpack.c.b16 %v1426, %v1424
        %v1465 = vpack.c.b16 %v1427, %v1425
        %v1466 = vpack.c.b16 %v1430, %v1428
        %v1467 = vpack.c.b16 %v1431, %v1429
        %v1468 = vpack.c.b16 %v1434, %v1432
        %v1469 = vpack.c.b16 %v1435, %v1433
        %v1470 = vpack.c.b16 %v1438, %v1436
        %v1471 = vpack.c.b16 %v1439, %v1437
        %1504 = vmatprep.subr.bf16.mxu0 %v1455
        %1505 = vmatpush1.bf16.msra.mxu0 %v1454
        %1506 = vmatprep.subr.bf16.mxu0 %v1453
        %1507 = vmatpush1.bf16.msra.mxu0 %v1452
        %1508 = vmatprep.subr.bf16.mxu0 %v1451
        %1509 = vmatpush1.bf16.msra.mxu0 %v1450
        %1510 = vmatprep.subr.bf16.mxu0 %v1449
        %1511 = vmatpush1.bf16.msra.mxu0 %v1448
        %1512 = vmatprep.subr.bf16.mxu0 %v1447
        %1513 = vmatpush1.bf16.msra.mxu0 %v1446
        %1514 = vmatprep.subr.bf16.mxu0 %v1445
        %1515 = vmatpush1.bf16.msra.mxu0 %v1444
        %1516 = vmatprep.subr.bf16.mxu0 %v1443
        %1517 = vmatpush1.bf16.msra.mxu0 %v1442
        %1518 = vmatprep.subr.bf16.mxu0 %v1441
        %1519 = vmatpush1.bf16.msra.mxu0 %v1440
        %1520 = vmatprep.subr.bf16.mxu0 %v1471
        %1521 = vmatpush2.bf16.msra.mxu0 %v1470
        %1522 = vmatprep.subr.bf16.mxu0 %v1469
        %1523 = vmatpush2.bf16.msra.mxu0 %v1468
        %1524 = vmatprep.subr.bf16.mxu0 %v1467
        %1525 = vmatpush2.bf16.msra.mxu0 %v1466
        %1526 = vmatprep.subr.bf16.mxu0 %v1465
        %1527 = vmatpush2.bf16.msra.mxu0 %v1464
        %1528 = vmatprep.subr.bf16.mxu0 %v1463
        %1529 = vmatpush2.bf16.msra.mxu0 %v1462
        %1530 = vmatprep.subr.bf16.mxu0 %v1461
        %1531 = vmatpush2.bf16.msra.mxu0 %v1460
        %1532 = vmatprep.subr.bf16.mxu0 %v1459
        %1533 = vmatpush2.bf16.msra.mxu0 %v1458
        %1534 = vmatprep.subr.bf16.mxu0 %v1457
        %1535 = vmatpush2.bf16.msra.mxu0 %v1456
        %1536 = vmatprep.mubr.bf16.mxu0 %v1167
        %1537 = vmatmul.mubr.bf16.gmra.mxu0 %v1166
        %v1538 = vpop.f32.mrf.mxu0
        %v1539 = vadd.f32 0.0, %v1538
        %v1540 = vpop.f32.mrf.mxu0
        %v1541 = vadd.f32 0.0, %v1540
        %v1542 = vpop.f32.mrf.mxu0
        %v1543 = vpop.f32.mrf.mxu0
        %1544 = vdwg.mxu0
        %v1547 = vcombine.high %v1152, %v1152
        %v1549 = vunpack.c.l.s4 1966171168
        %v1550 = vunpack.c.0.s8 %v1549
        %v1551 = vlaneseq
        %v1552 = vshrl.u32 %v1551, 7
        %v1553 = vsub.s32 %v1550, %v1552
        %v1554 = vrot.slane %v1152, %v1553
        %v1556 = vunpack.c.l.s4 1966171168
        %v1557 = vunpack.c.0.s8 %v1556
        %v1558 = vlaneseq
        %v1559 = vshrl.u32 %v1558, 7
        %v1560 = vsub.s32 %v1557, %v1559
        %v1561 = vrot.slane %v1547, %v1560
        %v1562 = vcombine.high %v1554, %v1554
        %v1563 = vcombine.high %v1561, %v1561
        %v1565 = vunpack.c.l.s4 1966171168
        %v1566 = vunpack.c.0.s8 %v1565
        %v1567 = vlaneseq
        %v1568 = vshrl.u32 %v1567, 7
        %v1569 = vsub.s32 %v1566, %v1568
        %v1570 = vrot.slane %v1554, %v1569
        %v1572 = vunpack.c.l.s4 1966171168
        %v1573 = vunpack.c.0.s8 %v1572
        %v1574 = vlaneseq
        %v1575 = vshrl.u32 %v1574, 7
        %v1576 = vsub.s32 %v1573, %v1575
        %v1577 = vrot.slane %v1561, %v1576
        %v1579 = vunpack.c.l.s4 1966171168
        %v1580 = vunpack.c.0.s8 %v1579
        %v1581 = vlaneseq
        %v1582 = vshrl.u32 %v1581, 7
        %v1583 = vsub.s32 %v1580, %v1582
        %v1584 = vrot.slane %v1562, %v1583
        %v1586 = vunpack.c.l.s4 1966171168
        %v1587 = vunpack.c.0.s8 %v1586
        %v1588 = vlaneseq
        %v1589 = vshrl.u32 %v1588, 7
        %v1590 = vsub.s32 %v1587, %v1589
        %v1591 = vrot.slane %v1563, %v1590
        %v1592 = vcombine.high %v1570, %v1570
        %v1593 = vcombine.high %v1577, %v1577
        %v1594 = vcombine.high %v1584, %v1584
        %v1595 = vcombine.high %v1591, %v1591
        %v1597 = vunpack.c.l.s4 1966171168
        %v1598 = vunpack.c.0.s8 %v1597
        %v1599 = vlaneseq
        %v1600 = vshrl.u32 %v1599, 7
        %v1601 = vsub.s32 %v1598, %v1600
        %v1602 = vrot.slane %v1153, %v1601
        %v1604 = vunpack.c.l.s4 1966171168
        %v1605 = vunpack.c.0.s8 %v1604
        %v1606 = vlaneseq
        %v1607 = vshrl.u32 %v1606, 7
        %v1608 = vsub.s32 %v1605, %v1607
        %v1609 = vrot.slane %v1602, %v1608
        %v1763 = vunpack.c.l.b16 %v1168
        %v1764 = vunpack.c.h.b16 %v1168
        %v1765 = vunpack.c.l.b16 %v1169
        %v1766 = vunpack.c.h.b16 %v1169
        %v1767 = vunpack.c.l.b16 %v1170
        %v1768 = vunpack.c.h.b16 %v1170
        %v1769 = vunpack.c.l.b16 %v1171
        %v1770 = vunpack.c.h.b16 %v1171
        %v1771 = vunpack.c.l.b16 %v1172
        %v1772 = vunpack.c.h.b16 %v1172
        %v1773 = vunpack.c.l.b16 %v1173
        %v1774 = vunpack.c.h.b16 %v1173
        %v1775 = vunpack.c.l.b16 %v1174
        %v1776 = vunpack.c.h.b16 %v1174
        %v1777 = vunpack.c.l.b16 %v1175
        %v1778 = vunpack.c.h.b16 %v1175
        %v1779 = vunpack.c.l.b16 %v1176
        %v1780 = vunpack.c.h.b16 %v1176
        %v1781 = vunpack.c.l.b16 %v1177
        %v1782 = vunpack.c.h.b16 %v1177
        %v1783 = vunpack.c.l.b16 %v1178
        %v1784 = vunpack.c.h.b16 %v1178
        %v1785 = vunpack.c.l.b16 %v1179
        %v1786 = vunpack.c.h.b16 %v1179
        %v1787 = vunpack.c.l.b16 %v1180
        %v1788 = vunpack.c.h.b16 %v1180
        %v1789 = vunpack.c.l.b16 %v1181
        %v1790 = vunpack.c.h.b16 %v1181
        %v1791 = vunpack.c.l.b16 %v1182
        %v1792 = vunpack.c.h.b16 %v1182
        %v1793 = vunpack.c.l.b16 %v1183
        %v1794 = vunpack.c.h.b16 %v1183
        %v1795 = vunpack.c.l.b16 %v1184
        %v1796 = vunpack.c.h.b16 %v1184
        %v1797 = vunpack.c.l.b16 %v1185
        %v1798 = vunpack.c.h.b16 %v1185
        %v1799 = vunpack.c.l.b16 %v1186
        %v1800 = vunpack.c.h.b16 %v1186
        %v1801 = vunpack.c.l.b16 %v1187
        %v1802 = vunpack.c.h.b16 %v1187
        %v1803 = vunpack.c.l.b16 %v1188
        %v1804 = vunpack.c.h.b16 %v1188
        %v1805 = vunpack.c.l.b16 %v1189
        %v1806 = vunpack.c.h.b16 %v1189
        %v1807 = vunpack.c.l.b16 %v1190
        %v1808 = vunpack.c.h.b16 %v1190
        %v1809 = vunpack.c.l.b16 %v1191
        %v1810 = vunpack.c.h.b16 %v1191
        %v1811 = vunpack.c.l.b16 %v1192
        %v1812 = vunpack.c.h.b16 %v1192
        %v1813 = vunpack.c.l.b16 %v1193
        %v1814 = vunpack.c.h.b16 %v1193
        %v1815 = vunpack.c.l.b16 %v1194
        %v1816 = vunpack.c.h.b16 %v1194
        %v1817 = vunpack.c.l.b16 %v1195
        %v1818 = vunpack.c.h.b16 %v1195
        %v1819 = vunpack.c.l.b16 %v1196
        %v1820 = vunpack.c.h.b16 %v1196
        %v1821 = vunpack.c.l.b16 %v1197
        %v1822 = vunpack.c.h.b16 %v1197
        %v1823 = vunpack.c.l.b16 %v1198
        %v1824 = vunpack.c.h.b16 %v1198
        %v1825 = vunpack.c.l.b16 %v1199
        %v1826 = vunpack.c.h.b16 %v1199
        %v1827 = vunpack.c.l.b16 %v1200
        %v1828 = vunpack.c.h.b16 %v1200
        %v1829 = vunpack.c.l.b16 %v1201
        %v1830 = vunpack.c.h.b16 %v1201
        %v1831 = vunpack.c.l.b16 %v1202
        %v1832 = vunpack.c.h.b16 %v1202
        %v1833 = vunpack.c.l.b16 %v1203
        %v1834 = vunpack.c.h.b16 %v1203
        %v1835 = vunpack.c.l.b16 %v1204
        %v1836 = vunpack.c.h.b16 %v1204
        %v1837 = vunpack.c.l.b16 %v1205
        %v1838 = vunpack.c.h.b16 %v1205
        %v1839 = vunpack.c.l.b16 %v1206
        %v1840 = vunpack.c.h.b16 %v1206
        %v1841 = vunpack.c.l.b16 %v1207
        %v1842 = vunpack.c.h.b16 %v1207
        %v1843 = vunpack.c.l.b16 %v1208
        %v1844 = vunpack.c.h.b16 %v1208
        %v1845 = vunpack.c.l.b16 %v1209
        %v1846 = vunpack.c.h.b16 %v1209
        %v1847 = vunpack.c.l.b16 %v1210
        %v1848 = vunpack.c.h.b16 %v1210
        %v1849 = vunpack.c.l.b16 %v1211
        %v1850 = vunpack.c.h.b16 %v1211
        %v1851 = vunpack.c.l.b16 %v1212
        %v1852 = vunpack.c.h.b16 %v1212
        %v1853 = vunpack.c.l.b16 %v1213
        %v1854 = vunpack.c.h.b16 %v1213
        %v1855 = vunpack.c.l.b16 %v1214
        %v1856 = vunpack.c.h.b16 %v1214
        %v1857 = vunpack.c.l.b16 %v1215
        %v1858 = vunpack.c.h.b16 %v1215
        %v1859 = vunpack.c.l.b16 %v1216
        %v1860 = vunpack.c.h.b16 %v1216
        %v1861 = vunpack.c.l.b16 %v1217
        %v1862 = vunpack.c.h.b16 %v1217
        %v1863 = vunpack.c.l.b16 %v1218
        %v1864 = vunpack.c.h.b16 %v1218
        %v1865 = vunpack.c.l.b16 %v1219
        %v1866 = vunpack.c.h.b16 %v1219
        %v1867 = vunpack.c.l.b16 %v1220
        %v1868 = vunpack.c.h.b16 %v1220
        %v1869 = vunpack.c.l.b16 %v1221
        %v1870 = vunpack.c.h.b16 %v1221
        %v1871 = vunpack.c.l.b16 %v1222
        %v1872 = vunpack.c.h.b16 %v1222
        %v1873 = vunpack.c.l.b16 %v1223
        %v1874 = vunpack.c.h.b16 %v1223
        %v1875 = vunpack.c.l.b16 %v1224
        %v1876 = vunpack.c.h.b16 %v1224
        %v1877 = vunpack.c.l.b16 %v1225
        %v1878 = vunpack.c.h.b16 %v1225
        %v1879 = vunpack.c.l.b16 %v1226
        %v1880 = vunpack.c.h.b16 %v1226
        %v1881 = vunpack.c.l.b16 %v1227
        %v1882 = vunpack.c.h.b16 %v1227
        %v1883 = vunpack.c.l.b16 %v1228
        %v1884 = vunpack.c.h.b16 %v1228
        %v1885 = vunpack.c.l.b16 %v1229
        %v1886 = vunpack.c.h.b16 %v1229
        %v1887 = vunpack.c.l.b16 %v1230
        %v1888 = vunpack.c.h.b16 %v1230
        %v1889 = vunpack.c.l.b16 %v1231
        %v1890 = vunpack.c.h.b16 %v1231
        %v1891 = vunpack.c.l.b16 %v1232
        %v1892 = vunpack.c.h.b16 %v1232
        %v1893 = vunpack.c.l.b16 %v1233
        %v1894 = vunpack.c.h.b16 %v1233
        %v1895 = vunpack.c.l.b16 %v1234
        %v1896 = vunpack.c.h.b16 %v1234
        %v1897 = vunpack.c.l.b16 %v1235
        %v1898 = vunpack.c.h.b16 %v1235
        %v1899 = vunpack.c.l.b16 %v1236
        %v1900 = vunpack.c.h.b16 %v1236
        %v1901 = vunpack.c.l.b16 %v1237
        %v1902 = vunpack.c.h.b16 %v1237
        %v1903 = vunpack.c.l.b16 %v1238
        %v1904 = vunpack.c.h.b16 %v1238
        %v1905 = vunpack.c.l.b16 %v1239
        %v1906 = vunpack.c.h.b16 %v1239
        %v1907 = vunpack.c.l.b16 %v1240
        %v1908 = vunpack.c.h.b16 %v1240
        %v1909 = vunpack.c.l.b16 %v1241
        %v1910 = vunpack.c.h.b16 %v1241
        %v1911 = vunpack.c.l.b16 %v1242
        %v1912 = vunpack.c.h.b16 %v1242
        %v1913 = vunpack.c.l.b16 %v1243
        %v1914 = vunpack.c.h.b16 %v1243
        %v1915 = vunpack.c.l.b16 %v1244
        %v1916 = vunpack.c.h.b16 %v1244
        %v1917 = vunpack.c.l.b16 %v1245
        %v1918 = vunpack.c.h.b16 %v1245
        %v1919 = vunpack.c.l.b16 %v1246
        %v1920 = vunpack.c.h.b16 %v1246
        %v1921 = vunpack.c.l.b16 %v1247
        %v1922 = vunpack.c.h.b16 %v1247
        %v1923 = vunpack.c.l.b16 %v1248
        %v1924 = vunpack.c.h.b16 %v1248
        %v1925 = vunpack.c.l.b16 %v1249
        %v1926 = vunpack.c.h.b16 %v1249
        %v1927 = vunpack.c.l.b16 %v1250
        %v1928 = vunpack.c.h.b16 %v1250
        %v1929 = vunpack.c.l.b16 %v1251
        %v1930 = vunpack.c.h.b16 %v1251
        %v1931 = vunpack.c.l.b16 %v1252
        %v1932 = vunpack.c.h.b16 %v1252
        %v1933 = vunpack.c.l.b16 %v1253
        %v1934 = vunpack.c.h.b16 %v1253
        %v1935 = vunpack.c.l.b16 %v1254
        %v1936 = vunpack.c.h.b16 %v1254
        %v1937 = vunpack.c.l.b16 %v1255
        %v1938 = vunpack.c.h.b16 %v1255
        %v1939 = vunpack.c.l.b16 %v1256
        %v1940 = vunpack.c.h.b16 %v1256
        %v1941 = vunpack.c.l.b16 %v1257
        %v1942 = vunpack.c.h.b16 %v1257
        %v1943 = vunpack.c.l.b16 %v1258
        %v1944 = vunpack.c.h.b16 %v1258
        %v1945 = vunpack.c.l.b16 %v1259
        %v1946 = vunpack.c.h.b16 %v1259
        %v1947 = vunpack.c.l.b16 %v1260
        %v1948 = vunpack.c.h.b16 %v1260
        %v1949 = vunpack.c.l.b16 %v1261
        %v1950 = vunpack.c.h.b16 %v1261
        %v1951 = vunpack.c.l.b16 %v1262
        %v1952 = vunpack.c.h.b16 %v1262
        %v1953 = vunpack.c.l.b16 %v1263
        %v1954 = vunpack.c.h.b16 %v1263
        %v1955 = vunpack.c.l.b16 %v1264
        %v1956 = vunpack.c.h.b16 %v1264
        %v1957 = vunpack.c.l.b16 %v1265
        %v1958 = vunpack.c.h.b16 %v1265
        %v1959 = vunpack.c.l.b16 %v1266
        %v1960 = vunpack.c.h.b16 %v1266
        %v1961 = vunpack.c.l.b16 %v1267
        %v1962 = vunpack.c.h.b16 %v1267
        %v1963 = vunpack.c.l.b16 %v1268
        %v1964 = vunpack.c.h.b16 %v1268
        %v1965 = vunpack.c.l.b16 %v1269
        %v1966 = vunpack.c.h.b16 %v1269
        %v1967 = vunpack.c.l.b16 %v1270
        %v1968 = vunpack.c.h.b16 %v1270
        %v1969 = vunpack.c.l.b16 %v1271
        %v1970 = vunpack.c.h.b16 %v1271
        %v1971 = vunpack.c.l.b16 %v1272
        %v1972 = vunpack.c.h.b16 %v1272
        %v1973 = vunpack.c.l.b16 %v1273
        %v1974 = vunpack.c.h.b16 %v1273
        %v1975 = vunpack.c.l.b16 %v1274
        %v1976 = vunpack.c.h.b16 %v1274
        %v1977 = vunpack.c.l.b16 %v1275
        %v1978 = vunpack.c.h.b16 %v1275
        %v1979 = vunpack.c.l.b16 %v1276
        %v1980 = vunpack.c.h.b16 %v1276
        %v1981 = vunpack.c.l.b16 %v1277
        %v1982 = vunpack.c.h.b16 %v1277
        %v1983 = vunpack.c.l.b16 %v1278
        %v1984 = vunpack.c.h.b16 %v1278
        %v1985 = vunpack.c.l.b16 %v1279
        %v1986 = vunpack.c.h.b16 %v1279
        %v1987 = vunpack.c.l.b16 %v1280
        %v1988 = vunpack.c.h.b16 %v1280
        %v1989 = vunpack.c.l.b16 %v1281
        %v1990 = vunpack.c.h.b16 %v1281
        %v1991 = vunpack.c.l.b16 %v1282
        %v1992 = vunpack.c.h.b16 %v1282
        %v1993 = vunpack.c.l.b16 %v1283
        %v1994 = vunpack.c.h.b16 %v1283
        %v1995 = vunpack.c.l.b16 %v1284
        %v1996 = vunpack.c.h.b16 %v1284
        %v1997 = vunpack.c.l.b16 %v1285
        %v1998 = vunpack.c.h.b16 %v1285
        %v1999 = vunpack.c.l.b16 %v1286
        %v2000 = vunpack.c.h.b16 %v1286
        %v2001 = vunpack.c.l.b16 %v1287
        %v2002 = vunpack.c.h.b16 %v1287
        %v2003 = vunpack.c.l.b16 %v1288
        %v2004 = vunpack.c.h.b16 %v1288
        %v2005 = vunpack.c.l.b16 %v1289
        %v2006 = vunpack.c.h.b16 %v1289
        %v2007 = vunpack.c.l.b16 %v1290
        %v2008 = vunpack.c.h.b16 %v1290
        %v2009 = vunpack.c.l.b16 %v1291
        %v2010 = vunpack.c.h.b16 %v1291
        %v2011 = vunpack.c.l.b16 %v1292
        %v2012 = vunpack.c.h.b16 %v1292
        %v2013 = vunpack.c.l.b16 %v1293
        %v2014 = vunpack.c.h.b16 %v1293
        %v2015 = vunpack.c.l.b16 %v1294
        %v2016 = vunpack.c.h.b16 %v1294
        %v2017 = vunpack.c.l.b16 %v1295
        %v2018 = vunpack.c.h.b16 %v1295
        %v2019 = vunpack.c.l.b16 %v1296
        %v2020 = vunpack.c.h.b16 %v1296
        %v2021 = vunpack.c.l.b16 %v1297
        %v2022 = vunpack.c.h.b16 %v1297
        %v2023 = vunpack.c.l.b16 %v1298
        %v2024 = vunpack.c.h.b16 %v1298
        %v2025 = vunpack.c.l.b16 %v1299
        %v2026 = vunpack.c.h.b16 %v1299
        %v2027 = vunpack.c.l.b16 %v1300
        %v2028 = vunpack.c.h.b16 %v1300
        %v2029 = vunpack.c.l.b16 %v1301
        %v2030 = vunpack.c.h.b16 %v1301
        %v2031 = vunpack.c.l.b16 %v1302
        %v2032 = vunpack.c.h.b16 %v1302
        %v2033 = vunpack.c.l.b16 %v1303
        %v2034 = vunpack.c.h.b16 %v1303
        %v2035 = vunpack.c.l.b16 %v1304
        %v2036 = vunpack.c.h.b16 %v1304
        %v2037 = vunpack.c.l.b16 %v1305
        %v2038 = vunpack.c.h.b16 %v1305
        %v2039 = vunpack.c.l.b16 %v1306
        %v2040 = vunpack.c.h.b16 %v1306
        %v2041 = vunpack.c.l.b16 %v1307
        %v2042 = vunpack.c.h.b16 %v1307
        %v2043 = vunpack.c.l.b16 %v1308
        %v2044 = vunpack.c.h.b16 %v1308
        %v2045 = vunpack.c.l.b16 %v1309
        %v2046 = vunpack.c.h.b16 %v1309
        %v2047 = vunpack.c.l.b16 %v1310
        %v2048 = vunpack.c.h.b16 %v1310
        %v2049 = vunpack.c.l.b16 %v1311
        %v2050 = vunpack.c.h.b16 %v1311
        %v2051 = vpack.c.b16 %v1765, %v1763
        %v2052 = vpack.c.b16 %v1766, %v1764
        %v2053 = vpack.c.b16 %v1769, %v1767
        %v2054 = vpack.c.b16 %v1770, %v1768
        %v2055 = vpack.c.b16 %v1773, %v1771
        %v2056 = vpack.c.b16 %v1774, %v1772
        %v2057 = vpack.c.b16 %v1777, %v1775
        %v2058 = vpack.c.b16 %v1778, %v1776
        %v2059 = vpack.c.b16 %v1781, %v1779
        %v2060 = vpack.c.b16 %v1782, %v1780
        %v2061 = vpack.c.b16 %v1785, %v1783
        %v2062 = vpack.c.b16 %v1786, %v1784
        %v2063 = vpack.c.b16 %v1789, %v1787
        %v2064 = vpack.c.b16 %v1790, %v1788
        %v2065 = vpack.c.b16 %v1793, %v1791
        %v2066 = vpack.c.b16 %v1794, %v1792
        %v2067 = vpack.c.b16 %v1797, %v1795
        %v2068 = vpack.c.b16 %v1798, %v1796
        %v2069 = vpack.c.b16 %v1801, %v1799
        %v2070 = vpack.c.b16 %v1802, %v1800
        %v2071 = vpack.c.b16 %v1805, %v1803
        %v2072 = vpack.c.b16 %v1806, %v1804
        %v2073 = vpack.c.b16 %v1809, %v1807
        %v2074 = vpack.c.b16 %v1810, %v1808
        %v2075 = vpack.c.b16 %v1813, %v1811
        %v2076 = vpack.c.b16 %v1814, %v1812
        %v2077 = vpack.c.b16 %v1817, %v1815
        %v2078 = vpack.c.b16 %v1818, %v1816
        %v2079 = vpack.c.b16 %v1821, %v1819
        %v2080 = vpack.c.b16 %v1822, %v1820
        %v2081 = vpack.c.b16 %v1825, %v1823
        %v2082 = vpack.c.b16 %v1826, %v1824
        %v2083 = vpack.c.b16 %v1829, %v1827
        %v2084 = vpack.c.b16 %v1830, %v1828
        %v2085 = vpack.c.b16 %v1833, %v1831
        %v2086 = vpack.c.b16 %v1834, %v1832
        %v2087 = vpack.c.b16 %v1837, %v1835
        %v2088 = vpack.c.b16 %v1838, %v1836
        %v2089 = vpack.c.b16 %v1841, %v1839
        %v2090 = vpack.c.b16 %v1842, %v1840
        %v2091 = vpack.c.b16 %v1845, %v1843
        %v2092 = vpack.c.b16 %v1846, %v1844
        %v2093 = vpack.c.b16 %v1849, %v1847
        %v2094 = vpack.c.b16 %v1850, %v1848
        %v2095 = vpack.c.b16 %v1853, %v1851
        %v2096 = vpack.c.b16 %v1854, %v1852
        %v2097 = vpack.c.b16 %v1857, %v1855
        %v2098 = vpack.c.b16 %v1858, %v1856
        %v2099 = vpack.c.b16 %v1861, %v1859
        %v2100 = vpack.c.b16 %v1862, %v1860
        %v2101 = vpack.c.b16 %v1865, %v1863
        %v2102 = vpack.c.b16 %v1866, %v1864
        %v2103 = vpack.c.b16 %v1869, %v1867
        %v2104 = vpack.c.b16 %v1870, %v1868
        %v2105 = vpack.c.b16 %v1873, %v1871
        %v2106 = vpack.c.b16 %v1874, %v1872
        %v2107 = vpack.c.b16 %v1877, %v1875
        %v2108 = vpack.c.b16 %v1878, %v1876
        %v2109 = vpack.c.b16 %v1881, %v1879
        %v2110 = vpack.c.b16 %v1882, %v1880
        %v2111 = vpack.c.b16 %v1885, %v1883
        %v2112 = vpack.c.b16 %v1886, %v1884
        %v2113 = vpack.c.b16 %v1889, %v1887
        %v2114 = vpack.c.b16 %v1890, %v1888
        %v2115 = vpack.c.b16 %v1893, %v1891
        %v2116 = vpack.c.b16 %v1894, %v1892
        %v2117 = vpack.c.b16 %v1897, %v1895
        %v2118 = vpack.c.b16 %v1898, %v1896
        %v2119 = vpack.c.b16 %v1901, %v1899
        %v2120 = vpack.c.b16 %v1902, %v1900
        %v2121 = vpack.c.b16 %v1905, %v1903
        %v2122 = vpack.c.b16 %v1906, %v1904
        %v2123 = vpack.c.b16 %v1909, %v1907
        %v2124 = vpack.c.b16 %v1910, %v1908
        %v2125 = vpack.c.b16 %v1913, %v1911
        %v2126 = vpack.c.b16 %v1914, %v1912
        %v2127 = vpack.c.b16 %v1917, %v1915
        %v2128 = vpack.c.b16 %v1918, %v1916
        %v2129 = vpack.c.b16 %v1921, %v1919
        %v2130 = vpack.c.b16 %v1922, %v1920
        %v2131 = vpack.c.b16 %v1925, %v1923
        %v2132 = vpack.c.b16 %v1926, %v1924
        %v2133 = vpack.c.b16 %v1929, %v1927
        %v2134 = vpack.c.b16 %v1930, %v1928
        %v2135 = vpack.c.b16 %v1933, %v1931
        %v2136 = vpack.c.b16 %v1934, %v1932
        %v2137 = vpack.c.b16 %v1937, %v1935
        %v2138 = vpack.c.b16 %v1938, %v1936
        %v2139 = vpack.c.b16 %v1941, %v1939
        %v2140 = vpack.c.b16 %v1942, %v1940
        %v2141 = vpack.c.b16 %v1945, %v1943
        %v2142 = vpack.c.b16 %v1946, %v1944
        %v2143 = vpack.c.b16 %v1949, %v1947
        %v2144 = vpack.c.b16 %v1950, %v1948
        %v2145 = vpack.c.b16 %v1953, %v1951
        %v2146 = vpack.c.b16 %v1954, %v1952
        %v2147 = vpack.c.b16 %v1957, %v1955
        %v2148 = vpack.c.b16 %v1958, %v1956
        %v2149 = vpack.c.b16 %v1961, %v1959
        %v2150 = vpack.c.b16 %v1962, %v1960
        %v2151 = vpack.c.b16 %v1965, %v1963
        %v2152 = vpack.c.b16 %v1966, %v1964
        %v2153 = vpack.c.b16 %v1969, %v1967
        %v2154 = vpack.c.b16 %v1970, %v1968
        %v2155 = vpack.c.b16 %v1973, %v1971
        %v2156 = vpack.c.b16 %v1974, %v1972
        %v2157 = vpack.c.b16 %v1977, %v1975
        %v2158 = vpack.c.b16 %v1978, %v1976
        %v2159 = vpack.c.b16 %v1981, %v1979
        %v2160 = vpack.c.b16 %v1982, %v1980
        %v2161 = vpack.c.b16 %v1985, %v1983
        %v2162 = vpack.c.b16 %v1986, %v1984
        %v2163 = vpack.c.b16 %v1989, %v1987
        %v2164 = vpack.c.b16 %v1990, %v1988
        %v2165 = vpack.c.b16 %v1993, %v1991
        %v2166 = vpack.c.b16 %v1994, %v1992
        %v2167 = vpack.c.b16 %v1997, %v1995
        %v2168 = vpack.c.b16 %v1998, %v1996
        %v2169 = vpack.c.b16 %v2001, %v1999
        %v2170 = vpack.c.b16 %v2002, %v2000
        %v2171 = vpack.c.b16 %v2005, %v2003
        %v2172 = vpack.c.b16 %v2006, %v2004
        %v2173 = vpack.c.b16 %v2009, %v2007
        %v2174 = vpack.c.b16 %v2010, %v2008
        %v2175 = vpack.c.b16 %v2013, %v2011
        %v2176 = vpack.c.b16 %v2014, %v2012
        %v2177 = vpack.c.b16 %v2017, %v2015
        %v2178 = vpack.c.b16 %v2018, %v2016
        %v2179 = vpack.c.b16 %v2021, %v2019
        %v2180 = vpack.c.b16 %v2022, %v2020
        %v2181 = vpack.c.b16 %v2025, %v2023
        %v2182 = vpack.c.b16 %v2026, %v2024
        %v2183 = vpack.c.b16 %v2029, %v2027
        %v2184 = vpack.c.b16 %v2030, %v2028
        %v2185 = vpack.c.b16 %v2033, %v2031
        %v2186 = vpack.c.b16 %v2034, %v2032
        %v2187 = vpack.c.b16 %v2037, %v2035
        %v2188 = vpack.c.b16 %v2038, %v2036
        %v2189 = vpack.c.b16 %v2041, %v2039
        %v2190 = vpack.c.b16 %v2042, %v2040
        %v2191 = vpack.c.b16 %v2045, %v2043
        %v2192 = vpack.c.b16 %v2046, %v2044
        %v2193 = vpack.c.b16 %v2049, %v2047
        %v2194 = vpack.c.b16 %v2050, %v2048
        %2339 = vmatprep.subr.bf16.mxu0 %v2066
        %2340 = vmatpush1.bf16.msra.mxu0 %v2065
        %2341 = vmatprep.subr.bf16.mxu0 %v2064
        %2342 = vmatpush1.bf16.msra.mxu0 %v2063
        %2343 = vmatprep.subr.bf16.mxu0 %v2062
        %2344 = vmatpush1.bf16.msra.mxu0 %v2061
        %2345 = vmatprep.subr.bf16.mxu0 %v2060
        %2346 = vmatpush1.bf16.msra.mxu0 %v2059
        %2347 = vmatprep.subr.bf16.mxu0 %v2058
        %2348 = vmatpush1.bf16.msra.mxu0 %v2057
        %2349 = vmatprep.subr.bf16.mxu0 %v2056
        %2350 = vmatpush1.bf16.msra.mxu0 %v2055
        %2351 = vmatprep.subr.bf16.mxu0 %v2054
        %2352 = vmatpush1.bf16.msra.mxu0 %v2053
        %2353 = vmatprep.subr.bf16.mxu0 %v2052
        %2354 = vmatpush1.bf16.msra.mxu0 %v2051
        %2355 = vmatprep.subr.bf16.mxu0 %v2082
        %2356 = vmatpush2.bf16.msra.mxu0 %v2081
        %2357 = vmatprep.subr.bf16.mxu0 %v2080
        %2358 = vmatpush2.bf16.msra.mxu0 %v2079
        %2359 = vmatprep.subr.bf16.mxu0 %v2078
        %2360 = vmatpush2.bf16.msra.mxu0 %v2077
        %2361 = vmatprep.subr.bf16.mxu0 %v2076
        %2362 = vmatpush2.bf16.msra.mxu0 %v2075
        %2363 = vmatprep.subr.bf16.mxu0 %v2074
        %2364 = vmatpush2.bf16.msra.mxu0 %v2073
        %2365 = vmatprep.subr.bf16.mxu0 %v2072
        %2366 = vmatpush2.bf16.msra.mxu0 %v2071
        %2367 = vmatprep.subr.bf16.mxu0 %v2070
        %2368 = vmatpush2.bf16.msra.mxu0 %v2069
        %2369 = vmatprep.subr.bf16.mxu0 %v2068
        %2370 = vmatpush2.bf16.msra.mxu0 %v2067
        %2371 = vmatprep.mubr.bf16.mxu0 %v1584
        %2372 = vmatmul.mubr.bf16.gmra.mxu0 %v1570
        %v2373 = vpop.f32.mrf.mxu0
        %v2374 = vadd.f32 %v1539, %v2373
        %v2375 = vpop.f32.mrf.mxu0
        %v2376 = vadd.f32 %v1541, %v2375
        %v2377 = vpop.f32.mrf.mxu0
        %v2378 = vpop.f32.mrf.mxu0
        %2379 = vdwg.mxu0
        %2380 = vmatprep.subr.bf16.mxu0 %v2098
        %2381 = vmatpush1.bf16.msra.mxu0 %v2097
        %2382 = vmatprep.subr.bf16.mxu0 %v2096
        %2383 = vmatpush1.bf16.msra.mxu0 %v2095
        %2384 = vmatprep.subr.bf16.mxu0 %v2094
        %2385 = vmatpush1.bf16.msra.mxu0 %v2093
        %2386 = vmatprep.subr.bf16.mxu0 %v2092
        %2387 = vmatpush1.bf16.msra.mxu0 %v2091
        %2388 = vmatprep.subr.bf16.mxu0 %v2090
        %2389 = vmatpush1.bf16.msra.mxu0 %v2089
        %2390 = vmatprep.subr.bf16.mxu0 %v2088
        %2391 = vmatpush1.bf16.msra.mxu0 %v2087
        %2392 = vmatprep.subr.bf16.mxu0 %v2086
        %2393 = vmatpush1.bf16.msra.mxu0 %v2085
        %2394 = vmatprep.subr.bf16.mxu0 %v2084
        %2395 = vmatpush1.bf16.msra.mxu0 %v2083
        %2396 = vmatprep.subr.bf16.mxu0 %v2114
        %2397 = vmatpush2.bf16.msra.mxu0 %v2113
        %2398 = vmatprep.subr.bf16.mxu0 %v2112
        %2399 = vmatpush2.bf16.msra.mxu0 %v2111
        %2400 = vmatprep.subr.bf16.mxu0 %v2110
        %2401 = vmatpush2.bf16.msra.mxu0 %v2109
        %2402 = vmatprep.subr.bf16.mxu0 %v2108
        %2403 = vmatpush2.bf16.msra.mxu0 %v2107
        %2404 = vmatprep.subr.bf16.mxu0 %v2106
        %2405 = vmatpush2.bf16.msra.mxu0 %v2105
        %2406 = vmatprep.subr.bf16.mxu0 %v2104
        %2407 = vmatpush2.bf16.msra.mxu0 %v2103
        %2408 = vmatprep.subr.bf16.mxu0 %v2102
        %2409 = vmatpush2.bf16.msra.mxu0 %v2101
        %2410 = vmatprep.subr.bf16.mxu0 %v2100
        %2411 = vmatpush2.bf16.msra.mxu0 %v2099
        %2412 = vmatprep.mubr.bf16.mxu0 %v1594
        %2413 = vmatmul.mubr.bf16.gmra.mxu0 %v1592
        %v2414 = vpop.f32.mrf.mxu0
        %v2415 = vadd.f32 %v2374, %v2414
        %v2416 = vpop.f32.mrf.mxu0
        %v2417 = vadd.f32 %v2376, %v2416
        %v2418 = vpop.f32.mrf.mxu0
        %v2419 = vpop.f32.mrf.mxu0
        %2420 = vdwg.mxu0
        %2421 = vmatprep.subr.bf16.mxu0 %v2130
        %2422 = vmatpush1.bf16.msra.mxu0 %v2129
        %2423 = vmatprep.subr.bf16.mxu0 %v2128
        %2424 = vmatpush1.bf16.msra.mxu0 %v2127
        %2425 = vmatprep.subr.bf16.mxu0 %v2126
        %2426 = vmatpush1.bf16.msra.mxu0 %v2125
        %2427 = vmatprep.subr.bf16.mxu0 %v2124
        %2428 = vmatpush1.bf16.msra.mxu0 %v2123
        %2429 = vmatprep.subr.bf16.mxu0 %v2122
        %2430 = vmatpush1.bf16.msra.mxu0 %v2121
        %2431 = vmatprep.subr.bf16.mxu0 %v2120
        %2432 = vmatpush1.bf16.msra.mxu0 %v2119
        %2433 = vmatprep.subr.bf16.mxu0 %v2118
        %2434 = vmatpush1.bf16.msra.mxu0 %v2117
        %2435 = vmatprep.subr.bf16.mxu0 %v2116
        %2436 = vmatpush1.bf16.msra.mxu0 %v2115
        %2437 = vmatprep.subr.bf16.mxu0 %v2146
        %2438 = vmatpush2.bf16.msra.mxu0 %v2145
        %2439 = vmatprep.subr.bf16.mxu0 %v2144
        %2440 = vmatpush2.bf16.msra.mxu0 %v2143
        %2441 = vmatprep.subr.bf16.mxu0 %v2142
        %2442 = vmatpush2.bf16.msra.mxu0 %v2141
        %2443 = vmatprep.subr.bf16.mxu0 %v2140
        %2444 = vmatpush2.bf16.msra.mxu0 %v2139
        %2445 = vmatprep.subr.bf16.mxu0 %v2138
        %2446 = vmatpush2.bf16.msra.mxu0 %v2137
        %2447 = vmatprep.subr.bf16.mxu0 %v2136
        %2448 = vmatpush2.bf16.msra.mxu0 %v2135
        %2449 = vmatprep.subr.bf16.mxu0 %v2134
        %2450 = vmatpush2.bf16.msra.mxu0 %v2133
        %2451 = vmatprep.subr.bf16.mxu0 %v2132
        %2452 = vmatpush2.bf16.msra.mxu0 %v2131
        %2453 = vmatprep.mubr.bf16.mxu0 %v1591
        %2454 = vmatmul.mubr.bf16.gmra.mxu0 %v1577
        %v2455 = vpop.f32.mrf.mxu0
        %v2456 = vadd.f32 %v2415, %v2455
        %v2457 = vpop.f32.mrf.mxu0
        %v2458 = vadd.f32 %v2417, %v2457
        %v2459 = vpop.f32.mrf.mxu0
        %v2460 = vpop.f32.mrf.mxu0
        %2461 = vdwg.mxu0
        %2462 = vmatprep.subr.bf16.mxu0 %v2162
        %2463 = vmatpush1.bf16.msra.mxu0 %v2161
        %2464 = vmatprep.subr.bf16.mxu0 %v2160
        %2465 = vmatpush1.bf16.msra.mxu0 %v2159
        %2466 = vmatprep.subr.bf16.mxu0 %v2158
        %2467 = vmatpush1.bf16.msra.mxu0 %v2157
        %2468 = vmatprep.subr.bf16.mxu0 %v2156
        %2469 = vmatpush1.bf16.msra.mxu0 %v2155
        %2470 = vmatprep.subr.bf16.mxu0 %v2154
        %2471 = vmatpush1.bf16.msra.mxu0 %v2153
        %2472 = vmatprep.subr.bf16.mxu0 %v2152
        %2473 = vmatpush1.bf16.msra.mxu0 %v2151
        %2474 = vmatprep.subr.bf16.mxu0 %v2150
        %2475 = vmatpush1.bf16.msra.mxu0 %v2149
        %2476 = vmatprep.subr.bf16.mxu0 %v2148
        %2477 = vmatpush1.bf16.msra.mxu0 %v2147
        %2478 = vmatprep.subr.bf16.mxu0 %v2178
        %2479 = vmatpush2.bf16.msra.mxu0 %v2177
        %2480 = vmatprep.subr.bf16.mxu0 %v2176
        %2481 = vmatpush2.bf16.msra.mxu0 %v2175
        %2482 = vmatprep.subr.bf16.mxu0 %v2174
        %2483 = vmatpush2.bf16.msra.mxu0 %v2173
        %2484 = vmatprep.subr.bf16.mxu0 %v2172
        %2485 = vmatpush2.bf16.msra.mxu0 %v2171
        %2486 = vmatprep.subr.bf16.mxu0 %v2170
        %2487 = vmatpush2.bf16.msra.mxu0 %v2169
        %2488 = vmatprep.subr.bf16.mxu0 %v2168
        %2489 = vmatpush2.bf16.msra.mxu0 %v2167
        %2490 = vmatprep.subr.bf16.mxu0 %v2166
        %2491 = vmatpush2.bf16.msra.mxu0 %v2165
        %2492 = vmatprep.subr.bf16.mxu0 %v2164
        %2493 = vmatpush2.bf16.msra.mxu0 %v2163
        %2494 = vmatprep.mubr.bf16.mxu0 %v1595
        %2495 = vmatmul.mubr.bf16.gmra.mxu0 %v1593
        %v2496 = vpop.f32.mrf.mxu0
        %v2497 = vadd.f32 %v2456, %v2496
        %v2498 = vpop.f32.mrf.mxu0
        %v2499 = vadd.f32 %v2458, %v2498
        %v2500 = vpop.f32.mrf.mxu0
        %v2501 = vpop.f32.mrf.mxu0
        %2502 = vdwg.mxu0
        %2503 = vmatprep.subr.bf16.mxu0 %v2194
        %2504 = vmatpush1.bf16.msra.mxu0 %v2193
        %2505 = vmatprep.subr.bf16.mxu0 %v2192
        %2506 = vmatpush1.bf16.msra.mxu0 %v2191
        %2507 = vmatprep.subr.bf16.mxu0 %v2190
        %2508 = vmatpush1.bf16.msra.mxu0 %v2189
        %2509 = vmatprep.subr.bf16.mxu0 %v2188
        %2510 = vmatpush1.bf16.msra.mxu0 %v2187
        %2511 = vmatprep.subr.bf16.mxu0 %v2186
        %2512 = vmatpush1.bf16.msra.mxu0 %v2185
        %2513 = vmatprep.subr.bf16.mxu0 %v2184
        %2514 = vmatpush1.bf16.msra.mxu0 %v2183
        %2515 = vmatprep.subr.bf16.mxu0 %v2182
        %2516 = vmatpush1.bf16.msra.mxu0 %v2181
        %2517 = vmatprep.subr.bf16.mxu0 %v2180
        %2518 = vmatpush1.bf16.msra.mxu0 %v2179
        %2519 = vmatprep.subr.bf16.mxu0 0
        %2520 = vmatpush2.bf16.msra.mxu0 0
        %2521 = vmatprep.subr.bf16.mxu0 0
        %2522 = vmatpush2.bf16.msra.mxu0 0
        %2523 = vmatprep.subr.bf16.mxu0 0
        %2524 = vmatpush2.bf16.msra.mxu0 0
        %2525 = vmatprep.subr.bf16.mxu0 0
        %2526 = vmatpush2.bf16.msra.mxu0 0
        %2527 = vmatprep.subr.bf16.mxu0 0
        %2528 = vmatpush2.bf16.msra.mxu0 0
        %2529 = vmatprep.subr.bf16.mxu0 0
        %2530 = vmatpush2.bf16.msra.mxu0 0
        %2531 = vmatprep.subr.bf16.mxu0 0
        %2532 = vmatpush2.bf16.msra.mxu0 0
        %2533 = vmatprep.subr.bf16.mxu0 0
        %2534 = vmatpush2.bf16.msra.mxu0 0
        %2535 = vmatprep.mubr.bf16.mxu0 0
        %2536 = vmatmul.mubr.bf16.gmra.mxu0 %v1609
        %v2537 = vpop.f32.mrf.mxu0
        %v2538 = vadd.f32 %v2497, %v2537
        %v2539 = vpop.f32.mrf.mxu0
        %v2540 = vadd.f32 %v2499, %v2539
        %v2541 = vpop.f32.mrf.mxu0
        %v2542 = vpop.f32.mrf.mxu0
        %2543 = vdwg.mxu0
        %v2544 = vld [vmem:[%s1149] sm:$0x3]
        %v2546 = vlaneseq
        %v2547 = vshrl.u32 %v2546, 7
        %v2548 = vsub.s32 0, %v2547
        %v2549 = vrot.slane %v2544, %v2548
        %v2550 = vlaneseq
        %v2551 = vshrl.u32 %v2550, 7
        %v2552 = vsub.s32 1, %v2551
        %v2553 = vrot.slane %v2544, %v2552
        %v2556 = vadd.f32 %v2538, %v2549
        %v2557 = vadd.f32 %v2540, %v2553
        %v2560 = vcombine.low %v2556, %v2557
        %v2562 = vunpack.c.l.s4 1983009808
        %v2563 = vunpack.c.0.s8 %v2562
        %v2564 = vlaneseq
        %v2565 = vshrl.u32 %v2564, 7
        %v2566 = vsub.s32 %v2563, %v2565
        %v2567 = vrot.slane %v2560, %v2566
        %s2569 = smul.u32 %s24, 2
        %s2570 = smul.addr %s2569, 2
        %s2571 = scalar_lea.vmem [#allocation2], %s2570
        %2572 = vst [vmem:[%s2571] sm:$0xf] %v2567
        %p2573 = scmp.eq.s32.totalorder %s24, 3
        // Predicated region
        $region129: #{policy_forward.9} parent=119 // pred_check
          %p2574 = pneg %p2573
        $region130: #{policy_forward.9} parent=119 // pred_check_branch
          %2576 = sbr.rel (%p2574) target = $region132
        $region131: #{policy_forward.9} parent=119 // pred_region
          %v2577 = vld [vmem:[#allocation2] sm:$0xf]
          %v2578 = vxor.u32 %v2577, 2147483648
          %v2579 = vmul.f32 %v2578, 1.442695
          %v2580 = vpow.pop %v2579
          %v2581 = vadd.f32 %v2580, 1.0
          %v2582 = vrcp.pop %v2581
          %v2583 = vmul.f32 1.0, %v2582
          %s2584 = scalar_lea.vmem [#allocation2], 4
          %v2585 = vld [vmem:[%s2584] sm:$0xf]
          %v2586 = vxor.u32 %v2585, 2147483648
          %v2587 = vmul.f32 %v2586, 1.442695
          %v2588 = vpow.pop %v2587
          %v2589 = vadd.f32 %v2588, 1.0
          %v2590 = vrcp.pop %v2589
          %v2591 = vmul.f32 1.0, %v2590
          %s2592 = scalar_lea.vmem [#allocation2], 8
          %v2593 = vld [vmem:[%s2592] sm:$0xf]
          %v2594 = vtanh.pop %v2593
          %s2595 = scalar_lea.vmem [#allocation2], 12
          %v2596 = vld [vmem:[%s2595] sm:$0xf]
          %v2597 = vxor.u32 %v2596, 2147483648
          %v2598 = vmul.f32 %v2597, 1.442695
          %v2599 = vpow.pop %v2598
          %v2600 = vadd.f32 %v2599, 1.0
          %v2601 = vrcp.pop %v2600
          %v2602 = vmul.f32 1.0, %v2601
          %v2603 = vld [vmem:[%s2] sm:$0xf]
          %v2604 = vmul.f32 %v2591, %v2603
          %v2605 = vmul.f32 %v2583, %v2594
          %v2606 = vadd.f32 %v2604, %v2605
          %v2607 = vtanh.pop %v2606
          %v2608 = vmul.f32 %v2602, %v2607
          %2609 = vst [vmem:[#allocation7] sm:$0xf] %v2606
          %2610 = vst [vmem:[#allocation5] sm:$0xf] %v2608
          %v2611 = vld [vmem:[%s6] sm:$0xff]
          %v2612 = vld [vmem:[%s6 + $0x8] sm:$0xff]
          %v2613 = vld [vmem:[%s6 + $0x10] sm:$0xff]
          %v2614 = vld [vmem:[%s6 + $0x18] sm:$0xff]
          %v2615 = vld [vmem:[%s6 + $0x20] sm:$0xff]
          %v2616 = vld [vmem:[%s6 + $0x28] sm:$0xff]
          %v2617 = vld [vmem:[%s6 + $0x30] sm:$0xff]
          %v2618 = vld [vmem:[%s6 + $0x38] sm:$0xff]
          %v2619 = vld [vmem:[%s6 + $0x40] sm:$0xff]
          %v2620 = vld [vmem:[%s6 + $0x48] sm:$0xff]
          %v2621 = vld [vmem:[%s6 + $0x50] sm:$0xff]
          %v2622 = vld [vmem:[%s6 + $0x58] sm:$0xff]
          %v2623 = vld [vmem:[%s6 + $0x60] sm:$0xff]
          %v2624 = vld [vmem:[%s6 + $0x68] sm:$0xff]
          %v2625 = vld [vmem:[%s6 + $0x70] sm:$0xff]
          %v2626 = vld [vmem:[%s6 + $0x78] sm:$0xff]
          %v2627 = vld [vmem:[%s6 + $0x80] sm:$0xff]
          %v2628 = vld [vmem:[%s6 + $0x88] sm:$0xff]
          %v2629 = vld [vmem:[%s6 + $0x90] sm:$0xff]
          %v2630 = vld [vmem:[%s6 + $0x98] sm:$0xff]
          %v2631 = vld [vmem:[%s6 + $0xa0] sm:$0xff]
          %v2632 = vld [vmem:[%s6 + $0xa8] sm:$0xff]
          %v2633 = vld [vmem:[%s6 + $0xb0] sm:$0xff]
          %v2634 = vld [vmem:[%s6 + $0xb8] sm:$0xff]
          %v2635 = vld [vmem:[%s6 + $0xc0] sm:$0xff]
          %v2636 = vld [vmem:[%s6 + $0xc8] sm:$0xff]
          %v2637 = vld [vmem:[%s6 + $0xd0] sm:$0xff]
          %v2638 = vld [vmem:[%s6 + $0xd8] sm:$0xff]
          %v2639 = vld [vmem:[%s6 + $0xe0] sm:$0xff]
          %v2640 = vld [vmem:[%s6 + $0xe8] sm:$0xff]
          %v2641 = vld [vmem:[%s6 + $0xf0] sm:$0xff]
          %v2642 = vld [vmem:[%s6 + $0xf8] sm:$0xff]
          %v2643 = vld [vmem:[%s7] sm:$0x1]
          %v2645 = vlaneseq
          %v2646 = vshrl.u32 %v2645, 7
          %v2647 = vsub.s32 0, %v2646
          %v2648 = vrot.slane %v2643, %v2647
          %v2652 = vunpack.c.l.s4 1983009808
          %v2653 = vunpack.c.0.s8 %v2652
          %v2654 = vlaneseq
          %v2655 = vshrl.u32 %v2654, 7
          %v2656 = vsub.s32 %v2653, %v2655
          %v2657 = vrot.slane %v2608, %v2656
          %v2658 = vcombine.high %v2657, %v2657
          %2661 = vmatprep.subr.mxu0 0.0
          %2662 = vmatpush1.msra.mxu0 %v2626
          %2663 = vmatprep.subr.mxu0 0.0
          %2664 = vmatpush1.msra.mxu0 %v2625
          %2665 = vmatprep.subr.mxu0 0.0
          %2666 = vmatpush1.msra.mxu0 %v2624
          %2667 = vmatprep.subr.mxu0 0.0
          %2668 = vmatpush1.msra.mxu0 %v2623
          %2669 = vmatprep.subr.mxu0 0.0
          %2670 = vmatpush1.msra.mxu0 %v2622
          %2671 = vmatprep.subr.mxu0 0.0
          %2672 = vmatpush1.msra.mxu0 %v2621
          %2673 = vmatprep.subr.mxu0 0.0
          %2674 = vmatpush1.msra.mxu0 %v2620
          %2675 = vmatprep.subr.mxu0 0.0
          %2676 = vmatpush1.msra.mxu0 %v2619
          %2677 = vmatprep.subr.mxu0 0.0
          %2678 = vmatpush1.msra.mxu0 %v2618
          %2679 = vmatprep.subr.mxu0 0.0
          %2680 = vmatpush1.msra.mxu0 %v2617
          %2681 = vmatprep.subr.mxu0 0.0
          %2682 = vmatpush1.msra.mxu0 %v2616
          %2683 = vmatprep.subr.mxu0 0.0
          %2684 = vmatpush1.msra.mxu0 %v2615
          %2685 = vmatprep.subr.mxu0 0.0
          %2686 = vmatpush1.msra.mxu0 %v2614
          %2687 = vmatprep.subr.mxu0 0.0
          %2688 = vmatpush1.msra.mxu0 %v2613
          %2689 = vmatprep.subr.mxu0 0.0
          %2690 = vmatpush1.msra.mxu0 %v2612
          %2691 = vmatprep.subr.mxu0 0.0
          %2692 = vmatpush1.msra.mxu0 %v2611
          %2693 = vmatprep.subr.mxu0 0.0
          %2694 = vmatpush2.msra.mxu0 %v2642
          %2695 = vmatprep.subr.mxu0 0.0
          %2696 = vmatpush2.msra.mxu0 %v2641
          %2697 = vmatprep.subr.mxu0 0.0
          %2698 = vmatpush2.msra.mxu0 %v2640
          %2699 = vmatprep.subr.mxu0 0.0
          %2700 = vmatpush2.msra.mxu0 %v2639
          %2701 = vmatprep.subr.mxu0 0.0
          %2702 = vmatpush2.msra.mxu0 %v2638
          %2703 = vmatprep.subr.mxu0 0.0
          %2704 = vmatpush2.msra.mxu0 %v2637
          %2705 = vmatprep.subr.mxu0 0.0
          %2706 = vmatpush2.msra.mxu0 %v2636
          %2707 = vmatprep.subr.mxu0 0.0
          %2708 = vmatpush2.msra.mxu0 %v2635
          %2709 = vmatprep.subr.mxu0 0.0
          %2710 = vmatpush2.msra.mxu0 %v2634
          %2711 = vmatprep.subr.mxu0 0.0
          %2712 = vmatpush2.msra.mxu0 %v2633
          %2713 = vmatprep.subr.mxu0 0.0
          %2714 = vmatpush2.msra.mxu0 %v2632
          %2715 = vmatprep.subr.mxu0 0.0
          %2716 = vmatpush2.msra.mxu0 %v2631
          %2717 = vmatprep.subr.mxu0 0.0
          %2718 = vmatpush2.msra.mxu0 %v2630
          %2719 = vmatprep.subr.mxu0 0.0
          %2720 = vmatpush2.msra.mxu0 %v2629
          %2721 = vmatprep.subr.mxu0 0.0
          %2722 = vmatpush2.msra.mxu0 %v2628
          %2723 = vmatprep.subr.mxu0 0.0
          %2724 = vmatpush2.msra.mxu0 %v2627
          %2725 = vmatprep.mubr.f32.mxu0 %v2658
          %2726 = vmatmul.mubr.f32.gmra.mxu0 %v2657
          %v2727 = vpop.f32.mrf.mxu0
          %v2728 = vadd.f32 %v2648, %v2727
          %v2729 = vpop.f32.mrf.mxu0
          %2730 = vdwg.mxu0
          %vm2731 = vcmask 50176
          %2732 = vst.msk [vmem:[%s10] sm:$0x3] %vm2731, %v2728
        $region132: #{policy_forward.9} parent=119 // pred_fallthru
          _
        // Predicated region
        $region133: #{policy_forward.9} parent=119 // pred_check
          %p2733 = pneg %p220
        $region134: #{policy_forward.9} parent=119 // pred_check_branch
          %2735 = sbr.rel (%p2733) target = $region136
        $region135: #{policy_forward.9} parent=119 // pred_region
          %s2737 = ssub.s32 64, 64
          %2738 = vsyncadd [#allocation6], %s2737
          %s2740 = sshll.u32 [#allocation5], 4
          %s2741 = int_to_ptr.vmem [resolvable:$true] %s2740
          %2743 = dma.vmem_to_hbm [thread:$0]  %s2741, 64, %s8, [#allocation6]
        $region136: #{policy_forward.9} parent=119 // pred_fallthru
          _
        // Predicated region
        $region137: #{policy_forward.9} parent=119 // pred_check
          %p2744 = pneg %p241
        $region138: #{policy_forward.9} parent=119 // pred_check_branch
          %2746 = sbr.rel (%p2744) target = $region140
        $region139: #{policy_forward.9} parent=119 // pred_region
          %s2748 = ssub.s32 64, 64
          %2749 = vsyncadd [#allocation8], %s2748
          %s2751 = sshll.u32 [#allocation7], 4
          %s2752 = int_to_ptr.vmem [resolvable:$true] %s2751
          %2754 = dma.vmem_to_hbm [thread:$0]  %s2752, 64, %s9, [#allocation8]
        $region140: #{policy_forward.9} parent=119 // pred_fallthru
          _
        // Predicated region
        $region141: #{policy_forward.9} parent=119 // pred_check
          %p2755 = pneg %p262
        $region142: #{policy_forward.9} parent=119 // pred_check_branch
          %2757 = sbr.rel (%p2755) target = $region144
        $region143: #{policy_forward.9} parent=119 // pred_region
          _
        $region144: #{policy_forward.9} parent=119 // pred_fallthru
          _
        // Predicated region
        $region145: #{policy_forward.9} parent=119 // pred_check
          %p2758 = pneg %p220
        $region146: #{policy_forward.9} parent=119 // pred_check_branch
          %2760 = sbr.rel (%p2758) target = $region148
        $region147: #{policy_forward.9} parent=119 // pred_region
          %2761 = dma.done [#allocation6], 64
        $region148: #{policy_forward.9} parent=119 // pred_fallthru
          _
        // Predicated region
        $region149: #{policy_forward.9} parent=119 // pred_check
          %p2762 = pneg %p241
        $region150: #{policy_forward.9} parent=119 // pred_check_branch
          %2764 = sbr.rel (%p2762) target = $region152
        $region151: #{policy_forward.9} parent=119 // pred_region
          %2765 = dma.done [#allocation8], 64
        $region152: #{policy_forward.9} parent=119 // pred_fallthru
          _
        // Predicated region
        $region153: #{policy_forward.9} parent=119 // pred_check
          %p2766 = pneg %p262
        $region154: #{policy_forward.9} parent=119 // pred_check_branch
          %2768 = sbr.rel (%p2766) target = $region156
        $region155: #{policy_forward.9} parent=119 // pred_region
          _
        $region156: #{policy_forward.9} parent=119 // pred_fallthru
          _
      $region120: #{policy_forward.9} parent=5 // pred_fallthru
        _
      %p2769 = scmp.le.s32.totalorder 2, %s19
      // Predicated region
      $region157: #{policy_forward.9} parent=5 // pred_check
        %p2770 = pneg %p2769
      $region158: #{policy_forward.9} parent=5 // pred_check_branch
        %2772 = sbr.rel (%p2770) target = $region160
      $region159: #{policy_forward.9} parent=5 // pred_region
        %s2773 = ssub.s32 %s19, 2
      $region160: #{policy_forward.9} parent=5 // pred_fallthru
        _
    $region6: #{policy_forward.9} parent=1 // loop_footer
      %s23 = sadd.s32 1, %s19
    $region7: #{policy_forward.9} parent=1 // loop_footer_branch
      %18 = sbr.rel target = $region3
    $region8: #{policy_forward.9} parent=1 // loop_exit
      _
    %2774 = vsyncpa [#allocation6], 1
    %s2775 = scalar_lea.sflag [#allocation6], 1
    %2776 = vsyncpa %s2775, 1
    %2777 = vsyncpa [#allocation8], 1

</llo_original>
